<compile_context>
chip_gen: v7x
topology: tpu7x:2x2x1
jax: 0.10.0
libtpu: 0.0.40
codegen_flags: <defaults>
</compile_context>

<pallas_src>
import jax
import jax.numpy as jnp
from jax import lax
from jax.experimental import pallas as pl
from jax.experimental.pallas import tpu as pltpu


def _round_up(x: int, m: int) -> int:
    return (x + m - 1) // m * m


def _sigmoid(x):
    # exp -> EUP, approximate reciprocal -> EUP; keeps the epilogue off the
    # VPU f32-divide path.  (Pre-activations here are O(1), no overflow risk.)
    return pl.reciprocal(1.0 + jnp.exp(-x), approx=True)


def _silu(x):
    return x * _sigmoid(x)


# ---------------------------------------------------------------------------
# Fused kernel: GatedMLP(bond) -> scatter-sum by dst -> atom + summed
# ---------------------------------------------------------------------------
def _gated_atom_update_kernel(
    dst_ref,          # (1, TE)      int32  dst atom per bond in this tile (-1 = pad)
    bond_ref,         # (TE, Fb)     bf16   bond-feature tile
    atom_ref,         # (Np, Fa_t)   f32    atom-feature block (resident)
    w1g1_ref,         # (Fb, 2*Fh)   bf16   fused [w1 | g1]
    b1c1_ref,         # (1, 2*Fh)    f32    fused [b1 | c1]
    w2_ref, b2_ref,   # trunk layer 2: (Fh, Fa_t) bf16, (1, Fa_t) f32
    g2_ref, c2_ref,   # gate  layer 2: (Fh, Fa_t) bf16, (1, Fa_t) f32
    out_ref,          # (Np, Fa_t)   f32    resident accumulator / output block
):
    k = pl.program_id(1)  # edge-tile (reduction) axis

    # Initialize the resident output block with the atom features (residual).
    @pl.when(k == 0)
    def _init():
        out_ref[...] = atom_ref[...]

    x = bond_ref[...]  # bf16

    # Fused layer 1: one 2*Fh-wide matmul fills the 256-wide MXU on v6e/v7x.
    fh = b1c1_ref.shape[1] // 2
    pre = jnp.dot(x, w1g1_ref[...], preferred_element_type=jnp.float32)
    pre = pre + b1c1_ref[...]
    h = _silu(pre[:, :fh])     # trunk hidden
    gh = _silu(pre[:, fh:])    # gate hidden

    y = _silu(jnp.dot(h.astype(jnp.bfloat16), w2_ref[...],
                      preferred_element_type=jnp.float32) + b2_ref[...])
    gate = _sigmoid(jnp.dot(gh.astype(jnp.bfloat16), g2_ref[...],
                            preferred_element_type=jnp.float32) + c2_ref[...])
    msgs = (y * gate).astype(jnp.bfloat16)                        # (TE, Fa_t)

    # Scatter-add by dst expressed as a one-hot matmul on the MXU.  The one-hot
    # is built in VMEM from the O(E) index stream (exact in bf16: values 0/1);
    # padded bonds carry dst = -1 and never match any row.
    n_pad, te = out_ref.shape[0], msgs.shape[0]
    row_ids = lax.broadcasted_iota(jnp.int32, (n_pad, te), 0)
    one_hot = (dst_ref[...] == row_ids).astype(jnp.bfloat16)      # (Np, TE)
    out_ref[...] += jnp.dot(one_hot, msgs, preferred_element_type=jnp.float32)


# ---------------------------------------------------------------------------
# VMEM budgeting / tile sizing
# ---------------------------------------------------------------------------
def _vmem_limit_bytes() -> int:
    """~75% of physical VMEM: ~96 MiB on v5e/v6e (128 MiB), ~48 MiB on v7x (64 MiB)."""
    phys = 64 * 1024 * 1024  # conservative fallback (safe on every generation)
    try:
        phys = int(getattr(pltpu.get_tpu_info(), "vmem_capacity_bytes", phys))
    except Exception:
        pass
    return phys * 3 // 4


def _auto_tile_e(n_bonds, fb_p, fh_p, fa_t, n_p, vmem_budget) -> int:
    """Largest edge tile (multiple of 512, in [512, 2048]) fitting the VMEM budget."""
    per_edge = (2 * (fb_p * 2 + 4)        # bond (bf16) + dst (int32), double-buffered
                + 4 * 2 * fh_p            # fused layer-1 pre-activations (f32)
                + 4 * 3 * fa_t            # y, gate, y*gate (f32)
                + 2 * fa_t                # msgs (bf16)
                + n_p * (4 + 2))          # iota + one-hot column
    resident = 2 * (n_p * fa_t * 4 * 2            # atom block + output accumulator
                    + fb_p * 2 * fh_p * 2         # fused [w1|g1] (bf16)
                    + 2 * fh_p * 4                # fused [b1|c1] (f32)
                    + 2 * fh_p * fa_t * 2         # w2, g2 (bf16)
                    + 2 * fa_t * 4)               # b2, c2 (f32)
    avail = max(vmem_budget - resident - (4 << 20), per_edge * 512)
    te = int(max(512, min((avail // per_edge) // 512 * 512, 2048)))
    return min(te, _round_up(n_bonds, 512))   # small graphs: one tile covers all of E


# ---------------------------------------------------------------------------
# Wrapper: padding to lane-dense shapes + pallas_call plumbing
# ---------------------------------------------------------------------------
def gated_atom_update(atom_features, bond_features, dst, params, *, tile_e=None):
    """atom' = atom + scatter_sum(GatedMLP(bond), dst) as one fused Pallas kernel.

    tile_e: edge-tile size (multiple of 128).  Default None auto-sizes it from
    the per-generation VMEM budget (clamped to [512, 2048]); treat as sweepable.
    """
    n_atoms, f_atom = atom_features.shape
    n_bonds, f_bond = bond_features.shape
    f_hidden = params["w1"].shape[1]
    assert params["w2"].shape[1] == f_atom, "GatedMLP output dim must equal F_ATOM"

    fa_p = _round_up(f_atom, 128)
    fb_p = _round_up(f_bond, 128)
    fh_p = _round_up(f_hidden, 128)
    n_p = _round_up(n_atoms, 8)

    # Leading *parallel* grid axis over output-feature blocks (v7x megacore).
    n_fa = 2 if fa_p % 256 == 0 else 1
    fa_t = fa_p // n_fa

    vmem_budget = _vmem_limit_bytes()
    if tile_e is None:
        tile_e = _auto_tile_e(n_bonds, fb_p, fh_p, fa_t, n_p, vmem_budget)
    e_p = _round_up(n_bonds, tile_e)

    def pad2(a, rows, cols, dtype):
        out = jnp.zeros((rows, cols), dtype)
        return out.at[: a.shape[0], : a.shape[1]].set(a.astype(dtype))

    atom_p = pad2(atom_features, n_p, fa_p, jnp.float32)
    bond_p = pad2(bond_features, e_p, fb_p, jnp.bfloat16)   # bf16 halves HBM traffic
    dst_p = jnp.full((1, e_p), -1, jnp.int32).at[0, :n_bonds].set(
        dst.astype(jnp.int32))

    # Fused first layer: [w1 | g1] and [b1 | c1].
    w1g1 = jnp.concatenate(
        [pad2(params["w1"], fb_p, fh_p, jnp.bfloat16),
         pad2(params["g1"], fb_p, fh_p, jnp.bfloat16)], axis=1)
    b1c1 = jnp.concatenate(
        [pad2(params["b1"], 1, fh_p, jnp.float32),
         pad2(params["c1"], 1, fh_p, jnp.float32)], axis=1)
    w2 = pad2(params["w2"], fh_p, fa_p, jnp.bfloat16)
    g2 = pad2(params["g2"], fh_p, fa_p, jnp.bfloat16)
    b2 = pad2(params["b2"], 1, fa_p, jnp.float32)
    c2 = pad2(params["c2"], 1, fa_p, jnp.float32)

    grid = (n_fa, e_p // tile_e)

    flops = (n_fa * 2 * e_p * fb_p * 2 * fh_p        # fused layer-1 (dup per Fa block)
             + 2 * e_p * fh_p * fa_p * 2             # two second-layer matmuls
             + 2 * n_p * e_p * fa_p)                 # one-hot scatter matmul
    transcendentals = 2 * e_p * (n_fa * 2 * fh_p + 2 * fa_p)
    bytes_accessed = (n_fa * (e_p * fb_p * 2 + e_p * 4)          # bond + dst tiles
                      + 2 * n_p * fa_p * 4                       # atoms in + out
                      + (fb_p * 2 * fh_p + 2 * fh_p * fa_p) * 2  # weights
                      + (2 * fh_p + 2 * fa_p) * 4)               # biases

    def build_call(single_buffer_resident: bool):
        def resident(shape, index_map):
            # Constant / per-Fa-block operands: a single VMEM buffer is enough,
            # leaving more VMEM for large edge tiles (most valuable on v7x).
            if single_buffer_resident:
                return pl.BlockSpec(shape, index_map, pipeline_mode=pl.Buffered(1))
            return pl.BlockSpec(shape, index_map)

        const = lambda j, k: (0, 0)      # same block at every grid point
        by_fa = lambda j, k: (0, j)      # blocked along the parallel Fa axis

        return pl.pallas_call(
            _gated_atom_update_kernel,
            grid=grid,
            in_specs=[
                pl.BlockSpec((1, tile_e), lambda j, k: (0, k)),      # dst tile
                pl.BlockSpec((tile_e, fb_p), lambda j, k: (k, 0)),   # bond tile
                resident((n_p, fa_t), by_fa),                        # atom block
                resident((fb_p, 2 * fh_p), const),                   # [w1|g1]
                resident((1, 2 * fh_p), const),                      # [b1|c1]
                resident((fh_p, fa_t), by_fa),                       # w2
                resident((1, fa_t), by_fa),                          # b2
                resident((fh_p, fa_t), by_fa),                       # g2
                resident((1, fa_t), by_fa),                          # c2
            ],
            out_specs=resident((n_p, fa_t), by_fa),                  # accumulator
            out_shape=jax.ShapeDtypeStruct((n_p, fa_p), jnp.float32),
            input_output_aliases={2: 0},   # reuse the padded atom HBM buffer
            compiler_params=pltpu.CompilerParams(
                dimension_semantics=("parallel", "arbitrary"),
                vmem_limit_bytes=vmem_budget,
            ),
            cost_estimate=pl.CostEstimate(
                flops=flops,
                transcendentals=transcendentals,
                bytes_accessed=bytes_accessed,
            ),
        )

    args = (dst_p, bond_p, atom_p, w1g1, b1c1, w2, b2, g2, c2)
    try:
        out = jax.block_until_ready(build_call(True)(*args))
    except Exception:
        # This jax build rejects pipeline_mode=pl.Buffered(1): fall back to the
        # default double-buffered BlockSpecs (identical semantics).
        out = jax.block_until_ready(build_call(False)(*args))

    return out[:n_atoms, :f_atom]


# ---------------------------------------------------------------------------
# Parameters + pure-JAX reference
# ---------------------------------------------------------------------------
def init_gated_mlp_params(neurons, key, scale=0.1):
    f_in, f_hidden, f_out = neurons
    ks = jax.random.split(key, 8)
    return {
        "w1": scale * jax.random.normal(ks[0], (f_in, f_hidden), jnp.float32),
        "b1": scale * jax.random.normal(ks[1], (1, f_hidden), jnp.float32),
        "w2": scale * jax.random.normal(ks[2], (f_hidden, f_out), jnp.float32),
        "b2": scale * jax.random.normal(ks[3], (1, f_out), jnp.float32),
        "g1": scale * jax.random.normal(ks[4], (f_in, f_hidden), jnp.float32),
        "c1": scale * jax.random.normal(ks[5], (1, f_hidden), jnp.float32),
        "g2": scale * jax.random.normal(ks[6], (f_hidden, f_out), jnp.float32),
        "c2": scale * jax.random.normal(ks[7], (1, f_out), jnp.float32),
    }


def gated_atom_update_ref(atom_features, bond_features, dst, p):
    h = jax.nn.silu(bond_features @ p["w1"] + p["b1"])
    y = jax.nn.silu(h @ p["w2"] + p["b2"])
    gh = jax.nn.silu(bond_features @ p["g1"] + p["c1"])
    gate = jax.nn.sigmoid(gh @ p["g2"] + p["c2"])
    msgs = y * gate
    summed = jnp.zeros((atom_features.shape[0], msgs.shape[1]),
                       jnp.float32).at[dst].add(msgs)
    return atom_features + summed


# ---------------------------------------------------------------------------
# Deterministic setup + run
# ---------------------------------------------------------------------------
if __name__ == "__main__":
    N_ATOMS, N_BONDS = 40, 300
    F_BOND, F_HIDDEN, F_ATOM = 48, 64, 32
    neurons = [F_BOND, F_HIDDEN, F_ATOM]

    key = jax.random.PRNGKey(0)
    k_atom, k_bond, k_idx, k_params = jax.random.split(key, 4)

    atom_features = jax.random.normal(k_atom, (N_ATOMS, F_ATOM), jnp.float32)
    bond_features = jax.random.normal(k_bond, (N_BONDS, F_BOND), jnp.float32)
    # graph.bond_atom_indices: (E, 2) int32, column 1 = destination atom of each bond.
    bond_atom_indices = jax.random.randint(k_idx, (N_BONDS, 2), 0, N_ATOMS,
                                           dtype=jnp.int32)
    dst = bond_atom_indices[:, 1]

    params = init_gated_mlp_params(neurons, k_params)

    out = gated_atom_update(atom_features, bond_features, dst, params)
    out = jax.block_until_ready(out)
    assert out.shape == (N_ATOMS, F_ATOM)

    ref = gated_atom_update_ref(atom_features, bond_features, dst, params)
    max_err = float(jnp.max(jnp.abs(out - ref)))
    # bf16 messages + approximate-EUP sigmoid denominator -> loose-ish tolerance.
    assert jnp.allclose(out, ref, atol=0.1, rtol=0.1), f"max abs err {max_err}"

    print("KERNEL_OK")
</pallas_src>

<mosaic_0001>
module attributes {stable_mosaic.version = 11 : i64} {
  func.func @_gated_atom_update_kernel(%arg0: i32, %arg1: i32, %arg2: memref<1x512xi32, #tpu.memory_space<vmem>>, %arg3: memref<512x128xbf16, #tpu.memory_space<vmem>>, %arg4: memref<40x128xf32, #tpu.memory_space<vmem>>, %arg5: memref<128x256xbf16, #tpu.memory_space<vmem>>, %arg6: memref<1x256xf32, #tpu.memory_space<vmem>>, %arg7: memref<128x128xbf16, #tpu.memory_space<vmem>>, %arg8: memref<1x128xf32, #tpu.memory_space<vmem>>, %arg9: memref<128x128xbf16, #tpu.memory_space<vmem>>, %arg10: memref<1x128xf32, #tpu.memory_space<vmem>>, %arg11: memref<40x128xf32, #tpu.memory_space<vmem>>) attributes {dimension_semantics = [#tpu.dimension_semantics<parallel>, #tpu.dimension_semantics<arbitrary>], iteration_bounds = array<i64: 1, 1>, scalar_prefetch = 0 : i64, scratch_operands = 0 : i64, tpu.core_type = #tpu.core_type<tc>, window_params = [{transform_indices = @transform_0, window_bounds = array<i64: 1, 512>}, {transform_indices = @transform_1, window_bounds = array<i64: 512, 128>}, {pipeline_mode = #tpu.pipeline_mode<synchronous>, transform_indices = @transform_2, window_bounds = array<i64: 40, 128>}, {pipeline_mode = #tpu.pipeline_mode<synchronous>, transform_indices = @transform_3, window_bounds = array<i64: 128, 256>}, {pipeline_mode = #tpu.pipeline_mode<synchronous>, transform_indices = @transform_4, window_bounds = array<i64: 1, 256>}, {pipeline_mode = #tpu.pipeline_mode<synchronous>, transform_indices = @transform_5, window_bounds = array<i64: 128, 128>}, {pipeline_mode = #tpu.pipeline_mode<synchronous>, transform_indices = @transform_6, window_bounds = array<i64: 1, 128>}, {pipeline_mode = #tpu.pipeline_mode<synchronous>, transform_indices = @transform_7, window_bounds = array<i64: 128, 128>}, {pipeline_mode = #tpu.pipeline_mode<synchronous>, transform_indices = @transform_8, window_bounds = array<i64: 1, 128>}, {pipeline_mode = #tpu.pipeline_mode<synchronous>, transform_indices = @transform_9, window_bounds = array<i64: 40, 128>}]} {
    %c0_i32 = arith.constant 0 : i32
    %0 = arith.cmpi eq, %arg1, %c0_i32 : i32
    %1 = arith.extui %0 : i1 to i32
    %c0_i32_0 = arith.constant 0 : i32
    %2 = arith.cmpi ne, %1, %c0_i32_0 : i32
    scf.if %2 {
      %c0_31 = arith.constant 0 : index
      %c0_32 = arith.constant 0 : index
      %63 = vector.load %arg4[%c0_31, %c0_32] : memref<40x128xf32, #tpu.memory_space<vmem>>, vector<40x128xf32>
      %c0_33 = arith.constant 0 : index
      %c0_34 = arith.constant 0 : index
      %64 = vector.load %arg11[%c0_33, %c0_34] : memref<40x128xf32, #tpu.memory_space<vmem>>, vector<40x128xf32>
      tpu.vector_store %arg11[%c0_33, %c0_34], %63 {strides = array<i32>} : memref<40x128xf32, #tpu.memory_space<vmem>>, vector<40x128xf32>,
    } else {
    }
    %c0 = arith.constant 0 : index
    %c0_1 = arith.constant 0 : index
    %3 = vector.load %arg3[%c0, %c0_1] : memref<512x128xbf16, #tpu.memory_space<vmem>>, vector<512x128xbf16>
    %c0_2 = arith.constant 0 : index
    %c0_3 = arith.constant 0 : index
    %4 = vector.load %arg5[%c0_2, %c0_3] : memref<128x256xbf16, #tpu.memory_space<vmem>>, vector<128x256xbf16>
    %cst = arith.constant dense<0.000000e+00> : vector<512x256xf32>
    %5 = tpu.matmul %3, %4, %cst {dimension_numbers = #tpu.dot_dimension_numbers<[1], [0], [0], [1], [0, 0, 1, 1], [], []>} : vector<512x128xbf16>, vector<128x256xbf16>, vector<512x256xf32> -> vector<512x256xf32>
    %c0_4 = arith.constant 0 : index
    %c0_5 = arith.constant 0 : index
    %6 = vector.load %arg6[%c0_4, %c0_5] : memref<1x256xf32, #tpu.memory_space<vmem>>, vector<1x256xf32>
    %7 = vector.broadcast %6 : vector<1x256xf32> to vector<512x256xf32>
    %8 = arith.addf %5, %7 : vector<512x256xf32>
    %9 = vector.extract_strided_slice %8 {offsets = [0, 0], sizes = [512, 128], strides = [1, 1]} : vector<512x256xf32> to vector<512x128xf32>
    %cst_6 = arith.constant 0.000000e+00 : f32
    %10 = vector.broadcast %cst_6 : f32 to vector<512x128xf32>
    %11 = arith.subf %10, %9 : vector<512x128xf32>
    %12 = math.exp %11 : vector<512x128xf32>
    %cst_7 = arith.constant 1.000000e+00 : f32
    %13 = vector.broadcast %cst_7 : f32 to vector<512x128xf32>
    %14 = arith.addf %13, %12 : vector<512x128xf32>
    %15 = tpu.reciprocal %14 {approx = true} : vector<512x128xf32> -> vector<512x128xf32>
    %16 = arith.mulf %9, %15 : vector<512x128xf32>
    %17 = vector.extract_strided_slice %8 {offsets = [0, 128], sizes = [512, 128], strides = [1, 1]} : vector<512x256xf32> to vector<512x128xf32>
    %cst_8 = arith.constant 0.000000e+00 : f32
    %18 = vector.broadcast %cst_8 : f32 to vector<512x128xf32>
    %19 = arith.subf %18, %17 : vector<512x128xf32>
    %20 = math.exp %19 : vector<512x128xf32>
    %cst_9 = arith.constant 1.000000e+00 : f32
    %21 = vector.broadcast %cst_9 : f32 to vector<512x128xf32>
    %22 = arith.addf %21, %20 : vector<512x128xf32>
    %23 = tpu.reciprocal %22 {approx = true} : vector<512x128xf32> -> vector<512x128xf32>
    %24 = arith.mulf %17, %23 : vector<512x128xf32>
    %25 = arith.truncf %16 : vector<512x128xf32> to vector<512x128xbf16>
    %c0_10 = arith.constant 0 : index
    %c0_11 = arith.constant 0 : index
    %26 = vector.load %arg7[%c0_10, %c0_11] : memref<128x128xbf16, #tpu.memory_space<vmem>>, vector<128x128xbf16>
    %cst_12 = arith.constant dense<0.000000e+00> : vector<512x128xf32>
    %27 = tpu.matmul %25, %26, %cst_12 {dimension_numbers = #tpu.dot_dimension_numbers<[1], [0], [0], [1], [0, 0, 1, 1], [], []>} : vector<512x128xbf16>, vector<128x128xbf16>, vector<512x128xf32> -> vector<512x128xf32>
    %c0_13 = arith.constant 0 : index
    %c0_14 = arith.constant 0 : index
    %28 = vector.load %arg8[%c0_13, %c0_14] : memref<1x128xf32, #tpu.memory_space<vmem>>, vector<1x128xf32>
    %29 = vector.broadcast %28 : vector<1x128xf32> to vector<512x128xf32>
    %30 = arith.addf %27, %29 : vector<512x128xf32>
    %cst_15 = arith.constant 0.000000e+00 : f32
    %31 = vector.broadcast %cst_15 : f32 to vector<512x128xf32>
    %32 = arith.subf %31, %30 : vector<512x128xf32>
    %33 = math.exp %32 : vector<512x128xf32>
    %cst_16 = arith.constant 1.000000e+00 : f32
    %34 = vector.broadcast %cst_16 : f32 to vector<512x128xf32>
    %35 = arith.addf %34, %33 : vector<512x128xf32>
    %36 = tpu.reciprocal %35 {approx = true} : vector<512x128xf32> -> vector<512x128xf32>
    %37 = arith.mulf %30, %36 : vector<512x128xf32>
    %38 = arith.truncf %24 : vector<512x128xf32> to vector<512x128xbf16>
    %c0_17 = arith.constant 0 : index
    %c0_18 = arith.constant 0 : index
    %39 = vector.load %arg9[%c0_17, %c0_18] : memref<128x128xbf16, #tpu.memory_space<vmem>>, vector<128x128xbf16>
    %cst_19 = arith.constant dense<0.000000e+00> : vector<512x128xf32>
    %40 = tpu.matmul %38, %39, %cst_19 {dimension_numbers = #tpu.dot_dimension_numbers<[1], [0], [0], [1], [0, 0, 1, 1], [], []>} : vector<512x128xbf16>, vector<128x128xbf16>, vector<512x128xf32> -> vector<512x128xf32>
    %c0_20 = arith.constant 0 : index
    %c0_21 = arith.constant 0 : index
    %41 = vector.load %arg10[%c0_20, %c0_21] : memref<1x128xf32, #tpu.memory_space<vmem>>, vector<1x128xf32>
    %42 = vector.broadcast %41 : vector<1x128xf32> to vector<512x128xf32>
    %43 = arith.addf %40, %42 : vector<512x128xf32>
    %cst_22 = arith.constant 0.000000e+00 : f32
    %44 = vector.broadcast %cst_22 : f32 to vector<512x128xf32>
    %45 = arith.subf %44, %43 : vector<512x128xf32>
    %46 = math.exp %45 : vector<512x128xf32>
    %cst_23 = arith.constant 1.000000e+00 : f32
    %47 = vector.broadcast %cst_23 : f32 to vector<512x128xf32>
    %48 = arith.addf %47, %46 : vector<512x128xf32>
    %49 = tpu.reciprocal %48 {approx = true} : vector<512x128xf32> -> vector<512x128xf32>
    %50 = arith.mulf %37, %49 : vector<512x128xf32>
    %51 = arith.truncf %50 : vector<512x128xf32> to vector<512x128xbf16>
    %52 = tpu.iota {dimensions = array<i32: 0>} : vector<40x512xi32>
    %c0_24 = arith.constant 0 : index
    %c0_25 = arith.constant 0 : index
    %53 = vector.load %arg2[%c0_24, %c0_25] : memref<1x512xi32, #tpu.memory_space<vmem>>, vector<1x512xi32>
    %54 = vector.broadcast %53 : vector<1x512xi32> to vector<40x512xi32>
    %55 = arith.cmpi eq, %54, %52 : vector<40x512xi32>
    %56 = arith.extui %55 : vector<40x512xi1> to vector<40x512xi32>
    %57 = arith.sitofp %56 : vector<40x512xi32> to vector<40x512xf32>
    %58 = arith.truncf %57 : vector<40x512xf32> to vector<40x512xbf16>
    %c0_26 = arith.constant 0 : index
    %c0_27 = arith.constant 0 : index
    %59 = vector.load %arg11[%c0_26, %c0_27] : memref<40x128xf32, #tpu.memory_space<vmem>>, vector<40x128xf32>
    %cst_28 = arith.constant dense<0.000000e+00> : vector<40x128xf32>
    %60 = tpu.matmul %58, %51, %cst_28 {dimension_numbers = #tpu.dot_dimension_numbers<[1], [0], [0], [1], [0, 0, 1, 1], [], []>} : vector<40x512xbf16>, vector<512x128xbf16>, vector<40x128xf32> -> vector<40x128xf32>
    %61 = arith.addf %59, %60 : vector<40x128xf32>
    %c0_29 = arith.constant 0 : index
    %c0_30 = arith.constant 0 : index
    %62 = vector.load %arg11[%c0_29, %c0_30] : memref<40x128xf32, #tpu.memory_space<vmem>>, vector<40x128xf32>
    tpu.vector_store %arg11[%c0_29, %c0_30], %61 {strides = array<i32>} : memref<40x128xf32, #tpu.memory_space<vmem>>, vector<40x128xf32>,
    return
  }
  func.func @transform_0(%arg0: i32, %arg1: i32) -> (i32, i32) {
    %c0_i32 = arith.constant 0 : i32
    %c0_i32_0 = arith.constant 0 : i32
    return %c0_i32, %arg1 : i32, i32
  }
  func.func @transform_1(%arg0: i32, %arg1: i32) -> (i32, i32) {
    %c0_i32 = arith.constant 0 : i32
    %c0_i32_0 = arith.constant 0 : i32
    return %arg1, %c0_i32 : i32, i32
  }
  func.func @transform_2(%arg0: i32, %arg1: i32) -> (i32, i32) {
    %c0_i32 = arith.constant 0 : i32
    %c0_i32_0 = arith.constant 0 : i32
    return %c0_i32, %arg0 : i32, i32
  }
  func.func @transform_3(%arg0: i32, %arg1: i32) -> (i32, i32) {
    %c0_i32 = arith.constant 0 : i32
    %c0_i32_0 = arith.constant 0 : i32
    %c0_i32_1 = arith.constant 0 : i32
    return %c0_i32, %c0_i32_0 : i32, i32
  }
  func.func @transform_4(%arg0: i32, %arg1: i32) -> (i32, i32) {
    %c0_i32 = arith.constant 0 : i32
    %c0_i32_0 = arith.constant 0 : i32
    %c0_i32_1 = arith.constant 0 : i32
    return %c0_i32, %c0_i32_0 : i32, i32
  }
  func.func @transform_5(%arg0: i32, %arg1: i32) -> (i32, i32) {
    %c0_i32 = arith.constant 0 : i32
    %c0_i32_0 = arith.constant 0 : i32
    return %c0_i32, %arg0 : i32, i32
  }
  func.func @transform_6(%arg0: i32, %arg1: i32) -> (i32, i32) {
    %c0_i32 = arith.constant 0 : i32
    %c0_i32_0 = arith.constant 0 : i32
    return %c0_i32, %arg0 : i32, i32
  }
  func.func @transform_7(%arg0: i32, %arg1: i32) -> (i32, i32) {
    %c0_i32 = arith.constant 0 : i32
    %c0_i32_0 = arith.constant 0 : i32
    return %c0_i32, %arg0 : i32, i32
  }
  func.func @transform_8(%arg0: i32, %arg1: i32) -> (i32, i32) {
    %c0_i32 = arith.constant 0 : i32
    %c0_i32_0 = arith.constant 0 : i32
    return %c0_i32, %arg0 : i32, i32
  }
  func.func @transform_9(%arg0: i32, %arg1: i32) -> (i32, i32) {
    %c0_i32 = arith.constant 0 : i32
    %c0_i32_0 = arith.constant 0 : i32
    return %c0_i32, %arg0 : i32, i32
  }
}

module attributes {stable_mosaic.version = 11 : i64} {
  func.func @_gated_atom_update_kernel(%arg0: i32, %arg1: i32, %arg2: memref<1x512xi32, #tpu.memory_space<vmem>>, %arg3: memref<512x128xbf16, #tpu.memory_space<vmem>>, %arg4: memref<40x128xf32, #tpu.memory_space<vmem>>, %arg5: memref<128x256xbf16, #tpu.memory_space<vmem>>, %arg6: memref<1x256xf32, #tpu.memory_space<vmem>>, %arg7: memref<128x128xbf16, #tpu.memory_space<vmem>>, %arg8: memref<1x128xf32, #tpu.memory_space<vmem>>, %arg9: memref<128x128xbf16, #tpu.memory_space<vmem>>, %arg10: memref<1x128xf32, #tpu.memory_space<vmem>>, %arg11: memref<40x128xf32, #tpu.memory_space<vmem>>) attributes {dimension_semantics = [#tpu.dimension_semantics<parallel>, #tpu.dimension_semantics<arbitrary>], iteration_bounds = array<i64: 1, 1>, scalar_prefetch = 0 : i64, scratch_operands = 0 : i64, tpu.core_type = #tpu.core_type<tc>, window_params = [{transform_indices = @transform_0, window_bounds = array<i64: 1, 512>}, {transform_indices = @transform_1, window_bounds = array<i64: 512, 128>}, {transform_indices = @transform_2, window_bounds = array<i64: 40, 128>}, {pipeline_mode = #tpu.pipeline_mode<synchronous>, transform_indices = @transform_3, window_bounds = array<i64: 128, 256>}, {pipeline_mode = #tpu.pipeline_mode<synchronous>, transform_indices = @transform_4, window_bounds = array<i64: 1, 256>}, {transform_indices = @transform_5, window_bounds = array<i64: 128, 128>}, {transform_indices = @transform_6, window_bounds = array<i64: 1, 128>}, {transform_indices = @transform_7, window_bounds = array<i64: 128, 128>}, {transform_indices = @transform_8, window_bounds = array<i64: 1, 128>}, {transform_indices = @transform_9, window_bounds = array<i64: 40, 128>}]} {
    %c0_i32 = arith.constant 0 : i32
    %0 = arith.cmpi eq, %arg1, %c0_i32 : i32
    %1 = arith.extui %0 : i1 to i32
    %c0_i32_0 = arith.constant 0 : i32
    %2 = arith.cmpi ne, %1, %c0_i32_0 : i32
    scf.if %2 {
      %c0_31 = arith.constant 0 : index
      %c0_32 = arith.constant 0 : index
      %63 = vector.load %arg4[%c0_31, %c0_32] : memref<40x128xf32, #tpu.memory_space<vmem>>, vector<40x128xf32>
      %c0_33 = arith.constant 0 : index
      %c0_34 = arith.constant 0 : index
      %64 = vector.load %arg11[%c0_33, %c0_34] : memref<40x128xf32, #tpu.memory_space<vmem>>, vector<40x128xf32>
      tpu.vector_store %arg11[%c0_33, %c0_34], %63 {strides = array<i32>} : memref<40x128xf32, #tpu.memory_space<vmem>>, vector<40x128xf32>,
    } else {
    }
    %c0 = arith.constant 0 : index
    %c0_1 = arith.constant 0 : index
    %3 = vector.load %arg3[%c0, %c0_1] : memref<512x128xbf16, #tpu.memory_space<vmem>>, vector<512x128xbf16>
    %c0_2 = arith.constant 0 : index
    %c0_3 = arith.constant 0 : index
    %4 = vector.load %arg5[%c0_2, %c0_3] : memref<128x256xbf16, #tpu.memory_space<vmem>>, vector<128x256xbf16>
    %cst = arith.constant dense<0.000000e+00> : vector<512x256xf32>
    %5 = tpu.matmul %3, %4, %cst {dimension_numbers = #tpu.dot_dimension_numbers<[1], [0], [0], [1], [0, 0, 1, 1], [], []>} : vector<512x128xbf16>, vector<128x256xbf16>, vector<512x256xf32> -> vector<512x256xf32>
    %c0_4 = arith.constant 0 : index
    %c0_5 = arith.constant 0 : index
    %6 = vector.load %arg6[%c0_4, %c0_5] : memref<1x256xf32, #tpu.memory_space<vmem>>, vector<1x256xf32>
    %7 = vector.broadcast %6 : vector<1x256xf32> to vector<512x256xf32>
    %8 = arith.addf %5, %7 : vector<512x256xf32>
    %9 = vector.extract_strided_slice %8 {offsets = [0, 0], sizes = [512, 128], strides = [1, 1]} : vector<512x256xf32> to vector<512x128xf32>
    %cst_6 = arith.constant 0.000000e+00 : f32
    %10 = vector.broadcast %cst_6 : f32 to vector<512x128xf32>
    %11 = arith.subf %10, %9 : vector<512x128xf32>
    %12 = math.exp %11 : vector<512x128xf32>
    %cst_7 = arith.constant 1.000000e+00 : f32
    %13 = vector.broadcast %cst_7 : f32 to vector<512x128xf32>
    %14 = arith.addf %13, %12 : vector<512x128xf32>
    %15 = tpu.reciprocal %14 {approx = true} : vector<512x128xf32> -> vector<512x128xf32>
    %16 = arith.mulf %9, %15 : vector<512x128xf32>
    %17 = vector.extract_strided_slice %8 {offsets = [0, 128], sizes = [512, 128], strides = [1, 1]} : vector<512x256xf32> to vector<512x128xf32>
    %cst_8 = arith.constant 0.000000e+00 : f32
    %18 = vector.broadcast %cst_8 : f32 to vector<512x128xf32>
    %19 = arith.subf %18, %17 : vector<512x128xf32>
    %20 = math.exp %19 : vector<512x128xf32>
    %cst_9 = arith.constant 1.000000e+00 : f32
    %21 = vector.broadcast %cst_9 : f32 to vector<512x128xf32>
    %22 = arith.addf %21, %20 : vector<512x128xf32>
    %23 = tpu.reciprocal %22 {approx = true} : vector<512x128xf32> -> vector<512x128xf32>
    %24 = arith.mulf %17, %23 : vector<512x128xf32>
    %25 = arith.truncf %16 : vector<512x128xf32> to vector<512x128xbf16>
    %c0_10 = arith.constant 0 : index
    %c0_11 = arith.constant 0 : index
    %26 = vector.load %arg7[%c0_10, %c0_11] : memref<128x128xbf16, #tpu.memory_space<vmem>>, vector<128x128xbf16>
    %cst_12 = arith.constant dense<0.000000e+00> : vector<512x128xf32>
    %27 = tpu.matmul %25, %26, %cst_12 {dimension_numbers = #tpu.dot_dimension_numbers<[1], [0], [0], [1], [0, 0, 1, 1], [], []>} : vector<512x128xbf16>, vector<128x128xbf16>, vector<512x128xf32> -> vector<512x128xf32>
    %c0_13 = arith.constant 0 : index
    %c0_14 = arith.constant 0 : index
    %28 = vector.load %arg8[%c0_13, %c0_14] : memref<1x128xf32, #tpu.memory_space<vmem>>, vector<1x128xf32>
    %29 = vector.broadcast %28 : vector<1x128xf32> to vector<512x128xf32>
    %30 = arith.addf %27, %29 : vector<512x128xf32>
    %cst_15 = arith.constant 0.000000e+00 : f32
    %31 = vector.broadcast %cst_15 : f32 to vector<512x128xf32>
    %32 = arith.subf %31, %30 : vector<512x128xf32>
    %33 = math.exp %32 : vector<512x128xf32>
    %cst_16 = arith.constant 1.000000e+00 : f32
    %34 = vector.broadcast %cst_16 : f32 to vector<512x128xf32>
    %35 = arith.addf %34, %33 : vector<512x128xf32>
    %36 = tpu.reciprocal %35 {approx = true} : vector<512x128xf32> -> vector<512x128xf32>
    %37 = arith.mulf %30, %36 : vector<512x128xf32>
    %38 = arith.truncf %24 : vector<512x128xf32> to vector<512x128xbf16>
    %c0_17 = arith.constant 0 : index
    %c0_18 = arith.constant 0 : index
    %39 = vector.load %arg9[%c0_17, %c0_18] : memref<128x128xbf16, #tpu.memory_space<vmem>>, vector<128x128xbf16>
    %cst_19 = arith.constant dense<0.000000e+00> : vector<512x128xf32>
    %40 = tpu.matmul %38, %39, %cst_19 {dimension_numbers = #tpu.dot_dimension_numbers<[1], [0], [0], [1], [0, 0, 1, 1], [], []>} : vector<512x128xbf16>, vector<128x128xbf16>, vector<512x128xf32> -> vector<512x128xf32>
    %c0_20 = arith.constant 0 : index
    %c0_21 = arith.constant 0 : index
    %41 = vector.load %arg10[%c0_20, %c0_21] : memref<1x128xf32, #tpu.memory_space<vmem>>, vector<1x128xf32>
    %42 = vector.broadcast %41 : vector<1x128xf32> to vector<512x128xf32>
    %43 = arith.addf %40, %42 : vector<512x128xf32>
    %cst_22 = arith.constant 0.000000e+00 : f32
    %44 = vector.broadcast %cst_22 : f32 to vector<512x128xf32>
    %45 = arith.subf %44, %43 : vector<512x128xf32>
    %46 = math.exp %45 : vector<512x128xf32>
    %cst_23 = arith.constant 1.000000e+00 : f32
    %47 = vector.broadcast %cst_23 : f32 to vector<512x128xf32>
    %48 = arith.addf %47, %46 : vector<512x128xf32>
    %49 = tpu.reciprocal %48 {approx = true} : vector<512x128xf32> -> vector<512x128xf32>
    %50 = arith.mulf %37, %49 : vector<512x128xf32>
    %51 = arith.truncf %50 : vector<512x128xf32> to vector<512x128xbf16>
    %52 = tpu.iota {dimensions = array<i32: 0>} : vector<40x512xi32>
    %c0_24 = arith.constant 0 : index
    %c0_25 = arith.constant 0 : index
    %53 = vector.load %arg2[%c0_24, %c0_25] : memref<1x512xi32, #tpu.memory_space<vmem>>, vector<1x512xi32>
    %54 = vector.broadcast %53 : vector<1x512xi32> to vector<40x512xi32>
    %55 = arith.cmpi eq, %54, %52 : vector<40x512xi32>
    %56 = arith.extui %55 : vector<40x512xi1> to vector<40x512xi32>
    %57 = arith.sitofp %56 : vector<40x512xi32> to vector<40x512xf32>
    %58 = arith.truncf %57 : vector<40x512xf32> to vector<40x512xbf16>
    %c0_26 = arith.constant 0 : index
    %c0_27 = arith.constant 0 : index
    %59 = vector.load %arg11[%c0_26, %c0_27] : memref<40x128xf32, #tpu.memory_space<vmem>>, vector<40x128xf32>
    %cst_28 = arith.constant dense<0.000000e+00> : vector<40x128xf32>
    %60 = tpu.matmul %58, %51, %cst_28 {dimension_numbers = #tpu.dot_dimension_numbers<[1], [0], [0], [1], [0, 0, 1, 1], [], []>} : vector<40x512xbf16>, vector<512x128xbf16>, vector<40x128xf32> -> vector<40x128xf32>
    %61 = arith.addf %59, %60 : vector<40x128xf32>
    %c0_29 = arith.constant 0 : index
    %c0_30 = arith.constant 0 : index
    %62 = vector.load %arg11[%c0_29, %c0_30] : memref<40x128xf32, #tpu.memory_space<vmem>>, vector<40x128xf32>
    tpu.vector_store %arg11[%c0_29, %c0_30], %61 {strides = array<i32>} : memref<40x128xf32, #tpu.memory_space<vmem>>, vector<40x128xf32>,
    return
  }
  func.func @transform_0(%arg0: i32, %arg1: i32) -> (i32, i32) {
    %c0_i32 = arith.constant 0 : i32
    %c0_i32_0 = arith.constant 0 : i32
    return %c0_i32, %arg1 : i32, i32
  }
  func.func @transform_1(%arg0: i32, %arg1: i32) -> (i32, i32) {
    %c0_i32 = arith.constant 0 : i32
    %c0_i32_0 = arith.constant 0 : i32
    return %arg1, %c0_i32 : i32, i32
  }
  func.func @transform_2(%arg0: i32, %arg1: i32) -> (i32, i32) {
    %c0_i32 = arith.constant 0 : i32
    %c0_i32_0 = arith.constant 0 : i32
    return %c0_i32, %arg0 : i32, i32
  }
  func.func @transform_3(%arg0: i32, %arg1: i32) -> (i32, i32) {
    %c0_i32 = arith.constant 0 : i32
    %c0_i32_0 = arith.constant 0 : i32
    %c0_i32_1 = arith.constant 0 : i32
    return %c0_i32, %c0_i32_0 : i32, i32
  }
  func.func @transform_4(%arg0: i32, %arg1: i32) -> (i32, i32) {
    %c0_i32 = arith.constant 0 : i32
    %c0_i32_0 = arith.constant 0 : i32
    %c0_i32_1 = arith.constant 0 : i32
    return %c0_i32, %c0_i32_0 : i32, i32
  }
  func.func @transform_5(%arg0: i32, %arg1: i32) -> (i32, i32) {
    %c0_i32 = arith.constant 0 : i32
    %c0_i32_0 = arith.constant 0 : i32
    return %c0_i32, %arg0 : i32, i32
  }
  func.func @transform_6(%arg0: i32, %arg1: i32) -> (i32, i32) {
    %c0_i32 = arith.constant 0 : i32
    %c0_i32_0 = arith.constant 0 : i32
    return %c0_i32, %arg0 : i32, i32
  }
  func.func @transform_7(%arg0: i32, %arg1: i32) -> (i32, i32) {
    %c0_i32 = arith.constant 0 : i32
    %c0_i32_0 = arith.constant 0 : i32
    return %c0_i32, %arg0 : i32, i32
  }
  func.func @transform_8(%arg0: i32, %arg1: i32) -> (i32, i32) {
    %c0_i32 = arith.constant 0 : i32
    %c0_i32_0 = arith.constant 0 : i32
    return %c0_i32, %arg0 : i32, i32
  }
  func.func @transform_9(%arg0: i32, %arg1: i32) -> (i32, i32) {
    %c0_i32 = arith.constant 0 : i32
    %c0_i32_0 = arith.constant 0 : i32
    return %c0_i32, %arg0 : i32, i32
  }
}

</mosaic_0001>

<llo_original>
// kernel: tpu_custom_call.1
$region0: #{tpu_custom_call.1}
  #allocation0 [shape = 'u32[]', space=smem, size = 0x4, offset = 0x4, fixed_abs, tag = 'smem constant byte address 0x4 - core index']
  #allocation1 [shape = 'u32[144,128]{1,0:T(1,128)}', space=vmem, size = 0x12000, scoped, tag = 'internal scratch']
  %s0 = inlined_call_operand.vmem [shape: s32[1,512], index: 0, kind: input, shape index: {}]
  %s1 = inlined_call_operand.hbm [shape: bf16[512,128], index: 1, kind: input, shape index: {}]
  %s2 = inlined_call_operand.hbm [shape: f32[40,128], index: 2, kind: input, shape index: {}, may-alias: {2,9}]
  %s3 = inlined_call_operand.hbm [shape: bf16[128,256], index: 3, kind: input, shape index: {}]
  %s4 = inlined_call_operand.vmem [shape: f32[1,256], index: 4, kind: input, shape index: {}]
  %s5 = inlined_call_operand.vmem [shape: bf16[128,128], index: 5, kind: input, shape index: {}]
  %s6 = inlined_call_operand.vmem [shape: f32[1,128], index: 6, kind: input, shape index: {}]
  %s7 = inlined_call_operand.hbm [shape: bf16[128,128], index: 7, kind: input, shape index: {}]
  %s8 = inlined_call_operand.vmem [shape: f32[1,128], index: 8, kind: input, shape index: {}]
  %s9 = inlined_call_operand.hbm [shape: f32[40,128], index: 9, kind: output, shape index: {}, may-alias: {2,9}]
  %s10 = sld [smem:[#allocation0]]
  $region66: #{tpu_custom_call.1} parent=0
    _
  %s12 = ssub.s32 1, %s10
  %s13 = scalar_select 0, %s12, %s10
  $region1: #{tpu_custom_call.1} parent=0
    #allocation2 [shape = 'u8[131072]{0}', space=vmem, size = 0x20000, scoped, tag = 'input window, operand 1, single buffered']
    #allocation3 [shape = 's32[1]{0}', space=sflag, size = 0x4, scoped, tag = 'scoped memory for tpu_custom_call.1']
    #allocation4 [shape = 's32[1]{0}', space=sflag, size = 0x4, scoped, tag = 'scoped memory for tpu_custom_call.1']
    #allocation5 [shape = 'u8[20480]{0}', space=vmem, size = 0x5000, scoped, tag = 'input window, operand 2, single buffered']
    #allocation6 [shape = 's32[1]{0}', space=sflag, size = 0x4, scoped, tag = 'scoped memory for tpu_custom_call.1']
    #allocation7 [shape = 'u8[65536]{0}', space=vmem, size = 0x10000, scoped, tag = 'input window, operand 3, single buffered']
    #allocation8 [shape = 'u8[32768]{0}', space=vmem, size = 0x8000, scoped, tag = 'input window, operand 7, single buffered']
    #allocation9 [shape = 's32[1]{0}', space=sflag, size = 0x4, scoped, tag = 'scoped memory for tpu_custom_call.1']
    #allocation10 [shape = 'u8[20480]{0}', space=vmem, size = 0x5000, scoped, tag = 'output window, operand 0, single buffered']
    %14 = vsyncpa [#allocation3], 0
    %15 = vsyncpa [#allocation6], 0
    %16 = vsyncpa [#allocation9], 0
    %17 = vsyncpa [#allocation4], 0
    // Predicated region
    $region2: #{tpu_custom_call.1} parent=1 // pred_check
      _
    $region3: #{tpu_custom_call.1} parent=1 // pred_check_branch
      %19 = sbr.rel (0) target = $region5
    $region4: #{tpu_custom_call.1} parent=1 // pred_region
      _
    $region5: #{tpu_custom_call.1} parent=1 // pred_fallthru
      _
    // Predicated region
    $region6: #{tpu_custom_call.1} parent=1 // pred_check
      _
    $region7: #{tpu_custom_call.1} parent=1 // pred_check_branch
      %21 = sbr.rel (0) target = $region9
    $region8: #{tpu_custom_call.1} parent=1 // pred_region
      %s23 = ssub.s32 4096, 4096
      %24 = vsyncadd [#allocation3], %s23
      %s25 = sshll.u32 [#allocation2], 4
      %s26 = int_to_ptr.vmem [resolvable:$true] %s25
      %31 = dma.hbm_to_vmem [thread:$0]  %s1, 4096, %s26, [#allocation3], 64, 64, 4
    $region9: #{tpu_custom_call.1} parent=1 // pred_fallthru
      _
    // Predicated region
    $region10: #{tpu_custom_call.1} parent=1 // pred_check
      _
    $region11: #{tpu_custom_call.1} parent=1 // pred_check_branch
      %33 = sbr.rel (0) target = $region13
    $region12: #{tpu_custom_call.1} parent=1 // pred_region
      %s35 = ssub.s32 640, 640
      %36 = vsyncadd [#allocation6], %s35
      %s37 = sshll.u32 [#allocation5], 4
      %s38 = int_to_ptr.vmem [resolvable:$true] %s37
      %43 = dma.hbm_to_vmem [thread:$0]  %s2, 640, %s38, [#allocation6], 128, 128, 8
    $region13: #{tpu_custom_call.1} parent=1 // pred_fallthru
      _
    // Predicated region
    $region14: #{tpu_custom_call.1} parent=1 // pred_check
      _
    $region15: #{tpu_custom_call.1} parent=1 // pred_check_branch
      %45 = sbr.rel (0) target = $region17
    $region16: #{tpu_custom_call.1} parent=1 // pred_region
      %s47 = ssub.s32 2048, 2048
      %48 = vsyncadd [#allocation6], %s47
      %s49 = sshll.u32 [#allocation7], 4
      %s50 = int_to_ptr.vmem [resolvable:$true] %s49
      %55 = dma.hbm_to_vmem [thread:$0]  %s3, 2048, %s50, [#allocation6], 128, 128, 8
    $region17: #{tpu_custom_call.1} parent=1 // pred_fallthru
      _
    // Predicated region
    $region18: #{tpu_custom_call.1} parent=1 // pred_check
      _
    $region19: #{tpu_custom_call.1} parent=1 // pred_check_branch
      %57 = sbr.rel (0) target = $region21
    $region20: #{tpu_custom_call.1} parent=1 // pred_region
      _
    $region21: #{tpu_custom_call.1} parent=1 // pred_fallthru
      _
    // Predicated region
    $region22: #{tpu_custom_call.1} parent=1 // pred_check
      _
    $region23: #{tpu_custom_call.1} parent=1 // pred_check_branch
      %59 = sbr.rel (0) target = $region25
    $region24: #{tpu_custom_call.1} parent=1 // pred_region
      _
    $region25: #{tpu_custom_call.1} parent=1 // pred_fallthru
      _
    // Predicated region
    $region26: #{tpu_custom_call.1} parent=1 // pred_check
      _
    $region27: #{tpu_custom_call.1} parent=1 // pred_check_branch
      %61 = sbr.rel (0) target = $region29
    $region28: #{tpu_custom_call.1} parent=1 // pred_region
      _
    $region29: #{tpu_custom_call.1} parent=1 // pred_fallthru
      _
    // Predicated region
    $region30: #{tpu_custom_call.1} parent=1 // pred_check
      _
    $region31: #{tpu_custom_call.1} parent=1 // pred_check_branch
      %63 = sbr.rel (0) target = $region33
    $region32: #{tpu_custom_call.1} parent=1 // pred_region
      %s65 = ssub.s32 1024, 1024
      %66 = vsyncadd [#allocation9], %s65
      %s67 = sshll.u32 [#allocation8], 4
      %s68 = int_to_ptr.vmem [resolvable:$true] %s67
      %73 = dma.hbm_to_vmem [thread:$0]  %s7, 1024, %s68, [#allocation9], 64, 64, 4
    $region33: #{tpu_custom_call.1} parent=1 // pred_fallthru
      _
    // Predicated region
    $region34: #{tpu_custom_call.1} parent=1 // pred_check
      _
    $region35: #{tpu_custom_call.1} parent=1 // pred_check_branch
      %75 = sbr.rel (0) target = $region37
    $region36: #{tpu_custom_call.1} parent=1 // pred_region
      _
    $region37: #{tpu_custom_call.1} parent=1 // pred_fallthru
      _
    // Predicated region
    $region38: #{tpu_custom_call.1} parent=1 // pred_check
      _
    $region39: #{tpu_custom_call.1} parent=1 // pred_check_branch
      %77 = sbr.rel (0) target = $region41
    $region40: #{tpu_custom_call.1} parent=1 // pred_region
      %78 = dma.done [#allocation3], 4096
    $region41: #{tpu_custom_call.1} parent=1 // pred_fallthru
      _
    // Predicated region
    $region42: #{tpu_custom_call.1} parent=1 // pred_check
      _
    $region43: #{tpu_custom_call.1} parent=1 // pred_check_branch
      %80 = sbr.rel (0) target = $region45
    $region44: #{tpu_custom_call.1} parent=1 // pred_region
      %81 = dma.done [#allocation6], 640
    $region45: #{tpu_custom_call.1} parent=1 // pred_fallthru
      _
    // Predicated region
    $region46: #{tpu_custom_call.1} parent=1 // pred_check
      _
    $region47: #{tpu_custom_call.1} parent=1 // pred_check_branch
      %83 = sbr.rel (0) target = $region49
    $region48: #{tpu_custom_call.1} parent=1 // pred_region
      %84 = dma.done [#allocation6], 2048
    $region49: #{tpu_custom_call.1} parent=1 // pred_fallthru
      _
    // Predicated region
    $region50: #{tpu_custom_call.1} parent=1 // pred_check
      _
    $region51: #{tpu_custom_call.1} parent=1 // pred_check_branch
      %86 = sbr.rel (0) target = $region53
    $region52: #{tpu_custom_call.1} parent=1 // pred_region
      %87 = dma.done [#allocation9], 1024
    $region53: #{tpu_custom_call.1} parent=1 // pred_fallthru
      _
    %p89 = scmp.eq.s32.totalorder 0, 0
    // Predicated region
    $region54: #{tpu_custom_call.1} parent=1 // pred_check
      %p90 = pneg %p89
    $region55: #{tpu_custom_call.1} parent=1 // pred_check_branch
      %92 = sbr.rel (%p90) target = $region57
    $region56: #{tpu_custom_call.1} parent=1 // pred_region
      %v93 = vld [vmem:[#allocation5] sm:$0xff]
      %v94 = vld [vmem:[#allocation5 + $0x8] sm:$0xff]
      %v95 = vld [vmem:[#allocation5 + $0x10] sm:$0xff]
      %v96 = vld [vmem:[#allocation5 + $0x18] sm:$0xff]
      %v97 = vld [vmem:[#allocation5 + $0x20] sm:$0xff]
      %98 = vst [vmem:[#allocation10] sm:$0xff] %v93
      %99 = vst [vmem:[#allocation10 + $0x8] sm:$0xff] %v94
      %100 = vst [vmem:[#allocation10 + $0x10] sm:$0xff] %v95
      %101 = vst [vmem:[#allocation10 + $0x18] sm:$0xff] %v96
      %102 = vst [vmem:[#allocation10 + $0x20] sm:$0xff] %v97
    $region57: #{tpu_custom_call.1} parent=1 // pred_fallthru
      _
    %v103 = vld [vmem:[#allocation2] sm:$0xf]
    %v104 = vld [vmem:[#allocation2 + $0x4] sm:$0xf]
    %v105 = vld [vmem:[#allocation2 + $0x8] sm:$0xf]
    %v106 = vld [vmem:[#allocation2 + $0xc] sm:$0xf]
    %v107 = vld [vmem:[#allocation2 + $0x10] sm:$0xf]
    %v108 = vld [vmem:[#allocation2 + $0x14] sm:$0xf]
    %v109 = vld [vmem:[#allocation2 + $0x18] sm:$0xf]
    %v110 = vld [vmem:[#allocation2 + $0x1c] sm:$0xf]
    %v111 = vld [vmem:[#allocation2 + $0x20] sm:$0xf]
    %v112 = vld [vmem:[#allocation2 + $0x24] sm:$0xf]
    %v113 = vld [vmem:[#allocation2 + $0x28] sm:$0xf]
    %v114 = vld [vmem:[#allocation2 + $0x2c] sm:$0xf]
    %v115 = vld [vmem:[#allocation2 + $0x30] sm:$0xf]
    %v116 = vld [vmem:[#allocation2 + $0x34] sm:$0xf]
    %v117 = vld [vmem:[#allocation2 + $0x38] sm:$0xf]
    %v118 = vld [vmem:[#allocation2 + $0x3c] sm:$0xf]
    %v119 = vld [vmem:[#allocation2 + $0x40] sm:$0xf]
    %v120 = vld [vmem:[#allocation2 + $0x44] sm:$0xf]
    %v121 = vld [vmem:[#allocation2 + $0x48] sm:$0xf]
    %v122 = vld [vmem:[#allocation2 + $0x4c] sm:$0xf]
    %v123 = vld [vmem:[#allocation2 + $0x50] sm:$0xf]
    %v124 = vld [vmem:[#allocation2 + $0x54] sm:$0xf]
    %v125 = vld [vmem:[#allocation2 + $0x58] sm:$0xf]
    %v126 = vld [vmem:[#allocation2 + $0x5c] sm:$0xf]
    %v127 = vld [vmem:[#allocation2 + $0x60] sm:$0xf]
    %v128 = vld [vmem:[#allocation2 + $0x64] sm:$0xf]
    %v129 = vld [vmem:[#allocation2 + $0x68] sm:$0xf]
    %v130 = vld [vmem:[#allocation2 + $0x6c] sm:$0xf]
    %v131 = vld [vmem:[#allocation2 + $0x70] sm:$0xf]
    %v132 = vld [vmem:[#allocation2 + $0x74] sm:$0xf]
    %v133 = vld [vmem:[#allocation2 + $0x78] sm:$0xf]
    %v134 = vld [vmem:[#allocation2 + $0x7c] sm:$0xf]
    %v135 = vld [vmem:[#allocation2 + $0x80] sm:$0xf]
    %v136 = vld [vmem:[#allocation2 + $0x84] sm:$0xf]
    %v137 = vld [vmem:[#allocation2 + $0x88] sm:$0xf]
    %v138 = vld [vmem:[#allocation2 + $0x8c] sm:$0xf]
    %v139 = vld [vmem:[#allocation2 + $0x90] sm:$0xf]
    %v140 = vld [vmem:[#allocation2 + $0x94] sm:$0xf]
    %v141 = vld [vmem:[#allocation2 + $0x98] sm:$0xf]
    %v142 = vld [vmem:[#allocation2 + $0x9c] sm:$0xf]
    %v143 = vld [vmem:[#allocation2 + $0xa0] sm:$0xf]
    %v144 = vld [vmem:[#allocation2 + $0xa4] sm:$0xf]
    %v145 = vld [vmem:[#allocation2 + $0xa8] sm:$0xf]
    %v146 = vld [vmem:[#allocation2 + $0xac] sm:$0xf]
    %v147 = vld [vmem:[#allocation2 + $0xb0] sm:$0xf]
    %v148 = vld [vmem:[#allocation2 + $0xb4] sm:$0xf]
    %v149 = vld [vmem:[#allocation2 + $0xb8] sm:$0xf]
    %v150 = vld [vmem:[#allocation2 + $0xbc] sm:$0xf]
    %v151 = vld [vmem:[#allocation2 + $0xc0] sm:$0xf]
    %v152 = vld [vmem:[#allocation2 + $0xc4] sm:$0xf]
    %v153 = vld [vmem:[#allocation2 + $0xc8] sm:$0xf]
    %v154 = vld [vmem:[#allocation2 + $0xcc] sm:$0xf]
    %v155 = vld [vmem:[#allocation2 + $0xd0] sm:$0xf]
    %v156 = vld [vmem:[#allocation2 + $0xd4] sm:$0xf]
    %v157 = vld [vmem:[#allocation2 + $0xd8] sm:$0xf]
    %v158 = vld [vmem:[#allocation2 + $0xdc] sm:$0xf]
    %v159 = vld [vmem:[#allocation2 + $0xe0] sm:$0xf]
    %v160 = vld [vmem:[#allocation2 + $0xe4] sm:$0xf]
    %v161 = vld [vmem:[#allocation2 + $0xe8] sm:$0xf]
    %v162 = vld [vmem:[#allocation2 + $0xec] sm:$0xf]
    %v163 = vld [vmem:[#allocation2 + $0xf0] sm:$0xf]
    %v164 = vld [vmem:[#allocation2 + $0xf4] sm:$0xf]
    %v165 = vld [vmem:[#allocation2 + $0xf8] sm:$0xf]
    %v166 = vld [vmem:[#allocation2 + $0xfc] sm:$0xf]
    %v167 = vld [vmem:[#allocation7] sm:$0xff]
    %v168 = vld [vmem:[#allocation7 + $0x8] sm:$0xff]
    %v169 = vld [vmem:[#allocation7 + $0x10] sm:$0xff]
    %v170 = vld [vmem:[#allocation7 + $0x18] sm:$0xff]
    %v171 = vld [vmem:[#allocation7 + $0x20] sm:$0xff]
    %v172 = vld [vmem:[#allocation7 + $0x28] sm:$0xff]
    %v173 = vld [vmem:[#allocation7 + $0x30] sm:$0xff]
    %v174 = vld [vmem:[#allocation7 + $0x38] sm:$0xff]
    %v175 = vld [vmem:[#allocation7 + $0x40] sm:$0xff]
    %v176 = vld [vmem:[#allocation7 + $0x48] sm:$0xff]
    %v177 = vld [vmem:[#allocation7 + $0x50] sm:$0xff]
    %v178 = vld [vmem:[#allocation7 + $0x58] sm:$0xff]
    %v179 = vld [vmem:[#allocation7 + $0x60] sm:$0xff]
    %v180 = vld [vmem:[#allocation7 + $0x68] sm:$0xff]
    %v181 = vld [vmem:[#allocation7 + $0x70] sm:$0xff]
    %v182 = vld [vmem:[#allocation7 + $0x78] sm:$0xff]
    %v183 = vld [vmem:[%s4] sm:$0x3]
    %v185 = vlaneseq
    %v186 = vshrl.u32 %v185, 7
    %v187 = vsub.s32 0, %v186
    %v188 = vrot.slane %v183, %v187
    %v189 = vlaneseq
    %v190 = vshrl.u32 %v189, 7
    %v191 = vsub.s32 1, %v190
    %v192 = vrot.slane %v183, %v191
    %v259 = vunpack.c.l.b16 %v103
    %v260 = vunpack.c.l.b16 %v104
    %v261 = vunpack.c.l.b16 %v105
    %v262 = vunpack.c.l.b16 %v106
    %v263 = vunpack.c.l.b16 %v107
    %v264 = vunpack.c.l.b16 %v108
    %v265 = vunpack.c.l.b16 %v109
    %v266 = vunpack.c.l.b16 %v110
    %v267 = vunpack.c.l.b16 %v111
    %v268 = vunpack.c.l.b16 %v112
    %v269 = vunpack.c.l.b16 %v113
    %v270 = vunpack.c.l.b16 %v114
    %v271 = vunpack.c.l.b16 %v115
    %v272 = vunpack.c.l.b16 %v116
    %v273 = vunpack.c.l.b16 %v117
    %v274 = vunpack.c.l.b16 %v118
    %v275 = vunpack.c.l.b16 %v119
    %v276 = vunpack.c.l.b16 %v120
    %v277 = vunpack.c.l.b16 %v121
    %v278 = vunpack.c.l.b16 %v122
    %v279 = vunpack.c.l.b16 %v123
    %v280 = vunpack.c.l.b16 %v124
    %v281 = vunpack.c.l.b16 %v125
    %v282 = vunpack.c.l.b16 %v126
    %v283 = vunpack.c.l.b16 %v127
    %v284 = vunpack.c.l.b16 %v128
    %v285 = vunpack.c.l.b16 %v129
    %v286 = vunpack.c.l.b16 %v130
    %v287 = vunpack.c.l.b16 %v131
    %v288 = vunpack.c.l.b16 %v132
    %v289 = vunpack.c.l.b16 %v133
    %v290 = vunpack.c.l.b16 %v134
    %v291 = vunpack.c.l.b16 %v135
    %v292 = vunpack.c.l.b16 %v136
    %v293 = vunpack.c.l.b16 %v137
    %v294 = vunpack.c.l.b16 %v138
    %v295 = vunpack.c.l.b16 %v139
    %v296 = vunpack.c.l.b16 %v140
    %v297 = vunpack.c.l.b16 %v141
    %v298 = vunpack.c.l.b16 %v142
    %v299 = vunpack.c.l.b16 %v143
    %v300 = vunpack.c.l.b16 %v144
    %v301 = vunpack.c.l.b16 %v145
    %v302 = vunpack.c.l.b16 %v146
    %v303 = vunpack.c.l.b16 %v147
    %v304 = vunpack.c.l.b16 %v148
    %v305 = vunpack.c.l.b16 %v149
    %v306 = vunpack.c.l.b16 %v150
    %v307 = vunpack.c.l.b16 %v151
    %v308 = vunpack.c.l.b16 %v152
    %v309 = vunpack.c.l.b16 %v153
    %v310 = vunpack.c.l.b16 %v154
    %v311 = vunpack.c.l.b16 %v155
    %v312 = vunpack.c.l.b16 %v156
    %v313 = vunpack.c.l.b16 %v157
    %v314 = vunpack.c.l.b16 %v158
    %v315 = vunpack.c.l.b16 %v159
    %v316 = vunpack.c.l.b16 %v160
    %v317 = vunpack.c.l.b16 %v161
    %v318 = vunpack.c.l.b16 %v162
    %v319 = vunpack.c.l.b16 %v163
    %v320 = vunpack.c.l.b16 %v164
    %v321 = vunpack.c.l.b16 %v165
    %v322 = vunpack.c.l.b16 %v166
    %v323 = vpack.c.b16 %v260, %v259
    %v324 = vpack.c.b16 %v262, %v261
    %v325 = vpack.c.b16 %v264, %v263
    %v326 = vpack.c.b16 %v266, %v265
    %v327 = vpack.c.b16 %v268, %v267
    %v328 = vpack.c.b16 %v270, %v269
    %v329 = vpack.c.b16 %v272, %v271
    %v330 = vpack.c.b16 %v274, %v273
    %v331 = vpack.c.b16 %v276, %v275
    %v332 = vpack.c.b16 %v278, %v277
    %v333 = vpack.c.b16 %v280, %v279
    %v334 = vpack.c.b16 %v282, %v281
    %v335 = vpack.c.b16 %v284, %v283
    %v336 = vpack.c.b16 %v286, %v285
    %v337 = vpack.c.b16 %v288, %v287
    %v338 = vpack.c.b16 %v290, %v289
    %v339 = vpack.c.b16 %v292, %v291
    %v340 = vpack.c.b16 %v294, %v293
    %v341 = vpack.c.b16 %v296, %v295
    %v342 = vpack.c.b16 %v298, %v297
    %v343 = vpack.c.b16 %v300, %v299
    %v344 = vpack.c.b16 %v302, %v301
    %v345 = vpack.c.b16 %v304, %v303
    %v346 = vpack.c.b16 %v306, %v305
    %v347 = vpack.c.b16 %v308, %v307
    %v348 = vpack.c.b16 %v310, %v309
    %v349 = vpack.c.b16 %v312, %v311
    %v350 = vpack.c.b16 %v314, %v313
    %v351 = vpack.c.b16 %v316, %v315
    %v352 = vpack.c.b16 %v318, %v317
    %v353 = vpack.c.b16 %v320, %v319
    %v354 = vpack.c.b16 %v322, %v321
    %v403 = vunpack.c.l.b16 %v167
    %v404 = vunpack.c.h.b16 %v167
    %v405 = vunpack.c.l.b16 %v168
    %v406 = vunpack.c.h.b16 %v168
    %v407 = vunpack.c.l.b16 %v169
    %v408 = vunpack.c.h.b16 %v169
    %v409 = vunpack.c.l.b16 %v170
    %v410 = vunpack.c.h.b16 %v170
    %v411 = vunpack.c.l.b16 %v171
    %v412 = vunpack.c.h.b16 %v171
    %v413 = vunpack.c.l.b16 %v172
    %v414 = vunpack.c.h.b16 %v172
    %v415 = vunpack.c.l.b16 %v173
    %v416 = vunpack.c.h.b16 %v173
    %v417 = vunpack.c.l.b16 %v174
    %v418 = vunpack.c.h.b16 %v174
    %v419 = vunpack.c.l.b16 %v175
    %v420 = vunpack.c.h.b16 %v175
    %v421 = vunpack.c.l.b16 %v176
    %v422 = vunpack.c.h.b16 %v176
    %v423 = vunpack.c.l.b16 %v177
    %v424 = vunpack.c.h.b16 %v177
    %v425 = vunpack.c.l.b16 %v178
    %v426 = vunpack.c.h.b16 %v178
    %v427 = vunpack.c.l.b16 %v179
    %v428 = vunpack.c.h.b16 %v179
    %v429 = vunpack.c.l.b16 %v180
    %v430 = vunpack.c.h.b16 %v180
    %v431 = vunpack.c.l.b16 %v181
    %v432 = vunpack.c.h.b16 %v181
    %v433 = vunpack.c.l.b16 %v182
    %v434 = vunpack.c.h.b16 %v182
    %v435 = vpack.c.b16 %v405, %v403
    %v436 = vpack.c.b16 %v406, %v404
    %v437 = vpack.c.b16 %v409, %v407
    %v438 = vpack.c.b16 %v410, %v408
    %v439 = vpack.c.b16 %v413, %v411
    %v440 = vpack.c.b16 %v414, %v412
    %v441 = vpack.c.b16 %v417, %v415
    %v442 = vpack.c.b16 %v418, %v416
    %v443 = vpack.c.b16 %v421, %v419
    %v444 = vpack.c.b16 %v422, %v420
    %v445 = vpack.c.b16 %v425, %v423
    %v446 = vpack.c.b16 %v426, %v424
    %v447 = vpack.c.b16 %v429, %v427
    %v448 = vpack.c.b16 %v430, %v428
    %v449 = vpack.c.b16 %v433, %v431
    %v450 = vpack.c.b16 %v434, %v432
    %467 = vmatprep.subr.bf16.mxu0 %v436
    %468 = vmatpush1.bf16.msra.mxu0 %v435
    %469 = vmatprep.subr.bf16.mxu0 %v438
    %470 = vmatpush1.bf16.msra.mxu0 %v437
    %471 = vmatprep.subr.bf16.mxu0 %v440
    %472 = vmatpush1.bf16.msra.mxu0 %v439
    %473 = vmatprep.subr.bf16.mxu0 %v442
    %474 = vmatpush1.bf16.msra.mxu0 %v441
    %475 = vmatprep.subr.bf16.mxu0 %v444
    %476 = vmatpush1.bf16.msra.mxu0 %v443
    %477 = vmatprep.subr.bf16.mxu0 %v446
    %478 = vmatpush1.bf16.msra.mxu0 %v445
    %479 = vmatprep.subr.bf16.mxu0 %v448
    %480 = vmatpush1.bf16.msra.mxu0 %v447
    %481 = vmatprep.subr.bf16.mxu0 %v450
    %482 = vmatpush1.bf16.msra.mxu0 %v449
    %483 = vmatprep.subr.bf16.mxu0 0
    %484 = vmatpush1.bf16.msra.mxu0 0
    %485 = vmatprep.subr.bf16.mxu0 0
    %486 = vmatpush1.bf16.msra.mxu0 0
    %487 = vmatprep.subr.bf16.mxu0 0
    %488 = vmatpush1.bf16.msra.mxu0 0
    %489 = vmatprep.subr.bf16.mxu0 0
    %490 = vmatpush1.bf16.msra.mxu0 0
    %491 = vmatprep.subr.bf16.mxu0 0
    %492 = vmatpush1.bf16.msra.mxu0 0
    %493 = vmatprep.subr.bf16.mxu0 0
    %494 = vmatpush1.bf16.msra.mxu0 0
    %495 = vmatprep.subr.bf16.mxu0 0
    %496 = vmatpush1.bf16.msra.mxu0 0
    %497 = vmatprep.subr.bf16.mxu0 0
    %498 = vmatpush1.bf16.msra.mxu0 0
    %499 = vmatprep.mubr.bf16.mxu0 0
    %500 = vmatmul.mubr.bf16.gmra.mrb[0].mxu0 %v323
    %v501 = vpop.f32.mrb[0].mxu0
    %v502 = vadd.f32 %v188, %v501
    %v503 = vpop.f32.mrb[0].mxu0
    %v504 = vadd.f32 %v192, %v503
    %v505 = vpop.f32.mrb[0].mxu0
    %v506 = vadd.f32 %v188, %v505
    %v507 = vpop.f32.mrb[0].mxu0
    %v508 = vadd.f32 %v192, %v507
    %509 = vmatprep.mubr.bf16.mxu0 0
    %510 = vmatmul.mubr.bf16.gmra.mrb[0].mxu0 %v324
    %v511 = vpop.f32.mrb[0].mxu0
    %v512 = vadd.f32 %v188, %v511
    %v513 = vpop.f32.mrb[0].mxu0
    %v514 = vadd.f32 %v192, %v513
    %v515 = vpop.f32.mrb[0].mxu0
    %v516 = vadd.f32 %v188, %v515
    %v517 = vpop.f32.mrb[0].mxu0
    %v518 = vadd.f32 %v192, %v517
    %519 = vmatprep.mubr.bf16.mxu0 0
    %520 = vmatmul.mubr.bf16.gmra.mrb[0].mxu0 %v325
    %v521 = vpop.f32.mrb[0].mxu0
    %v522 = vadd.f32 %v188, %v521
    %v523 = vpop.f32.mrb[0].mxu0
    %v524 = vadd.f32 %v192, %v523
    %v525 = vpop.f32.mrb[0].mxu0
    %v526 = vadd.f32 %v188, %v525
    %v527 = vpop.f32.mrb[0].mxu0
    %v528 = vadd.f32 %v192, %v527
    %529 = vmatprep.mubr.bf16.mxu0 0
    %530 = vmatmul.mubr.bf16.gmra.mrb[0].mxu0 %v326
    %v531 = vpop.f32.mrb[0].mxu0
    %v532 = vadd.f32 %v188, %v531
    %v533 = vpop.f32.mrb[0].mxu0
    %v534 = vadd.f32 %v192, %v533
    %v535 = vpop.f32.mrb[0].mxu0
    %v536 = vadd.f32 %v188, %v535
    %v537 = vpop.f32.mrb[0].mxu0
    %v538 = vadd.f32 %v192, %v537
    %539 = vmatprep.mubr.bf16.mxu0 0
    %540 = vmatmul.mubr.bf16.gmra.mrb[0].mxu0 %v327
    %v541 = vpop.f32.mrb[0].mxu0
    %v542 = vadd.f32 %v188, %v541
    %v543 = vpop.f32.mrb[0].mxu0
    %v544 = vadd.f32 %v192, %v543
    %v545 = vpop.f32.mrb[0].mxu0
    %v546 = vadd.f32 %v188, %v545
    %v547 = vpop.f32.mrb[0].mxu0
    %v548 = vadd.f32 %v192, %v547
    %549 = vmatprep.mubr.bf16.mxu0 0
    %550 = vmatmul.mubr.bf16.gmra.mrb[0].mxu0 %v328
    %v551 = vpop.f32.mrb[0].mxu0
    %v552 = vadd.f32 %v188, %v551
    %v553 = vpop.f32.mrb[0].mxu0
    %v554 = vadd.f32 %v192, %v553
    %v555 = vpop.f32.mrb[0].mxu0
    %v556 = vadd.f32 %v188, %v555
    %v557 = vpop.f32.mrb[0].mxu0
    %v558 = vadd.f32 %v192, %v557
    %559 = vmatprep.mubr.bf16.mxu0 0
    %560 = vmatmul.mubr.bf16.gmra.mrb[0].mxu0 %v329
    %v561 = vpop.f32.mrb[0].mxu0
    %v562 = vadd.f32 %v188, %v561
    %v563 = vpop.f32.mrb[0].mxu0
    %v564 = vadd.f32 %v192, %v563
    %v565 = vpop.f32.mrb[0].mxu0
    %v566 = vadd.f32 %v188, %v565
    %v567 = vpop.f32.mrb[0].mxu0
    %v568 = vadd.f32 %v192, %v567
    %569 = vmatprep.mubr.bf16.mxu0 0
    %570 = vmatmul.mubr.bf16.gmra.mrb[0].mxu0 %v330
    %v571 = vpop.f32.mrb[0].mxu0
    %v572 = vadd.f32 %v188, %v571
    %v573 = vpop.f32.mrb[0].mxu0
    %v574 = vadd.f32 %v192, %v573
    %v575 = vpop.f32.mrb[0].mxu0
    %v576 = vadd.f32 %v188, %v575
    %v577 = vpop.f32.mrb[0].mxu0
    %v578 = vadd.f32 %v192, %v577
    %579 = vmatprep.mubr.bf16.mxu0 0
    %580 = vmatmul.mubr.bf16.gmra.mrb[0].mxu0 %v331
    %v581 = vpop.f32.mrb[0].mxu0
    %v582 = vadd.f32 %v188, %v581
    %v583 = vpop.f32.mrb[0].mxu0
    %v584 = vadd.f32 %v192, %v583
    %v585 = vpop.f32.mrb[0].mxu0
    %v586 = vadd.f32 %v188, %v585
    %v587 = vpop.f32.mrb[0].mxu0
    %v588 = vadd.f32 %v192, %v587
    %589 = vmatprep.mubr.bf16.mxu0 0
    %590 = vmatmul.mubr.bf16.gmra.mrb[0].mxu0 %v332
    %v591 = vpop.f32.mrb[0].mxu0
    %v592 = vadd.f32 %v188, %v591
    %v593 = vpop.f32.mrb[0].mxu0
    %v594 = vadd.f32 %v192, %v593
    %v595 = vpop.f32.mrb[0].mxu0
    %v596 = vadd.f32 %v188, %v595
    %v597 = vpop.f32.mrb[0].mxu0
    %v598 = vadd.f32 %v192, %v597
    %599 = vmatprep.mubr.bf16.mxu0 0
    %600 = vmatmul.mubr.bf16.gmra.mrb[0].mxu0 %v333
    %v601 = vpop.f32.mrb[0].mxu0
    %v602 = vadd.f32 %v188, %v601
    %v603 = vpop.f32.mrb[0].mxu0
    %v604 = vadd.f32 %v192, %v603
    %v605 = vpop.f32.mrb[0].mxu0
    %v606 = vadd.f32 %v188, %v605
    %v607 = vpop.f32.mrb[0].mxu0
    %v608 = vadd.f32 %v192, %v607
    %609 = vmatprep.mubr.bf16.mxu0 0
    %610 = vmatmul.mubr.bf16.gmra.mrb[0].mxu0 %v334
    %v611 = vpop.f32.mrb[0].mxu0
    %v612 = vadd.f32 %v188, %v611
    %v613 = vpop.f32.mrb[0].mxu0
    %v614 = vadd.f32 %v192, %v613
    %v615 = vpop.f32.mrb[0].mxu0
    %v616 = vadd.f32 %v188, %v615
    %v617 = vpop.f32.mrb[0].mxu0
    %v618 = vadd.f32 %v192, %v617
    %619 = vmatprep.mubr.bf16.mxu0 0
    %620 = vmatmul.mubr.bf16.gmra.mrb[0].mxu0 %v335
    %v621 = vpop.f32.mrb[0].mxu0
    %v622 = vadd.f32 %v188, %v621
    %v623 = vpop.f32.mrb[0].mxu0
    %v624 = vadd.f32 %v192, %v623
    %v625 = vpop.f32.mrb[0].mxu0
    %v626 = vadd.f32 %v188, %v625
    %v627 = vpop.f32.mrb[0].mxu0
    %v628 = vadd.f32 %v192, %v627
    %629 = vmatprep.mubr.bf16.mxu0 0
    %630 = vmatmul.mubr.bf16.gmra.mrb[0].mxu0 %v336
    %v631 = vpop.f32.mrb[0].mxu0
    %v632 = vadd.f32 %v188, %v631
    %v633 = vpop.f32.mrb[0].mxu0
    %v634 = vadd.f32 %v192, %v633
    %v635 = vpop.f32.mrb[0].mxu0
    %v636 = vadd.f32 %v188, %v635
    %v637 = vpop.f32.mrb[0].mxu0
    %v638 = vadd.f32 %v192, %v637
    %639 = vmatprep.mubr.bf16.mxu0 0
    %640 = vmatmul.mubr.bf16.gmra.mrb[0].mxu0 %v337
    %v641 = vpop.f32.mrb[0].mxu0
    %v642 = vadd.f32 %v188, %v641
    %v643 = vpop.f32.mrb[0].mxu0
    %v644 = vadd.f32 %v192, %v643
    %v645 = vpop.f32.mrb[0].mxu0
    %v646 = vadd.f32 %v188, %v645
    %v647 = vpop.f32.mrb[0].mxu0
    %v648 = vadd.f32 %v192, %v647
    %649 = vmatprep.mubr.bf16.mxu0 0
    %650 = vmatmul.mubr.bf16.gmra.mrb[0].mxu0 %v338
    %v651 = vpop.f32.mrb[0].mxu0
    %v652 = vadd.f32 %v188, %v651
    %v653 = vpop.f32.mrb[0].mxu0
    %v654 = vadd.f32 %v192, %v653
    %v655 = vpop.f32.mrb[0].mxu0
    %v656 = vadd.f32 %v188, %v655
    %v657 = vpop.f32.mrb[0].mxu0
    %v658 = vadd.f32 %v192, %v657
    %659 = vmatprep.mubr.bf16.mxu0 0
    %660 = vmatmul.mubr.bf16.gmra.mrb[0].mxu0 %v339
    %v661 = vpop.f32.mrb[0].mxu0
    %v662 = vadd.f32 %v188, %v661
    %v663 = vpop.f32.mrb[0].mxu0
    %v664 = vadd.f32 %v192, %v663
    %v665 = vpop.f32.mrb[0].mxu0
    %v666 = vadd.f32 %v188, %v665
    %v667 = vpop.f32.mrb[0].mxu0
    %v668 = vadd.f32 %v192, %v667
    %669 = vmatprep.mubr.bf16.mxu0 0
    %670 = vmatmul.mubr.bf16.gmra.mrb[0].mxu0 %v340
    %v671 = vpop.f32.mrb[0].mxu0
    %v672 = vadd.f32 %v188, %v671
    %v673 = vpop.f32.mrb[0].mxu0
    %v674 = vadd.f32 %v192, %v673
    %v675 = vpop.f32.mrb[0].mxu0
    %v676 = vadd.f32 %v188, %v675
    %v677 = vpop.f32.mrb[0].mxu0
    %v678 = vadd.f32 %v192, %v677
    %679 = vmatprep.mubr.bf16.mxu0 0
    %680 = vmatmul.mubr.bf16.gmra.mrb[0].mxu0 %v341
    %v681 = vpop.f32.mrb[0].mxu0
    %v682 = vadd.f32 %v188, %v681
    %v683 = vpop.f32.mrb[0].mxu0
    %v684 = vadd.f32 %v192, %v683
    %v685 = vpop.f32.mrb[0].mxu0
    %v686 = vadd.f32 %v188, %v685
    %v687 = vpop.f32.mrb[0].mxu0
    %v688 = vadd.f32 %v192, %v687
    %689 = vmatprep.mubr.bf16.mxu0 0
    %690 = vmatmul.mubr.bf16.gmra.mrb[0].mxu0 %v342
    %v691 = vpop.f32.mrb[0].mxu0
    %v692 = vadd.f32 %v188, %v691
    %v693 = vpop.f32.mrb[0].mxu0
    %v694 = vadd.f32 %v192, %v693
    %v695 = vpop.f32.mrb[0].mxu0
    %v696 = vadd.f32 %v188, %v695
    %v697 = vpop.f32.mrb[0].mxu0
    %v698 = vadd.f32 %v192, %v697
    %699 = vmatprep.mubr.bf16.mxu0 0
    %700 = vmatmul.mubr.bf16.gmra.mrb[0].mxu0 %v343
    %v701 = vpop.f32.mrb[0].mxu0
    %v702 = vadd.f32 %v188, %v701
    %v703 = vpop.f32.mrb[0].mxu0
    %v704 = vadd.f32 %v192, %v703
    %v705 = vpop.f32.mrb[0].mxu0
    %v706 = vadd.f32 %v188, %v705
    %v707 = vpop.f32.mrb[0].mxu0
    %v708 = vadd.f32 %v192, %v707
    %709 = vmatprep.mubr.bf16.mxu0 0
    %710 = vmatmul.mubr.bf16.gmra.mrb[0].mxu0 %v344
    %v711 = vpop.f32.mrb[0].mxu0
    %v712 = vadd.f32 %v188, %v711
    %v713 = vpop.f32.mrb[0].mxu0
    %v714 = vadd.f32 %v192, %v713
    %v715 = vpop.f32.mrb[0].mxu0
    %v716 = vadd.f32 %v188, %v715
    %v717 = vpop.f32.mrb[0].mxu0
    %v718 = vadd.f32 %v192, %v717
    %719 = vmatprep.mubr.bf16.mxu0 0
    %720 = vmatmul.mubr.bf16.gmra.mrb[0].mxu0 %v345
    %v721 = vpop.f32.mrb[0].mxu0
    %v722 = vadd.f32 %v188, %v721
    %v723 = vpop.f32.mrb[0].mxu0
    %v724 = vadd.f32 %v192, %v723
    %v725 = vpop.f32.mrb[0].mxu0
    %v726 = vadd.f32 %v188, %v725
    %v727 = vpop.f32.mrb[0].mxu0
    %v728 = vadd.f32 %v192, %v727
    %729 = vmatprep.mubr.bf16.mxu0 0
    %730 = vmatmul.mubr.bf16.gmra.mrb[0].mxu0 %v346
    %v731 = vpop.f32.mrb[0].mxu0
    %v732 = vadd.f32 %v188, %v731
    %v733 = vpop.f32.mrb[0].mxu0
    %v734 = vadd.f32 %v192, %v733
    %v735 = vpop.f32.mrb[0].mxu0
    %v736 = vadd.f32 %v188, %v735
    %v737 = vpop.f32.mrb[0].mxu0
    %v738 = vadd.f32 %v192, %v737
    %739 = vmatprep.mubr.bf16.mxu0 0
    %740 = vmatmul.mubr.bf16.gmra.mrb[0].mxu0 %v347
    %v741 = vpop.f32.mrb[0].mxu0
    %v742 = vadd.f32 %v188, %v741
    %v743 = vpop.f32.mrb[0].mxu0
    %v744 = vadd.f32 %v192, %v743
    %v745 = vpop.f32.mrb[0].mxu0
    %v746 = vadd.f32 %v188, %v745
    %v747 = vpop.f32.mrb[0].mxu0
    %v748 = vadd.f32 %v192, %v747
    %749 = vmatprep.mubr.bf16.mxu0 0
    %750 = vmatmul.mubr.bf16.gmra.mrb[0].mxu0 %v348
    %v751 = vpop.f32.mrb[0].mxu0
    %v752 = vadd.f32 %v188, %v751
    %v753 = vpop.f32.mrb[0].mxu0
    %v754 = vadd.f32 %v192, %v753
    %v755 = vpop.f32.mrb[0].mxu0
    %v756 = vadd.f32 %v188, %v755
    %v757 = vpop.f32.mrb[0].mxu0
    %v758 = vadd.f32 %v192, %v757
    %759 = vmatprep.mubr.bf16.mxu0 0
    %760 = vmatmul.mubr.bf16.gmra.mrb[0].mxu0 %v349
    %v761 = vpop.f32.mrb[0].mxu0
    %v762 = vadd.f32 %v188, %v761
    %v763 = vpop.f32.mrb[0].mxu0
    %v764 = vadd.f32 %v192, %v763
    %v765 = vpop.f32.mrb[0].mxu0
    %v766 = vadd.f32 %v188, %v765
    %v767 = vpop.f32.mrb[0].mxu0
    %v768 = vadd.f32 %v192, %v767
    %769 = vmatprep.mubr.bf16.mxu0 0
    %770 = vmatmul.mubr.bf16.gmra.mrb[0].mxu0 %v350
    %v771 = vpop.f32.mrb[0].mxu0
    %v772 = vadd.f32 %v188, %v771
    %v773 = vpop.f32.mrb[0].mxu0
    %v774 = vadd.f32 %v192, %v773
    %v775 = vpop.f32.mrb[0].mxu0
    %v776 = vadd.f32 %v188, %v775
    %v777 = vpop.f32.mrb[0].mxu0
    %v778 = vadd.f32 %v192, %v777
    %779 = vmatprep.mubr.bf16.mxu0 0
    %780 = vmatmul.mubr.bf16.gmra.mrb[0].mxu0 %v351
    %v781 = vpop.f32.mrb[0].mxu0
    %v782 = vadd.f32 %v188, %v781
    %v783 = vpop.f32.mrb[0].mxu0
    %v784 = vadd.f32 %v192, %v783
    %v785 = vpop.f32.mrb[0].mxu0
    %v786 = vadd.f32 %v188, %v785
    %v787 = vpop.f32.mrb[0].mxu0
    %v788 = vadd.f32 %v192, %v787
    %789 = vmatprep.mubr.bf16.mxu0 0
    %790 = vmatmul.mubr.bf16.gmra.mrb[0].mxu0 %v352
    %v791 = vpop.f32.mrb[0].mxu0
    %v792 = vadd.f32 %v188, %v791
    %v793 = vpop.f32.mrb[0].mxu0
    %v794 = vadd.f32 %v192, %v793
    %v795 = vpop.f32.mrb[0].mxu0
    %v796 = vadd.f32 %v188, %v795
    %v797 = vpop.f32.mrb[0].mxu0
    %v798 = vadd.f32 %v192, %v797
    %799 = vmatprep.mubr.bf16.mxu0 0
    %800 = vmatmul.mubr.bf16.gmra.mrb[0].mxu0 %v353
    %v801 = vpop.f32.mrb[0].mxu0
    %v802 = vadd.f32 %v188, %v801
    %v803 = vpop.f32.mrb[0].mxu0
    %v804 = vadd.f32 %v192, %v803
    %v805 = vpop.f32.mrb[0].mxu0
    %v806 = vadd.f32 %v188, %v805
    %v807 = vpop.f32.mrb[0].mxu0
    %v808 = vadd.f32 %v192, %v807
    %809 = vmatprep.mubr.bf16.mxu0 0
    %810 = vmatmul.mubr.bf16.gmra.mrb[0].mxu0 %v354
    %v811 = vpop.f32.mrb[0].mxu0
    %v812 = vadd.f32 %v188, %v811
    %v813 = vpop.f32.mrb[0].mxu0
    %v814 = vadd.f32 %v192, %v813
    %v815 = vpop.f32.mrb[0].mxu0
    %v816 = vadd.f32 %v188, %v815
    %v817 = vpop.f32.mrb[0].mxu0
    %v818 = vadd.f32 %v192, %v817
    %819 = vdwg.mxu0
    %v820 = vsub.f32 0.0, %v502
    %v821 = vsub.f32 0.0, %v506
    %v822 = vsub.f32 0.0, %v512
    %v823 = vsub.f32 0.0, %v516
    %v824 = vsub.f32 0.0, %v522
    %v825 = vsub.f32 0.0, %v526
    %v826 = vsub.f32 0.0, %v532
    %v827 = vsub.f32 0.0, %v536
    %v828 = vsub.f32 0.0, %v542
    %v829 = vsub.f32 0.0, %v546
    %v830 = vsub.f32 0.0, %v552
    %v831 = vsub.f32 0.0, %v556
    %v832 = vsub.f32 0.0, %v562
    %v833 = vsub.f32 0.0, %v566
    %v834 = vsub.f32 0.0, %v572
    %v835 = vsub.f32 0.0, %v576
    %v836 = vsub.f32 0.0, %v582
    %v837 = vsub.f32 0.0, %v586
    %v838 = vsub.f32 0.0, %v592
    %v839 = vsub.f32 0.0, %v596
    %v840 = vsub.f32 0.0, %v602
    %v841 = vsub.f32 0.0, %v606
    %v842 = vsub.f32 0.0, %v612
    %v843 = vsub.f32 0.0, %v616
    %v844 = vsub.f32 0.0, %v622
    %v845 = vsub.f32 0.0, %v626
    %v846 = vsub.f32 0.0, %v632
    %v847 = vsub.f32 0.0, %v636
    %v848 = vsub.f32 0.0, %v642
    %v849 = vsub.f32 0.0, %v646
    %v850 = vsub.f32 0.0, %v652
    %v851 = vsub.f32 0.0, %v656
    %v852 = vsub.f32 0.0, %v662
    %v853 = vsub.f32 0.0, %v666
    %v854 = vsub.f32 0.0, %v672
    %v855 = vsub.f32 0.0, %v676
    %v856 = vsub.f32 0.0, %v682
    %v857 = vsub.f32 0.0, %v686
    %v858 = vsub.f32 0.0, %v692
    %v859 = vsub.f32 0.0, %v696
    %v860 = vsub.f32 0.0, %v702
    %v861 = vsub.f32 0.0, %v706
    %v862 = vsub.f32 0.0, %v712
    %v863 = vsub.f32 0.0, %v716
    %v864 = vsub.f32 0.0, %v722
    %v865 = vsub.f32 0.0, %v726
    %v866 = vsub.f32 0.0, %v732
    %v867 = vsub.f32 0.0, %v736
    %v868 = vsub.f32 0.0, %v742
    %v869 = vsub.f32 0.0, %v746
    %v870 = vsub.f32 0.0, %v752
    %v871 = vsub.f32 0.0, %v756
    %v872 = vsub.f32 0.0, %v762
    %v873 = vsub.f32 0.0, %v766
    %v874 = vsub.f32 0.0, %v772
    %v875 = vsub.f32 0.0, %v776
    %v876 = vsub.f32 0.0, %v782
    %v877 = vsub.f32 0.0, %v786
    %v878 = vsub.f32 0.0, %v792
    %v879 = vsub.f32 0.0, %v796
    %v880 = vsub.f32 0.0, %v802
    %v881 = vsub.f32 0.0, %v806
    %v882 = vsub.f32 0.0, %v812
    %v883 = vsub.f32 0.0, %v816
    %v884 = vmul.f32 %v820, 1.442695
    %v885 = vpow.pop %v884
    %v886 = vmul.f32 %v821, 1.442695
    %v887 = vpow.pop %v886
    %v888 = vmul.f32 %v822, 1.442695
    %v889 = vpow.pop %v888
    %v890 = vmul.f32 %v823, 1.442695
    %v891 = vpow.pop %v890
    %v892 = vmul.f32 %v824, 1.442695
    %v893 = vpow.pop %v892
    %v894 = vmul.f32 %v825, 1.442695
    %v895 = vpow.pop %v894
    %v896 = vmul.f32 %v826, 1.442695
    %v897 = vpow.pop %v896
    %v898 = vmul.f32 %v827, 1.442695
    %v899 = vpow.pop %v898
    %v900 = vmul.f32 %v828, 1.442695
    %v901 = vpow.pop %v900
    %v902 = vmul.f32 %v829, 1.442695
    %v903 = vpow.pop %v902
    %v904 = vmul.f32 %v830, 1.442695
    %v905 = vpow.pop %v904
    %v906 = vmul.f32 %v831, 1.442695
    %v907 = vpow.pop %v906
    %v908 = vmul.f32 %v832, 1.442695
    %v909 = vpow.pop %v908
    %v910 = vmul.f32 %v833, 1.442695
    %v911 = vpow.pop %v910
    %v912 = vmul.f32 %v834, 1.442695
    %v913 = vpow.pop %v912
    %v914 = vmul.f32 %v835, 1.442695
    %v915 = vpow.pop %v914
    %v916 = vmul.f32 %v836, 1.442695
    %v917 = vpow.pop %v916
    %v918 = vmul.f32 %v837, 1.442695
    %v919 = vpow.pop %v918
    %v920 = vmul.f32 %v838, 1.442695
    %v921 = vpow.pop %v920
    %v922 = vmul.f32 %v839, 1.442695
    %v923 = vpow.pop %v922
    %v924 = vmul.f32 %v840, 1.442695
    %v925 = vpow.pop %v924
    %v926 = vmul.f32 %v841, 1.442695
    %v927 = vpow.pop %v926
    %v928 = vmul.f32 %v842, 1.442695
    %v929 = vpow.pop %v928
    %v930 = vmul.f32 %v843, 1.442695
    %v931 = vpow.pop %v930
    %v932 = vmul.f32 %v844, 1.442695
    %v933 = vpow.pop %v932
    %v934 = vmul.f32 %v845, 1.442695
    %v935 = vpow.pop %v934
    %v936 = vmul.f32 %v846, 1.442695
    %v937 = vpow.pop %v936
    %v938 = vmul.f32 %v847, 1.442695
    %v939 = vpow.pop %v938
    %v940 = vmul.f32 %v848, 1.442695
    %v941 = vpow.pop %v940
    %v942 = vmul.f32 %v849, 1.442695
    %v943 = vpow.pop %v942
    %v944 = vmul.f32 %v850, 1.442695
    %v945 = vpow.pop %v944
    %v946 = vmul.f32 %v851, 1.442695
    %v947 = vpow.pop %v946
    %v948 = vmul.f32 %v852, 1.442695
    %v949 = vpow.pop %v948
    %v950 = vmul.f32 %v853, 1.442695
    %v951 = vpow.pop %v950
    %v952 = vmul.f32 %v854, 1.442695
    %v953 = vpow.pop %v952
    %v954 = vmul.f32 %v855, 1.442695
    %v955 = vpow.pop %v954
    %v956 = vmul.f32 %v856, 1.442695
    %v957 = vpow.pop %v956
    %v958 = vmul.f32 %v857, 1.442695
    %v959 = vpow.pop %v958
    %v960 = vmul.f32 %v858, 1.442695
    %v961 = vpow.pop %v960
    %v962 = vmul.f32 %v859, 1.442695
    %v963 = vpow.pop %v962
    %v964 = vmul.f32 %v860, 1.442695
    %v965 = vpow.pop %v964
    %v966 = vmul.f32 %v861, 1.442695
    %v967 = vpow.pop %v966
    %v968 = vmul.f32 %v862, 1.442695
    %v969 = vpow.pop %v968
    %v970 = vmul.f32 %v863, 1.442695
    %v971 = vpow.pop %v970
    %v972 = vmul.f32 %v864, 1.442695
    %v973 = vpow.pop %v972
    %v974 = vmul.f32 %v865, 1.442695
    %v975 = vpow.pop %v974
    %v976 = vmul.f32 %v866, 1.442695
    %v977 = vpow.pop %v976
    %v978 = vmul.f32 %v867, 1.442695
    %v979 = vpow.pop %v978
    %v980 = vmul.f32 %v868, 1.442695
    %v981 = vpow.pop %v980
    %v982 = vmul.f32 %v869, 1.442695
    %v983 = vpow.pop %v982
    %v984 = vmul.f32 %v870, 1.442695
    %v985 = vpow.pop %v984
    %v986 = vmul.f32 %v871, 1.442695
    %v987 = vpow.pop %v986
    %v988 = vmul.f32 %v872, 1.442695
    %v989 = vpow.pop %v988
    %v990 = vmul.f32 %v873, 1.442695
    %v991 = vpow.pop %v990
    %v992 = vmul.f32 %v874, 1.442695
    %v993 = vpow.pop %v992
    %v994 = vmul.f32 %v875, 1.442695
    %v995 = vpow.pop %v994
    %v996 = vmul.f32 %v876, 1.442695
    %v997 = vpow.pop %v996
    %v998 = vmul.f32 %v877, 1.442695
    %v999 = vpow.pop %v998
    %v1000 = vmul.f32 %v878, 1.442695
    %v1001 = vpow.pop %v1000
    %v1002 = vmul.f32 %v879, 1.442695
    %v1003 = vpow.pop %v1002
    %v1004 = vmul.f32 %v880, 1.442695
    %v1005 = vpow.pop %v1004
    %v1006 = vmul.f32 %v881, 1.442695
    %v1007 = vpow.pop %v1006
    %v1008 = vmul.f32 %v882, 1.442695
    %v1009 = vpow.pop %v1008
    %v1010 = vmul.f32 %v883, 1.442695
    %v1011 = vpow.pop %v1010
    %v1012 = vadd.f32 %v885, 1.0
    %v1013 = vadd.f32 %v887, 1.0
    %v1014 = vadd.f32 %v889, 1.0
    %v1015 = vadd.f32 %v891, 1.0
    %v1016 = vadd.f32 %v893, 1.0
    %v1017 = vadd.f32 %v895, 1.0
    %v1018 = vadd.f32 %v897, 1.0
    %v1019 = vadd.f32 %v899, 1.0
    %v1020 = vadd.f32 %v901, 1.0
    %v1021 = vadd.f32 %v903, 1.0
    %v1022 = vadd.f32 %v905, 1.0
    %v1023 = vadd.f32 %v907, 1.0
    %v1024 = vadd.f32 %v909, 1.0
    %v1025 = vadd.f32 %v911, 1.0
    %v1026 = vadd.f32 %v913, 1.0
    %v1027 = vadd.f32 %v915, 1.0
    %v1028 = vadd.f32 %v917, 1.0
    %v1029 = vadd.f32 %v919, 1.0
    %v1030 = vadd.f32 %v921, 1.0
    %v1031 = vadd.f32 %v923, 1.0
    %v1032 = vadd.f32 %v925, 1.0
    %v1033 = vadd.f32 %v927, 1.0
    %v1034 = vadd.f32 %v929, 1.0
    %v1035 = vadd.f32 %v931, 1.0
    %v1036 = vadd.f32 %v933, 1.0
    %v1037 = vadd.f32 %v935, 1.0
    %v1038 = vadd.f32 %v937, 1.0
    %v1039 = vadd.f32 %v939, 1.0
    %v1040 = vadd.f32 %v941, 1.0
    %v1041 = vadd.f32 %v943, 1.0
    %v1042 = vadd.f32 %v945, 1.0
    %v1043 = vadd.f32 %v947, 1.0
    %v1044 = vadd.f32 %v949, 1.0
    %v1045 = vadd.f32 %v951, 1.0
    %v1046 = vadd.f32 %v953, 1.0
    %v1047 = vadd.f32 %v955, 1.0
    %v1048 = vadd.f32 %v957, 1.0
    %v1049 = vadd.f32 %v959, 1.0
    %v1050 = vadd.f32 %v961, 1.0
    %v1051 = vadd.f32 %v963, 1.0
    %v1052 = vadd.f32 %v965, 1.0
    %v1053 = vadd.f32 %v967, 1.0
    %v1054 = vadd.f32 %v969, 1.0
    %v1055 = vadd.f32 %v971, 1.0
    %v1056 = vadd.f32 %v973, 1.0
    %v1057 = vadd.f32 %v975, 1.0
    %v1058 = vadd.f32 %v977, 1.0
    %v1059 = vadd.f32 %v979, 1.0
    %v1060 = vadd.f32 %v981, 1.0
    %v1061 = vadd.f32 %v983, 1.0
    %v1062 = vadd.f32 %v985, 1.0
    %v1063 = vadd.f32 %v987, 1.0
    %v1064 = vadd.f32 %v989, 1.0
    %v1065 = vadd.f32 %v991, 1.0
    %v1066 = vadd.f32 %v993, 1.0
    %v1067 = vadd.f32 %v995, 1.0
    %v1068 = vadd.f32 %v997, 1.0
    %v1069 = vadd.f32 %v999, 1.0
    %v1070 = vadd.f32 %v1001, 1.0
    %v1071 = vadd.f32 %v1003, 1.0
    %v1072 = vadd.f32 %v1005, 1.0
    %v1073 = vadd.f32 %v1007, 1.0
    %v1074 = vadd.f32 %v1009, 1.0
    %v1075 = vadd.f32 %v1011, 1.0
    %v1076 = vrcp.pop %v1012
    %v1077 = vrcp.pop %v1013
    %v1078 = vrcp.pop %v1014
    %v1079 = vrcp.pop %v1015
    %v1080 = vrcp.pop %v1016
    %v1081 = vrcp.pop %v1017
    %v1082 = vrcp.pop %v1018
    %v1083 = vrcp.pop %v1019
    %v1084 = vrcp.pop %v1020
    %v1085 = vrcp.pop %v1021
    %v1086 = vrcp.pop %v1022
    %v1087 = vrcp.pop %v1023
    %v1088 = vrcp.pop %v1024
    %v1089 = vrcp.pop %v1025
    %v1090 = vrcp.pop %v1026
    %v1091 = vrcp.pop %v1027
    %v1092 = vrcp.pop %v1028
    %v1093 = vrcp.pop %v1029
    %v1094 = vrcp.pop %v1030
    %v1095 = vrcp.pop %v1031
    %v1096 = vrcp.pop %v1032
    %v1097 = vrcp.pop %v1033
    %v1098 = vrcp.pop %v1034
    %v1099 = vrcp.pop %v1035
    %v1100 = vrcp.pop %v1036
    %v1101 = vrcp.pop %v1037
    %v1102 = vrcp.pop %v1038
    %v1103 = vrcp.pop %v1039
    %v1104 = vrcp.pop %v1040
    %v1105 = vrcp.pop %v1041
    %v1106 = vrcp.pop %v1042
    %v1107 = vrcp.pop %v1043
    %v1108 = vrcp.pop %v1044
    %v1109 = vrcp.pop %v1045
    %v1110 = vrcp.pop %v1046
    %v1111 = vrcp.pop %v1047
    %v1112 = vrcp.pop %v1048
    %v1113 = vrcp.pop %v1049
    %v1114 = vrcp.pop %v1050
    %v1115 = vrcp.pop %v1051
    %v1116 = vrcp.pop %v1052
    %v1117 = vrcp.pop %v1053
    %v1118 = vrcp.pop %v1054
    %v1119 = vrcp.pop %v1055
    %v1120 = vrcp.pop %v1056
    %v1121 = vrcp.pop %v1057
    %v1122 = vrcp.pop %v1058
    %v1123 = vrcp.pop %v1059
    %v1124 = vrcp.pop %v1060
    %v1125 = vrcp.pop %v1061
    %v1126 = vrcp.pop %v1062
    %v1127 = vrcp.pop %v1063
    %v1128 = vrcp.pop %v1064
    %v1129 = vrcp.pop %v1065
    %v1130 = vrcp.pop %v1066
    %v1131 = vrcp.pop %v1067
    %v1132 = vrcp.pop %v1068
    %v1133 = vrcp.pop %v1069
    %v1134 = vrcp.pop %v1070
    %v1135 = vrcp.pop %v1071
    %v1136 = vrcp.pop %v1072
    %v1137 = vrcp.pop %v1073
    %v1138 = vrcp.pop %v1074
    %v1139 = vrcp.pop %v1075
    %v1140 = vmul.f32 %v502, %v1076
    %v1141 = vmul.f32 %v506, %v1077
    %v1142 = vmul.f32 %v512, %v1078
    %v1143 = vmul.f32 %v516, %v1079
    %v1144 = vmul.f32 %v522, %v1080
    %v1145 = vmul.f32 %v526, %v1081
    %v1146 = vmul.f32 %v532, %v1082
    %v1147 = vmul.f32 %v536, %v1083
    %v1148 = vmul.f32 %v542, %v1084
    %v1149 = vmul.f32 %v546, %v1085
    %v1150 = vmul.f32 %v552, %v1086
    %v1151 = vmul.f32 %v556, %v1087
    %v1152 = vmul.f32 %v562, %v1088
    %v1153 = vmul.f32 %v566, %v1089
    %v1154 = vmul.f32 %v572, %v1090
    %v1155 = vmul.f32 %v576, %v1091
    %v1156 = vmul.f32 %v582, %v1092
    %v1157 = vmul.f32 %v586, %v1093
    %v1158 = vmul.f32 %v592, %v1094
    %v1159 = vmul.f32 %v596, %v1095
    %v1160 = vmul.f32 %v602, %v1096
    %v1161 = vmul.f32 %v606, %v1097
    %v1162 = vmul.f32 %v612, %v1098
    %v1163 = vmul.f32 %v616, %v1099
    %v1164 = vmul.f32 %v622, %v1100
    %v1165 = vmul.f32 %v626, %v1101
    %v1166 = vmul.f32 %v632, %v1102
    %v1167 = vmul.f32 %v636, %v1103
    %v1168 = vmul.f32 %v642, %v1104
    %v1169 = vmul.f32 %v646, %v1105
    %v1170 = vmul.f32 %v652, %v1106
    %v1171 = vmul.f32 %v656, %v1107
    %v1172 = vmul.f32 %v662, %v1108
    %v1173 = vmul.f32 %v666, %v1109
    %v1174 = vmul.f32 %v672, %v1110
    %v1175 = vmul.f32 %v676, %v1111
    %v1176 = vmul.f32 %v682, %v1112
    %v1177 = vmul.f32 %v686, %v1113
    %v1178 = vmul.f32 %v692, %v1114
    %v1179 = vmul.f32 %v696, %v1115
    %v1180 = vmul.f32 %v702, %v1116
    %v1181 = vmul.f32 %v706, %v1117
    %v1182 = vmul.f32 %v712, %v1118
    %v1183 = vmul.f32 %v716, %v1119
    %v1184 = vmul.f32 %v722, %v1120
    %v1185 = vmul.f32 %v726, %v1121
    %v1186 = vmul.f32 %v732, %v1122
    %v1187 = vmul.f32 %v736, %v1123
    %v1188 = vmul.f32 %v742, %v1124
    %v1189 = vmul.f32 %v746, %v1125
    %v1190 = vmul.f32 %v752, %v1126
    %v1191 = vmul.f32 %v756, %v1127
    %v1192 = vmul.f32 %v762, %v1128
    %v1193 = vmul.f32 %v766, %v1129
    %v1194 = vmul.f32 %v772, %v1130
    %v1195 = vmul.f32 %v776, %v1131
    %v1196 = vmul.f32 %v782, %v1132
    %v1197 = vmul.f32 %v786, %v1133
    %v1198 = vmul.f32 %v792, %v1134
    %v1199 = vmul.f32 %v796, %v1135
    %v1200 = vmul.f32 %v802, %v1136
    %v1201 = vmul.f32 %v806, %v1137
    %v1202 = vmul.f32 %v812, %v1138
    %v1203 = vmul.f32 %v816, %v1139
    %v1204 = vsub.f32 0.0, %v504
    %v1205 = vsub.f32 0.0, %v508
    %v1206 = vsub.f32 0.0, %v514
    %v1207 = vsub.f32 0.0, %v518
    %v1208 = vsub.f32 0.0, %v524
    %v1209 = vsub.f32 0.0, %v528
    %v1210 = vsub.f32 0.0, %v534
    %v1211 = vsub.f32 0.0, %v538
    %v1212 = vsub.f32 0.0, %v544
    %v1213 = vsub.f32 0.0, %v548
    %v1214 = vsub.f32 0.0, %v554
    %v1215 = vsub.f32 0.0, %v558
    %v1216 = vsub.f32 0.0, %v564
    %v1217 = vsub.f32 0.0, %v568
    %v1218 = vsub.f32 0.0, %v574
    %v1219 = vsub.f32 0.0, %v578
    %v1220 = vsub.f32 0.0, %v584
    %v1221 = vsub.f32 0.0, %v588
    %v1222 = vsub.f32 0.0, %v594
    %v1223 = vsub.f32 0.0, %v598
    %v1224 = vsub.f32 0.0, %v604
    %v1225 = vsub.f32 0.0, %v608
    %v1226 = vsub.f32 0.0, %v614
    %v1227 = vsub.f32 0.0, %v618
    %v1228 = vsub.f32 0.0, %v624
    %v1229 = vsub.f32 0.0, %v628
    %v1230 = vsub.f32 0.0, %v634
    %v1231 = vsub.f32 0.0, %v638
    %v1232 = vsub.f32 0.0, %v644
    %v1233 = vsub.f32 0.0, %v648
    %v1234 = vsub.f32 0.0, %v654
    %v1235 = vsub.f32 0.0, %v658
    %v1236 = vsub.f32 0.0, %v664
    %v1237 = vsub.f32 0.0, %v668
    %v1238 = vsub.f32 0.0, %v674
    %v1239 = vsub.f32 0.0, %v678
    %v1240 = vsub.f32 0.0, %v684
    %v1241 = vsub.f32 0.0, %v688
    %v1242 = vsub.f32 0.0, %v694
    %v1243 = vsub.f32 0.0, %v698
    %v1244 = vsub.f32 0.0, %v704
    %v1245 = vsub.f32 0.0, %v708
    %v1246 = vsub.f32 0.0, %v714
    %v1247 = vsub.f32 0.0, %v718
    %v1248 = vsub.f32 0.0, %v724
    %v1249 = vsub.f32 0.0, %v728
    %v1250 = vsub.f32 0.0, %v734
    %v1251 = vsub.f32 0.0, %v738
    %v1252 = vsub.f32 0.0, %v744
    %v1253 = vsub.f32 0.0, %v748
    %v1254 = vsub.f32 0.0, %v754
    %v1255 = vsub.f32 0.0, %v758
    %v1256 = vsub.f32 0.0, %v764
    %v1257 = vsub.f32 0.0, %v768
    %v1258 = vsub.f32 0.0, %v774
    %v1259 = vsub.f32 0.0, %v778
    %v1260 = vsub.f32 0.0, %v784
    %v1261 = vsub.f32 0.0, %v788
    %v1262 = vsub.f32 0.0, %v794
    %v1263 = vsub.f32 0.0, %v798
    %v1264 = vsub.f32 0.0, %v804
    %v1265 = vsub.f32 0.0, %v808
    %v1266 = vsub.f32 0.0, %v814
    %v1267 = vsub.f32 0.0, %v818
    %v1268 = vmul.f32 %v1204, 1.442695
    %v1269 = vpow.pop %v1268
    %v1270 = vmul.f32 %v1205, 1.442695
    %v1271 = vpow.pop %v1270
    %v1272 = vmul.f32 %v1206, 1.442695
    %v1273 = vpow.pop %v1272
    %v1274 = vmul.f32 %v1207, 1.442695
    %v1275 = vpow.pop %v1274
    %v1276 = vmul.f32 %v1208, 1.442695
    %v1277 = vpow.pop %v1276
    %v1278 = vmul.f32 %v1209, 1.442695
    %v1279 = vpow.pop %v1278
    %v1280 = vmul.f32 %v1210, 1.442695
    %v1281 = vpow.pop %v1280
    %v1282 = vmul.f32 %v1211, 1.442695
    %v1283 = vpow.pop %v1282
    %v1284 = vmul.f32 %v1212, 1.442695
    %v1285 = vpow.pop %v1284
    %v1286 = vmul.f32 %v1213, 1.442695
    %v1287 = vpow.pop %v1286
    %v1288 = vmul.f32 %v1214, 1.442695
    %v1289 = vpow.pop %v1288
    %v1290 = vmul.f32 %v1215, 1.442695
    %v1291 = vpow.pop %v1290
    %v1292 = vmul.f32 %v1216, 1.442695
    %v1293 = vpow.pop %v1292
    %v1294 = vmul.f32 %v1217, 1.442695
    %v1295 = vpow.pop %v1294
    %v1296 = vmul.f32 %v1218, 1.442695
    %v1297 = vpow.pop %v1296
    %v1298 = vmul.f32 %v1219, 1.442695
    %v1299 = vpow.pop %v1298
    %v1300 = vmul.f32 %v1220, 1.442695
    %v1301 = vpow.pop %v1300
    %v1302 = vmul.f32 %v1221, 1.442695
    %v1303 = vpow.pop %v1302
    %v1304 = vmul.f32 %v1222, 1.442695
    %v1305 = vpow.pop %v1304
    %v1306 = vmul.f32 %v1223, 1.442695
    %v1307 = vpow.pop %v1306
    %v1308 = vmul.f32 %v1224, 1.442695
    %v1309 = vpow.pop %v1308
    %v1310 = vmul.f32 %v1225, 1.442695
    %v1311 = vpow.pop %v1310
    %v1312 = vmul.f32 %v1226, 1.442695
    %v1313 = vpow.pop %v1312
    %v1314 = vmul.f32 %v1227, 1.442695
    %v1315 = vpow.pop %v1314
    %v1316 = vmul.f32 %v1228, 1.442695
    %v1317 = vpow.pop %v1316
    %v1318 = vmul.f32 %v1229, 1.442695
    %v1319 = vpow.pop %v1318
    %v1320 = vmul.f32 %v1230, 1.442695
    %v1321 = vpow.pop %v1320
    %v1322 = vmul.f32 %v1231, 1.442695
    %v1323 = vpow.pop %v1322
    %v1324 = vmul.f32 %v1232, 1.442695
    %v1325 = vpow.pop %v1324
    %v1326 = vmul.f32 %v1233, 1.442695
    %v1327 = vpow.pop %v1326
    %v1328 = vmul.f32 %v1234, 1.442695
    %v1329 = vpow.pop %v1328
    %v1330 = vmul.f32 %v1235, 1.442695
    %v1331 = vpow.pop %v1330
    %v1332 = vmul.f32 %v1236, 1.442695
    %v1333 = vpow.pop %v1332
    %v1334 = vmul.f32 %v1237, 1.442695
    %v1335 = vpow.pop %v1334
    %v1336 = vmul.f32 %v1238, 1.442695
    %v1337 = vpow.pop %v1336
    %v1338 = vmul.f32 %v1239, 1.442695
    %v1339 = vpow.pop %v1338
    %v1340 = vmul.f32 %v1240, 1.442695
    %v1341 = vpow.pop %v1340
    %v1342 = vmul.f32 %v1241, 1.442695
    %v1343 = vpow.pop %v1342
    %v1344 = vmul.f32 %v1242, 1.442695
    %v1345 = vpow.pop %v1344
    %v1346 = vmul.f32 %v1243, 1.442695
    %v1347 = vpow.pop %v1346
    %v1348 = vmul.f32 %v1244, 1.442695
    %v1349 = vpow.pop %v1348
    %v1350 = vmul.f32 %v1245, 1.442695
    %v1351 = vpow.pop %v1350
    %v1352 = vmul.f32 %v1246, 1.442695
    %v1353 = vpow.pop %v1352
    %v1354 = vmul.f32 %v1247, 1.442695
    %v1355 = vpow.pop %v1354
    %v1356 = vmul.f32 %v1248, 1.442695
    %v1357 = vpow.pop %v1356
    %v1358 = vmul.f32 %v1249, 1.442695
    %v1359 = vpow.pop %v1358
    %v1360 = vmul.f32 %v1250, 1.442695
    %v1361 = vpow.pop %v1360
    %v1362 = vmul.f32 %v1251, 1.442695
    %v1363 = vpow.pop %v1362
    %v1364 = vmul.f32 %v1252, 1.442695
    %v1365 = vpow.pop %v1364
    %v1366 = vmul.f32 %v1253, 1.442695
    %v1367 = vpow.pop %v1366
    %v1368 = vmul.f32 %v1254, 1.442695
    %v1369 = vpow.pop %v1368
    %v1370 = vmul.f32 %v1255, 1.442695
    %v1371 = vpow.pop %v1370
    %v1372 = vmul.f32 %v1256, 1.442695
    %v1373 = vpow.pop %v1372
    %v1374 = vmul.f32 %v1257, 1.442695
    %v1375 = vpow.pop %v1374
    %v1376 = vmul.f32 %v1258, 1.442695
    %v1377 = vpow.pop %v1376
    %v1378 = vmul.f32 %v1259, 1.442695
    %v1379 = vpow.pop %v1378
    %v1380 = vmul.f32 %v1260, 1.442695
    %v1381 = vpow.pop %v1380
    %v1382 = vmul.f32 %v1261, 1.442695
    %v1383 = vpow.pop %v1382
    %v1384 = vmul.f32 %v1262, 1.442695
    %v1385 = vpow.pop %v1384
    %v1386 = vmul.f32 %v1263, 1.442695
    %v1387 = vpow.pop %v1386
    %v1388 = vmul.f32 %v1264, 1.442695
    %v1389 = vpow.pop %v1388
    %v1390 = vmul.f32 %v1265, 1.442695
    %v1391 = vpow.pop %v1390
    %v1392 = vmul.f32 %v1266, 1.442695
    %v1393 = vpow.pop %v1392
    %v1394 = vmul.f32 %v1267, 1.442695
    %v1395 = vpow.pop %v1394
    %v1396 = vadd.f32 %v1269, 1.0
    %v1397 = vadd.f32 %v1271, 1.0
    %v1398 = vadd.f32 %v1273, 1.0
    %v1399 = vadd.f32 %v1275, 1.0
    %v1400 = vadd.f32 %v1277, 1.0
    %v1401 = vadd.f32 %v1279, 1.0
    %v1402 = vadd.f32 %v1281, 1.0
    %v1403 = vadd.f32 %v1283, 1.0
    %v1404 = vadd.f32 %v1285, 1.0
    %v1405 = vadd.f32 %v1287, 1.0
    %v1406 = vadd.f32 %v1289, 1.0
    %v1407 = vadd.f32 %v1291, 1.0
    %v1408 = vadd.f32 %v1293, 1.0
    %v1409 = vadd.f32 %v1295, 1.0
    %v1410 = vadd.f32 %v1297, 1.0
    %v1411 = vadd.f32 %v1299, 1.0
    %v1412 = vadd.f32 %v1301, 1.0
    %v1413 = vadd.f32 %v1303, 1.0
    %v1414 = vadd.f32 %v1305, 1.0
    %v1415 = vadd.f32 %v1307, 1.0
    %v1416 = vadd.f32 %v1309, 1.0
    %v1417 = vadd.f32 %v1311, 1.0
    %v1418 = vadd.f32 %v1313, 1.0
    %v1419 = vadd.f32 %v1315, 1.0
    %v1420 = vadd.f32 %v1317, 1.0
    %v1421 = vadd.f32 %v1319, 1.0
    %v1422 = vadd.f32 %v1321, 1.0
    %v1423 = vadd.f32 %v1323, 1.0
    %v1424 = vadd.f32 %v1325, 1.0
    %v1425 = vadd.f32 %v1327, 1.0
    %v1426 = vadd.f32 %v1329, 1.0
    %v1427 = vadd.f32 %v1331, 1.0
    %v1428 = vadd.f32 %v1333, 1.0
    %v1429 = vadd.f32 %v1335, 1.0
    %v1430 = vadd.f32 %v1337, 1.0
    %v1431 = vadd.f32 %v1339, 1.0
    %v1432 = vadd.f32 %v1341, 1.0
    %v1433 = vadd.f32 %v1343, 1.0
    %v1434 = vadd.f32 %v1345, 1.0
    %v1435 = vadd.f32 %v1347, 1.0
    %v1436 = vadd.f32 %v1349, 1.0
    %v1437 = vadd.f32 %v1351, 1.0
    %v1438 = vadd.f32 %v1353, 1.0
    %v1439 = vadd.f32 %v1355, 1.0
    %v1440 = vadd.f32 %v1357, 1.0
    %v1441 = vadd.f32 %v1359, 1.0
    %v1442 = vadd.f32 %v1361, 1.0
    %v1443 = vadd.f32 %v1363, 1.0
    %v1444 = vadd.f32 %v1365, 1.0
    %v1445 = vadd.f32 %v1367, 1.0
    %v1446 = vadd.f32 %v1369, 1.0
    %v1447 = vadd.f32 %v1371, 1.0
    %v1448 = vadd.f32 %v1373, 1.0
    %v1449 = vadd.f32 %v1375, 1.0
    %v1450 = vadd.f32 %v1377, 1.0
    %v1451 = vadd.f32 %v1379, 1.0
    %v1452 = vadd.f32 %v1381, 1.0
    %v1453 = vadd.f32 %v1383, 1.0
    %v1454 = vadd.f32 %v1385, 1.0
    %v1455 = vadd.f32 %v1387, 1.0
    %v1456 = vadd.f32 %v1389, 1.0
    %v1457 = vadd.f32 %v1391, 1.0
    %v1458 = vadd.f32 %v1393, 1.0
    %v1459 = vadd.f32 %v1395, 1.0
    %v1460 = vrcp.pop %v1396
    %v1461 = vrcp.pop %v1397
    %v1462 = vrcp.pop %v1398
    %v1463 = vrcp.pop %v1399
    %v1464 = vrcp.pop %v1400
    %v1465 = vrcp.pop %v1401
    %v1466 = vrcp.pop %v1402
    %v1467 = vrcp.pop %v1403
    %v1468 = vrcp.pop %v1404
    %v1469 = vrcp.pop %v1405
    %v1470 = vrcp.pop %v1406
    %v1471 = vrcp.pop %v1407
    %v1472 = vrcp.pop %v1408
    %v1473 = vrcp.pop %v1409
    %v1474 = vrcp.pop %v1410
    %v1475 = vrcp.pop %v1411
    %v1476 = vrcp.pop %v1412
    %v1477 = vrcp.pop %v1413
    %v1478 = vrcp.pop %v1414
    %v1479 = vrcp.pop %v1415
    %v1480 = vrcp.pop %v1416
    %v1481 = vrcp.pop %v1417
    %v1482 = vrcp.pop %v1418
    %v1483 = vrcp.pop %v1419
    %v1484 = vrcp.pop %v1420
    %v1485 = vrcp.pop %v1421
    %v1486 = vrcp.pop %v1422
    %v1487 = vrcp.pop %v1423
    %v1488 = vrcp.pop %v1424
    %v1489 = vrcp.pop %v1425
    %v1490 = vrcp.pop %v1426
    %v1491 = vrcp.pop %v1427
    %v1492 = vrcp.pop %v1428
    %v1493 = vrcp.pop %v1429
    %v1494 = vrcp.pop %v1430
    %v1495 = vrcp.pop %v1431
    %v1496 = vrcp.pop %v1432
    %v1497 = vrcp.pop %v1433
    %v1498 = vrcp.pop %v1434
    %v1499 = vrcp.pop %v1435
    %v1500 = vrcp.pop %v1436
    %v1501 = vrcp.pop %v1437
    %v1502 = vrcp.pop %v1438
    %v1503 = vrcp.pop %v1439
    %v1504 = vrcp.pop %v1440
    %v1505 = vrcp.pop %v1441
    %v1506 = vrcp.pop %v1442
    %v1507 = vrcp.pop %v1443
    %v1508 = vrcp.pop %v1444
    %v1509 = vrcp.pop %v1445
    %v1510 = vrcp.pop %v1446
    %v1511 = vrcp.pop %v1447
    %v1512 = vrcp.pop %v1448
    %v1513 = vrcp.pop %v1449
    %v1514 = vrcp.pop %v1450
    %v1515 = vrcp.pop %v1451
    %v1516 = vrcp.pop %v1452
    %v1517 = vrcp.pop %v1453
    %v1518 = vrcp.pop %v1454
    %v1519 = vrcp.pop %v1455
    %v1520 = vrcp.pop %v1456
    %v1521 = vrcp.pop %v1457
    %v1522 = vrcp.pop %v1458
    %v1523 = vrcp.pop %v1459
    %v1524 = vmul.f32 %v504, %v1460
    %v1525 = vmul.f32 %v508, %v1461
    %v1526 = vmul.f32 %v514, %v1462
    %v1527 = vmul.f32 %v518, %v1463
    %v1528 = vmul.f32 %v524, %v1464
    %v1529 = vmul.f32 %v528, %v1465
    %v1530 = vmul.f32 %v534, %v1466
    %v1531 = vmul.f32 %v538, %v1467
    %v1532 = vmul.f32 %v544, %v1468
    %v1533 = vmul.f32 %v548, %v1469
    %v1534 = vmul.f32 %v554, %v1470
    %v1535 = vmul.f32 %v558, %v1471
    %v1536 = vmul.f32 %v564, %v1472
    %v1537 = vmul.f32 %v568, %v1473
    %v1538 = vmul.f32 %v574, %v1474
    %v1539 = vmul.f32 %v578, %v1475
    %v1540 = vmul.f32 %v584, %v1476
    %v1541 = vmul.f32 %v588, %v1477
    %v1542 = vmul.f32 %v594, %v1478
    %v1543 = vmul.f32 %v598, %v1479
    %v1544 = vmul.f32 %v604, %v1480
    %v1545 = vmul.f32 %v608, %v1481
    %v1546 = vmul.f32 %v614, %v1482
    %v1547 = vmul.f32 %v618, %v1483
    %v1548 = vmul.f32 %v624, %v1484
    %v1549 = vmul.f32 %v628, %v1485
    %v1550 = vmul.f32 %v634, %v1486
    %v1551 = vmul.f32 %v638, %v1487
    %v1552 = vmul.f32 %v644, %v1488
    %v1553 = vmul.f32 %v648, %v1489
    %v1554 = vmul.f32 %v654, %v1490
    %v1555 = vmul.f32 %v658, %v1491
    %v1556 = vmul.f32 %v664, %v1492
    %v1557 = vmul.f32 %v668, %v1493
    %v1558 = vmul.f32 %v674, %v1494
    %v1559 = vmul.f32 %v678, %v1495
    %v1560 = vmul.f32 %v684, %v1496
    %v1561 = vmul.f32 %v688, %v1497
    %v1562 = vmul.f32 %v694, %v1498
    %v1563 = vmul.f32 %v698, %v1499
    %v1564 = vmul.f32 %v704, %v1500
    %v1565 = vmul.f32 %v708, %v1501
    %v1566 = vmul.f32 %v714, %v1502
    %v1567 = vmul.f32 %v718, %v1503
    %v1568 = vmul.f32 %v724, %v1504
    %v1569 = vmul.f32 %v728, %v1505
    %v1570 = vmul.f32 %v734, %v1506
    %v1571 = vmul.f32 %v738, %v1507
    %v1572 = vmul.f32 %v744, %v1508
    %v1573 = vmul.f32 %v748, %v1509
    %v1574 = vmul.f32 %v754, %v1510
    %v1575 = vmul.f32 %v758, %v1511
    %v1576 = vmul.f32 %v764, %v1512
    %v1577 = vmul.f32 %v768, %v1513
    %v1578 = vmul.f32 %v774, %v1514
    %v1579 = vmul.f32 %v778, %v1515
    %v1580 = vmul.f32 %v784, %v1516
    %v1581 = vmul.f32 %v788, %v1517
    %v1582 = vmul.f32 %v794, %v1518
    %v1583 = vmul.f32 %v798, %v1519
    %v1584 = vmul.f32 %v804, %v1520
    %v1585 = vmul.f32 %v808, %v1521
    %v1586 = vmul.f32 %v814, %v1522
    %v1587 = vmul.f32 %v818, %v1523
    %v1588 = vpack.c.bf16 %v1141, %v1140
    %v1589 = vpack.c.bf16 %v1143, %v1142
    %v1590 = vpack.c.bf16 %v1145, %v1144
    %v1591 = vpack.c.bf16 %v1147, %v1146
    %v1592 = vpack.c.bf16 %v1149, %v1148
    %v1593 = vpack.c.bf16 %v1151, %v1150
    %v1594 = vpack.c.bf16 %v1153, %v1152
    %v1595 = vpack.c.bf16 %v1155, %v1154
    %v1596 = vpack.c.bf16 %v1157, %v1156
    %v1597 = vpack.c.bf16 %v1159, %v1158
    %v1598 = vpack.c.bf16 %v1161, %v1160
    %v1599 = vpack.c.bf16 %v1163, %v1162
    %v1600 = vpack.c.bf16 %v1165, %v1164
    %v1601 = vpack.c.bf16 %v1167, %v1166
    %v1602 = vpack.c.bf16 %v1169, %v1168
    %v1603 = vpack.c.bf16 %v1171, %v1170
    %v1604 = vpack.c.bf16 %v1173, %v1172
    %v1605 = vpack.c.bf16 %v1175, %v1174
    %v1606 = vpack.c.bf16 %v1177, %v1176
    %v1607 = vpack.c.bf16 %v1179, %v1178
    %v1608 = vpack.c.bf16 %v1181, %v1180
    %v1609 = vpack.c.bf16 %v1183, %v1182
    %v1610 = vpack.c.bf16 %v1185, %v1184
    %v1611 = vpack.c.bf16 %v1187, %v1186
    %v1612 = vpack.c.bf16 %v1189, %v1188
    %v1613 = vpack.c.bf16 %v1191, %v1190
    %v1614 = vpack.c.bf16 %v1193, %v1192
    %v1615 = vpack.c.bf16 %v1195, %v1194
    %v1616 = vpack.c.bf16 %v1197, %v1196
    %v1617 = vpack.c.bf16 %v1199, %v1198
    %v1618 = vpack.c.bf16 %v1201, %v1200
    %v1619 = vpack.c.bf16 %v1203, %v1202
    %v1620 = vld [vmem:[%s5] sm:$0xf]
    %v1621 = vld [vmem:[%s5 + $0x4] sm:$0xf]
    %v1622 = vld [vmem:[%s5 + $0x8] sm:$0xf]
    %v1623 = vld [vmem:[%s5 + $0xc] sm:$0xf]
    %v1624 = vld [vmem:[%s5 + $0x10] sm:$0xf]
    %v1625 = vld [vmem:[%s5 + $0x14] sm:$0xf]
    %v1626 = vld [vmem:[%s5 + $0x18] sm:$0xf]
    %v1627 = vld [vmem:[%s5 + $0x1c] sm:$0xf]
    %v1628 = vld [vmem:[%s5 + $0x20] sm:$0xf]
    %v1629 = vld [vmem:[%s5 + $0x24] sm:$0xf]
    %v1630 = vld [vmem:[%s5 + $0x28] sm:$0xf]
    %v1631 = vld [vmem:[%s5 + $0x2c] sm:$0xf]
    %v1632 = vld [vmem:[%s5 + $0x30] sm:$0xf]
    %v1633 = vld [vmem:[%s5 + $0x34] sm:$0xf]
    %v1634 = vld [vmem:[%s5 + $0x38] sm:$0xf]
    %v1635 = vld [vmem:[%s5 + $0x3c] sm:$0xf]
    %v1636 = vld [vmem:[%s6] sm:$0x1]
    %v1638 = vlaneseq
    %v1639 = vshrl.u32 %v1638, 7
    %v1640 = vsub.s32 0, %v1639
    %v1641 = vrot.slane %v1636, %v1640
    %v1659 = vunpack.c.l.b16 %v1620
    %v1660 = vunpack.c.l.b16 %v1621
    %v1661 = vunpack.c.l.b16 %v1622
    %v1662 = vunpack.c.l.b16 %v1623
    %v1663 = vunpack.c.l.b16 %v1624
    %v1664 = vunpack.c.l.b16 %v1625
    %v1665 = vunpack.c.l.b16 %v1626
    %v1666 = vunpack.c.l.b16 %v1627
    %v1667 = vunpack.c.l.b16 %v1628
    %v1668 = vunpack.c.l.b16 %v1629
    %v1669 = vunpack.c.l.b16 %v1630
    %v1670 = vunpack.c.l.b16 %v1631
    %v1671 = vunpack.c.l.b16 %v1632
    %v1672 = vunpack.c.l.b16 %v1633
    %v1673 = vunpack.c.l.b16 %v1634
    %v1674 = vunpack.c.l.b16 %v1635
    %v1675 = vpack.c.b16 %v1660, %v1659
    %v1676 = vpack.c.b16 %v1662, %v1661
    %v1677 = vpack.c.b16 %v1664, %v1663
    %v1678 = vpack.c.b16 %v1666, %v1665
    %v1679 = vpack.c.b16 %v1668, %v1667
    %v1680 = vpack.c.b16 %v1670, %v1669
    %v1681 = vpack.c.b16 %v1672, %v1671
    %v1682 = vpack.c.b16 %v1674, %v1673
    %1691 = vmatprep.subr.bf16.mxu0 0
    %1692 = vmatpush1.bf16.msra.mxu0 %v1675
    %1693 = vmatprep.subr.bf16.mxu0 0
    %1694 = vmatpush1.bf16.msra.mxu0 %v1676
    %1695 = vmatprep.subr.bf16.mxu0 0
    %1696 = vmatpush1.bf16.msra.mxu0 %v1677
    %1697 = vmatprep.subr.bf16.mxu0 0
    %1698 = vmatpush1.bf16.msra.mxu0 %v1678
    %1699 = vmatprep.subr.bf16.mxu0 0
    %1700 = vmatpush1.bf16.msra.mxu0 %v1679
    %1701 = vmatprep.subr.bf16.mxu0 0
    %1702 = vmatpush1.bf16.msra.mxu0 %v1680
    %1703 = vmatprep.subr.bf16.mxu0 0
    %1704 = vmatpush1.bf16.msra.mxu0 %v1681
    %1705 = vmatprep.subr.bf16.mxu0 0
    %1706 = vmatpush1.bf16.msra.mxu0 %v1682
    %1707 = vmatprep.subr.bf16.mxu0 0
    %1708 = vmatpush1.bf16.msra.mxu0 0
    %1709 = vmatprep.subr.bf16.mxu0 0
    %1710 = vmatpush1.bf16.msra.mxu0 0
    %1711 = vmatprep.subr.bf16.mxu0 0
    %1712 = vmatpush1.bf16.msra.mxu0 0
    %1713 = vmatprep.subr.bf16.mxu0 0
    %1714 = vmatpush1.bf16.msra.mxu0 0
    %1715 = vmatprep.subr.bf16.mxu0 0
    %1716 = vmatpush1.bf16.msra.mxu0 0
    %1717 = vmatprep.subr.bf16.mxu0 0
    %1718 = vmatpush1.bf16.msra.mxu0 0
    %1719 = vmatprep.subr.bf16.mxu0 0
    %1720 = vmatpush1.bf16.msra.mxu0 0
    %1721 = vmatprep.subr.bf16.mxu0 0
    %1722 = vmatpush1.bf16.msra.mxu0 0
    %1723 = vmatprep.mubr.bf16.mxu0 0
    %1724 = vmatmul.mubr.bf16.gmra.mrb[0].mxu0 %v1588
    %v1725 = vpop.f32.mrb[0].mxu0
    %v1726 = vadd.f32 %v1641, %v1725
    %v1727 = vpop.f32.mrb[0].mxu0
    %v1728 = vpop.f32.mrb[0].mxu0
    %v1729 = vadd.f32 %v1641, %v1728
    %v1730 = vpop.f32.mrb[0].mxu0
    %1731 = vmatprep.mubr.bf16.mxu0 0
    %1732 = vmatmul.mubr.bf16.gmra.mrb[0].mxu0 %v1589
    %v1733 = vpop.f32.mrb[0].mxu0
    %v1734 = vadd.f32 %v1641, %v1733
    %v1735 = vpop.f32.mrb[0].mxu0
    %v1736 = vpop.f32.mrb[0].mxu0
    %v1737 = vadd.f32 %v1641, %v1736
    %v1738 = vpop.f32.mrb[0].mxu0
    %1739 = vmatprep.mubr.bf16.mxu0 0
    %1740 = vmatmul.mubr.bf16.gmra.mrb[0].mxu0 %v1590
    %v1741 = vpop.f32.mrb[0].mxu0
    %v1742 = vadd.f32 %v1641, %v1741
    %v1743 = vpop.f32.mrb[0].mxu0
    %v1744 = vpop.f32.mrb[0].mxu0
    %v1745 = vadd.f32 %v1641, %v1744
    %v1746 = vpop.f32.mrb[0].mxu0
    %1747 = vmatprep.mubr.bf16.mxu0 0
    %1748 = vmatmul.mubr.bf16.gmra.mrb[0].mxu0 %v1591
    %v1749 = vpop.f32.mrb[0].mxu0
    %v1750 = vadd.f32 %v1641, %v1749
    %v1751 = vpop.f32.mrb[0].mxu0
    %v1752 = vpop.f32.mrb[0].mxu0
    %v1753 = vadd.f32 %v1641, %v1752
    %v1754 = vpop.f32.mrb[0].mxu0
    %1755 = vmatprep.mubr.bf16.mxu0 0
    %1756 = vmatmul.mubr.bf16.gmra.mrb[0].mxu0 %v1592
    %v1757 = vpop.f32.mrb[0].mxu0
    %v1758 = vadd.f32 %v1641, %v1757
    %v1759 = vpop.f32.mrb[0].mxu0
    %v1760 = vpop.f32.mrb[0].mxu0
    %v1761 = vadd.f32 %v1641, %v1760
    %v1762 = vpop.f32.mrb[0].mxu0
    %1763 = vmatprep.mubr.bf16.mxu0 0
    %1764 = vmatmul.mubr.bf16.gmra.mrb[0].mxu0 %v1593
    %v1765 = vpop.f32.mrb[0].mxu0
    %v1766 = vadd.f32 %v1641, %v1765
    %v1767 = vpop.f32.mrb[0].mxu0
    %v1768 = vpop.f32.mrb[0].mxu0
    %v1769 = vadd.f32 %v1641, %v1768
    %v1770 = vpop.f32.mrb[0].mxu0
    %1771 = vmatprep.mubr.bf16.mxu0 0
    %1772 = vmatmul.mubr.bf16.gmra.mrb[0].mxu0 %v1594
    %v1773 = vpop.f32.mrb[0].mxu0
    %v1774 = vadd.f32 %v1641, %v1773
    %v1775 = vpop.f32.mrb[0].mxu0
    %v1776 = vpop.f32.mrb[0].mxu0
    %v1777 = vadd.f32 %v1641, %v1776
    %v1778 = vpop.f32.mrb[0].mxu0
    %1779 = vmatprep.mubr.bf16.mxu0 0
    %1780 = vmatmul.mubr.bf16.gmra.mrb[0].mxu0 %v1595
    %v1781 = vpop.f32.mrb[0].mxu0
    %v1782 = vadd.f32 %v1641, %v1781
    %v1783 = vpop.f32.mrb[0].mxu0
    %v1784 = vpop.f32.mrb[0].mxu0
    %v1785 = vadd.f32 %v1641, %v1784
    %v1786 = vpop.f32.mrb[0].mxu0
    %1787 = vmatprep.mubr.bf16.mxu0 0
    %1788 = vmatmul.mubr.bf16.gmra.mrb[0].mxu0 %v1596
    %v1789 = vpop.f32.mrb[0].mxu0
    %v1790 = vadd.f32 %v1641, %v1789
    %v1791 = vpop.f32.mrb[0].mxu0
    %v1792 = vpop.f32.mrb[0].mxu0
    %v1793 = vadd.f32 %v1641, %v1792
    %v1794 = vpop.f32.mrb[0].mxu0
    %1795 = vmatprep.mubr.bf16.mxu0 0
    %1796 = vmatmul.mubr.bf16.gmra.mrb[0].mxu0 %v1597
    %v1797 = vpop.f32.mrb[0].mxu0
    %v1798 = vadd.f32 %v1641, %v1797
    %v1799 = vpop.f32.mrb[0].mxu0
    %v1800 = vpop.f32.mrb[0].mxu0
    %v1801 = vadd.f32 %v1641, %v1800
    %v1802 = vpop.f32.mrb[0].mxu0
    %1803 = vmatprep.mubr.bf16.mxu0 0
    %1804 = vmatmul.mubr.bf16.gmra.mrb[0].mxu0 %v1598
    %v1805 = vpop.f32.mrb[0].mxu0
    %v1806 = vadd.f32 %v1641, %v1805
    %v1807 = vpop.f32.mrb[0].mxu0
    %v1808 = vpop.f32.mrb[0].mxu0
    %v1809 = vadd.f32 %v1641, %v1808
    %v1810 = vpop.f32.mrb[0].mxu0
    %1811 = vmatprep.mubr.bf16.mxu0 0
    %1812 = vmatmul.mubr.bf16.gmra.mrb[0].mxu0 %v1599
    %v1813 = vpop.f32.mrb[0].mxu0
    %v1814 = vadd.f32 %v1641, %v1813
    %v1815 = vpop.f32.mrb[0].mxu0
    %v1816 = vpop.f32.mrb[0].mxu0
    %v1817 = vadd.f32 %v1641, %v1816
    %v1818 = vpop.f32.mrb[0].mxu0
    %1819 = vmatprep.mubr.bf16.mxu0 0
    %1820 = vmatmul.mubr.bf16.gmra.mrb[0].mxu0 %v1600
    %v1821 = vpop.f32.mrb[0].mxu0
    %v1822 = vadd.f32 %v1641, %v1821
    %v1823 = vpop.f32.mrb[0].mxu0
    %v1824 = vpop.f32.mrb[0].mxu0
    %v1825 = vadd.f32 %v1641, %v1824
    %v1826 = vpop.f32.mrb[0].mxu0
    %1827 = vmatprep.mubr.bf16.mxu0 0
    %1828 = vmatmul.mubr.bf16.gmra.mrb[0].mxu0 %v1601
    %v1829 = vpop.f32.mrb[0].mxu0
    %v1830 = vadd.f32 %v1641, %v1829
    %v1831 = vpop.f32.mrb[0].mxu0
    %v1832 = vpop.f32.mrb[0].mxu0
    %v1833 = vadd.f32 %v1641, %v1832
    %v1834 = vpop.f32.mrb[0].mxu0
    %1835 = vmatprep.mubr.bf16.mxu0 0
    %1836 = vmatmul.mubr.bf16.gmra.mrb[0].mxu0 %v1602
    %v1837 = vpop.f32.mrb[0].mxu0
    %v1838 = vadd.f32 %v1641, %v1837
    %v1839 = vpop.f32.mrb[0].mxu0
    %v1840 = vpop.f32.mrb[0].mxu0
    %v1841 = vadd.f32 %v1641, %v1840
    %v1842 = vpop.f32.mrb[0].mxu0
    %1843 = vmatprep.mubr.bf16.mxu0 0
    %1844 = vmatmul.mubr.bf16.gmra.mrb[0].mxu0 %v1603
    %v1845 = vpop.f32.mrb[0].mxu0
    %v1846 = vadd.f32 %v1641, %v1845
    %v1847 = vpop.f32.mrb[0].mxu0
    %v1848 = vpop.f32.mrb[0].mxu0
    %v1849 = vadd.f32 %v1641, %v1848
    %v1850 = vpop.f32.mrb[0].mxu0
    %1851 = vmatprep.mubr.bf16.mxu0 0
    %1852 = vmatmul.mubr.bf16.gmra.mrb[0].mxu0 %v1604
    %v1853 = vpop.f32.mrb[0].mxu0
    %v1854 = vadd.f32 %v1641, %v1853
    %v1855 = vpop.f32.mrb[0].mxu0
    %v1856 = vpop.f32.mrb[0].mxu0
    %v1857 = vadd.f32 %v1641, %v1856
    %v1858 = vpop.f32.mrb[0].mxu0
    %1859 = vmatprep.mubr.bf16.mxu0 0
    %1860 = vmatmul.mubr.bf16.gmra.mrb[0].mxu0 %v1605
    %v1861 = vpop.f32.mrb[0].mxu0
    %v1862 = vadd.f32 %v1641, %v1861
    %v1863 = vpop.f32.mrb[0].mxu0
    %v1864 = vpop.f32.mrb[0].mxu0
    %v1865 = vadd.f32 %v1641, %v1864
    %v1866 = vpop.f32.mrb[0].mxu0
    %1867 = vmatprep.mubr.bf16.mxu0 0
    %1868 = vmatmul.mubr.bf16.gmra.mrb[0].mxu0 %v1606
    %v1869 = vpop.f32.mrb[0].mxu0
    %v1870 = vadd.f32 %v1641, %v1869
    %v1871 = vpop.f32.mrb[0].mxu0
    %v1872 = vpop.f32.mrb[0].mxu0
    %v1873 = vadd.f32 %v1641, %v1872
    %v1874 = vpop.f32.mrb[0].mxu0
    %1875 = vmatprep.mubr.bf16.mxu0 0
    %1876 = vmatmul.mubr.bf16.gmra.mrb[0].mxu0 %v1607
    %v1877 = vpop.f32.mrb[0].mxu0
    %v1878 = vadd.f32 %v1641, %v1877
    %v1879 = vpop.f32.mrb[0].mxu0
    %v1880 = vpop.f32.mrb[0].mxu0
    %v1881 = vadd.f32 %v1641, %v1880
    %v1882 = vpop.f32.mrb[0].mxu0
    %1883 = vmatprep.mubr.bf16.mxu0 0
    %1884 = vmatmul.mubr.bf16.gmra.mrb[0].mxu0 %v1608
    %v1885 = vpop.f32.mrb[0].mxu0
    %v1886 = vadd.f32 %v1641, %v1885
    %v1887 = vpop.f32.mrb[0].mxu0
    %v1888 = vpop.f32.mrb[0].mxu0
    %v1889 = vadd.f32 %v1641, %v1888
    %v1890 = vpop.f32.mrb[0].mxu0
    %1891 = vmatprep.mubr.bf16.mxu0 0
    %1892 = vmatmul.mubr.bf16.gmra.mrb[0].mxu0 %v1609
    %v1893 = vpop.f32.mrb[0].mxu0
    %v1894 = vadd.f32 %v1641, %v1893
    %v1895 = vpop.f32.mrb[0].mxu0
    %v1896 = vpop.f32.mrb[0].mxu0
    %v1897 = vadd.f32 %v1641, %v1896
    %v1898 = vpop.f32.mrb[0].mxu0
    %1899 = vmatprep.mubr.bf16.mxu0 0
    %1900 = vmatmul.mubr.bf16.gmra.mrb[0].mxu0 %v1610
    %v1901 = vpop.f32.mrb[0].mxu0
    %v1902 = vadd.f32 %v1641, %v1901
    %v1903 = vpop.f32.mrb[0].mxu0
    %v1904 = vpop.f32.mrb[0].mxu0
    %v1905 = vadd.f32 %v1641, %v1904
    %v1906 = vpop.f32.mrb[0].mxu0
    %1907 = vmatprep.mubr.bf16.mxu0 0
    %1908 = vmatmul.mubr.bf16.gmra.mrb[0].mxu0 %v1611
    %v1909 = vpop.f32.mrb[0].mxu0
    %v1910 = vadd.f32 %v1641, %v1909
    %v1911 = vpop.f32.mrb[0].mxu0
    %v1912 = vpop.f32.mrb[0].mxu0
    %v1913 = vadd.f32 %v1641, %v1912
    %v1914 = vpop.f32.mrb[0].mxu0
    %1915 = vmatprep.mubr.bf16.mxu0 0
    %1916 = vmatmul.mubr.bf16.gmra.mrb[0].mxu0 %v1612
    %v1917 = vpop.f32.mrb[0].mxu0
    %v1918 = vadd.f32 %v1641, %v1917
    %v1919 = vpop.f32.mrb[0].mxu0
    %v1920 = vpop.f32.mrb[0].mxu0
    %v1921 = vadd.f32 %v1641, %v1920
    %v1922 = vpop.f32.mrb[0].mxu0
    %1923 = vmatprep.mubr.bf16.mxu0 0
    %1924 = vmatmul.mubr.bf16.gmra.mrb[0].mxu0 %v1613
    %v1925 = vpop.f32.mrb[0].mxu0
    %v1926 = vadd.f32 %v1641, %v1925
    %v1927 = vpop.f32.mrb[0].mxu0
    %v1928 = vpop.f32.mrb[0].mxu0
    %v1929 = vadd.f32 %v1641, %v1928
    %v1930 = vpop.f32.mrb[0].mxu0
    %1931 = vmatprep.mubr.bf16.mxu0 0
    %1932 = vmatmul.mubr.bf16.gmra.mrb[0].mxu0 %v1614
    %v1933 = vpop.f32.mrb[0].mxu0
    %v1934 = vadd.f32 %v1641, %v1933
    %v1935 = vpop.f32.mrb[0].mxu0
    %v1936 = vpop.f32.mrb[0].mxu0
    %v1937 = vadd.f32 %v1641, %v1936
    %v1938 = vpop.f32.mrb[0].mxu0
    %1939 = vmatprep.mubr.bf16.mxu0 0
    %1940 = vmatmul.mubr.bf16.gmra.mrb[0].mxu0 %v1615
    %v1941 = vpop.f32.mrb[0].mxu0
    %v1942 = vadd.f32 %v1641, %v1941
    %v1943 = vpop.f32.mrb[0].mxu0
    %v1944 = vpop.f32.mrb[0].mxu0
    %v1945 = vadd.f32 %v1641, %v1944
    %v1946 = vpop.f32.mrb[0].mxu0
    %1947 = vmatprep.mubr.bf16.mxu0 0
    %1948 = vmatmul.mubr.bf16.gmra.mrb[0].mxu0 %v1616
    %v1949 = vpop.f32.mrb[0].mxu0
    %v1950 = vadd.f32 %v1641, %v1949
    %v1951 = vpop.f32.mrb[0].mxu0
    %v1952 = vpop.f32.mrb[0].mxu0
    %v1953 = vadd.f32 %v1641, %v1952
    %v1954 = vpop.f32.mrb[0].mxu0
    %1955 = vmatprep.mubr.bf16.mxu0 0
    %1956 = vmatmul.mubr.bf16.gmra.mrb[0].mxu0 %v1617
    %v1957 = vpop.f32.mrb[0].mxu0
    %v1958 = vadd.f32 %v1641, %v1957
    %v1959 = vpop.f32.mrb[0].mxu0
    %v1960 = vpop.f32.mrb[0].mxu0
    %v1961 = vadd.f32 %v1641, %v1960
    %v1962 = vpop.f32.mrb[0].mxu0
    %1963 = vmatprep.mubr.bf16.mxu0 0
    %1964 = vmatmul.mubr.bf16.gmra.mrb[0].mxu0 %v1618
    %v1965 = vpop.f32.mrb[0].mxu0
    %v1966 = vadd.f32 %v1641, %v1965
    %v1967 = vpop.f32.mrb[0].mxu0
    %v1968 = vpop.f32.mrb[0].mxu0
    %v1969 = vadd.f32 %v1641, %v1968
    %v1970 = vpop.f32.mrb[0].mxu0
    %1971 = vmatprep.mubr.bf16.mxu0 0
    %1972 = vmatmul.mubr.bf16.gmra.mrb[0].mxu0 %v1619
    %v1973 = vpop.f32.mrb[0].mxu0
    %v1974 = vadd.f32 %v1641, %v1973
    %v1975 = vpop.f32.mrb[0].mxu0
    %v1976 = vpop.f32.mrb[0].mxu0
    %v1977 = vadd.f32 %v1641, %v1976
    %v1978 = vpop.f32.mrb[0].mxu0
    %1979 = vdwg.mxu0
    %v1980 = vsub.f32 0.0, %v1726
    %v1981 = vsub.f32 0.0, %v1729
    %v1982 = vsub.f32 0.0, %v1734
    %v1983 = vsub.f32 0.0, %v1737
    %v1984 = vsub.f32 0.0, %v1742
    %v1985 = vsub.f32 0.0, %v1745
    %v1986 = vsub.f32 0.0, %v1750
    %v1987 = vsub.f32 0.0, %v1753
    %v1988 = vsub.f32 0.0, %v1758
    %v1989 = vsub.f32 0.0, %v1761
    %v1990 = vsub.f32 0.0, %v1766
    %v1991 = vsub.f32 0.0, %v1769
    %v1992 = vsub.f32 0.0, %v1774
    %v1993 = vsub.f32 0.0, %v1777
    %v1994 = vsub.f32 0.0, %v1782
    %v1995 = vsub.f32 0.0, %v1785
    %v1996 = vsub.f32 0.0, %v1790
    %v1997 = vsub.f32 0.0, %v1793
    %v1998 = vsub.f32 0.0, %v1798
    %v1999 = vsub.f32 0.0, %v1801
    %v2000 = vsub.f32 0.0, %v1806
    %v2001 = vsub.f32 0.0, %v1809
    %v2002 = vsub.f32 0.0, %v1814
    %v2003 = vsub.f32 0.0, %v1817
    %v2004 = vsub.f32 0.0, %v1822
    %v2005 = vsub.f32 0.0, %v1825
    %v2006 = vsub.f32 0.0, %v1830
    %v2007 = vsub.f32 0.0, %v1833
    %v2008 = vsub.f32 0.0, %v1838
    %v2009 = vsub.f32 0.0, %v1841
    %v2010 = vsub.f32 0.0, %v1846
    %v2011 = vsub.f32 0.0, %v1849
    %v2012 = vsub.f32 0.0, %v1854
    %v2013 = vsub.f32 0.0, %v1857
    %v2014 = vsub.f32 0.0, %v1862
    %v2015 = vsub.f32 0.0, %v1865
    %v2016 = vsub.f32 0.0, %v1870
    %v2017 = vsub.f32 0.0, %v1873
    %v2018 = vsub.f32 0.0, %v1878
    %v2019 = vsub.f32 0.0, %v1881
    %v2020 = vsub.f32 0.0, %v1886
    %v2021 = vsub.f32 0.0, %v1889
    %v2022 = vsub.f32 0.0, %v1894
    %v2023 = vsub.f32 0.0, %v1897
    %v2024 = vsub.f32 0.0, %v1902
    %v2025 = vsub.f32 0.0, %v1905
    %v2026 = vsub.f32 0.0, %v1910
    %v2027 = vsub.f32 0.0, %v1913
    %v2028 = vsub.f32 0.0, %v1918
    %v2029 = vsub.f32 0.0, %v1921
    %v2030 = vsub.f32 0.0, %v1926
    %v2031 = vsub.f32 0.0, %v1929
    %v2032 = vsub.f32 0.0, %v1934
    %v2033 = vsub.f32 0.0, %v1937
    %v2034 = vsub.f32 0.0, %v1942
    %v2035 = vsub.f32 0.0, %v1945
    %v2036 = vsub.f32 0.0, %v1950
    %v2037 = vsub.f32 0.0, %v1953
    %v2038 = vsub.f32 0.0, %v1958
    %v2039 = vsub.f32 0.0, %v1961
    %v2040 = vsub.f32 0.0, %v1966
    %v2041 = vsub.f32 0.0, %v1969
    %v2042 = vsub.f32 0.0, %v1974
    %v2043 = vsub.f32 0.0, %v1977
    %v2044 = vmul.f32 %v1980, 1.442695
    %v2045 = vpow.pop %v2044
    %v2046 = vmul.f32 %v1981, 1.442695
    %v2047 = vpow.pop %v2046
    %v2048 = vmul.f32 %v1982, 1.442695
    %v2049 = vpow.pop %v2048
    %v2050 = vmul.f32 %v1983, 1.442695
    %v2051 = vpow.pop %v2050
    %v2052 = vmul.f32 %v1984, 1.442695
    %v2053 = vpow.pop %v2052
    %v2054 = vmul.f32 %v1985, 1.442695
    %v2055 = vpow.pop %v2054
    %v2056 = vmul.f32 %v1986, 1.442695
    %v2057 = vpow.pop %v2056
    %v2058 = vmul.f32 %v1987, 1.442695
    %v2059 = vpow.pop %v2058
    %v2060 = vmul.f32 %v1988, 1.442695
    %v2061 = vpow.pop %v2060
    %v2062 = vmul.f32 %v1989, 1.442695
    %v2063 = vpow.pop %v2062
    %v2064 = vmul.f32 %v1990, 1.442695
    %v2065 = vpow.pop %v2064
    %v2066 = vmul.f32 %v1991, 1.442695
    %v2067 = vpow.pop %v2066
    %v2068 = vmul.f32 %v1992, 1.442695
    %v2069 = vpow.pop %v2068
    %v2070 = vmul.f32 %v1993, 1.442695
    %v2071 = vpow.pop %v2070
    %v2072 = vmul.f32 %v1994, 1.442695
    %v2073 = vpow.pop %v2072
    %v2074 = vmul.f32 %v1995, 1.442695
    %v2075 = vpow.pop %v2074
    %v2076 = vmul.f32 %v1996, 1.442695
    %v2077 = vpow.pop %v2076
    %v2078 = vmul.f32 %v1997, 1.442695
    %v2079 = vpow.pop %v2078
    %v2080 = vmul.f32 %v1998, 1.442695
    %v2081 = vpow.pop %v2080
    %v2082 = vmul.f32 %v1999, 1.442695
    %v2083 = vpow.pop %v2082
    %v2084 = vmul.f32 %v2000, 1.442695
    %v2085 = vpow.pop %v2084
    %v2086 = vmul.f32 %v2001, 1.442695
    %v2087 = vpow.pop %v2086
    %v2088 = vmul.f32 %v2002, 1.442695
    %v2089 = vpow.pop %v2088
    %v2090 = vmul.f32 %v2003, 1.442695
    %v2091 = vpow.pop %v2090
    %v2092 = vmul.f32 %v2004, 1.442695
    %v2093 = vpow.pop %v2092
    %v2094 = vmul.f32 %v2005, 1.442695
    %v2095 = vpow.pop %v2094
    %v2096 = vmul.f32 %v2006, 1.442695
    %v2097 = vpow.pop %v2096
    %v2098 = vmul.f32 %v2007, 1.442695
    %v2099 = vpow.pop %v2098
    %v2100 = vmul.f32 %v2008, 1.442695
    %v2101 = vpow.pop %v2100
    %v2102 = vmul.f32 %v2009, 1.442695
    %v2103 = vpow.pop %v2102
    %v2104 = vmul.f32 %v2010, 1.442695
    %v2105 = vpow.pop %v2104
    %v2106 = vmul.f32 %v2011, 1.442695
    %v2107 = vpow.pop %v2106
    %v2108 = vmul.f32 %v2012, 1.442695
    %v2109 = vpow.pop %v2108
    %v2110 = vmul.f32 %v2013, 1.442695
    %v2111 = vpow.pop %v2110
    %v2112 = vmul.f32 %v2014, 1.442695
    %v2113 = vpow.pop %v2112
    %v2114 = vmul.f32 %v2015, 1.442695
    %v2115 = vpow.pop %v2114
    %v2116 = vmul.f32 %v2016, 1.442695
    %v2117 = vpow.pop %v2116
    %v2118 = vmul.f32 %v2017, 1.442695
    %v2119 = vpow.pop %v2118
    %v2120 = vmul.f32 %v2018, 1.442695
    %v2121 = vpow.pop %v2120
    %v2122 = vmul.f32 %v2019, 1.442695
    %v2123 = vpow.pop %v2122
    %v2124 = vmul.f32 %v2020, 1.442695
    %v2125 = vpow.pop %v2124
    %v2126 = vmul.f32 %v2021, 1.442695
    %v2127 = vpow.pop %v2126
    %v2128 = vmul.f32 %v2022, 1.442695
    %v2129 = vpow.pop %v2128
    %v2130 = vmul.f32 %v2023, 1.442695
    %v2131 = vpow.pop %v2130
    %v2132 = vmul.f32 %v2024, 1.442695
    %v2133 = vpow.pop %v2132
    %v2134 = vmul.f32 %v2025, 1.442695
    %v2135 = vpow.pop %v2134
    %v2136 = vmul.f32 %v2026, 1.442695
    %v2137 = vpow.pop %v2136
    %v2138 = vmul.f32 %v2027, 1.442695
    %v2139 = vpow.pop %v2138
    %v2140 = vmul.f32 %v2028, 1.442695
    %v2141 = vpow.pop %v2140
    %v2142 = vmul.f32 %v2029, 1.442695
    %v2143 = vpow.pop %v2142
    %v2144 = vmul.f32 %v2030, 1.442695
    %v2145 = vpow.pop %v2144
    %v2146 = vmul.f32 %v2031, 1.442695
    %v2147 = vpow.pop %v2146
    %v2148 = vmul.f32 %v2032, 1.442695
    %v2149 = vpow.pop %v2148
    %v2150 = vmul.f32 %v2033, 1.442695
    %v2151 = vpow.pop %v2150
    %v2152 = vmul.f32 %v2034, 1.442695
    %v2153 = vpow.pop %v2152
    %v2154 = vmul.f32 %v2035, 1.442695
    %v2155 = vpow.pop %v2154
    %v2156 = vmul.f32 %v2036, 1.442695
    %v2157 = vpow.pop %v2156
    %v2158 = vmul.f32 %v2037, 1.442695
    %v2159 = vpow.pop %v2158
    %v2160 = vmul.f32 %v2038, 1.442695
    %v2161 = vpow.pop %v2160
    %v2162 = vmul.f32 %v2039, 1.442695
    %v2163 = vpow.pop %v2162
    %v2164 = vmul.f32 %v2040, 1.442695
    %v2165 = vpow.pop %v2164
    %v2166 = vmul.f32 %v2041, 1.442695
    %v2167 = vpow.pop %v2166
    %v2168 = vmul.f32 %v2042, 1.442695
    %v2169 = vpow.pop %v2168
    %v2170 = vmul.f32 %v2043, 1.442695
    %v2171 = vpow.pop %v2170
    %v2172 = vadd.f32 %v2045, 1.0
    %v2173 = vadd.f32 %v2047, 1.0
    %v2174 = vadd.f32 %v2049, 1.0
    %v2175 = vadd.f32 %v2051, 1.0
    %v2176 = vadd.f32 %v2053, 1.0
    %v2177 = vadd.f32 %v2055, 1.0
    %v2178 = vadd.f32 %v2057, 1.0
    %v2179 = vadd.f32 %v2059, 1.0
    %v2180 = vadd.f32 %v2061, 1.0
    %v2181 = vadd.f32 %v2063, 1.0
    %v2182 = vadd.f32 %v2065, 1.0
    %v2183 = vadd.f32 %v2067, 1.0
    %v2184 = vadd.f32 %v2069, 1.0
    %v2185 = vadd.f32 %v2071, 1.0
    %v2186 = vadd.f32 %v2073, 1.0
    %v2187 = vadd.f32 %v2075, 1.0
    %v2188 = vadd.f32 %v2077, 1.0
    %v2189 = vadd.f32 %v2079, 1.0
    %v2190 = vadd.f32 %v2081, 1.0
    %v2191 = vadd.f32 %v2083, 1.0
    %v2192 = vadd.f32 %v2085, 1.0
    %v2193 = vadd.f32 %v2087, 1.0
    %v2194 = vadd.f32 %v2089, 1.0
    %v2195 = vadd.f32 %v2091, 1.0
    %v2196 = vadd.f32 %v2093, 1.0
    %v2197 = vadd.f32 %v2095, 1.0
    %v2198 = vadd.f32 %v2097, 1.0
    %v2199 = vadd.f32 %v2099, 1.0
    %v2200 = vadd.f32 %v2101, 1.0
    %v2201 = vadd.f32 %v2103, 1.0
    %v2202 = vadd.f32 %v2105, 1.0
    %v2203 = vadd.f32 %v2107, 1.0
    %v2204 = vadd.f32 %v2109, 1.0
    %v2205 = vadd.f32 %v2111, 1.0
    %v2206 = vadd.f32 %v2113, 1.0
    %v2207 = vadd.f32 %v2115, 1.0
    %v2208 = vadd.f32 %v2117, 1.0
    %v2209 = vadd.f32 %v2119, 1.0
    %v2210 = vadd.f32 %v2121, 1.0
    %v2211 = vadd.f32 %v2123, 1.0
    %v2212 = vadd.f32 %v2125, 1.0
    %v2213 = vadd.f32 %v2127, 1.0
    %v2214 = vadd.f32 %v2129, 1.0
    %v2215 = vadd.f32 %v2131, 1.0
    %v2216 = vadd.f32 %v2133, 1.0
    %v2217 = vadd.f32 %v2135, 1.0
    %v2218 = vadd.f32 %v2137, 1.0
    %v2219 = vadd.f32 %v2139, 1.0
    %v2220 = vadd.f32 %v2141, 1.0
    %v2221 = vadd.f32 %v2143, 1.0
    %v2222 = vadd.f32 %v2145, 1.0
    %v2223 = vadd.f32 %v2147, 1.0
    %v2224 = vadd.f32 %v2149, 1.0
    %v2225 = vadd.f32 %v2151, 1.0
    %v2226 = vadd.f32 %v2153, 1.0
    %v2227 = vadd.f32 %v2155, 1.0
    %v2228 = vadd.f32 %v2157, 1.0
    %v2229 = vadd.f32 %v2159, 1.0
    %v2230 = vadd.f32 %v2161, 1.0
    %v2231 = vadd.f32 %v2163, 1.0
    %v2232 = vadd.f32 %v2165, 1.0
    %v2233 = vadd.f32 %v2167, 1.0
    %v2234 = vadd.f32 %v2169, 1.0
    %v2235 = vadd.f32 %v2171, 1.0
    %v2236 = vrcp.pop %v2172
    %v2237 = vrcp.pop %v2173
    %v2238 = vrcp.pop %v2174
    %v2239 = vrcp.pop %v2175
    %v2240 = vrcp.pop %v2176
    %v2241 = vrcp.pop %v2177
    %v2242 = vrcp.pop %v2178
    %v2243 = vrcp.pop %v2179
    %v2244 = vrcp.pop %v2180
    %v2245 = vrcp.pop %v2181
    %v2246 = vrcp.pop %v2182
    %v2247 = vrcp.pop %v2183
    %v2248 = vrcp.pop %v2184
    %v2249 = vrcp.pop %v2185
    %v2250 = vrcp.pop %v2186
    %v2251 = vrcp.pop %v2187
    %v2252 = vrcp.pop %v2188
    %v2253 = vrcp.pop %v2189
    %v2254 = vrcp.pop %v2190
    %v2255 = vrcp.pop %v2191
    %v2256 = vrcp.pop %v2192
    %v2257 = vrcp.pop %v2193
    %v2258 = vrcp.pop %v2194
    %v2259 = vrcp.pop %v2195
    %v2260 = vrcp.pop %v2196
    %v2261 = vrcp.pop %v2197
    %v2262 = vrcp.pop %v2198
    %v2263 = vrcp.pop %v2199
    %v2264 = vrcp.pop %v2200
    %v2265 = vrcp.pop %v2201
    %v2266 = vrcp.pop %v2202
    %v2267 = vrcp.pop %v2203
    %v2268 = vrcp.pop %v2204
    %v2269 = vrcp.pop %v2205
    %v2270 = vrcp.pop %v2206
    %v2271 = vrcp.pop %v2207
    %v2272 = vrcp.pop %v2208
    %v2273 = vrcp.pop %v2209
    %v2274 = vrcp.pop %v2210
    %v2275 = vrcp.pop %v2211
    %v2276 = vrcp.pop %v2212
    %v2277 = vrcp.pop %v2213
    %v2278 = vrcp.pop %v2214
    %v2279 = vrcp.pop %v2215
    %v2280 = vrcp.pop %v2216
    %v2281 = vrcp.pop %v2217
    %v2282 = vrcp.pop %v2218
    %v2283 = vrcp.pop %v2219
    %v2284 = vrcp.pop %v2220
    %v2285 = vrcp.pop %v2221
    %v2286 = vrcp.pop %v2222
    %v2287 = vrcp.pop %v2223
    %v2288 = vrcp.pop %v2224
    %v2289 = vrcp.pop %v2225
    %v2290 = vrcp.pop %v2226
    %v2291 = vrcp.pop %v2227
    %v2292 = vrcp.pop %v2228
    %v2293 = vrcp.pop %v2229
    %v2294 = vrcp.pop %v2230
    %v2295 = vrcp.pop %v2231
    %v2296 = vrcp.pop %v2232
    %v2297 = vrcp.pop %v2233
    %v2298 = vrcp.pop %v2234
    %v2299 = vrcp.pop %v2235
    %v2300 = vmul.f32 %v1726, %v2236
    %v2301 = vmul.f32 %v1729, %v2237
    %v2302 = vmul.f32 %v1734, %v2238
    %v2303 = vmul.f32 %v1737, %v2239
    %v2304 = vmul.f32 %v1742, %v2240
    %v2305 = vmul.f32 %v1745, %v2241
    %v2306 = vmul.f32 %v1750, %v2242
    %v2307 = vmul.f32 %v1753, %v2243
    %v2308 = vmul.f32 %v1758, %v2244
    %v2309 = vmul.f32 %v1761, %v2245
    %v2310 = vmul.f32 %v1766, %v2246
    %v2311 = vmul.f32 %v1769, %v2247
    %v2312 = vmul.f32 %v1774, %v2248
    %v2313 = vmul.f32 %v1777, %v2249
    %v2314 = vmul.f32 %v1782, %v2250
    %v2315 = vmul.f32 %v1785, %v2251
    %v2316 = vmul.f32 %v1790, %v2252
    %v2317 = vmul.f32 %v1793, %v2253
    %v2318 = vmul.f32 %v1798, %v2254
    %v2319 = vmul.f32 %v1801, %v2255
    %v2320 = vmul.f32 %v1806, %v2256
    %v2321 = vmul.f32 %v1809, %v2257
    %v2322 = vmul.f32 %v1814, %v2258
    %v2323 = vmul.f32 %v1817, %v2259
    %v2324 = vmul.f32 %v1822, %v2260
    %v2325 = vmul.f32 %v1825, %v2261
    %v2326 = vmul.f32 %v1830, %v2262
    %v2327 = vmul.f32 %v1833, %v2263
    %v2328 = vmul.f32 %v1838, %v2264
    %v2329 = vmul.f32 %v1841, %v2265
    %v2330 = vmul.f32 %v1846, %v2266
    %v2331 = vmul.f32 %v1849, %v2267
    %v2332 = vmul.f32 %v1854, %v2268
    %v2333 = vmul.f32 %v1857, %v2269
    %v2334 = vmul.f32 %v1862, %v2270
    %v2335 = vmul.f32 %v1865, %v2271
    %v2336 = vmul.f32 %v1870, %v2272
    %v2337 = vmul.f32 %v1873, %v2273
    %v2338 = vmul.f32 %v1878, %v2274
    %v2339 = vmul.f32 %v1881, %v2275
    %v2340 = vmul.f32 %v1886, %v2276
    %v2341 = vmul.f32 %v1889, %v2277
    %v2342 = vmul.f32 %v1894, %v2278
    %v2343 = vmul.f32 %v1897, %v2279
    %v2344 = vmul.f32 %v1902, %v2280
    %v2345 = vmul.f32 %v1905, %v2281
    %v2346 = vmul.f32 %v1910, %v2282
    %v2347 = vmul.f32 %v1913, %v2283
    %v2348 = vmul.f32 %v1918, %v2284
    %v2349 = vmul.f32 %v1921, %v2285
    %v2350 = vmul.f32 %v1926, %v2286
    %v2351 = vmul.f32 %v1929, %v2287
    %v2352 = vmul.f32 %v1934, %v2288
    %v2353 = vmul.f32 %v1937, %v2289
    %v2354 = vmul.f32 %v1942, %v2290
    %v2355 = vmul.f32 %v1945, %v2291
    %v2356 = vmul.f32 %v1950, %v2292
    %v2357 = vmul.f32 %v1953, %v2293
    %v2358 = vmul.f32 %v1958, %v2294
    %v2359 = vmul.f32 %v1961, %v2295
    %v2360 = vmul.f32 %v1966, %v2296
    %v2361 = vmul.f32 %v1969, %v2297
    %v2362 = vmul.f32 %v1974, %v2298
    %v2363 = vmul.f32 %v1977, %v2299
    %v2364 = vpack.c.bf16 %v1525, %v1524
    %v2365 = vpack.c.bf16 %v1527, %v1526
    %v2366 = vpack.c.bf16 %v1529, %v1528
    %v2367 = vpack.c.bf16 %v1531, %v1530
    %v2368 = vpack.c.bf16 %v1533, %v1532
    %v2369 = vpack.c.bf16 %v1535, %v1534
    %v2370 = vpack.c.bf16 %v1537, %v1536
    %v2371 = vpack.c.bf16 %v1539, %v1538
    %v2372 = vpack.c.bf16 %v1541, %v1540
    %v2373 = vpack.c.bf16 %v1543, %v1542
    %v2374 = vpack.c.bf16 %v1545, %v1544
    %v2375 = vpack.c.bf16 %v1547, %v1546
    %v2376 = vpack.c.bf16 %v1549, %v1548
    %v2377 = vpack.c.bf16 %v1551, %v1550
    %v2378 = vpack.c.bf16 %v1553, %v1552
    %v2379 = vpack.c.bf16 %v1555, %v1554
    %v2380 = vpack.c.bf16 %v1557, %v1556
    %v2381 = vpack.c.bf16 %v1559, %v1558
    %v2382 = vpack.c.bf16 %v1561, %v1560
    %v2383 = vpack.c.bf16 %v1563, %v1562
    %v2384 = vpack.c.bf16 %v1565, %v1564
    %v2385 = vpack.c.bf16 %v1567, %v1566
    %v2386 = vpack.c.bf16 %v1569, %v1568
    %v2387 = vpack.c.bf16 %v1571, %v1570
    %v2388 = vpack.c.bf16 %v1573, %v1572
    %v2389 = vpack.c.bf16 %v1575, %v1574
    %v2390 = vpack.c.bf16 %v1577, %v1576
    %v2391 = vpack.c.bf16 %v1579, %v1578
    %v2392 = vpack.c.bf16 %v1581, %v1580
    %v2393 = vpack.c.bf16 %v1583, %v1582
    %v2394 = vpack.c.bf16 %v1585, %v1584
    %v2395 = vpack.c.bf16 %v1587, %v1586
    %v2396 = vld [vmem:[#allocation8] sm:$0xf]
    %v2397 = vld [vmem:[#allocation8 + $0x4] sm:$0xf]
    %v2398 = vld [vmem:[#allocation8 + $0x8] sm:$0xf]
    %v2399 = vld [vmem:[#allocation8 + $0xc] sm:$0xf]
    %v2400 = vld [vmem:[#allocation8 + $0x10] sm:$0xf]
    %v2401 = vld [vmem:[#allocation8 + $0x14] sm:$0xf]
    %v2402 = vld [vmem:[#allocation8 + $0x18] sm:$0xf]
    %v2403 = vld [vmem:[#allocation8 + $0x1c] sm:$0xf]
    %v2404 = vld [vmem:[#allocation8 + $0x20] sm:$0xf]
    %v2405 = vld [vmem:[#allocation8 + $0x24] sm:$0xf]
    %v2406 = vld [vmem:[#allocation8 + $0x28] sm:$0xf]
    %v2407 = vld [vmem:[#allocation8 + $0x2c] sm:$0xf]
    %v2408 = vld [vmem:[#allocation8 + $0x30] sm:$0xf]
    %v2409 = vld [vmem:[#allocation8 + $0x34] sm:$0xf]
    %v2410 = vld [vmem:[#allocation8 + $0x38] sm:$0xf]
    %v2411 = vld [vmem:[#allocation8 + $0x3c] sm:$0xf]
    %v2412 = vld [vmem:[%s8] sm:$0x1]
    %v2414 = vlaneseq
    %v2415 = vshrl.u32 %v2414, 7
    %v2416 = vsub.s32 0, %v2415
    %v2417 = vrot.slane %v2412, %v2416
    %v2435 = vunpack.c.l.b16 %v2396
    %v2436 = vunpack.c.l.b16 %v2397
    %v2437 = vunpack.c.l.b16 %v2398
    %v2438 = vunpack.c.l.b16 %v2399
    %v2439 = vunpack.c.l.b16 %v2400
    %v2440 = vunpack.c.l.b16 %v2401
    %v2441 = vunpack.c.l.b16 %v2402
    %v2442 = vunpack.c.l.b16 %v2403
    %v2443 = vunpack.c.l.b16 %v2404
    %v2444 = vunpack.c.l.b16 %v2405
    %v2445 = vunpack.c.l.b16 %v2406
    %v2446 = vunpack.c.l.b16 %v2407
    %v2447 = vunpack.c.l.b16 %v2408
    %v2448 = vunpack.c.l.b16 %v2409
    %v2449 = vunpack.c.l.b16 %v2410
    %v2450 = vunpack.c.l.b16 %v2411
    %v2451 = vpack.c.b16 %v2436, %v2435
    %v2452 = vpack.c.b16 %v2438, %v2437
    %v2453 = vpack.c.b16 %v2440, %v2439
    %v2454 = vpack.c.b16 %v2442, %v2441
    %v2455 = vpack.c.b16 %v2444, %v2443
    %v2456 = vpack.c.b16 %v2446, %v2445
    %v2457 = vpack.c.b16 %v2448, %v2447
    %v2458 = vpack.c.b16 %v2450, %v2449
    %2467 = vmatprep.subr.bf16.mxu0 0
    %2468 = vmatpush1.bf16.msra.mxu0 %v2451
    %2469 = vmatprep.subr.bf16.mxu0 0
    %2470 = vmatpush1.bf16.msra.mxu0 %v2452
    %2471 = vmatprep.subr.bf16.mxu0 0
    %2472 = vmatpush1.bf16.msra.mxu0 %v2453
    %2473 = vmatprep.subr.bf16.mxu0 0
    %2474 = vmatpush1.bf16.msra.mxu0 %v2454
    %2475 = vmatprep.subr.bf16.mxu0 0
    %2476 = vmatpush1.bf16.msra.mxu0 %v2455
    %2477 = vmatprep.subr.bf16.mxu0 0
    %2478 = vmatpush1.bf16.msra.mxu0 %v2456
    %2479 = vmatprep.subr.bf16.mxu0 0
    %2480 = vmatpush1.bf16.msra.mxu0 %v2457
    %2481 = vmatprep.subr.bf16.mxu0 0
    %2482 = vmatpush1.bf16.msra.mxu0 %v2458
    %2483 = vmatprep.subr.bf16.mxu0 0
    %2484 = vmatpush1.bf16.msra.mxu0 0
    %2485 = vmatprep.subr.bf16.mxu0 0
    %2486 = vmatpush1.bf16.msra.mxu0 0
    %2487 = vmatprep.subr.bf16.mxu0 0
    %2488 = vmatpush1.bf16.msra.mxu0 0
    %2489 = vmatprep.subr.bf16.mxu0 0
    %2490 = vmatpush1.bf16.msra.mxu0 0
    %2491 = vmatprep.subr.bf16.mxu0 0
    %2492 = vmatpush1.bf16.msra.mxu0 0
    %2493 = vmatprep.subr.bf16.mxu0 0
    %2494 = vmatpush1.bf16.msra.mxu0 0
    %2495 = vmatprep.subr.bf16.mxu0 0
    %2496 = vmatpush1.bf16.msra.mxu0 0
    %2497 = vmatprep.subr.bf16.mxu0 0
    %2498 = vmatpush1.bf16.msra.mxu0 0
    %2499 = vmatprep.mubr.bf16.mxu0 0
    %2500 = vmatmul.mubr.bf16.gmra.mrb[0].mxu0 %v2364
    %v2501 = vpop.f32.mrb[0].mxu0
    %v2502 = vadd.f32 %v2417, %v2501
    %v2503 = vpop.f32.mrb[0].mxu0
    %v2504 = vpop.f32.mrb[0].mxu0
    %v2505 = vadd.f32 %v2417, %v2504
    %v2506 = vpop.f32.mrb[0].mxu0
    %2507 = vmatprep.mubr.bf16.mxu0 0
    %2508 = vmatmul.mubr.bf16.gmra.mrb[0].mxu0 %v2365
    %v2509 = vpop.f32.mrb[0].mxu0
    %v2510 = vadd.f32 %v2417, %v2509
    %v2511 = vpop.f32.mrb[0].mxu0
    %v2512 = vpop.f32.mrb[0].mxu0
    %v2513 = vadd.f32 %v2417, %v2512
    %v2514 = vpop.f32.mrb[0].mxu0
    %2515 = vmatprep.mubr.bf16.mxu0 0
    %2516 = vmatmul.mubr.bf16.gmra.mrb[0].mxu0 %v2366
    %v2517 = vpop.f32.mrb[0].mxu0
    %v2518 = vadd.f32 %v2417, %v2517
    %v2519 = vpop.f32.mrb[0].mxu0
    %v2520 = vpop.f32.mrb[0].mxu0
    %v2521 = vadd.f32 %v2417, %v2520
    %v2522 = vpop.f32.mrb[0].mxu0
    %2523 = vmatprep.mubr.bf16.mxu0 0
    %2524 = vmatmul.mubr.bf16.gmra.mrb[0].mxu0 %v2367
    %v2525 = vpop.f32.mrb[0].mxu0
    %v2526 = vadd.f32 %v2417, %v2525
    %v2527 = vpop.f32.mrb[0].mxu0
    %v2528 = vpop.f32.mrb[0].mxu0
    %v2529 = vadd.f32 %v2417, %v2528
    %v2530 = vpop.f32.mrb[0].mxu0
    %2531 = vmatprep.mubr.bf16.mxu0 0
    %2532 = vmatmul.mubr.bf16.gmra.mrb[0].mxu0 %v2368
    %v2533 = vpop.f32.mrb[0].mxu0
    %v2534 = vadd.f32 %v2417, %v2533
    %v2535 = vpop.f32.mrb[0].mxu0
    %v2536 = vpop.f32.mrb[0].mxu0
    %v2537 = vadd.f32 %v2417, %v2536
    %v2538 = vpop.f32.mrb[0].mxu0
    %2539 = vmatprep.mubr.bf16.mxu0 0
    %2540 = vmatmul.mubr.bf16.gmra.mrb[0].mxu0 %v2369
    %v2541 = vpop.f32.mrb[0].mxu0
    %v2542 = vadd.f32 %v2417, %v2541
    %v2543 = vpop.f32.mrb[0].mxu0
    %v2544 = vpop.f32.mrb[0].mxu0
    %v2545 = vadd.f32 %v2417, %v2544
    %v2546 = vpop.f32.mrb[0].mxu0
    %2547 = vmatprep.mubr.bf16.mxu0 0
    %2548 = vmatmul.mubr.bf16.gmra.mrb[0].mxu0 %v2370
    %v2549 = vpop.f32.mrb[0].mxu0
    %v2550 = vadd.f32 %v2417, %v2549
    %v2551 = vpop.f32.mrb[0].mxu0
    %v2552 = vpop.f32.mrb[0].mxu0
    %v2553 = vadd.f32 %v2417, %v2552
    %v2554 = vpop.f32.mrb[0].mxu0
    %2555 = vmatprep.mubr.bf16.mxu0 0
    %2556 = vmatmul.mubr.bf16.gmra.mrb[0].mxu0 %v2371
    %v2557 = vpop.f32.mrb[0].mxu0
    %v2558 = vadd.f32 %v2417, %v2557
    %v2559 = vpop.f32.mrb[0].mxu0
    %v2560 = vpop.f32.mrb[0].mxu0
    %v2561 = vadd.f32 %v2417, %v2560
    %v2562 = vpop.f32.mrb[0].mxu0
    %2563 = vmatprep.mubr.bf16.mxu0 0
    %2564 = vmatmul.mubr.bf16.gmra.mrb[0].mxu0 %v2372
    %v2565 = vpop.f32.mrb[0].mxu0
    %v2566 = vadd.f32 %v2417, %v2565
    %v2567 = vpop.f32.mrb[0].mxu0
    %v2568 = vpop.f32.mrb[0].mxu0
    %v2569 = vadd.f32 %v2417, %v2568
    %v2570 = vpop.f32.mrb[0].mxu0
    %2571 = vmatprep.mubr.bf16.mxu0 0
    %2572 = vmatmul.mubr.bf16.gmra.mrb[0].mxu0 %v2373
    %v2573 = vpop.f32.mrb[0].mxu0
    %v2574 = vadd.f32 %v2417, %v2573
    %v2575 = vpop.f32.mrb[0].mxu0
    %v2576 = vpop.f32.mrb[0].mxu0
    %v2577 = vadd.f32 %v2417, %v2576
    %v2578 = vpop.f32.mrb[0].mxu0
    %2579 = vmatprep.mubr.bf16.mxu0 0
    %2580 = vmatmul.mubr.bf16.gmra.mrb[0].mxu0 %v2374
    %v2581 = vpop.f32.mrb[0].mxu0
    %v2582 = vadd.f32 %v2417, %v2581
    %v2583 = vpop.f32.mrb[0].mxu0
    %v2584 = vpop.f32.mrb[0].mxu0
    %v2585 = vadd.f32 %v2417, %v2584
    %v2586 = vpop.f32.mrb[0].mxu0
    %2587 = vmatprep.mubr.bf16.mxu0 0
    %2588 = vmatmul.mubr.bf16.gmra.mrb[0].mxu0 %v2375
    %v2589 = vpop.f32.mrb[0].mxu0
    %v2590 = vadd.f32 %v2417, %v2589
    %v2591 = vpop.f32.mrb[0].mxu0
    %v2592 = vpop.f32.mrb[0].mxu0
    %v2593 = vadd.f32 %v2417, %v2592
    %v2594 = vpop.f32.mrb[0].mxu0
    %2595 = vmatprep.mubr.bf16.mxu0 0
    %2596 = vmatmul.mubr.bf16.gmra.mrb[0].mxu0 %v2376
    %v2597 = vpop.f32.mrb[0].mxu0
    %v2598 = vadd.f32 %v2417, %v2597
    %v2599 = vpop.f32.mrb[0].mxu0
    %v2600 = vpop.f32.mrb[0].mxu0
    %v2601 = vadd.f32 %v2417, %v2600
    %v2602 = vpop.f32.mrb[0].mxu0
    %2603 = vmatprep.mubr.bf16.mxu0 0
    %2604 = vmatmul.mubr.bf16.gmra.mrb[0].mxu0 %v2377
    %v2605 = vpop.f32.mrb[0].mxu0
    %v2606 = vadd.f32 %v2417, %v2605
    %v2607 = vpop.f32.mrb[0].mxu0
    %v2608 = vpop.f32.mrb[0].mxu0
    %v2609 = vadd.f32 %v2417, %v2608
    %v2610 = vpop.f32.mrb[0].mxu0
    %2611 = vmatprep.mubr.bf16.mxu0 0
    %2612 = vmatmul.mubr.bf16.gmra.mrb[0].mxu0 %v2378
    %v2613 = vpop.f32.mrb[0].mxu0
    %v2614 = vadd.f32 %v2417, %v2613
    %v2615 = vpop.f32.mrb[0].mxu0
    %v2616 = vpop.f32.mrb[0].mxu0
    %v2617 = vadd.f32 %v2417, %v2616
    %v2618 = vpop.f32.mrb[0].mxu0
    %2619 = vmatprep.mubr.bf16.mxu0 0
    %2620 = vmatmul.mubr.bf16.gmra.mrb[0].mxu0 %v2379
    %v2621 = vpop.f32.mrb[0].mxu0
    %v2622 = vadd.f32 %v2417, %v2621
    %v2623 = vpop.f32.mrb[0].mxu0
    %v2624 = vpop.f32.mrb[0].mxu0
    %v2625 = vadd.f32 %v2417, %v2624
    %v2626 = vpop.f32.mrb[0].mxu0
    %2627 = vmatprep.mubr.bf16.mxu0 0
    %2628 = vmatmul.mubr.bf16.gmra.mrb[0].mxu0 %v2380
    %v2629 = vpop.f32.mrb[0].mxu0
    %v2630 = vadd.f32 %v2417, %v2629
    %v2631 = vpop.f32.mrb[0].mxu0
    %v2632 = vpop.f32.mrb[0].mxu0
    %v2633 = vadd.f32 %v2417, %v2632
    %v2634 = vpop.f32.mrb[0].mxu0
    %2635 = vmatprep.mubr.bf16.mxu0 0
    %2636 = vmatmul.mubr.bf16.gmra.mrb[0].mxu0 %v2381
    %v2637 = vpop.f32.mrb[0].mxu0
    %v2638 = vadd.f32 %v2417, %v2637
    %v2639 = vpop.f32.mrb[0].mxu0
    %v2640 = vpop.f32.mrb[0].mxu0
    %v2641 = vadd.f32 %v2417, %v2640
    %v2642 = vpop.f32.mrb[0].mxu0
    %2643 = vmatprep.mubr.bf16.mxu0 0
    %2644 = vmatmul.mubr.bf16.gmra.mrb[0].mxu0 %v2382
    %v2645 = vpop.f32.mrb[0].mxu0
    %v2646 = vadd.f32 %v2417, %v2645
    %v2647 = vpop.f32.mrb[0].mxu0
    %v2648 = vpop.f32.mrb[0].mxu0
    %v2649 = vadd.f32 %v2417, %v2648
    %v2650 = vpop.f32.mrb[0].mxu0
    %2651 = vmatprep.mubr.bf16.mxu0 0
    %2652 = vmatmul.mubr.bf16.gmra.mrb[0].mxu0 %v2383
    %v2653 = vpop.f32.mrb[0].mxu0
    %v2654 = vadd.f32 %v2417, %v2653
    %v2655 = vpop.f32.mrb[0].mxu0
    %v2656 = vpop.f32.mrb[0].mxu0
    %v2657 = vadd.f32 %v2417, %v2656
    %v2658 = vpop.f32.mrb[0].mxu0
    %2659 = vmatprep.mubr.bf16.mxu0 0
    %2660 = vmatmul.mubr.bf16.gmra.mrb[0].mxu0 %v2384
    %v2661 = vpop.f32.mrb[0].mxu0
    %v2662 = vadd.f32 %v2417, %v2661
    %v2663 = vpop.f32.mrb[0].mxu0
    %v2664 = vpop.f32.mrb[0].mxu0
    %v2665 = vadd.f32 %v2417, %v2664
    %v2666 = vpop.f32.mrb[0].mxu0
    %2667 = vmatprep.mubr.bf16.mxu0 0
    %2668 = vmatmul.mubr.bf16.gmra.mrb[0].mxu0 %v2385
    %v2669 = vpop.f32.mrb[0].mxu0
    %v2670 = vadd.f32 %v2417, %v2669
    %v2671 = vpop.f32.mrb[0].mxu0
    %v2672 = vpop.f32.mrb[0].mxu0
    %v2673 = vadd.f32 %v2417, %v2672
    %v2674 = vpop.f32.mrb[0].mxu0
    %2675 = vmatprep.mubr.bf16.mxu0 0
    %2676 = vmatmul.mubr.bf16.gmra.mrb[0].mxu0 %v2386
    %v2677 = vpop.f32.mrb[0].mxu0
    %v2678 = vadd.f32 %v2417, %v2677
    %v2679 = vpop.f32.mrb[0].mxu0
    %v2680 = vpop.f32.mrb[0].mxu0
    %v2681 = vadd.f32 %v2417, %v2680
    %v2682 = vpop.f32.mrb[0].mxu0
    %2683 = vmatprep.mubr.bf16.mxu0 0
    %2684 = vmatmul.mubr.bf16.gmra.mrb[0].mxu0 %v2387
    %v2685 = vpop.f32.mrb[0].mxu0
    %v2686 = vadd.f32 %v2417, %v2685
    %v2687 = vpop.f32.mrb[0].mxu0
    %v2688 = vpop.f32.mrb[0].mxu0
    %v2689 = vadd.f32 %v2417, %v2688
    %v2690 = vpop.f32.mrb[0].mxu0
    %2691 = vmatprep.mubr.bf16.mxu0 0
    %2692 = vmatmul.mubr.bf16.gmra.mrb[0].mxu0 %v2388
    %v2693 = vpop.f32.mrb[0].mxu0
    %v2694 = vadd.f32 %v2417, %v2693
    %v2695 = vpop.f32.mrb[0].mxu0
    %v2696 = vpop.f32.mrb[0].mxu0
    %v2697 = vadd.f32 %v2417, %v2696
    %v2698 = vpop.f32.mrb[0].mxu0
    %2699 = vmatprep.mubr.bf16.mxu0 0
    %2700 = vmatmul.mubr.bf16.gmra.mrb[0].mxu0 %v2389
    %v2701 = vpop.f32.mrb[0].mxu0
    %v2702 = vadd.f32 %v2417, %v2701
    %v2703 = vpop.f32.mrb[0].mxu0
    %v2704 = vpop.f32.mrb[0].mxu0
    %v2705 = vadd.f32 %v2417, %v2704
    %v2706 = vpop.f32.mrb[0].mxu0
    %2707 = vmatprep.mubr.bf16.mxu0 0
    %2708 = vmatmul.mubr.bf16.gmra.mrb[0].mxu0 %v2390
    %v2709 = vpop.f32.mrb[0].mxu0
    %v2710 = vadd.f32 %v2417, %v2709
    %v2711 = vpop.f32.mrb[0].mxu0
    %v2712 = vpop.f32.mrb[0].mxu0
    %v2713 = vadd.f32 %v2417, %v2712
    %v2714 = vpop.f32.mrb[0].mxu0
    %2715 = vmatprep.mubr.bf16.mxu0 0
    %2716 = vmatmul.mubr.bf16.gmra.mrb[0].mxu0 %v2391
    %v2717 = vpop.f32.mrb[0].mxu0
    %v2718 = vadd.f32 %v2417, %v2717
    %v2719 = vpop.f32.mrb[0].mxu0
    %v2720 = vpop.f32.mrb[0].mxu0
    %v2721 = vadd.f32 %v2417, %v2720
    %v2722 = vpop.f32.mrb[0].mxu0
    %2723 = vmatprep.mubr.bf16.mxu0 0
    %2724 = vmatmul.mubr.bf16.gmra.mrb[0].mxu0 %v2392
    %v2725 = vpop.f32.mrb[0].mxu0
    %v2726 = vadd.f32 %v2417, %v2725
    %v2727 = vpop.f32.mrb[0].mxu0
    %v2728 = vpop.f32.mrb[0].mxu0
    %v2729 = vadd.f32 %v2417, %v2728
    %v2730 = vpop.f32.mrb[0].mxu0
    %2731 = vmatprep.mubr.bf16.mxu0 0
    %2732 = vmatmul.mubr.bf16.gmra.mrb[0].mxu0 %v2393
    %v2733 = vpop.f32.mrb[0].mxu0
    %v2734 = vadd.f32 %v2417, %v2733
    %v2735 = vpop.f32.mrb[0].mxu0
    %v2736 = vpop.f32.mrb[0].mxu0
    %v2737 = vadd.f32 %v2417, %v2736
    %v2738 = vpop.f32.mrb[0].mxu0
    %2739 = vmatprep.mubr.bf16.mxu0 0
    %2740 = vmatmul.mubr.bf16.gmra.mrb[0].mxu0 %v2394
    %v2741 = vpop.f32.mrb[0].mxu0
    %v2742 = vadd.f32 %v2417, %v2741
    %v2743 = vpop.f32.mrb[0].mxu0
    %v2744 = vpop.f32.mrb[0].mxu0
    %v2745 = vadd.f32 %v2417, %v2744
    %v2746 = vpop.f32.mrb[0].mxu0
    %2747 = vmatprep.mubr.bf16.mxu0 0
    %2748 = vmatmul.mubr.bf16.gmra.mrb[0].mxu0 %v2395
    %v2749 = vpop.f32.mrb[0].mxu0
    %v2750 = vadd.f32 %v2417, %v2749
    %v2751 = vpop.f32.mrb[0].mxu0
    %v2752 = vpop.f32.mrb[0].mxu0
    %v2753 = vadd.f32 %v2417, %v2752
    %v2754 = vpop.f32.mrb[0].mxu0
    %2755 = vdwg.mxu0
    %v2756 = vsub.f32 0.0, %v2502
    %v2757 = vsub.f32 0.0, %v2505
    %v2758 = vsub.f32 0.0, %v2510
    %v2759 = vsub.f32 0.0, %v2513
    %v2760 = vsub.f32 0.0, %v2518
    %v2761 = vsub.f32 0.0, %v2521
    %v2762 = vsub.f32 0.0, %v2526
    %v2763 = vsub.f32 0.0, %v2529
    %v2764 = vsub.f32 0.0, %v2534
    %v2765 = vsub.f32 0.0, %v2537
    %v2766 = vsub.f32 0.0, %v2542
    %v2767 = vsub.f32 0.0, %v2545
    %v2768 = vsub.f32 0.0, %v2550
    %v2769 = vsub.f32 0.0, %v2553
    %v2770 = vsub.f32 0.0, %v2558
    %v2771 = vsub.f32 0.0, %v2561
    %v2772 = vsub.f32 0.0, %v2566
    %v2773 = vsub.f32 0.0, %v2569
    %v2774 = vsub.f32 0.0, %v2574
    %v2775 = vsub.f32 0.0, %v2577
    %v2776 = vsub.f32 0.0, %v2582
    %v2777 = vsub.f32 0.0, %v2585
    %v2778 = vsub.f32 0.0, %v2590
    %v2779 = vsub.f32 0.0, %v2593
    %v2780 = vsub.f32 0.0, %v2598
    %v2781 = vsub.f32 0.0, %v2601
    %v2782 = vsub.f32 0.0, %v2606
    %v2783 = vsub.f32 0.0, %v2609
    %v2784 = vsub.f32 0.0, %v2614
    %v2785 = vsub.f32 0.0, %v2617
    %v2786 = vsub.f32 0.0, %v2622
    %v2787 = vsub.f32 0.0, %v2625
    %v2788 = vsub.f32 0.0, %v2630
    %v2789 = vsub.f32 0.0, %v2633
    %v2790 = vsub.f32 0.0, %v2638
    %v2791 = vsub.f32 0.0, %v2641
    %v2792 = vsub.f32 0.0, %v2646
    %v2793 = vsub.f32 0.0, %v2649
    %v2794 = vsub.f32 0.0, %v2654
    %v2795 = vsub.f32 0.0, %v2657
    %v2796 = vsub.f32 0.0, %v2662
    %v2797 = vsub.f32 0.0, %v2665
    %v2798 = vsub.f32 0.0, %v2670
    %v2799 = vsub.f32 0.0, %v2673
    %v2800 = vsub.f32 0.0, %v2678
    %v2801 = vsub.f32 0.0, %v2681
    %v2802 = vsub.f32 0.0, %v2686
    %v2803 = vsub.f32 0.0, %v2689
    %v2804 = vsub.f32 0.0, %v2694
    %v2805 = vsub.f32 0.0, %v2697
    %v2806 = vsub.f32 0.0, %v2702
    %v2807 = vsub.f32 0.0, %v2705
    %v2808 = vsub.f32 0.0, %v2710
    %v2809 = vsub.f32 0.0, %v2713
    %v2810 = vsub.f32 0.0, %v2718
    %v2811 = vsub.f32 0.0, %v2721
    %v2812 = vsub.f32 0.0, %v2726
    %v2813 = vsub.f32 0.0, %v2729
    %v2814 = vsub.f32 0.0, %v2734
    %v2815 = vsub.f32 0.0, %v2737
    %v2816 = vsub.f32 0.0, %v2742
    %v2817 = vsub.f32 0.0, %v2745
    %v2818 = vsub.f32 0.0, %v2750
    %v2819 = vsub.f32 0.0, %v2753
    %v2820 = vmul.f32 %v2756, 1.442695
    %v2821 = vpow.pop %v2820
    %v2822 = vmul.f32 %v2757, 1.442695
    %v2823 = vpow.pop %v2822
    %v2824 = vmul.f32 %v2758, 1.442695
    %v2825 = vpow.pop %v2824
    %v2826 = vmul.f32 %v2759, 1.442695
    %v2827 = vpow.pop %v2826
    %v2828 = vmul.f32 %v2760, 1.442695
    %v2829 = vpow.pop %v2828
    %v2830 = vmul.f32 %v2761, 1.442695
    %v2831 = vpow.pop %v2830
    %v2832 = vmul.f32 %v2762, 1.442695
    %v2833 = vpow.pop %v2832
    %v2834 = vmul.f32 %v2763, 1.442695
    %v2835 = vpow.pop %v2834
    %v2836 = vmul.f32 %v2764, 1.442695
    %v2837 = vpow.pop %v2836
    %v2838 = vmul.f32 %v2765, 1.442695
    %v2839 = vpow.pop %v2838
    %v2840 = vmul.f32 %v2766, 1.442695
    %v2841 = vpow.pop %v2840
    %v2842 = vmul.f32 %v2767, 1.442695
    %v2843 = vpow.pop %v2842
    %v2844 = vmul.f32 %v2768, 1.442695
    %v2845 = vpow.pop %v2844
    %v2846 = vmul.f32 %v2769, 1.442695
    %v2847 = vpow.pop %v2846
    %v2848 = vmul.f32 %v2770, 1.442695
    %v2849 = vpow.pop %v2848
    %v2850 = vmul.f32 %v2771, 1.442695
    %v2851 = vpow.pop %v2850
    %v2852 = vmul.f32 %v2772, 1.442695
    %v2853 = vpow.pop %v2852
    %v2854 = vmul.f32 %v2773, 1.442695
    %v2855 = vpow.pop %v2854
    %v2856 = vmul.f32 %v2774, 1.442695
    %v2857 = vpow.pop %v2856
    %v2858 = vmul.f32 %v2775, 1.442695
    %v2859 = vpow.pop %v2858
    %v2860 = vmul.f32 %v2776, 1.442695
    %v2861 = vpow.pop %v2860
    %v2862 = vmul.f32 %v2777, 1.442695
    %v2863 = vpow.pop %v2862
    %v2864 = vmul.f32 %v2778, 1.442695
    %v2865 = vpow.pop %v2864
    %v2866 = vmul.f32 %v2779, 1.442695
    %v2867 = vpow.pop %v2866
    %v2868 = vmul.f32 %v2780, 1.442695
    %v2869 = vpow.pop %v2868
    %v2870 = vmul.f32 %v2781, 1.442695
    %v2871 = vpow.pop %v2870
    %v2872 = vmul.f32 %v2782, 1.442695
    %v2873 = vpow.pop %v2872
    %v2874 = vmul.f32 %v2783, 1.442695
    %v2875 = vpow.pop %v2874
    %v2876 = vmul.f32 %v2784, 1.442695
    %v2877 = vpow.pop %v2876
    %v2878 = vmul.f32 %v2785, 1.442695
    %v2879 = vpow.pop %v2878
    %v2880 = vmul.f32 %v2786, 1.442695
    %v2881 = vpow.pop %v2880
    %v2882 = vmul.f32 %v2787, 1.442695
    %v2883 = vpow.pop %v2882
    %v2884 = vmul.f32 %v2788, 1.442695
    %v2885 = vpow.pop %v2884
    %v2886 = vmul.f32 %v2789, 1.442695
    %v2887 = vpow.pop %v2886
    %v2888 = vmul.f32 %v2790, 1.442695
    %v2889 = vpow.pop %v2888
    %v2890 = vmul.f32 %v2791, 1.442695
    %v2891 = vpow.pop %v2890
    %v2892 = vmul.f32 %v2792, 1.442695
    %v2893 = vpow.pop %v2892
    %v2894 = vmul.f32 %v2793, 1.442695
    %v2895 = vpow.pop %v2894
    %v2896 = vmul.f32 %v2794, 1.442695
    %v2897 = vpow.pop %v2896
    %v2898 = vmul.f32 %v2795, 1.442695
    %v2899 = vpow.pop %v2898
    %v2900 = vmul.f32 %v2796, 1.442695
    %v2901 = vpow.pop %v2900
    %v2902 = vmul.f32 %v2797, 1.442695
    %v2903 = vpow.pop %v2902
    %v2904 = vmul.f32 %v2798, 1.442695
    %v2905 = vpow.pop %v2904
    %v2906 = vmul.f32 %v2799, 1.442695
    %v2907 = vpow.pop %v2906
    %v2908 = vmul.f32 %v2800, 1.442695
    %v2909 = vpow.pop %v2908
    %v2910 = vmul.f32 %v2801, 1.442695
    %v2911 = vpow.pop %v2910
    %v2912 = vmul.f32 %v2802, 1.442695
    %v2913 = vpow.pop %v2912
    %v2914 = vmul.f32 %v2803, 1.442695
    %v2915 = vpow.pop %v2914
    %v2916 = vmul.f32 %v2804, 1.442695
    %v2917 = vpow.pop %v2916
    %v2918 = vmul.f32 %v2805, 1.442695
    %v2919 = vpow.pop %v2918
    %v2920 = vmul.f32 %v2806, 1.442695
    %v2921 = vpow.pop %v2920
    %v2922 = vmul.f32 %v2807, 1.442695
    %v2923 = vpow.pop %v2922
    %v2924 = vmul.f32 %v2808, 1.442695
    %v2925 = vpow.pop %v2924
    %v2926 = vmul.f32 %v2809, 1.442695
    %v2927 = vpow.pop %v2926
    %v2928 = vmul.f32 %v2810, 1.442695
    %v2929 = vpow.pop %v2928
    %v2930 = vmul.f32 %v2811, 1.442695
    %v2931 = vpow.pop %v2930
    %v2932 = vmul.f32 %v2812, 1.442695
    %v2933 = vpow.pop %v2932
    %v2934 = vmul.f32 %v2813, 1.442695
    %v2935 = vpow.pop %v2934
    %v2936 = vmul.f32 %v2814, 1.442695
    %v2937 = vpow.pop %v2936
    %v2938 = vmul.f32 %v2815, 1.442695
    %v2939 = vpow.pop %v2938
    %v2940 = vmul.f32 %v2816, 1.442695
    %v2941 = vpow.pop %v2940
    %v2942 = vmul.f32 %v2817, 1.442695
    %v2943 = vpow.pop %v2942
    %v2944 = vmul.f32 %v2818, 1.442695
    %v2945 = vpow.pop %v2944
    %v2946 = vmul.f32 %v2819, 1.442695
    %v2947 = vpow.pop %v2946
    %v2948 = vadd.f32 %v2821, 1.0
    %v2949 = vadd.f32 %v2823, 1.0
    %v2950 = vadd.f32 %v2825, 1.0
    %v2951 = vadd.f32 %v2827, 1.0
    %v2952 = vadd.f32 %v2829, 1.0
    %v2953 = vadd.f32 %v2831, 1.0
    %v2954 = vadd.f32 %v2833, 1.0
    %v2955 = vadd.f32 %v2835, 1.0
    %v2956 = vadd.f32 %v2837, 1.0
    %v2957 = vadd.f32 %v2839, 1.0
    %v2958 = vadd.f32 %v2841, 1.0
    %v2959 = vadd.f32 %v2843, 1.0
    %v2960 = vadd.f32 %v2845, 1.0
    %v2961 = vadd.f32 %v2847, 1.0
    %v2962 = vadd.f32 %v2849, 1.0
    %v2963 = vadd.f32 %v2851, 1.0
    %v2964 = vadd.f32 %v2853, 1.0
    %v2965 = vadd.f32 %v2855, 1.0
    %v2966 = vadd.f32 %v2857, 1.0
    %v2967 = vadd.f32 %v2859, 1.0
    %v2968 = vadd.f32 %v2861, 1.0
    %v2969 = vadd.f32 %v2863, 1.0
    %v2970 = vadd.f32 %v2865, 1.0
    %v2971 = vadd.f32 %v2867, 1.0
    %v2972 = vadd.f32 %v2869, 1.0
    %v2973 = vadd.f32 %v2871, 1.0
    %v2974 = vadd.f32 %v2873, 1.0
    %v2975 = vadd.f32 %v2875, 1.0
    %v2976 = vadd.f32 %v2877, 1.0
    %v2977 = vadd.f32 %v2879, 1.0
    %v2978 = vadd.f32 %v2881, 1.0
    %v2979 = vadd.f32 %v2883, 1.0
    %v2980 = vadd.f32 %v2885, 1.0
    %v2981 = vadd.f32 %v2887, 1.0
    %v2982 = vadd.f32 %v2889, 1.0
    %v2983 = vadd.f32 %v2891, 1.0
    %v2984 = vadd.f32 %v2893, 1.0
    %v2985 = vadd.f32 %v2895, 1.0
    %v2986 = vadd.f32 %v2897, 1.0
    %v2987 = vadd.f32 %v2899, 1.0
    %v2988 = vadd.f32 %v2901, 1.0
    %v2989 = vadd.f32 %v2903, 1.0
    %v2990 = vadd.f32 %v2905, 1.0
    %v2991 = vadd.f32 %v2907, 1.0
    %v2992 = vadd.f32 %v2909, 1.0
    %v2993 = vadd.f32 %v2911, 1.0
    %v2994 = vadd.f32 %v2913, 1.0
    %v2995 = vadd.f32 %v2915, 1.0
    %v2996 = vadd.f32 %v2917, 1.0
    %v2997 = vadd.f32 %v2919, 1.0
    %v2998 = vadd.f32 %v2921, 1.0
    %v2999 = vadd.f32 %v2923, 1.0
    %v3000 = vadd.f32 %v2925, 1.0
    %v3001 = vadd.f32 %v2927, 1.0
    %v3002 = vadd.f32 %v2929, 1.0
    %v3003 = vadd.f32 %v2931, 1.0
    %v3004 = vadd.f32 %v2933, 1.0
    %v3005 = vadd.f32 %v2935, 1.0
    %v3006 = vadd.f32 %v2937, 1.0
    %v3007 = vadd.f32 %v2939, 1.0
    %v3008 = vadd.f32 %v2941, 1.0
    %v3009 = vadd.f32 %v2943, 1.0
    %v3010 = vadd.f32 %v2945, 1.0
    %v3011 = vadd.f32 %v2947, 1.0
    %v3012 = vrcp.pop %v2948
    %v3013 = vrcp.pop %v2949
    %v3014 = vrcp.pop %v2950
    %v3015 = vrcp.pop %v2951
    %v3016 = vrcp.pop %v2952
    %v3017 = vrcp.pop %v2953
    %v3018 = vrcp.pop %v2954
    %v3019 = vrcp.pop %v2955
    %v3020 = vrcp.pop %v2956
    %v3021 = vrcp.pop %v2957
    %v3022 = vrcp.pop %v2958
    %v3023 = vrcp.pop %v2959
    %v3024 = vrcp.pop %v2960
    %v3025 = vrcp.pop %v2961
    %v3026 = vrcp.pop %v2962
    %v3027 = vrcp.pop %v2963
    %v3028 = vrcp.pop %v2964
    %v3029 = vrcp.pop %v2965
    %v3030 = vrcp.pop %v2966
    %v3031 = vrcp.pop %v2967
    %v3032 = vrcp.pop %v2968
    %v3033 = vrcp.pop %v2969
    %v3034 = vrcp.pop %v2970
    %v3035 = vrcp.pop %v2971
    %v3036 = vrcp.pop %v2972
    %v3037 = vrcp.pop %v2973
    %v3038 = vrcp.pop %v2974
    %v3039 = vrcp.pop %v2975
    %v3040 = vrcp.pop %v2976
    %v3041 = vrcp.pop %v2977
    %v3042 = vrcp.pop %v2978
    %v3043 = vrcp.pop %v2979
    %v3044 = vrcp.pop %v2980
    %v3045 = vrcp.pop %v2981
    %v3046 = vrcp.pop %v2982
    %v3047 = vrcp.pop %v2983
    %v3048 = vrcp.pop %v2984
    %v3049 = vrcp.pop %v2985
    %v3050 = vrcp.pop %v2986
    %v3051 = vrcp.pop %v2987
    %v3052 = vrcp.pop %v2988
    %v3053 = vrcp.pop %v2989
    %v3054 = vrcp.pop %v2990
    %v3055 = vrcp.pop %v2991
    %v3056 = vrcp.pop %v2992
    %v3057 = vrcp.pop %v2993
    %v3058 = vrcp.pop %v2994
    %v3059 = vrcp.pop %v2995
    %v3060 = vrcp.pop %v2996
    %v3061 = vrcp.pop %v2997
    %v3062 = vrcp.pop %v2998
    %v3063 = vrcp.pop %v2999
    %v3064 = vrcp.pop %v3000
    %v3065 = vrcp.pop %v3001
    %v3066 = vrcp.pop %v3002
    %v3067 = vrcp.pop %v3003
    %v3068 = vrcp.pop %v3004
    %v3069 = vrcp.pop %v3005
    %v3070 = vrcp.pop %v3006
    %v3071 = vrcp.pop %v3007
    %v3072 = vrcp.pop %v3008
    %v3073 = vrcp.pop %v3009
    %v3074 = vrcp.pop %v3010
    %v3075 = vrcp.pop %v3011
    %v3076 = vmul.f32 %v2300, %v3012
    %v3077 = vmul.f32 %v2301, %v3013
    %v3078 = vmul.f32 %v2302, %v3014
    %v3079 = vmul.f32 %v2303, %v3015
    %v3080 = vmul.f32 %v2304, %v3016
    %v3081 = vmul.f32 %v2305, %v3017
    %v3082 = vmul.f32 %v2306, %v3018
    %v3083 = vmul.f32 %v2307, %v3019
    %v3084 = vmul.f32 %v2308, %v3020
    %v3085 = vmul.f32 %v2309, %v3021
    %v3086 = vmul.f32 %v2310, %v3022
    %v3087 = vmul.f32 %v2311, %v3023
    %v3088 = vmul.f32 %v2312, %v3024
    %v3089 = vmul.f32 %v2313, %v3025
    %v3090 = vmul.f32 %v2314, %v3026
    %v3091 = vmul.f32 %v2315, %v3027
    %v3092 = vmul.f32 %v2316, %v3028
    %v3093 = vmul.f32 %v2317, %v3029
    %v3094 = vmul.f32 %v2318, %v3030
    %v3095 = vmul.f32 %v2319, %v3031
    %v3096 = vmul.f32 %v2320, %v3032
    %v3097 = vmul.f32 %v2321, %v3033
    %v3098 = vmul.f32 %v2322, %v3034
    %v3099 = vmul.f32 %v2323, %v3035
    %v3100 = vmul.f32 %v2324, %v3036
    %v3101 = vmul.f32 %v2325, %v3037
    %v3102 = vmul.f32 %v2326, %v3038
    %v3103 = vmul.f32 %v2327, %v3039
    %v3104 = vmul.f32 %v2328, %v3040
    %v3105 = vmul.f32 %v2329, %v3041
    %v3106 = vmul.f32 %v2330, %v3042
    %v3107 = vmul.f32 %v2331, %v3043
    %v3108 = vmul.f32 %v2332, %v3044
    %v3109 = vmul.f32 %v2333, %v3045
    %v3110 = vmul.f32 %v2334, %v3046
    %v3111 = vmul.f32 %v2335, %v3047
    %v3112 = vmul.f32 %v2336, %v3048
    %v3113 = vmul.f32 %v2337, %v3049
    %v3114 = vmul.f32 %v2338, %v3050
    %v3115 = vmul.f32 %v2339, %v3051
    %v3116 = vmul.f32 %v2340, %v3052
    %v3117 = vmul.f32 %v2341, %v3053
    %v3118 = vmul.f32 %v2342, %v3054
    %v3119 = vmul.f32 %v2343, %v3055
    %v3120 = vmul.f32 %v2344, %v3056
    %v3121 = vmul.f32 %v2345, %v3057
    %v3122 = vmul.f32 %v2346, %v3058
    %v3123 = vmul.f32 %v2347, %v3059
    %v3124 = vmul.f32 %v2348, %v3060
    %v3125 = vmul.f32 %v2349, %v3061
    %v3126 = vmul.f32 %v2350, %v3062
    %v3127 = vmul.f32 %v2351, %v3063
    %v3128 = vmul.f32 %v2352, %v3064
    %v3129 = vmul.f32 %v2353, %v3065
    %v3130 = vmul.f32 %v2354, %v3066
    %v3131 = vmul.f32 %v2355, %v3067
    %v3132 = vmul.f32 %v2356, %v3068
    %v3133 = vmul.f32 %v2357, %v3069
    %v3134 = vmul.f32 %v2358, %v3070
    %v3135 = vmul.f32 %v2359, %v3071
    %v3136 = vmul.f32 %v2360, %v3072
    %v3137 = vmul.f32 %v2361, %v3073
    %v3138 = vmul.f32 %v2362, %v3074
    %v3139 = vmul.f32 %v2363, %v3075
    %v3140 = vpack.c.bf16 %v3077, %v3076
    %v3141 = vpack.c.bf16 %v3079, %v3078
    %v3142 = vpack.c.bf16 %v3081, %v3080
    %v3143 = vpack.c.bf16 %v3083, %v3082
    %v3144 = vpack.c.bf16 %v3085, %v3084
    %v3145 = vpack.c.bf16 %v3087, %v3086
    %v3146 = vpack.c.bf16 %v3089, %v3088
    %v3147 = vpack.c.bf16 %v3091, %v3090
    %v3148 = vpack.c.bf16 %v3093, %v3092
    %v3149 = vpack.c.bf16 %v3095, %v3094
    %v3150 = vpack.c.bf16 %v3097, %v3096
    %v3151 = vpack.c.bf16 %v3099, %v3098
    %v3152 = vpack.c.bf16 %v3101, %v3100
    %v3153 = vpack.c.bf16 %v3103, %v3102
    %v3154 = vpack.c.bf16 %v3105, %v3104
    %v3155 = vpack.c.bf16 %v3107, %v3106
    %v3156 = vpack.c.bf16 %v3109, %v3108
    %v3157 = vpack.c.bf16 %v3111, %v3110
    %v3158 = vpack.c.bf16 %v3113, %v3112
    %v3159 = vpack.c.bf16 %v3115, %v3114
    %v3160 = vpack.c.bf16 %v3117, %v3116
    %v3161 = vpack.c.bf16 %v3119, %v3118
    %v3162 = vpack.c.bf16 %v3121, %v3120
    %v3163 = vpack.c.bf16 %v3123, %v3122
    %v3164 = vpack.c.bf16 %v3125, %v3124
    %v3165 = vpack.c.bf16 %v3127, %v3126
    %v3166 = vpack.c.bf16 %v3129, %v3128
    %v3167 = vpack.c.bf16 %v3131, %v3130
    %v3168 = vpack.c.bf16 %v3133, %v3132
    %v3169 = vpack.c.bf16 %v3135, %v3134
    %v3170 = vpack.c.bf16 %v3137, %v3136
    %v3171 = vpack.c.bf16 %v3139, %v3138
    %v3172 = vlaneseq
    %v3173 = vshrl.u32 %v3172, 7
    %v3174 = vadd.s32 %v3173, 8
    %v3175 = vadd.s32 %v3173, 16
    %v3176 = vadd.s32 %v3173, 24
    %v3177 = vadd.s32 %v3173, 32
    %v3178 = vld [vmem:[%s0] sm:$0xf]
    %v3179 = vlaneseq
    %v3180 = vshrl.u32 %v3179, 7
    %v3181 = vsub.s32 0, %v3180
    %v3182 = vrot.slane %v3178, %v3181
    %v3183 = vlaneseq
    %v3184 = vshrl.u32 %v3183, 7
    %v3185 = vsub.s32 1, %v3184
    %v3186 = vrot.slane %v3178, %v3185
    %v3187 = vlaneseq
    %v3188 = vshrl.u32 %v3187, 7
    %v3189 = vsub.s32 2, %v3188
    %v3190 = vrot.slane %v3178, %v3189
    %v3191 = vlaneseq
    %v3192 = vshrl.u32 %v3191, 7
    %v3193 = vsub.s32 3, %v3192
    %v3194 = vrot.slane %v3178, %v3193
    %vm3195 = vcmp.eq.s32.totalorder %v3182, %v3173
    %vm3196 = vcmp.eq.s32.totalorder %v3186, %v3173
    %vm3197 = vcmp.eq.s32.totalorder %v3190, %v3173
    %vm3198 = vcmp.eq.s32.totalorder %v3194, %v3173
    %vm3199 = vcmp.eq.s32.totalorder %v3182, %v3174
    %vm3200 = vcmp.eq.s32.totalorder %v3186, %v3174
    %vm3201 = vcmp.eq.s32.totalorder %v3190, %v3174
    %vm3202 = vcmp.eq.s32.totalorder %v3194, %v3174
    %vm3203 = vcmp.eq.s32.totalorder %v3182, %v3175
    %vm3204 = vcmp.eq.s32.totalorder %v3186, %v3175
    %vm3205 = vcmp.eq.s32.totalorder %v3190, %v3175
    %vm3206 = vcmp.eq.s32.totalorder %v3194, %v3175
    %vm3207 = vcmp.eq.s32.totalorder %v3182, %v3176
    %vm3208 = vcmp.eq.s32.totalorder %v3186, %v3176
    %vm3209 = vcmp.eq.s32.totalorder %v3190, %v3176
    %vm3210 = vcmp.eq.s32.totalorder %v3194, %v3176
    %vm3211 = vcmp.eq.s32.totalorder %v3182, %v3177
    %vm3212 = vcmp.eq.s32.totalorder %v3186, %v3177
    %vm3213 = vcmp.eq.s32.totalorder %v3190, %v3177
    %vm3214 = vcmp.eq.s32.totalorder %v3194, %v3177
    %v3215 = vsel %vm3195, 1, 0
    %v3216 = vsel %vm3196, 1, 0
    %v3217 = vsel %vm3197, 1, 0
    %v3218 = vsel %vm3198, 1, 0
    %v3219 = vsel %vm3199, 1, 0
    %v3220 = vsel %vm3200, 1, 0
    %v3221 = vsel %vm3201, 1, 0
    %v3222 = vsel %vm3202, 1, 0
    %v3223 = vsel %vm3203, 1, 0
    %v3224 = vsel %vm3204, 1, 0
    %v3225 = vsel %vm3205, 1, 0
    %v3226 = vsel %vm3206, 1, 0
    %v3227 = vsel %vm3207, 1, 0
    %v3228 = vsel %vm3208, 1, 0
    %v3229 = vsel %vm3209, 1, 0
    %v3230 = vsel %vm3210, 1, 0
    %v3231 = vsel %vm3211, 1, 0
    %v3232 = vsel %vm3212, 1, 0
    %v3233 = vsel %vm3213, 1, 0
    %v3234 = vsel %vm3214, 1, 0
    %v3235 = vcvt.s32.f32 %v3215
    %v3236 = vcvt.s32.f32 %v3216
    %v3237 = vcvt.s32.f32 %v3217
    %v3238 = vcvt.s32.f32 %v3218
    %v3239 = vcvt.s32.f32 %v3219
    %v3240 = vcvt.s32.f32 %v3220
    %v3241 = vcvt.s32.f32 %v3221
    %v3242 = vcvt.s32.f32 %v3222
    %v3243 = vcvt.s32.f32 %v3223
    %v3244 = vcvt.s32.f32 %v3224
    %v3245 = vcvt.s32.f32 %v3225
    %v3246 = vcvt.s32.f32 %v3226
    %v3247 = vcvt.s32.f32 %v3227
    %v3248 = vcvt.s32.f32 %v3228
    %v3249 = vcvt.s32.f32 %v3229
    %v3250 = vcvt.s32.f32 %v3230
    %v3251 = vcvt.s32.f32 %v3231
    %v3252 = vcvt.s32.f32 %v3232
    %v3253 = vcvt.s32.f32 %v3233
    %v3254 = vcvt.s32.f32 %v3234
    %v3255 = vpack.c.bf16 %v3239, %v3235
    %v3256 = vpack.c.bf16 %v3240, %v3236
    %v3257 = vpack.c.bf16 %v3241, %v3237
    %v3258 = vpack.c.bf16 %v3242, %v3238
    %v3259 = vpack.c.bf16 %v3247, %v3243
    %v3260 = vpack.c.bf16 %v3248, %v3244
    %v3261 = vpack.c.bf16 %v3249, %v3245
    %v3262 = vpack.c.bf16 %v3250, %v3246
    %v3263 = vpack.c.bf16 %v3251, %v3251
    %v3264 = vpack.c.bf16 %v3252, %v3252
    %v3265 = vpack.c.bf16 %v3253, %v3253
    %v3266 = vpack.c.bf16 %v3254, %v3254
    %v3267 = vld [vmem:[#allocation10] sm:$0xff]
    %v3268 = vld [vmem:[#allocation10 + $0x8] sm:$0xff]
    %v3269 = vld [vmem:[#allocation10 + $0x10] sm:$0xff]
    %v3270 = vld [vmem:[#allocation10 + $0x18] sm:$0xff]
    %v3271 = vld [vmem:[#allocation10 + $0x20] sm:$0xff]
    %3272 = vmatprep.subr.bf16.mxu0 0
    %3273 = vmatpush1.bf16.msra.mxu0 %v3140
    %3274 = vmatprep.subr.bf16.mxu0 0
    %3275 = vmatpush1.bf16.msra.mxu0 %v3141
    %3276 = vmatprep.subr.bf16.mxu0 0
    %3277 = vmatpush1.bf16.msra.mxu0 %v3142
    %3278 = vmatprep.subr.bf16.mxu0 0
    %3279 = vmatpush1.bf16.msra.mxu0 %v3143
    %3280 = vmatprep.subr.bf16.mxu0 0
    %3281 = vmatpush1.bf16.msra.mxu0 %v3144
    %3282 = vmatprep.subr.bf16.mxu0 0
    %3283 = vmatpush1.bf16.msra.mxu0 %v3145
    %3284 = vmatprep.subr.bf16.mxu0 0
    %3285 = vmatpush1.bf16.msra.mxu0 %v3146
    %3286 = vmatprep.subr.bf16.mxu0 0
    %3287 = vmatpush1.bf16.msra.mxu0 %v3147
    %3288 = vmatprep.subr.bf16.mxu0 0
    %3289 = vmatpush1.bf16.msra.mxu0 %v3148
    %3290 = vmatprep.subr.bf16.mxu0 0
    %3291 = vmatpush1.bf16.msra.mxu0 %v3149
    %3292 = vmatprep.subr.bf16.mxu0 0
    %3293 = vmatpush1.bf16.msra.mxu0 %v3150
    %3294 = vmatprep.subr.bf16.mxu0 0
    %3295 = vmatpush1.bf16.msra.mxu0 %v3151
    %3296 = vmatprep.subr.bf16.mxu0 0
    %3297 = vmatpush1.bf16.msra.mxu0 %v3152
    %3298 = vmatprep.subr.bf16.mxu0 0
    %3299 = vmatpush1.bf16.msra.mxu0 %v3153
    %3300 = vmatprep.subr.bf16.mxu0 0
    %3301 = vmatpush1.bf16.msra.mxu0 %v3154
    %3302 = vmatprep.subr.bf16.mxu0 0
    %3303 = vmatpush1.bf16.msra.mxu0 %v3155
    %3304 = vmatprep.mubr.bf16.mxu0 %v3256
    %3305 = vmatmul.mubr.bf16.gmra.mrb[0].mxu0 %v3255
    %v3306 = vpop.f32.mrb[0].mxu0
    %v3307 = vadd.f32 0.0, %v3306
    %v3308 = vpop.f32.mrb[0].mxu0
    %v3309 = vpop.f32.mrb[0].mxu0
    %v3310 = vadd.f32 0.0, %v3309
    %v3311 = vpop.f32.mrb[0].mxu0
    %3312 = vmatprep.mubr.bf16.mxu0 %v3260
    %3313 = vmatmul.mubr.bf16.gmra.mrb[0].mxu0 %v3259
    %v3314 = vpop.f32.mrb[0].mxu0
    %v3315 = vadd.f32 0.0, %v3314
    %v3316 = vpop.f32.mrb[0].mxu0
    %v3317 = vpop.f32.mrb[0].mxu0
    %v3318 = vadd.f32 0.0, %v3317
    %v3319 = vpop.f32.mrb[0].mxu0
    %3320 = vmatprep.mubr.bf16.mxu0 %v3264
    %3321 = vmatmul.mubr.bf16.gmra.mrb[0].mxu0 %v3263
    %v3322 = vpop.f32.mrb[0].mxu0
    %v3323 = vadd.f32 0.0, %v3322
    %v3324 = vpop.f32.mrb[0].mxu0
    %v3325 = vpop.f32.mrb[0].mxu0
    %v3326 = vpop.f32.mrb[0].mxu0
    %3327 = vdwg.mxu0
    %3328 = vmatprep.subr.bf16.mxu0 0
    %3329 = vmatpush1.bf16.msra.mxu0 %v3156
    %3330 = vmatprep.subr.bf16.mxu0 0
    %3331 = vmatpush1.bf16.msra.mxu0 %v3157
    %3332 = vmatprep.subr.bf16.mxu0 0
    %3333 = vmatpush1.bf16.msra.mxu0 %v3158
    %3334 = vmatprep.subr.bf16.mxu0 0
    %3335 = vmatpush1.bf16.msra.mxu0 %v3159
    %3336 = vmatprep.subr.bf16.mxu0 0
    %3337 = vmatpush1.bf16.msra.mxu0 %v3160
    %3338 = vmatprep.subr.bf16.mxu0 0
    %3339 = vmatpush1.bf16.msra.mxu0 %v3161
    %3340 = vmatprep.subr.bf16.mxu0 0
    %3341 = vmatpush1.bf16.msra.mxu0 %v3162
    %3342 = vmatprep.subr.bf16.mxu0 0
    %3343 = vmatpush1.bf16.msra.mxu0 %v3163
    %3344 = vmatprep.subr.bf16.mxu0 0
    %3345 = vmatpush1.bf16.msra.mxu0 %v3164
    %3346 = vmatprep.subr.bf16.mxu0 0
    %3347 = vmatpush1.bf16.msra.mxu0 %v3165
    %3348 = vmatprep.subr.bf16.mxu0 0
    %3349 = vmatpush1.bf16.msra.mxu0 %v3166
    %3350 = vmatprep.subr.bf16.mxu0 0
    %3351 = vmatpush1.bf16.msra.mxu0 %v3167
    %3352 = vmatprep.subr.bf16.mxu0 0
    %3353 = vmatpush1.bf16.msra.mxu0 %v3168
    %3354 = vmatprep.subr.bf16.mxu0 0
    %3355 = vmatpush1.bf16.msra.mxu0 %v3169
    %3356 = vmatprep.subr.bf16.mxu0 0
    %3357 = vmatpush1.bf16.msra.mxu0 %v3170
    %3358 = vmatprep.subr.bf16.mxu0 0
    %3359 = vmatpush1.bf16.msra.mxu0 %v3171
    %3360 = vmatprep.mubr.bf16.mxu0 %v3258
    %3361 = vmatmul.mubr.bf16.gmra.mrb[0].mxu0 %v3257
    %v3362 = vpop.f32.mrb[0].mxu0
    %v3363 = vadd.f32 %v3307, %v3362
    %v3364 = vpop.f32.mrb[0].mxu0
    %v3365 = vpop.f32.mrb[0].mxu0
    %v3366 = vadd.f32 %v3310, %v3365
    %v3367 = vpop.f32.mrb[0].mxu0
    %3368 = vmatprep.mubr.bf16.mxu0 %v3262
    %3369 = vmatmul.mubr.bf16.gmra.mrb[0].mxu0 %v3261
    %v3370 = vpop.f32.mrb[0].mxu0
    %v3371 = vadd.f32 %v3315, %v3370
    %v3372 = vpop.f32.mrb[0].mxu0
    %v3373 = vpop.f32.mrb[0].mxu0
    %v3374 = vadd.f32 %v3318, %v3373
    %v3375 = vpop.f32.mrb[0].mxu0
    %3376 = vmatprep.mubr.bf16.mxu0 %v3266
    %3377 = vmatmul.mubr.bf16.gmra.mrb[0].mxu0 %v3265
    %v3378 = vpop.f32.mrb[0].mxu0
    %v3379 = vadd.f32 %v3323, %v3378
    %v3380 = vpop.f32.mrb[0].mxu0
    %v3381 = vpop.f32.mrb[0].mxu0
    %v3382 = vpop.f32.mrb[0].mxu0
    %3383 = vdwg.mxu0
    %v3384 = vadd.f32 %v3267, %v3363
    %v3385 = vadd.f32 %v3268, %v3366
    %v3386 = vadd.f32 %v3269, %v3371
    %v3387 = vadd.f32 %v3270, %v3374
    %v3388 = vadd.f32 %v3271, %v3379
    %3389 = vst [vmem:[#allocation10] sm:$0xff] %v3384
    %3390 = vst [vmem:[#allocation10 + $0x8] sm:$0xff] %v3385
    %3391 = vst [vmem:[#allocation10 + $0x10] sm:$0xff] %v3386
    %3392 = vst [vmem:[#allocation10 + $0x18] sm:$0xff] %v3387
    %3393 = vst [vmem:[#allocation10 + $0x20] sm:$0xff] %v3388
    // Predicated region
    $region58: #{tpu_custom_call.1} parent=1 // pred_check
      _
    $region59: #{tpu_custom_call.1} parent=1 // pred_check_branch
      %3395 = sbr.rel (0) target = $region61
    $region60: #{tpu_custom_call.1} parent=1 // pred_region
      %s3397 = ssub.s32 640, 640
      %3398 = vsyncadd [#allocation4], %s3397
      %s3399 = sshll.u32 [#allocation10], 4
      %s3400 = int_to_ptr.vmem [resolvable:$true] %s3399
      %3405 = dma.vmem_to_hbm [thread:$0]  %s3400, 640, %s9, [#allocation4], 128, 128, 8
    $region61: #{tpu_custom_call.1} parent=1 // pred_fallthru
      _
    // Predicated region
    $region62: #{tpu_custom_call.1} parent=1 // pred_check
      _
    $region63: #{tpu_custom_call.1} parent=1 // pred_check_branch
      %3407 = sbr.rel (0) target = $region65
    $region64: #{tpu_custom_call.1} parent=1 // pred_region
      %3408 = dma.done [#allocation4], 640
    $region65: #{tpu_custom_call.1} parent=1 // pred_fallthru
      _
    %3409 = vsyncpa [#allocation3], 1
    %3410 = vsyncpa [#allocation6], 1
    %3411 = vsyncpa [#allocation9], 1
    %3412 = vsyncpa [#allocation4], 1

// kernel: tpu_custom_call.1
$region0: #{tpu_custom_call.1}
  #allocation0 [shape = 'u32[]', space=smem, size = 0x4, offset = 0x4, fixed_abs, tag = 'smem constant byte address 0x4 - core index']
  #allocation1 [shape = 'u32[144,128]{1,0:T(1,128)}', space=vmem, size = 0x12000, scoped, tag = 'internal scratch']
  %s0 = inlined_call_operand.vmem [shape: s32[1,512], index: 0, kind: input, shape index: {}]
  %s1 = inlined_call_operand.hbm [shape: bf16[512,128], index: 1, kind: input, shape index: {}]
  %s2 = inlined_call_operand.hbm [shape: f32[40,128], index: 2, kind: input, shape index: {}, may-alias: {2,9}]
  %s3 = inlined_call_operand.hbm [shape: bf16[128,256], index: 3, kind: input, shape index: {}]
  %s4 = inlined_call_operand.vmem [shape: f32[1,256], index: 4, kind: input, shape index: {}]
  %s5 = inlined_call_operand.vmem [shape: bf16[128,128], index: 5, kind: input, shape index: {}]
  %s6 = inlined_call_operand.vmem [shape: f32[1,128], index: 6, kind: input, shape index: {}]
  %s7 = inlined_call_operand.hbm [shape: bf16[128,128], index: 7, kind: input, shape index: {}]
  %s8 = inlined_call_operand.vmem [shape: f32[1,128], index: 8, kind: input, shape index: {}]
  %s9 = inlined_call_operand.hbm [shape: f32[40,128], index: 9, kind: output, shape index: {}, may-alias: {2,9}]
  %s10 = sld [smem:[#allocation0]]
  $region66: #{tpu_custom_call.1} parent=0
    _
  %s12 = ssub.s32 1, %s10
  %s13 = scalar_select 0, %s12, %s10
  $region1: #{tpu_custom_call.1} parent=0
    #allocation2 [shape = 'u8[131072]{0}', space=vmem, size = 0x20000, scoped, tag = 'input window, operand 1, single buffered']
    #allocation3 [shape = 's32[1]{0}', space=sflag, size = 0x4, scoped, tag = 'scoped memory for tpu_custom_call.1']
    #allocation4 [shape = 's32[1]{0}', space=sflag, size = 0x4, scoped, tag = 'scoped memory for tpu_custom_call.1']
    #allocation5 [shape = 'u8[20480]{0}', space=vmem, size = 0x5000, scoped, tag = 'input window, operand 2, single buffered']
    #allocation6 [shape = 's32[1]{0}', space=sflag, size = 0x4, scoped, tag = 'scoped memory for tpu_custom_call.1']
    #allocation7 [shape = 'u8[65536]{0}', space=vmem, size = 0x10000, scoped, tag = 'input window, operand 3, single buffered']
    #allocation8 [shape = 'u8[32768]{0}', space=vmem, size = 0x8000, scoped, tag = 'input window, operand 7, single buffered']
    #allocation9 [shape = 's32[1]{0}', space=sflag, size = 0x4, scoped, tag = 'scoped memory for tpu_custom_call.1']
    #allocation10 [shape = 'u8[20480]{0}', space=vmem, size = 0x5000, scoped, tag = 'output window, operand 0, single buffered']
    %14 = vsyncpa [#allocation3], 0
    %15 = vsyncpa [#allocation6], 0
    %16 = vsyncpa [#allocation9], 0
    %17 = vsyncpa [#allocation4], 0
    // Predicated region
    $region2: #{tpu_custom_call.1} parent=1 // pred_check
      _
    $region3: #{tpu_custom_call.1} parent=1 // pred_check_branch
      %19 = sbr.rel (0) target = $region5
    $region4: #{tpu_custom_call.1} parent=1 // pred_region
      _
    $region5: #{tpu_custom_call.1} parent=1 // pred_fallthru
      _
    // Predicated region
    $region6: #{tpu_custom_call.1} parent=1 // pred_check
      _
    $region7: #{tpu_custom_call.1} parent=1 // pred_check_branch
      %21 = sbr.rel (0) target = $region9
    $region8: #{tpu_custom_call.1} parent=1 // pred_region
      %s23 = ssub.s32 4096, 4096
      %24 = vsyncadd [#allocation3], %s23
      %s25 = sshll.u32 [#allocation2], 4
      %s26 = int_to_ptr.vmem [resolvable:$true] %s25
      %31 = dma.hbm_to_vmem [thread:$0]  %s1, 4096, %s26, [#allocation3], 64, 64, 4
    $region9: #{tpu_custom_call.1} parent=1 // pred_fallthru
      _
    // Predicated region
    $region10: #{tpu_custom_call.1} parent=1 // pred_check
      _
    $region11: #{tpu_custom_call.1} parent=1 // pred_check_branch
      %33 = sbr.rel (0) target = $region13
    $region12: #{tpu_custom_call.1} parent=1 // pred_region
      %s35 = ssub.s32 640, 640
      %36 = vsyncadd [#allocation6], %s35
      %s37 = sshll.u32 [#allocation5], 4
      %s38 = int_to_ptr.vmem [resolvable:$true] %s37
      %43 = dma.hbm_to_vmem [thread:$0]  %s2, 640, %s38, [#allocation6], 128, 128, 8
    $region13: #{tpu_custom_call.1} parent=1 // pred_fallthru
      _
    // Predicated region
    $region14: #{tpu_custom_call.1} parent=1 // pred_check
      _
    $region15: #{tpu_custom_call.1} parent=1 // pred_check_branch
      %45 = sbr.rel (0) target = $region17
    $region16: #{tpu_custom_call.1} parent=1 // pred_region
      %s47 = ssub.s32 2048, 2048
      %48 = vsyncadd [#allocation6], %s47
      %s49 = sshll.u32 [#allocation7], 4
      %s50 = int_to_ptr.vmem [resolvable:$true] %s49
      %55 = dma.hbm_to_vmem [thread:$0]  %s3, 2048, %s50, [#allocation6], 128, 128, 8
    $region17: #{tpu_custom_call.1} parent=1 // pred_fallthru
      _
    // Predicated region
    $region18: #{tpu_custom_call.1} parent=1 // pred_check
      _
    $region19: #{tpu_custom_call.1} parent=1 // pred_check_branch
      %57 = sbr.rel (0) target = $region21
    $region20: #{tpu_custom_call.1} parent=1 // pred_region
      _
    $region21: #{tpu_custom_call.1} parent=1 // pred_fallthru
      _
    // Predicated region
    $region22: #{tpu_custom_call.1} parent=1 // pred_check
      _
    $region23: #{tpu_custom_call.1} parent=1 // pred_check_branch
      %59 = sbr.rel (0) target = $region25
    $region24: #{tpu_custom_call.1} parent=1 // pred_region
      _
    $region25: #{tpu_custom_call.1} parent=1 // pred_fallthru
      _
    // Predicated region
    $region26: #{tpu_custom_call.1} parent=1 // pred_check
      _
    $region27: #{tpu_custom_call.1} parent=1 // pred_check_branch
      %61 = sbr.rel (0) target = $region29
    $region28: #{tpu_custom_call.1} parent=1 // pred_region
      _
    $region29: #{tpu_custom_call.1} parent=1 // pred_fallthru
      _
    // Predicated region
    $region30: #{tpu_custom_call.1} parent=1 // pred_check
      _
    $region31: #{tpu_custom_call.1} parent=1 // pred_check_branch
      %63 = sbr.rel (0) target = $region33
    $region32: #{tpu_custom_call.1} parent=1 // pred_region
      %s65 = ssub.s32 1024, 1024
      %66 = vsyncadd [#allocation9], %s65
      %s67 = sshll.u32 [#allocation8], 4
      %s68 = int_to_ptr.vmem [resolvable:$true] %s67
      %73 = dma.hbm_to_vmem [thread:$0]  %s7, 1024, %s68, [#allocation9], 64, 64, 4
    $region33: #{tpu_custom_call.1} parent=1 // pred_fallthru
      _
    // Predicated region
    $region34: #{tpu_custom_call.1} parent=1 // pred_check
      _
    $region35: #{tpu_custom_call.1} parent=1 // pred_check_branch
      %75 = sbr.rel (0) target = $region37
    $region36: #{tpu_custom_call.1} parent=1 // pred_region
      _
    $region37: #{tpu_custom_call.1} parent=1 // pred_fallthru
      _
    // Predicated region
    $region38: #{tpu_custom_call.1} parent=1 // pred_check
      _
    $region39: #{tpu_custom_call.1} parent=1 // pred_check_branch
      %77 = sbr.rel (0) target = $region41
    $region40: #{tpu_custom_call.1} parent=1 // pred_region
      %78 = dma.done [#allocation3], 4096
    $region41: #{tpu_custom_call.1} parent=1 // pred_fallthru
      _
    // Predicated region
    $region42: #{tpu_custom_call.1} parent=1 // pred_check
      _
    $region43: #{tpu_custom_call.1} parent=1 // pred_check_branch
      %80 = sbr.rel (0) target = $region45
    $region44: #{tpu_custom_call.1} parent=1 // pred_region
      %81 = dma.done [#allocation6], 640
    $region45: #{tpu_custom_call.1} parent=1 // pred_fallthru
      _
    // Predicated region
    $region46: #{tpu_custom_call.1} parent=1 // pred_check
      _
    $region47: #{tpu_custom_call.1} parent=1 // pred_check_branch
      %83 = sbr.rel (0) target = $region49
    $region48: #{tpu_custom_call.1} parent=1 // pred_region
      %84 = dma.done [#allocation6], 2048
    $region49: #{tpu_custom_call.1} parent=1 // pred_fallthru
      _
    // Predicated region
    $region50: #{tpu_custom_call.1} parent=1 // pred_check
      _
    $region51: #{tpu_custom_call.1} parent=1 // pred_check_branch
      %86 = sbr.rel (0) target = $region53
    $region52: #{tpu_custom_call.1} parent=1 // pred_region
      %87 = dma.done [#allocation9], 1024
    $region53: #{tpu_custom_call.1} parent=1 // pred_fallthru
      _
    %p89 = scmp.eq.s32.totalorder 0, 0
    // Predicated region
    $region54: #{tpu_custom_call.1} parent=1 // pred_check
      %p90 = pneg %p89
    $region55: #{tpu_custom_call.1} parent=1 // pred_check_branch
      %92 = sbr.rel (%p90) target = $region57
    $region56: #{tpu_custom_call.1} parent=1 // pred_region
      %v93 = vld [vmem:[#allocation5] sm:$0xff]
      %v94 = vld [vmem:[#allocation5 + $0x8] sm:$0xff]
      %v95 = vld [vmem:[#allocation5 + $0x10] sm:$0xff]
      %v96 = vld [vmem:[#allocation5 + $0x18] sm:$0xff]
      %v97 = vld [vmem:[#allocation5 + $0x20] sm:$0xff]
      %98 = vst [vmem:[#allocation10] sm:$0xff] %v93
      %99 = vst [vmem:[#allocation10 + $0x8] sm:$0xff] %v94
      %100 = vst [vmem:[#allocation10 + $0x10] sm:$0xff] %v95
      %101 = vst [vmem:[#allocation10 + $0x18] sm:$0xff] %v96
      %102 = vst [vmem:[#allocation10 + $0x20] sm:$0xff] %v97
    $region57: #{tpu_custom_call.1} parent=1 // pred_fallthru
      _
    %v103 = vld [vmem:[#allocation2] sm:$0xf]
    %v104 = vld [vmem:[#allocation2 + $0x4] sm:$0xf]
    %v105 = vld [vmem:[#allocation2 + $0x8] sm:$0xf]
    %v106 = vld [vmem:[#allocation2 + $0xc] sm:$0xf]
    %v107 = vld [vmem:[#allocation2 + $0x10] sm:$0xf]
    %v108 = vld [vmem:[#allocation2 + $0x14] sm:$0xf]
    %v109 = vld [vmem:[#allocation2 + $0x18] sm:$0xf]
    %v110 = vld [vmem:[#allocation2 + $0x1c] sm:$0xf]
    %v111 = vld [vmem:[#allocation2 + $0x20] sm:$0xf]
    %v112 = vld [vmem:[#allocation2 + $0x24] sm:$0xf]
    %v113 = vld [vmem:[#allocation2 + $0x28] sm:$0xf]
    %v114 = vld [vmem:[#allocation2 + $0x2c] sm:$0xf]
    %v115 = vld [vmem:[#allocation2 + $0x30] sm:$0xf]
    %v116 = vld [vmem:[#allocation2 + $0x34] sm:$0xf]
    %v117 = vld [vmem:[#allocation2 + $0x38] sm:$0xf]
    %v118 = vld [vmem:[#allocation2 + $0x3c] sm:$0xf]
    %v119 = vld [vmem:[#allocation2 + $0x40] sm:$0xf]
    %v120 = vld [vmem:[#allocation2 + $0x44] sm:$0xf]
    %v121 = vld [vmem:[#allocation2 + $0x48] sm:$0xf]
    %v122 = vld [vmem:[#allocation2 + $0x4c] sm:$0xf]
    %v123 = vld [vmem:[#allocation2 + $0x50] sm:$0xf]
    %v124 = vld [vmem:[#allocation2 + $0x54] sm:$0xf]
    %v125 = vld [vmem:[#allocation2 + $0x58] sm:$0xf]
    %v126 = vld [vmem:[#allocation2 + $0x5c] sm:$0xf]
    %v127 = vld [vmem:[#allocation2 + $0x60] sm:$0xf]
    %v128 = vld [vmem:[#allocation2 + $0x64] sm:$0xf]
    %v129 = vld [vmem:[#allocation2 + $0x68] sm:$0xf]
    %v130 = vld [vmem:[#allocation2 + $0x6c] sm:$0xf]
    %v131 = vld [vmem:[#allocation2 + $0x70] sm:$0xf]
    %v132 = vld [vmem:[#allocation2 + $0x74] sm:$0xf]
    %v133 = vld [vmem:[#allocation2 + $0x78] sm:$0xf]
    %v134 = vld [vmem:[#allocation2 + $0x7c] sm:$0xf]
    %v135 = vld [vmem:[#allocation2 + $0x80] sm:$0xf]
    %v136 = vld [vmem:[#allocation2 + $0x84] sm:$0xf]
    %v137 = vld [vmem:[#allocation2 + $0x88] sm:$0xf]
    %v138 = vld [vmem:[#allocation2 + $0x8c] sm:$0xf]
    %v139 = vld [vmem:[#allocation2 + $0x90] sm:$0xf]
    %v140 = vld [vmem:[#allocation2 + $0x94] sm:$0xf]
    %v141 = vld [vmem:[#allocation2 + $0x98] sm:$0xf]
    %v142 = vld [vmem:[#allocation2 + $0x9c] sm:$0xf]
    %v143 = vld [vmem:[#allocation2 + $0xa0] sm:$0xf]
    %v144 = vld [vmem:[#allocation2 + $0xa4] sm:$0xf]
    %v145 = vld [vmem:[#allocation2 + $0xa8] sm:$0xf]
    %v146 = vld [vmem:[#allocation2 + $0xac] sm:$0xf]
    %v147 = vld [vmem:[#allocation2 + $0xb0] sm:$0xf]
    %v148 = vld [vmem:[#allocation2 + $0xb4] sm:$0xf]
    %v149 = vld [vmem:[#allocation2 + $0xb8] sm:$0xf]
    %v150 = vld [vmem:[#allocation2 + $0xbc] sm:$0xf]
    %v151 = vld [vmem:[#allocation2 + $0xc0] sm:$0xf]
    %v152 = vld [vmem:[#allocation2 + $0xc4] sm:$0xf]
    %v153 = vld [vmem:[#allocation2 + $0xc8] sm:$0xf]
    %v154 = vld [vmem:[#allocation2 + $0xcc] sm:$0xf]
    %v155 = vld [vmem:[#allocation2 + $0xd0] sm:$0xf]
    %v156 = vld [vmem:[#allocation2 + $0xd4] sm:$0xf]
    %v157 = vld [vmem:[#allocation2 + $0xd8] sm:$0xf]
    %v158 = vld [vmem:[#allocation2 + $0xdc] sm:$0xf]
    %v159 = vld [vmem:[#allocation2 + $0xe0] sm:$0xf]
    %v160 = vld [vmem:[#allocation2 + $0xe4] sm:$0xf]
    %v161 = vld [vmem:[#allocation2 + $0xe8] sm:$0xf]
    %v162 = vld [vmem:[#allocation2 + $0xec] sm:$0xf]
    %v163 = vld [vmem:[#allocation2 + $0xf0] sm:$0xf]
    %v164 = vld [vmem:[#allocation2 + $0xf4] sm:$0xf]
    %v165 = vld [vmem:[#allocation2 + $0xf8] sm:$0xf]
    %v166 = vld [vmem:[#allocation2 + $0xfc] sm:$0xf]
    %v167 = vld [vmem:[#allocation7] sm:$0xff]
    %v168 = vld [vmem:[#allocation7 + $0x8] sm:$0xff]
    %v169 = vld [vmem:[#allocation7 + $0x10] sm:$0xff]
    %v170 = vld [vmem:[#allocation7 + $0x18] sm:$0xff]
    %v171 = vld [vmem:[#allocation7 + $0x20] sm:$0xff]
    %v172 = vld [vmem:[#allocation7 + $0x28] sm:$0xff]
    %v173 = vld [vmem:[#allocation7 + $0x30] sm:$0xff]
    %v174 = vld [vmem:[#allocation7 + $0x38] sm:$0xff]
    %v175 = vld [vmem:[#allocation7 + $0x40] sm:$0xff]
    %v176 = vld [vmem:[#allocation7 + $0x48] sm:$0xff]
    %v177 = vld [vmem:[#allocation7 + $0x50] sm:$0xff]
    %v178 = vld [vmem:[#allocation7 + $0x58] sm:$0xff]
    %v179 = vld [vmem:[#allocation7 + $0x60] sm:$0xff]
    %v180 = vld [vmem:[#allocation7 + $0x68] sm:$0xff]
    %v181 = vld [vmem:[#allocation7 + $0x70] sm:$0xff]
    %v182 = vld [vmem:[#allocation7 + $0x78] sm:$0xff]
    %v183 = vld [vmem:[%s4] sm:$0x3]
    %v185 = vlaneseq
    %v186 = vshrl.u32 %v185, 7
    %v187 = vsub.s32 0, %v186
    %v188 = vrot.slane %v183, %v187
    %v189 = vlaneseq
    %v190 = vshrl.u32 %v189, 7
    %v191 = vsub.s32 1, %v190
    %v192 = vrot.slane %v183, %v191
    %v259 = vunpack.c.l.b16 %v103
    %v260 = vunpack.c.l.b16 %v104
    %v261 = vunpack.c.l.b16 %v105
    %v262 = vunpack.c.l.b16 %v106
    %v263 = vunpack.c.l.b16 %v107
    %v264 = vunpack.c.l.b16 %v108
    %v265 = vunpack.c.l.b16 %v109
    %v266 = vunpack.c.l.b16 %v110
    %v267 = vunpack.c.l.b16 %v111
    %v268 = vunpack.c.l.b16 %v112
    %v269 = vunpack.c.l.b16 %v113
    %v270 = vunpack.c.l.b16 %v114
    %v271 = vunpack.c.l.b16 %v115
    %v272 = vunpack.c.l.b16 %v116
    %v273 = vunpack.c.l.b16 %v117
    %v274 = vunpack.c.l.b16 %v118
    %v275 = vunpack.c.l.b16 %v119
    %v276 = vunpack.c.l.b16 %v120
    %v277 = vunpack.c.l.b16 %v121
    %v278 = vunpack.c.l.b16 %v122
    %v279 = vunpack.c.l.b16 %v123
    %v280 = vunpack.c.l.b16 %v124
    %v281 = vunpack.c.l.b16 %v125
    %v282 = vunpack.c.l.b16 %v126
    %v283 = vunpack.c.l.b16 %v127
    %v284 = vunpack.c.l.b16 %v128
    %v285 = vunpack.c.l.b16 %v129
    %v286 = vunpack.c.l.b16 %v130
    %v287 = vunpack.c.l.b16 %v131
    %v288 = vunpack.c.l.b16 %v132
    %v289 = vunpack.c.l.b16 %v133
    %v290 = vunpack.c.l.b16 %v134
    %v291 = vunpack.c.l.b16 %v135
    %v292 = vunpack.c.l.b16 %v136
    %v293 = vunpack.c.l.b16 %v137
    %v294 = vunpack.c.l.b16 %v138
    %v295 = vunpack.c.l.b16 %v139
    %v296 = vunpack.c.l.b16 %v140
    %v297 = vunpack.c.l.b16 %v141
    %v298 = vunpack.c.l.b16 %v142
    %v299 = vunpack.c.l.b16 %v143
    %v300 = vunpack.c.l.b16 %v144
    %v301 = vunpack.c.l.b16 %v145
    %v302 = vunpack.c.l.b16 %v146
    %v303 = vunpack.c.l.b16 %v147
    %v304 = vunpack.c.l.b16 %v148
    %v305 = vunpack.c.l.b16 %v149
    %v306 = vunpack.c.l.b16 %v150
    %v307 = vunpack.c.l.b16 %v151
    %v308 = vunpack.c.l.b16 %v152
    %v309 = vunpack.c.l.b16 %v153
    %v310 = vunpack.c.l.b16 %v154
    %v311 = vunpack.c.l.b16 %v155
    %v312 = vunpack.c.l.b16 %v156
    %v313 = vunpack.c.l.b16 %v157
    %v314 = vunpack.c.l.b16 %v158
    %v315 = vunpack.c.l.b16 %v159
    %v316 = vunpack.c.l.b16 %v160
    %v317 = vunpack.c.l.b16 %v161
    %v318 = vunpack.c.l.b16 %v162
    %v319 = vunpack.c.l.b16 %v163
    %v320 = vunpack.c.l.b16 %v164
    %v321 = vunpack.c.l.b16 %v165
    %v322 = vunpack.c.l.b16 %v166
    %v323 = vpack.c.b16 %v260, %v259
    %v324 = vpack.c.b16 %v262, %v261
    %v325 = vpack.c.b16 %v264, %v263
    %v326 = vpack.c.b16 %v266, %v265
    %v327 = vpack.c.b16 %v268, %v267
    %v328 = vpack.c.b16 %v270, %v269
    %v329 = vpack.c.b16 %v272, %v271
    %v330 = vpack.c.b16 %v274, %v273
    %v331 = vpack.c.b16 %v276, %v275
    %v332 = vpack.c.b16 %v278, %v277
    %v333 = vpack.c.b16 %v280, %v279
    %v334 = vpack.c.b16 %v282, %v281
    %v335 = vpack.c.b16 %v284, %v283
    %v336 = vpack.c.b16 %v286, %v285
    %v337 = vpack.c.b16 %v288, %v287
    %v338 = vpack.c.b16 %v290, %v289
    %v339 = vpack.c.b16 %v292, %v291
    %v340 = vpack.c.b16 %v294, %v293
    %v341 = vpack.c.b16 %v296, %v295
    %v342 = vpack.c.b16 %v298, %v297
    %v343 = vpack.c.b16 %v300, %v299
    %v344 = vpack.c.b16 %v302, %v301
    %v345 = vpack.c.b16 %v304, %v303
    %v346 = vpack.c.b16 %v306, %v305
    %v347 = vpack.c.b16 %v308, %v307
    %v348 = vpack.c.b16 %v310, %v309
    %v349 = vpack.c.b16 %v312, %v311
    %v350 = vpack.c.b16 %v314, %v313
    %v351 = vpack.c.b16 %v316, %v315
    %v352 = vpack.c.b16 %v318, %v317
    %v353 = vpack.c.b16 %v320, %v319
    %v354 = vpack.c.b16 %v322, %v321
    %v403 = vunpack.c.l.b16 %v167
    %v404 = vunpack.c.h.b16 %v167
    %v405 = vunpack.c.l.b16 %v168
    %v406 = vunpack.c.h.b16 %v168
    %v407 = vunpack.c.l.b16 %v169
    %v408 = vunpack.c.h.b16 %v169
    %v409 = vunpack.c.l.b16 %v170
    %v410 = vunpack.c.h.b16 %v170
    %v411 = vunpack.c.l.b16 %v171
    %v412 = vunpack.c.h.b16 %v171
    %v413 = vunpack.c.l.b16 %v172
    %v414 = vunpack.c.h.b16 %v172
    %v415 = vunpack.c.l.b16 %v173
    %v416 = vunpack.c.h.b16 %v173
    %v417 = vunpack.c.l.b16 %v174
    %v418 = vunpack.c.h.b16 %v174
    %v419 = vunpack.c.l.b16 %v175
    %v420 = vunpack.c.h.b16 %v175
    %v421 = vunpack.c.l.b16 %v176
    %v422 = vunpack.c.h.b16 %v176
    %v423 = vunpack.c.l.b16 %v177
    %v424 = vunpack.c.h.b16 %v177
    %v425 = vunpack.c.l.b16 %v178
    %v426 = vunpack.c.h.b16 %v178
    %v427 = vunpack.c.l.b16 %v179
    %v428 = vunpack.c.h.b16 %v179
    %v429 = vunpack.c.l.b16 %v180
    %v430 = vunpack.c.h.b16 %v180
    %v431 = vunpack.c.l.b16 %v181
    %v432 = vunpack.c.h.b16 %v181
    %v433 = vunpack.c.l.b16 %v182
    %v434 = vunpack.c.h.b16 %v182
    %v435 = vpack.c.b16 %v405, %v403
    %v436 = vpack.c.b16 %v406, %v404
    %v437 = vpack.c.b16 %v409, %v407
    %v438 = vpack.c.b16 %v410, %v408
    %v439 = vpack.c.b16 %v413, %v411
    %v440 = vpack.c.b16 %v414, %v412
    %v441 = vpack.c.b16 %v417, %v415
    %v442 = vpack.c.b16 %v418, %v416
    %v443 = vpack.c.b16 %v421, %v419
    %v444 = vpack.c.b16 %v422, %v420
    %v445 = vpack.c.b16 %v425, %v423
    %v446 = vpack.c.b16 %v426, %v424
    %v447 = vpack.c.b16 %v429, %v427
    %v448 = vpack.c.b16 %v430, %v428
    %v449 = vpack.c.b16 %v433, %v431
    %v450 = vpack.c.b16 %v434, %v432
    %467 = vmatprep.subr.bf16.mxu0 %v436
    %468 = vmatpush1.bf16.msra.mxu0 %v435
    %469 = vmatprep.subr.bf16.mxu0 %v438
    %470 = vmatpush1.bf16.msra.mxu0 %v437
    %471 = vmatprep.subr.bf16.mxu0 %v440
    %472 = vmatpush1.bf16.msra.mxu0 %v439
    %473 = vmatprep.subr.bf16.mxu0 %v442
    %474 = vmatpush1.bf16.msra.mxu0 %v441
    %475 = vmatprep.subr.bf16.mxu0 %v444
    %476 = vmatpush1.bf16.msra.mxu0 %v443
    %477 = vmatprep.subr.bf16.mxu0 %v446
    %478 = vmatpush1.bf16.msra.mxu0 %v445
    %479 = vmatprep.subr.bf16.mxu0 %v448
    %480 = vmatpush1.bf16.msra.mxu0 %v447
    %481 = vmatprep.subr.bf16.mxu0 %v450
    %482 = vmatpush1.bf16.msra.mxu0 %v449
    %483 = vmatprep.subr.bf16.mxu0 0
    %484 = vmatpush1.bf16.msra.mxu0 0
    %485 = vmatprep.subr.bf16.mxu0 0
    %486 = vmatpush1.bf16.msra.mxu0 0
    %487 = vmatprep.subr.bf16.mxu0 0
    %488 = vmatpush1.bf16.msra.mxu0 0
    %489 = vmatprep.subr.bf16.mxu0 0
    %490 = vmatpush1.bf16.msra.mxu0 0
    %491 = vmatprep.subr.bf16.mxu0 0
    %492 = vmatpush1.bf16.msra.mxu0 0
    %493 = vmatprep.subr.bf16.mxu0 0
    %494 = vmatpush1.bf16.msra.mxu0 0
    %495 = vmatprep.subr.bf16.mxu0 0
    %496 = vmatpush1.bf16.msra.mxu0 0
    %497 = vmatprep.subr.bf16.mxu0 0
    %498 = vmatpush1.bf16.msra.mxu0 0
    %499 = vmatprep.mubr.bf16.mxu0 0
    %500 = vmatmul.mubr.bf16.gmra.mrb[0].mxu0 %v323
    %v501 = vpop.f32.mrb[0].mxu0
    %v502 = vadd.f32 %v188, %v501
    %v503 = vpop.f32.mrb[0].mxu0
    %v504 = vadd.f32 %v192, %v503
    %v505 = vpop.f32.mrb[0].mxu0
    %v506 = vadd.f32 %v188, %v505
    %v507 = vpop.f32.mrb[0].mxu0
    %v508 = vadd.f32 %v192, %v507
    %509 = vmatprep.mubr.bf16.mxu0 0
    %510 = vmatmul.mubr.bf16.gmra.mrb[0].mxu0 %v324
    %v511 = vpop.f32.mrb[0].mxu0
    %v512 = vadd.f32 %v188, %v511
    %v513 = vpop.f32.mrb[0].mxu0
    %v514 = vadd.f32 %v192, %v513
    %v515 = vpop.f32.mrb[0].mxu0
    %v516 = vadd.f32 %v188, %v515
    %v517 = vpop.f32.mrb[0].mxu0
    %v518 = vadd.f32 %v192, %v517
    %519 = vmatprep.mubr.bf16.mxu0 0
    %520 = vmatmul.mubr.bf16.gmra.mrb[0].mxu0 %v325
    %v521 = vpop.f32.mrb[0].mxu0
    %v522 = vadd.f32 %v188, %v521
    %v523 = vpop.f32.mrb[0].mxu0
    %v524 = vadd.f32 %v192, %v523
    %v525 = vpop.f32.mrb[0].mxu0
    %v526 = vadd.f32 %v188, %v525
    %v527 = vpop.f32.mrb[0].mxu0
    %v528 = vadd.f32 %v192, %v527
    %529 = vmatprep.mubr.bf16.mxu0 0
    %530 = vmatmul.mubr.bf16.gmra.mrb[0].mxu0 %v326
    %v531 = vpop.f32.mrb[0].mxu0
    %v532 = vadd.f32 %v188, %v531
    %v533 = vpop.f32.mrb[0].mxu0
    %v534 = vadd.f32 %v192, %v533
    %v535 = vpop.f32.mrb[0].mxu0
    %v536 = vadd.f32 %v188, %v535
    %v537 = vpop.f32.mrb[0].mxu0
    %v538 = vadd.f32 %v192, %v537
    %539 = vmatprep.mubr.bf16.mxu0 0
    %540 = vmatmul.mubr.bf16.gmra.mrb[0].mxu0 %v327
    %v541 = vpop.f32.mrb[0].mxu0
    %v542 = vadd.f32 %v188, %v541
    %v543 = vpop.f32.mrb[0].mxu0
    %v544 = vadd.f32 %v192, %v543
    %v545 = vpop.f32.mrb[0].mxu0
    %v546 = vadd.f32 %v188, %v545
    %v547 = vpop.f32.mrb[0].mxu0
    %v548 = vadd.f32 %v192, %v547
    %549 = vmatprep.mubr.bf16.mxu0 0
    %550 = vmatmul.mubr.bf16.gmra.mrb[0].mxu0 %v328
    %v551 = vpop.f32.mrb[0].mxu0
    %v552 = vadd.f32 %v188, %v551
    %v553 = vpop.f32.mrb[0].mxu0
    %v554 = vadd.f32 %v192, %v553
    %v555 = vpop.f32.mrb[0].mxu0
    %v556 = vadd.f32 %v188, %v555
    %v557 = vpop.f32.mrb[0].mxu0
    %v558 = vadd.f32 %v192, %v557
    %559 = vmatprep.mubr.bf16.mxu0 0
    %560 = vmatmul.mubr.bf16.gmra.mrb[0].mxu0 %v329
    %v561 = vpop.f32.mrb[0].mxu0
    %v562 = vadd.f32 %v188, %v561
    %v563 = vpop.f32.mrb[0].mxu0
    %v564 = vadd.f32 %v192, %v563
    %v565 = vpop.f32.mrb[0].mxu0
    %v566 = vadd.f32 %v188, %v565
    %v567 = vpop.f32.mrb[0].mxu0
    %v568 = vadd.f32 %v192, %v567
    %569 = vmatprep.mubr.bf16.mxu0 0
    %570 = vmatmul.mubr.bf16.gmra.mrb[0].mxu0 %v330
    %v571 = vpop.f32.mrb[0].mxu0
    %v572 = vadd.f32 %v188, %v571
    %v573 = vpop.f32.mrb[0].mxu0
    %v574 = vadd.f32 %v192, %v573
    %v575 = vpop.f32.mrb[0].mxu0
    %v576 = vadd.f32 %v188, %v575
    %v577 = vpop.f32.mrb[0].mxu0
    %v578 = vadd.f32 %v192, %v577
    %579 = vmatprep.mubr.bf16.mxu0 0
    %580 = vmatmul.mubr.bf16.gmra.mrb[0].mxu0 %v331
    %v581 = vpop.f32.mrb[0].mxu0
    %v582 = vadd.f32 %v188, %v581
    %v583 = vpop.f32.mrb[0].mxu0
    %v584 = vadd.f32 %v192, %v583
    %v585 = vpop.f32.mrb[0].mxu0
    %v586 = vadd.f32 %v188, %v585
    %v587 = vpop.f32.mrb[0].mxu0
    %v588 = vadd.f32 %v192, %v587
    %589 = vmatprep.mubr.bf16.mxu0 0
    %590 = vmatmul.mubr.bf16.gmra.mrb[0].mxu0 %v332
    %v591 = vpop.f32.mrb[0].mxu0
    %v592 = vadd.f32 %v188, %v591
    %v593 = vpop.f32.mrb[0].mxu0
    %v594 = vadd.f32 %v192, %v593
    %v595 = vpop.f32.mrb[0].mxu0
    %v596 = vadd.f32 %v188, %v595
    %v597 = vpop.f32.mrb[0].mxu0
    %v598 = vadd.f32 %v192, %v597
    %599 = vmatprep.mubr.bf16.mxu0 0
    %600 = vmatmul.mubr.bf16.gmra.mrb[0].mxu0 %v333
    %v601 = vpop.f32.mrb[0].mxu0
    %v602 = vadd.f32 %v188, %v601
    %v603 = vpop.f32.mrb[0].mxu0
    %v604 = vadd.f32 %v192, %v603
    %v605 = vpop.f32.mrb[0].mxu0
    %v606 = vadd.f32 %v188, %v605
    %v607 = vpop.f32.mrb[0].mxu0
    %v608 = vadd.f32 %v192, %v607
    %609 = vmatprep.mubr.bf16.mxu0 0
    %610 = vmatmul.mubr.bf16.gmra.mrb[0].mxu0 %v334
    %v611 = vpop.f32.mrb[0].mxu0
    %v612 = vadd.f32 %v188, %v611
    %v613 = vpop.f32.mrb[0].mxu0
    %v614 = vadd.f32 %v192, %v613
    %v615 = vpop.f32.mrb[0].mxu0
    %v616 = vadd.f32 %v188, %v615
    %v617 = vpop.f32.mrb[0].mxu0
    %v618 = vadd.f32 %v192, %v617
    %619 = vmatprep.mubr.bf16.mxu0 0
    %620 = vmatmul.mubr.bf16.gmra.mrb[0].mxu0 %v335
    %v621 = vpop.f32.mrb[0].mxu0
    %v622 = vadd.f32 %v188, %v621
    %v623 = vpop.f32.mrb[0].mxu0
    %v624 = vadd.f32 %v192, %v623
    %v625 = vpop.f32.mrb[0].mxu0
    %v626 = vadd.f32 %v188, %v625
    %v627 = vpop.f32.mrb[0].mxu0
    %v628 = vadd.f32 %v192, %v627
    %629 = vmatprep.mubr.bf16.mxu0 0
    %630 = vmatmul.mubr.bf16.gmra.mrb[0].mxu0 %v336
    %v631 = vpop.f32.mrb[0].mxu0
    %v632 = vadd.f32 %v188, %v631
    %v633 = vpop.f32.mrb[0].mxu0
    %v634 = vadd.f32 %v192, %v633
    %v635 = vpop.f32.mrb[0].mxu0
    %v636 = vadd.f32 %v188, %v635
    %v637 = vpop.f32.mrb[0].mxu0
    %v638 = vadd.f32 %v192, %v637
    %639 = vmatprep.mubr.bf16.mxu0 0
    %640 = vmatmul.mubr.bf16.gmra.mrb[0].mxu0 %v337
    %v641 = vpop.f32.mrb[0].mxu0
    %v642 = vadd.f32 %v188, %v641
    %v643 = vpop.f32.mrb[0].mxu0
    %v644 = vadd.f32 %v192, %v643
    %v645 = vpop.f32.mrb[0].mxu0
    %v646 = vadd.f32 %v188, %v645
    %v647 = vpop.f32.mrb[0].mxu0
    %v648 = vadd.f32 %v192, %v647
    %649 = vmatprep.mubr.bf16.mxu0 0
    %650 = vmatmul.mubr.bf16.gmra.mrb[0].mxu0 %v338
    %v651 = vpop.f32.mrb[0].mxu0
    %v652 = vadd.f32 %v188, %v651
    %v653 = vpop.f32.mrb[0].mxu0
    %v654 = vadd.f32 %v192, %v653
    %v655 = vpop.f32.mrb[0].mxu0
    %v656 = vadd.f32 %v188, %v655
    %v657 = vpop.f32.mrb[0].mxu0
    %v658 = vadd.f32 %v192, %v657
    %659 = vmatprep.mubr.bf16.mxu0 0
    %660 = vmatmul.mubr.bf16.gmra.mrb[0].mxu0 %v339
    %v661 = vpop.f32.mrb[0].mxu0
    %v662 = vadd.f32 %v188, %v661
    %v663 = vpop.f32.mrb[0].mxu0
    %v664 = vadd.f32 %v192, %v663
    %v665 = vpop.f32.mrb[0].mxu0
    %v666 = vadd.f32 %v188, %v665
    %v667 = vpop.f32.mrb[0].mxu0
    %v668 = vadd.f32 %v192, %v667
    %669 = vmatprep.mubr.bf16.mxu0 0
    %670 = vmatmul.mubr.bf16.gmra.mrb[0].mxu0 %v340
    %v671 = vpop.f32.mrb[0].mxu0
    %v672 = vadd.f32 %v188, %v671
    %v673 = vpop.f32.mrb[0].mxu0
    %v674 = vadd.f32 %v192, %v673
    %v675 = vpop.f32.mrb[0].mxu0
    %v676 = vadd.f32 %v188, %v675
    %v677 = vpop.f32.mrb[0].mxu0
    %v678 = vadd.f32 %v192, %v677
    %679 = vmatprep.mubr.bf16.mxu0 0
    %680 = vmatmul.mubr.bf16.gmra.mrb[0].mxu0 %v341
    %v681 = vpop.f32.mrb[0].mxu0
    %v682 = vadd.f32 %v188, %v681
    %v683 = vpop.f32.mrb[0].mxu0
    %v684 = vadd.f32 %v192, %v683
    %v685 = vpop.f32.mrb[0].mxu0
    %v686 = vadd.f32 %v188, %v685
    %v687 = vpop.f32.mrb[0].mxu0
    %v688 = vadd.f32 %v192, %v687
    %689 = vmatprep.mubr.bf16.mxu0 0
    %690 = vmatmul.mubr.bf16.gmra.mrb[0].mxu0 %v342
    %v691 = vpop.f32.mrb[0].mxu0
    %v692 = vadd.f32 %v188, %v691
    %v693 = vpop.f32.mrb[0].mxu0
    %v694 = vadd.f32 %v192, %v693
    %v695 = vpop.f32.mrb[0].mxu0
    %v696 = vadd.f32 %v188, %v695
    %v697 = vpop.f32.mrb[0].mxu0
    %v698 = vadd.f32 %v192, %v697
    %699 = vmatprep.mubr.bf16.mxu0 0
    %700 = vmatmul.mubr.bf16.gmra.mrb[0].mxu0 %v343
    %v701 = vpop.f32.mrb[0].mxu0
    %v702 = vadd.f32 %v188, %v701
    %v703 = vpop.f32.mrb[0].mxu0
    %v704 = vadd.f32 %v192, %v703
    %v705 = vpop.f32.mrb[0].mxu0
    %v706 = vadd.f32 %v188, %v705
    %v707 = vpop.f32.mrb[0].mxu0
    %v708 = vadd.f32 %v192, %v707
    %709 = vmatprep.mubr.bf16.mxu0 0
    %710 = vmatmul.mubr.bf16.gmra.mrb[0].mxu0 %v344
    %v711 = vpop.f32.mrb[0].mxu0
    %v712 = vadd.f32 %v188, %v711
    %v713 = vpop.f32.mrb[0].mxu0
    %v714 = vadd.f32 %v192, %v713
    %v715 = vpop.f32.mrb[0].mxu0
    %v716 = vadd.f32 %v188, %v715
    %v717 = vpop.f32.mrb[0].mxu0
    %v718 = vadd.f32 %v192, %v717
    %719 = vmatprep.mubr.bf16.mxu0 0
    %720 = vmatmul.mubr.bf16.gmra.mrb[0].mxu0 %v345
    %v721 = vpop.f32.mrb[0].mxu0
    %v722 = vadd.f32 %v188, %v721
    %v723 = vpop.f32.mrb[0].mxu0
    %v724 = vadd.f32 %v192, %v723
    %v725 = vpop.f32.mrb[0].mxu0
    %v726 = vadd.f32 %v188, %v725
    %v727 = vpop.f32.mrb[0].mxu0
    %v728 = vadd.f32 %v192, %v727
    %729 = vmatprep.mubr.bf16.mxu0 0
    %730 = vmatmul.mubr.bf16.gmra.mrb[0].mxu0 %v346
    %v731 = vpop.f32.mrb[0].mxu0
    %v732 = vadd.f32 %v188, %v731
    %v733 = vpop.f32.mrb[0].mxu0
    %v734 = vadd.f32 %v192, %v733
    %v735 = vpop.f32.mrb[0].mxu0
    %v736 = vadd.f32 %v188, %v735
    %v737 = vpop.f32.mrb[0].mxu0
    %v738 = vadd.f32 %v192, %v737
    %739 = vmatprep.mubr.bf16.mxu0 0
    %740 = vmatmul.mubr.bf16.gmra.mrb[0].mxu0 %v347
    %v741 = vpop.f32.mrb[0].mxu0
    %v742 = vadd.f32 %v188, %v741
    %v743 = vpop.f32.mrb[0].mxu0
    %v744 = vadd.f32 %v192, %v743
    %v745 = vpop.f32.mrb[0].mxu0
    %v746 = vadd.f32 %v188, %v745
    %v747 = vpop.f32.mrb[0].mxu0
    %v748 = vadd.f32 %v192, %v747
    %749 = vmatprep.mubr.bf16.mxu0 0
    %750 = vmatmul.mubr.bf16.gmra.mrb[0].mxu0 %v348
    %v751 = vpop.f32.mrb[0].mxu0
    %v752 = vadd.f32 %v188, %v751
    %v753 = vpop.f32.mrb[0].mxu0
    %v754 = vadd.f32 %v192, %v753
    %v755 = vpop.f32.mrb[0].mxu0
    %v756 = vadd.f32 %v188, %v755
    %v757 = vpop.f32.mrb[0].mxu0
    %v758 = vadd.f32 %v192, %v757
    %759 = vmatprep.mubr.bf16.mxu0 0
    %760 = vmatmul.mubr.bf16.gmra.mrb[0].mxu0 %v349
    %v761 = vpop.f32.mrb[0].mxu0
    %v762 = vadd.f32 %v188, %v761
    %v763 = vpop.f32.mrb[0].mxu0
    %v764 = vadd.f32 %v192, %v763
    %v765 = vpop.f32.mrb[0].mxu0
    %v766 = vadd.f32 %v188, %v765
    %v767 = vpop.f32.mrb[0].mxu0
    %v768 = vadd.f32 %v192, %v767
    %769 = vmatprep.mubr.bf16.mxu0 0
    %770 = vmatmul.mubr.bf16.gmra.mrb[0].mxu0 %v350
    %v771 = vpop.f32.mrb[0].mxu0
    %v772 = vadd.f32 %v188, %v771
    %v773 = vpop.f32.mrb[0].mxu0
    %v774 = vadd.f32 %v192, %v773
    %v775 = vpop.f32.mrb[0].mxu0
    %v776 = vadd.f32 %v188, %v775
    %v777 = vpop.f32.mrb[0].mxu0
    %v778 = vadd.f32 %v192, %v777
    %779 = vmatprep.mubr.bf16.mxu0 0
    %780 = vmatmul.mubr.bf16.gmra.mrb[0].mxu0 %v351
    %v781 = vpop.f32.mrb[0].mxu0
    %v782 = vadd.f32 %v188, %v781
    %v783 = vpop.f32.mrb[0].mxu0
    %v784 = vadd.f32 %v192, %v783
    %v785 = vpop.f32.mrb[0].mxu0
    %v786 = vadd.f32 %v188, %v785
    %v787 = vpop.f32.mrb[0].mxu0
    %v788 = vadd.f32 %v192, %v787
    %789 = vmatprep.mubr.bf16.mxu0 0
    %790 = vmatmul.mubr.bf16.gmra.mrb[0].mxu0 %v352
    %v791 = vpop.f32.mrb[0].mxu0
    %v792 = vadd.f32 %v188, %v791
    %v793 = vpop.f32.mrb[0].mxu0
    %v794 = vadd.f32 %v192, %v793
    %v795 = vpop.f32.mrb[0].mxu0
    %v796 = vadd.f32 %v188, %v795
    %v797 = vpop.f32.mrb[0].mxu0
    %v798 = vadd.f32 %v192, %v797
    %799 = vmatprep.mubr.bf16.mxu0 0
    %800 = vmatmul.mubr.bf16.gmra.mrb[0].mxu0 %v353
    %v801 = vpop.f32.mrb[0].mxu0
    %v802 = vadd.f32 %v188, %v801
    %v803 = vpop.f32.mrb[0].mxu0
    %v804 = vadd.f32 %v192, %v803
    %v805 = vpop.f32.mrb[0].mxu0
    %v806 = vadd.f32 %v188, %v805
    %v807 = vpop.f32.mrb[0].mxu0
    %v808 = vadd.f32 %v192, %v807
    %809 = vmatprep.mubr.bf16.mxu0 0
    %810 = vmatmul.mubr.bf16.gmra.mrb[0].mxu0 %v354
    %v811 = vpop.f32.mrb[0].mxu0
    %v812 = vadd.f32 %v188, %v811
    %v813 = vpop.f32.mrb[0].mxu0
    %v814 = vadd.f32 %v192, %v813
    %v815 = vpop.f32.mrb[0].mxu0
    %v816 = vadd.f32 %v188, %v815
    %v817 = vpop.f32.mrb[0].mxu0
    %v818 = vadd.f32 %v192, %v817
    %819 = vdwg.mxu0
    %v820 = vsub.f32 0.0, %v502
    %v821 = vsub.f32 0.0, %v506
    %v822 = vsub.f32 0.0, %v512
    %v823 = vsub.f32 0.0, %v516
    %v824 = vsub.f32 0.0, %v522
    %v825 = vsub.f32 0.0, %v526
    %v826 = vsub.f32 0.0, %v532
    %v827 = vsub.f32 0.0, %v536
    %v828 = vsub.f32 0.0, %v542
    %v829 = vsub.f32 0.0, %v546
    %v830 = vsub.f32 0.0, %v552
    %v831 = vsub.f32 0.0, %v556
    %v832 = vsub.f32 0.0, %v562
    %v833 = vsub.f32 0.0, %v566
    %v834 = vsub.f32 0.0, %v572
    %v835 = vsub.f32 0.0, %v576
    %v836 = vsub.f32 0.0, %v582
    %v837 = vsub.f32 0.0, %v586
    %v838 = vsub.f32 0.0, %v592
    %v839 = vsub.f32 0.0, %v596
    %v840 = vsub.f32 0.0, %v602
    %v841 = vsub.f32 0.0, %v606
    %v842 = vsub.f32 0.0, %v612
    %v843 = vsub.f32 0.0, %v616
    %v844 = vsub.f32 0.0, %v622
    %v845 = vsub.f32 0.0, %v626
    %v846 = vsub.f32 0.0, %v632
    %v847 = vsub.f32 0.0, %v636
    %v848 = vsub.f32 0.0, %v642
    %v849 = vsub.f32 0.0, %v646
    %v850 = vsub.f32 0.0, %v652
    %v851 = vsub.f32 0.0, %v656
    %v852 = vsub.f32 0.0, %v662
    %v853 = vsub.f32 0.0, %v666
    %v854 = vsub.f32 0.0, %v672
    %v855 = vsub.f32 0.0, %v676
    %v856 = vsub.f32 0.0, %v682
    %v857 = vsub.f32 0.0, %v686
    %v858 = vsub.f32 0.0, %v692
    %v859 = vsub.f32 0.0, %v696
    %v860 = vsub.f32 0.0, %v702
    %v861 = vsub.f32 0.0, %v706
    %v862 = vsub.f32 0.0, %v712
    %v863 = vsub.f32 0.0, %v716
    %v864 = vsub.f32 0.0, %v722
    %v865 = vsub.f32 0.0, %v726
    %v866 = vsub.f32 0.0, %v732
    %v867 = vsub.f32 0.0, %v736
    %v868 = vsub.f32 0.0, %v742
    %v869 = vsub.f32 0.0, %v746
    %v870 = vsub.f32 0.0, %v752
    %v871 = vsub.f32 0.0, %v756
    %v872 = vsub.f32 0.0, %v762
    %v873 = vsub.f32 0.0, %v766
    %v874 = vsub.f32 0.0, %v772
    %v875 = vsub.f32 0.0, %v776
    %v876 = vsub.f32 0.0, %v782
    %v877 = vsub.f32 0.0, %v786
    %v878 = vsub.f32 0.0, %v792
    %v879 = vsub.f32 0.0, %v796
    %v880 = vsub.f32 0.0, %v802
    %v881 = vsub.f32 0.0, %v806
    %v882 = vsub.f32 0.0, %v812
    %v883 = vsub.f32 0.0, %v816
    %v884 = vmul.f32 %v820, 1.442695
    %v885 = vpow.pop %v884
    %v886 = vmul.f32 %v821, 1.442695
    %v887 = vpow.pop %v886
    %v888 = vmul.f32 %v822, 1.442695
    %v889 = vpow.pop %v888
    %v890 = vmul.f32 %v823, 1.442695
    %v891 = vpow.pop %v890
    %v892 = vmul.f32 %v824, 1.442695
    %v893 = vpow.pop %v892
    %v894 = vmul.f32 %v825, 1.442695
    %v895 = vpow.pop %v894
    %v896 = vmul.f32 %v826, 1.442695
    %v897 = vpow.pop %v896
    %v898 = vmul.f32 %v827, 1.442695
    %v899 = vpow.pop %v898
    %v900 = vmul.f32 %v828, 1.442695
    %v901 = vpow.pop %v900
    %v902 = vmul.f32 %v829, 1.442695
    %v903 = vpow.pop %v902
    %v904 = vmul.f32 %v830, 1.442695
    %v905 = vpow.pop %v904
    %v906 = vmul.f32 %v831, 1.442695
    %v907 = vpow.pop %v906
    %v908 = vmul.f32 %v832, 1.442695
    %v909 = vpow.pop %v908
    %v910 = vmul.f32 %v833, 1.442695
    %v911 = vpow.pop %v910
    %v912 = vmul.f32 %v834, 1.442695
    %v913 = vpow.pop %v912
    %v914 = vmul.f32 %v835, 1.442695
    %v915 = vpow.pop %v914
    %v916 = vmul.f32 %v836, 1.442695
    %v917 = vpow.pop %v916
    %v918 = vmul.f32 %v837, 1.442695
    %v919 = vpow.pop %v918
    %v920 = vmul.f32 %v838, 1.442695
    %v921 = vpow.pop %v920
    %v922 = vmul.f32 %v839, 1.442695
    %v923 = vpow.pop %v922
    %v924 = vmul.f32 %v840, 1.442695
    %v925 = vpow.pop %v924
    %v926 = vmul.f32 %v841, 1.442695
    %v927 = vpow.pop %v926
    %v928 = vmul.f32 %v842, 1.442695
    %v929 = vpow.pop %v928
    %v930 = vmul.f32 %v843, 1.442695
    %v931 = vpow.pop %v930
    %v932 = vmul.f32 %v844, 1.442695
    %v933 = vpow.pop %v932
    %v934 = vmul.f32 %v845, 1.442695
    %v935 = vpow.pop %v934
    %v936 = vmul.f32 %v846, 1.442695
    %v937 = vpow.pop %v936
    %v938 = vmul.f32 %v847, 1.442695
    %v939 = vpow.pop %v938
    %v940 = vmul.f32 %v848, 1.442695
    %v941 = vpow.pop %v940
    %v942 = vmul.f32 %v849, 1.442695
    %v943 = vpow.pop %v942
    %v944 = vmul.f32 %v850, 1.442695
    %v945 = vpow.pop %v944
    %v946 = vmul.f32 %v851, 1.442695
    %v947 = vpow.pop %v946
    %v948 = vmul.f32 %v852, 1.442695
    %v949 = vpow.pop %v948
    %v950 = vmul.f32 %v853, 1.442695
    %v951 = vpow.pop %v950
    %v952 = vmul.f32 %v854, 1.442695
    %v953 = vpow.pop %v952
    %v954 = vmul.f32 %v855, 1.442695
    %v955 = vpow.pop %v954
    %v956 = vmul.f32 %v856, 1.442695
    %v957 = vpow.pop %v956
    %v958 = vmul.f32 %v857, 1.442695
    %v959 = vpow.pop %v958
    %v960 = vmul.f32 %v858, 1.442695
    %v961 = vpow.pop %v960
    %v962 = vmul.f32 %v859, 1.442695
    %v963 = vpow.pop %v962
    %v964 = vmul.f32 %v860, 1.442695
    %v965 = vpow.pop %v964
    %v966 = vmul.f32 %v861, 1.442695
    %v967 = vpow.pop %v966
    %v968 = vmul.f32 %v862, 1.442695
    %v969 = vpow.pop %v968
    %v970 = vmul.f32 %v863, 1.442695
    %v971 = vpow.pop %v970
    %v972 = vmul.f32 %v864, 1.442695
    %v973 = vpow.pop %v972
    %v974 = vmul.f32 %v865, 1.442695
    %v975 = vpow.pop %v974
    %v976 = vmul.f32 %v866, 1.442695
    %v977 = vpow.pop %v976
    %v978 = vmul.f32 %v867, 1.442695
    %v979 = vpow.pop %v978
    %v980 = vmul.f32 %v868, 1.442695
    %v981 = vpow.pop %v980
    %v982 = vmul.f32 %v869, 1.442695
    %v983 = vpow.pop %v982
    %v984 = vmul.f32 %v870, 1.442695
    %v985 = vpow.pop %v984
    %v986 = vmul.f32 %v871, 1.442695
    %v987 = vpow.pop %v986
    %v988 = vmul.f32 %v872, 1.442695
    %v989 = vpow.pop %v988
    %v990 = vmul.f32 %v873, 1.442695
    %v991 = vpow.pop %v990
    %v992 = vmul.f32 %v874, 1.442695
    %v993 = vpow.pop %v992
    %v994 = vmul.f32 %v875, 1.442695
    %v995 = vpow.pop %v994
    %v996 = vmul.f32 %v876, 1.442695
    %v997 = vpow.pop %v996
    %v998 = vmul.f32 %v877, 1.442695
    %v999 = vpow.pop %v998
    %v1000 = vmul.f32 %v878, 1.442695
    %v1001 = vpow.pop %v1000
    %v1002 = vmul.f32 %v879, 1.442695
    %v1003 = vpow.pop %v1002
    %v1004 = vmul.f32 %v880, 1.442695
    %v1005 = vpow.pop %v1004
    %v1006 = vmul.f32 %v881, 1.442695
    %v1007 = vpow.pop %v1006
    %v1008 = vmul.f32 %v882, 1.442695
    %v1009 = vpow.pop %v1008
    %v1010 = vmul.f32 %v883, 1.442695
    %v1011 = vpow.pop %v1010
    %v1012 = vadd.f32 %v885, 1.0
    %v1013 = vadd.f32 %v887, 1.0
    %v1014 = vadd.f32 %v889, 1.0
    %v1015 = vadd.f32 %v891, 1.0
    %v1016 = vadd.f32 %v893, 1.0
    %v1017 = vadd.f32 %v895, 1.0
    %v1018 = vadd.f32 %v897, 1.0
    %v1019 = vadd.f32 %v899, 1.0
    %v1020 = vadd.f32 %v901, 1.0
    %v1021 = vadd.f32 %v903, 1.0
    %v1022 = vadd.f32 %v905, 1.0
    %v1023 = vadd.f32 %v907, 1.0
    %v1024 = vadd.f32 %v909, 1.0
    %v1025 = vadd.f32 %v911, 1.0
    %v1026 = vadd.f32 %v913, 1.0
    %v1027 = vadd.f32 %v915, 1.0
    %v1028 = vadd.f32 %v917, 1.0
    %v1029 = vadd.f32 %v919, 1.0
    %v1030 = vadd.f32 %v921, 1.0
    %v1031 = vadd.f32 %v923, 1.0
    %v1032 = vadd.f32 %v925, 1.0
    %v1033 = vadd.f32 %v927, 1.0
    %v1034 = vadd.f32 %v929, 1.0
    %v1035 = vadd.f32 %v931, 1.0
    %v1036 = vadd.f32 %v933, 1.0
    %v1037 = vadd.f32 %v935, 1.0
    %v1038 = vadd.f32 %v937, 1.0
    %v1039 = vadd.f32 %v939, 1.0
    %v1040 = vadd.f32 %v941, 1.0
    %v1041 = vadd.f32 %v943, 1.0
    %v1042 = vadd.f32 %v945, 1.0
    %v1043 = vadd.f32 %v947, 1.0
    %v1044 = vadd.f32 %v949, 1.0
    %v1045 = vadd.f32 %v951, 1.0
    %v1046 = vadd.f32 %v953, 1.0
    %v1047 = vadd.f32 %v955, 1.0
    %v1048 = vadd.f32 %v957, 1.0
    %v1049 = vadd.f32 %v959, 1.0
    %v1050 = vadd.f32 %v961, 1.0
    %v1051 = vadd.f32 %v963, 1.0
    %v1052 = vadd.f32 %v965, 1.0
    %v1053 = vadd.f32 %v967, 1.0
    %v1054 = vadd.f32 %v969, 1.0
    %v1055 = vadd.f32 %v971, 1.0
    %v1056 = vadd.f32 %v973, 1.0
    %v1057 = vadd.f32 %v975, 1.0
    %v1058 = vadd.f32 %v977, 1.0
    %v1059 = vadd.f32 %v979, 1.0
    %v1060 = vadd.f32 %v981, 1.0
    %v1061 = vadd.f32 %v983, 1.0
    %v1062 = vadd.f32 %v985, 1.0
    %v1063 = vadd.f32 %v987, 1.0
    %v1064 = vadd.f32 %v989, 1.0
    %v1065 = vadd.f32 %v991, 1.0
    %v1066 = vadd.f32 %v993, 1.0
    %v1067 = vadd.f32 %v995, 1.0
    %v1068 = vadd.f32 %v997, 1.0
    %v1069 = vadd.f32 %v999, 1.0
    %v1070 = vadd.f32 %v1001, 1.0
    %v1071 = vadd.f32 %v1003, 1.0
    %v1072 = vadd.f32 %v1005, 1.0
    %v1073 = vadd.f32 %v1007, 1.0
    %v1074 = vadd.f32 %v1009, 1.0
    %v1075 = vadd.f32 %v1011, 1.0
    %v1076 = vrcp.pop %v1012
    %v1077 = vrcp.pop %v1013
    %v1078 = vrcp.pop %v1014
    %v1079 = vrcp.pop %v1015
    %v1080 = vrcp.pop %v1016
    %v1081 = vrcp.pop %v1017
    %v1082 = vrcp.pop %v1018
    %v1083 = vrcp.pop %v1019
    %v1084 = vrcp.pop %v1020
    %v1085 = vrcp.pop %v1021
    %v1086 = vrcp.pop %v1022
    %v1087 = vrcp.pop %v1023
    %v1088 = vrcp.pop %v1024
    %v1089 = vrcp.pop %v1025
    %v1090 = vrcp.pop %v1026
    %v1091 = vrcp.pop %v1027
    %v1092 = vrcp.pop %v1028
    %v1093 = vrcp.pop %v1029
    %v1094 = vrcp.pop %v1030
    %v1095 = vrcp.pop %v1031
    %v1096 = vrcp.pop %v1032
    %v1097 = vrcp.pop %v1033
    %v1098 = vrcp.pop %v1034
    %v1099 = vrcp.pop %v1035
    %v1100 = vrcp.pop %v1036
    %v1101 = vrcp.pop %v1037
    %v1102 = vrcp.pop %v1038
    %v1103 = vrcp.pop %v1039
    %v1104 = vrcp.pop %v1040
    %v1105 = vrcp.pop %v1041
    %v1106 = vrcp.pop %v1042
    %v1107 = vrcp.pop %v1043
    %v1108 = vrcp.pop %v1044
    %v1109 = vrcp.pop %v1045
    %v1110 = vrcp.pop %v1046
    %v1111 = vrcp.pop %v1047
    %v1112 = vrcp.pop %v1048
    %v1113 = vrcp.pop %v1049
    %v1114 = vrcp.pop %v1050
    %v1115 = vrcp.pop %v1051
    %v1116 = vrcp.pop %v1052
    %v1117 = vrcp.pop %v1053
    %v1118 = vrcp.pop %v1054
    %v1119 = vrcp.pop %v1055
    %v1120 = vrcp.pop %v1056
    %v1121 = vrcp.pop %v1057
    %v1122 = vrcp.pop %v1058
    %v1123 = vrcp.pop %v1059
    %v1124 = vrcp.pop %v1060
    %v1125 = vrcp.pop %v1061
    %v1126 = vrcp.pop %v1062
    %v1127 = vrcp.pop %v1063
    %v1128 = vrcp.pop %v1064
    %v1129 = vrcp.pop %v1065
    %v1130 = vrcp.pop %v1066
    %v1131 = vrcp.pop %v1067
    %v1132 = vrcp.pop %v1068
    %v1133 = vrcp.pop %v1069
    %v1134 = vrcp.pop %v1070
    %v1135 = vrcp.pop %v1071
    %v1136 = vrcp.pop %v1072
    %v1137 = vrcp.pop %v1073
    %v1138 = vrcp.pop %v1074
    %v1139 = vrcp.pop %v1075
    %v1140 = vmul.f32 %v502, %v1076
    %v1141 = vmul.f32 %v506, %v1077
    %v1142 = vmul.f32 %v512, %v1078
    %v1143 = vmul.f32 %v516, %v1079
    %v1144 = vmul.f32 %v522, %v1080
    %v1145 = vmul.f32 %v526, %v1081
    %v1146 = vmul.f32 %v532, %v1082
    %v1147 = vmul.f32 %v536, %v1083
    %v1148 = vmul.f32 %v542, %v1084
    %v1149 = vmul.f32 %v546, %v1085
    %v1150 = vmul.f32 %v552, %v1086
    %v1151 = vmul.f32 %v556, %v1087
    %v1152 = vmul.f32 %v562, %v1088
    %v1153 = vmul.f32 %v566, %v1089
    %v1154 = vmul.f32 %v572, %v1090
    %v1155 = vmul.f32 %v576, %v1091
    %v1156 = vmul.f32 %v582, %v1092
    %v1157 = vmul.f32 %v586, %v1093
    %v1158 = vmul.f32 %v592, %v1094
    %v1159 = vmul.f32 %v596, %v1095
    %v1160 = vmul.f32 %v602, %v1096
    %v1161 = vmul.f32 %v606, %v1097
    %v1162 = vmul.f32 %v612, %v1098
    %v1163 = vmul.f32 %v616, %v1099
    %v1164 = vmul.f32 %v622, %v1100
    %v1165 = vmul.f32 %v626, %v1101
    %v1166 = vmul.f32 %v632, %v1102
    %v1167 = vmul.f32 %v636, %v1103
    %v1168 = vmul.f32 %v642, %v1104
    %v1169 = vmul.f32 %v646, %v1105
    %v1170 = vmul.f32 %v652, %v1106
    %v1171 = vmul.f32 %v656, %v1107
    %v1172 = vmul.f32 %v662, %v1108
    %v1173 = vmul.f32 %v666, %v1109
    %v1174 = vmul.f32 %v672, %v1110
    %v1175 = vmul.f32 %v676, %v1111
    %v1176 = vmul.f32 %v682, %v1112
    %v1177 = vmul.f32 %v686, %v1113
    %v1178 = vmul.f32 %v692, %v1114
    %v1179 = vmul.f32 %v696, %v1115
    %v1180 = vmul.f32 %v702, %v1116
    %v1181 = vmul.f32 %v706, %v1117
    %v1182 = vmul.f32 %v712, %v1118
    %v1183 = vmul.f32 %v716, %v1119
    %v1184 = vmul.f32 %v722, %v1120
    %v1185 = vmul.f32 %v726, %v1121
    %v1186 = vmul.f32 %v732, %v1122
    %v1187 = vmul.f32 %v736, %v1123
    %v1188 = vmul.f32 %v742, %v1124
    %v1189 = vmul.f32 %v746, %v1125
    %v1190 = vmul.f32 %v752, %v1126
    %v1191 = vmul.f32 %v756, %v1127
    %v1192 = vmul.f32 %v762, %v1128
    %v1193 = vmul.f32 %v766, %v1129
    %v1194 = vmul.f32 %v772, %v1130
    %v1195 = vmul.f32 %v776, %v1131
    %v1196 = vmul.f32 %v782, %v1132
    %v1197 = vmul.f32 %v786, %v1133
    %v1198 = vmul.f32 %v792, %v1134
    %v1199 = vmul.f32 %v796, %v1135
    %v1200 = vmul.f32 %v802, %v1136
    %v1201 = vmul.f32 %v806, %v1137
    %v1202 = vmul.f32 %v812, %v1138
    %v1203 = vmul.f32 %v816, %v1139
    %v1204 = vsub.f32 0.0, %v504
    %v1205 = vsub.f32 0.0, %v508
    %v1206 = vsub.f32 0.0, %v514
    %v1207 = vsub.f32 0.0, %v518
    %v1208 = vsub.f32 0.0, %v524
    %v1209 = vsub.f32 0.0, %v528
    %v1210 = vsub.f32 0.0, %v534
    %v1211 = vsub.f32 0.0, %v538
    %v1212 = vsub.f32 0.0, %v544
    %v1213 = vsub.f32 0.0, %v548
    %v1214 = vsub.f32 0.0, %v554
    %v1215 = vsub.f32 0.0, %v558
    %v1216 = vsub.f32 0.0, %v564
    %v1217 = vsub.f32 0.0, %v568
    %v1218 = vsub.f32 0.0, %v574
    %v1219 = vsub.f32 0.0, %v578
    %v1220 = vsub.f32 0.0, %v584
    %v1221 = vsub.f32 0.0, %v588
    %v1222 = vsub.f32 0.0, %v594
    %v1223 = vsub.f32 0.0, %v598
    %v1224 = vsub.f32 0.0, %v604
    %v1225 = vsub.f32 0.0, %v608
    %v1226 = vsub.f32 0.0, %v614
    %v1227 = vsub.f32 0.0, %v618
    %v1228 = vsub.f32 0.0, %v624
    %v1229 = vsub.f32 0.0, %v628
    %v1230 = vsub.f32 0.0, %v634
    %v1231 = vsub.f32 0.0, %v638
    %v1232 = vsub.f32 0.0, %v644
    %v1233 = vsub.f32 0.0, %v648
    %v1234 = vsub.f32 0.0, %v654
    %v1235 = vsub.f32 0.0, %v658
    %v1236 = vsub.f32 0.0, %v664
    %v1237 = vsub.f32 0.0, %v668
    %v1238 = vsub.f32 0.0, %v674
    %v1239 = vsub.f32 0.0, %v678
    %v1240 = vsub.f32 0.0, %v684
    %v1241 = vsub.f32 0.0, %v688
    %v1242 = vsub.f32 0.0, %v694
    %v1243 = vsub.f32 0.0, %v698
    %v1244 = vsub.f32 0.0, %v704
    %v1245 = vsub.f32 0.0, %v708
    %v1246 = vsub.f32 0.0, %v714
    %v1247 = vsub.f32 0.0, %v718
    %v1248 = vsub.f32 0.0, %v724
    %v1249 = vsub.f32 0.0, %v728
    %v1250 = vsub.f32 0.0, %v734
    %v1251 = vsub.f32 0.0, %v738
    %v1252 = vsub.f32 0.0, %v744
    %v1253 = vsub.f32 0.0, %v748
    %v1254 = vsub.f32 0.0, %v754
    %v1255 = vsub.f32 0.0, %v758
    %v1256 = vsub.f32 0.0, %v764
    %v1257 = vsub.f32 0.0, %v768
    %v1258 = vsub.f32 0.0, %v774
    %v1259 = vsub.f32 0.0, %v778
    %v1260 = vsub.f32 0.0, %v784
    %v1261 = vsub.f32 0.0, %v788
    %v1262 = vsub.f32 0.0, %v794
    %v1263 = vsub.f32 0.0, %v798
    %v1264 = vsub.f32 0.0, %v804
    %v1265 = vsub.f32 0.0, %v808
    %v1266 = vsub.f32 0.0, %v814
    %v1267 = vsub.f32 0.0, %v818
    %v1268 = vmul.f32 %v1204, 1.442695
    %v1269 = vpow.pop %v1268
    %v1270 = vmul.f32 %v1205, 1.442695
    %v1271 = vpow.pop %v1270
    %v1272 = vmul.f32 %v1206, 1.442695
    %v1273 = vpow.pop %v1272
    %v1274 = vmul.f32 %v1207, 1.442695
    %v1275 = vpow.pop %v1274
    %v1276 = vmul.f32 %v1208, 1.442695
    %v1277 = vpow.pop %v1276
    %v1278 = vmul.f32 %v1209, 1.442695
    %v1279 = vpow.pop %v1278
    %v1280 = vmul.f32 %v1210, 1.442695
    %v1281 = vpow.pop %v1280
    %v1282 = vmul.f32 %v1211, 1.442695
    %v1283 = vpow.pop %v1282
    %v1284 = vmul.f32 %v1212, 1.442695
    %v1285 = vpow.pop %v1284
    %v1286 = vmul.f32 %v1213, 1.442695
    %v1287 = vpow.pop %v1286
    %v1288 = vmul.f32 %v1214, 1.442695
    %v1289 = vpow.pop %v1288
    %v1290 = vmul.f32 %v1215, 1.442695
    %v1291 = vpow.pop %v1290
    %v1292 = vmul.f32 %v1216, 1.442695
    %v1293 = vpow.pop %v1292
    %v1294 = vmul.f32 %v1217, 1.442695
    %v1295 = vpow.pop %v1294
    %v1296 = vmul.f32 %v1218, 1.442695
    %v1297 = vpow.pop %v1296
    %v1298 = vmul.f32 %v1219, 1.442695
    %v1299 = vpow.pop %v1298
    %v1300 = vmul.f32 %v1220, 1.442695
    %v1301 = vpow.pop %v1300
    %v1302 = vmul.f32 %v1221, 1.442695
    %v1303 = vpow.pop %v1302
    %v1304 = vmul.f32 %v1222, 1.442695
    %v1305 = vpow.pop %v1304
    %v1306 = vmul.f32 %v1223, 1.442695
    %v1307 = vpow.pop %v1306
    %v1308 = vmul.f32 %v1224, 1.442695
    %v1309 = vpow.pop %v1308
    %v1310 = vmul.f32 %v1225, 1.442695
    %v1311 = vpow.pop %v1310
    %v1312 = vmul.f32 %v1226, 1.442695
    %v1313 = vpow.pop %v1312
    %v1314 = vmul.f32 %v1227, 1.442695
    %v1315 = vpow.pop %v1314
    %v1316 = vmul.f32 %v1228, 1.442695
    %v1317 = vpow.pop %v1316
    %v1318 = vmul.f32 %v1229, 1.442695
    %v1319 = vpow.pop %v1318
    %v1320 = vmul.f32 %v1230, 1.442695
    %v1321 = vpow.pop %v1320
    %v1322 = vmul.f32 %v1231, 1.442695
    %v1323 = vpow.pop %v1322
    %v1324 = vmul.f32 %v1232, 1.442695
    %v1325 = vpow.pop %v1324
    %v1326 = vmul.f32 %v1233, 1.442695
    %v1327 = vpow.pop %v1326
    %v1328 = vmul.f32 %v1234, 1.442695
    %v1329 = vpow.pop %v1328
    %v1330 = vmul.f32 %v1235, 1.442695
    %v1331 = vpow.pop %v1330
    %v1332 = vmul.f32 %v1236, 1.442695
    %v1333 = vpow.pop %v1332
    %v1334 = vmul.f32 %v1237, 1.442695
    %v1335 = vpow.pop %v1334
    %v1336 = vmul.f32 %v1238, 1.442695
    %v1337 = vpow.pop %v1336
    %v1338 = vmul.f32 %v1239, 1.442695
    %v1339 = vpow.pop %v1338
    %v1340 = vmul.f32 %v1240, 1.442695
    %v1341 = vpow.pop %v1340
    %v1342 = vmul.f32 %v1241, 1.442695
    %v1343 = vpow.pop %v1342
    %v1344 = vmul.f32 %v1242, 1.442695
    %v1345 = vpow.pop %v1344
    %v1346 = vmul.f32 %v1243, 1.442695
    %v1347 = vpow.pop %v1346
    %v1348 = vmul.f32 %v1244, 1.442695
    %v1349 = vpow.pop %v1348
    %v1350 = vmul.f32 %v1245, 1.442695
    %v1351 = vpow.pop %v1350
    %v1352 = vmul.f32 %v1246, 1.442695
    %v1353 = vpow.pop %v1352
    %v1354 = vmul.f32 %v1247, 1.442695
    %v1355 = vpow.pop %v1354
    %v1356 = vmul.f32 %v1248, 1.442695
    %v1357 = vpow.pop %v1356
    %v1358 = vmul.f32 %v1249, 1.442695
    %v1359 = vpow.pop %v1358
    %v1360 = vmul.f32 %v1250, 1.442695
    %v1361 = vpow.pop %v1360
    %v1362 = vmul.f32 %v1251, 1.442695
    %v1363 = vpow.pop %v1362
    %v1364 = vmul.f32 %v1252, 1.442695
    %v1365 = vpow.pop %v1364
    %v1366 = vmul.f32 %v1253, 1.442695
    %v1367 = vpow.pop %v1366
    %v1368 = vmul.f32 %v1254, 1.442695
    %v1369 = vpow.pop %v1368
    %v1370 = vmul.f32 %v1255, 1.442695
    %v1371 = vpow.pop %v1370
    %v1372 = vmul.f32 %v1256, 1.442695
    %v1373 = vpow.pop %v1372
    %v1374 = vmul.f32 %v1257, 1.442695
    %v1375 = vpow.pop %v1374
    %v1376 = vmul.f32 %v1258, 1.442695
    %v1377 = vpow.pop %v1376
    %v1378 = vmul.f32 %v1259, 1.442695
    %v1379 = vpow.pop %v1378
    %v1380 = vmul.f32 %v1260, 1.442695
    %v1381 = vpow.pop %v1380
    %v1382 = vmul.f32 %v1261, 1.442695
    %v1383 = vpow.pop %v1382
    %v1384 = vmul.f32 %v1262, 1.442695
    %v1385 = vpow.pop %v1384
    %v1386 = vmul.f32 %v1263, 1.442695
    %v1387 = vpow.pop %v1386
    %v1388 = vmul.f32 %v1264, 1.442695
    %v1389 = vpow.pop %v1388
    %v1390 = vmul.f32 %v1265, 1.442695
    %v1391 = vpow.pop %v1390
    %v1392 = vmul.f32 %v1266, 1.442695
    %v1393 = vpow.pop %v1392
    %v1394 = vmul.f32 %v1267, 1.442695
    %v1395 = vpow.pop %v1394
    %v1396 = vadd.f32 %v1269, 1.0
    %v1397 = vadd.f32 %v1271, 1.0
    %v1398 = vadd.f32 %v1273, 1.0
    %v1399 = vadd.f32 %v1275, 1.0
    %v1400 = vadd.f32 %v1277, 1.0
    %v1401 = vadd.f32 %v1279, 1.0
    %v1402 = vadd.f32 %v1281, 1.0
    %v1403 = vadd.f32 %v1283, 1.0
    %v1404 = vadd.f32 %v1285, 1.0
    %v1405 = vadd.f32 %v1287, 1.0
    %v1406 = vadd.f32 %v1289, 1.0
    %v1407 = vadd.f32 %v1291, 1.0
    %v1408 = vadd.f32 %v1293, 1.0
    %v1409 = vadd.f32 %v1295, 1.0
    %v1410 = vadd.f32 %v1297, 1.0
    %v1411 = vadd.f32 %v1299, 1.0
    %v1412 = vadd.f32 %v1301, 1.0
    %v1413 = vadd.f32 %v1303, 1.0
    %v1414 = vadd.f32 %v1305, 1.0
    %v1415 = vadd.f32 %v1307, 1.0
    %v1416 = vadd.f32 %v1309, 1.0
    %v1417 = vadd.f32 %v1311, 1.0
    %v1418 = vadd.f32 %v1313, 1.0
    %v1419 = vadd.f32 %v1315, 1.0
    %v1420 = vadd.f32 %v1317, 1.0
    %v1421 = vadd.f32 %v1319, 1.0
    %v1422 = vadd.f32 %v1321, 1.0
    %v1423 = vadd.f32 %v1323, 1.0
    %v1424 = vadd.f32 %v1325, 1.0
    %v1425 = vadd.f32 %v1327, 1.0
    %v1426 = vadd.f32 %v1329, 1.0
    %v1427 = vadd.f32 %v1331, 1.0
    %v1428 = vadd.f32 %v1333, 1.0
    %v1429 = vadd.f32 %v1335, 1.0
    %v1430 = vadd.f32 %v1337, 1.0
    %v1431 = vadd.f32 %v1339, 1.0
    %v1432 = vadd.f32 %v1341, 1.0
    %v1433 = vadd.f32 %v1343, 1.0
    %v1434 = vadd.f32 %v1345, 1.0
    %v1435 = vadd.f32 %v1347, 1.0
    %v1436 = vadd.f32 %v1349, 1.0
    %v1437 = vadd.f32 %v1351, 1.0
    %v1438 = vadd.f32 %v1353, 1.0
    %v1439 = vadd.f32 %v1355, 1.0
    %v1440 = vadd.f32 %v1357, 1.0
    %v1441 = vadd.f32 %v1359, 1.0
    %v1442 = vadd.f32 %v1361, 1.0
    %v1443 = vadd.f32 %v1363, 1.0
    %v1444 = vadd.f32 %v1365, 1.0
    %v1445 = vadd.f32 %v1367, 1.0
    %v1446 = vadd.f32 %v1369, 1.0
    %v1447 = vadd.f32 %v1371, 1.0
    %v1448 = vadd.f32 %v1373, 1.0
    %v1449 = vadd.f32 %v1375, 1.0
    %v1450 = vadd.f32 %v1377, 1.0
    %v1451 = vadd.f32 %v1379, 1.0
    %v1452 = vadd.f32 %v1381, 1.0
    %v1453 = vadd.f32 %v1383, 1.0
    %v1454 = vadd.f32 %v1385, 1.0
    %v1455 = vadd.f32 %v1387, 1.0
    %v1456 = vadd.f32 %v1389, 1.0
    %v1457 = vadd.f32 %v1391, 1.0
    %v1458 = vadd.f32 %v1393, 1.0
    %v1459 = vadd.f32 %v1395, 1.0
    %v1460 = vrcp.pop %v1396
    %v1461 = vrcp.pop %v1397
    %v1462 = vrcp.pop %v1398
    %v1463 = vrcp.pop %v1399
    %v1464 = vrcp.pop %v1400
    %v1465 = vrcp.pop %v1401
    %v1466 = vrcp.pop %v1402
    %v1467 = vrcp.pop %v1403
    %v1468 = vrcp.pop %v1404
    %v1469 = vrcp.pop %v1405
    %v1470 = vrcp.pop %v1406
    %v1471 = vrcp.pop %v1407
    %v1472 = vrcp.pop %v1408
    %v1473 = vrcp.pop %v1409
    %v1474 = vrcp.pop %v1410
    %v1475 = vrcp.pop %v1411
    %v1476 = vrcp.pop %v1412
    %v1477 = vrcp.pop %v1413
    %v1478 = vrcp.pop %v1414
    %v1479 = vrcp.pop %v1415
    %v1480 = vrcp.pop %v1416
    %v1481 = vrcp.pop %v1417
    %v1482 = vrcp.pop %v1418
    %v1483 = vrcp.pop %v1419
    %v1484 = vrcp.pop %v1420
    %v1485 = vrcp.pop %v1421
    %v1486 = vrcp.pop %v1422
    %v1487 = vrcp.pop %v1423
    %v1488 = vrcp.pop %v1424
    %v1489 = vrcp.pop %v1425
    %v1490 = vrcp.pop %v1426
    %v1491 = vrcp.pop %v1427
    %v1492 = vrcp.pop %v1428
    %v1493 = vrcp.pop %v1429
    %v1494 = vrcp.pop %v1430
    %v1495 = vrcp.pop %v1431
    %v1496 = vrcp.pop %v1432
    %v1497 = vrcp.pop %v1433
    %v1498 = vrcp.pop %v1434
    %v1499 = vrcp.pop %v1435
    %v1500 = vrcp.pop %v1436
    %v1501 = vrcp.pop %v1437
    %v1502 = vrcp.pop %v1438
    %v1503 = vrcp.pop %v1439
    %v1504 = vrcp.pop %v1440
    %v1505 = vrcp.pop %v1441
    %v1506 = vrcp.pop %v1442
    %v1507 = vrcp.pop %v1443
    %v1508 = vrcp.pop %v1444
    %v1509 = vrcp.pop %v1445
    %v1510 = vrcp.pop %v1446
    %v1511 = vrcp.pop %v1447
    %v1512 = vrcp.pop %v1448
    %v1513 = vrcp.pop %v1449
    %v1514 = vrcp.pop %v1450
    %v1515 = vrcp.pop %v1451
    %v1516 = vrcp.pop %v1452
    %v1517 = vrcp.pop %v1453
    %v1518 = vrcp.pop %v1454
    %v1519 = vrcp.pop %v1455
    %v1520 = vrcp.pop %v1456
    %v1521 = vrcp.pop %v1457
    %v1522 = vrcp.pop %v1458
    %v1523 = vrcp.pop %v1459
    %v1524 = vmul.f32 %v504, %v1460
    %v1525 = vmul.f32 %v508, %v1461
    %v1526 = vmul.f32 %v514, %v1462
    %v1527 = vmul.f32 %v518, %v1463
    %v1528 = vmul.f32 %v524, %v1464
    %v1529 = vmul.f32 %v528, %v1465
    %v1530 = vmul.f32 %v534, %v1466
    %v1531 = vmul.f32 %v538, %v1467
    %v1532 = vmul.f32 %v544, %v1468
    %v1533 = vmul.f32 %v548, %v1469
    %v1534 = vmul.f32 %v554, %v1470
    %v1535 = vmul.f32 %v558, %v1471
    %v1536 = vmul.f32 %v564, %v1472
    %v1537 = vmul.f32 %v568, %v1473
    %v1538 = vmul.f32 %v574, %v1474
    %v1539 = vmul.f32 %v578, %v1475
    %v1540 = vmul.f32 %v584, %v1476
    %v1541 = vmul.f32 %v588, %v1477
    %v1542 = vmul.f32 %v594, %v1478
    %v1543 = vmul.f32 %v598, %v1479
    %v1544 = vmul.f32 %v604, %v1480
    %v1545 = vmul.f32 %v608, %v1481
    %v1546 = vmul.f32 %v614, %v1482
    %v1547 = vmul.f32 %v618, %v1483
    %v1548 = vmul.f32 %v624, %v1484
    %v1549 = vmul.f32 %v628, %v1485
    %v1550 = vmul.f32 %v634, %v1486
    %v1551 = vmul.f32 %v638, %v1487
    %v1552 = vmul.f32 %v644, %v1488
    %v1553 = vmul.f32 %v648, %v1489
    %v1554 = vmul.f32 %v654, %v1490
    %v1555 = vmul.f32 %v658, %v1491
    %v1556 = vmul.f32 %v664, %v1492
    %v1557 = vmul.f32 %v668, %v1493
    %v1558 = vmul.f32 %v674, %v1494
    %v1559 = vmul.f32 %v678, %v1495
    %v1560 = vmul.f32 %v684, %v1496
    %v1561 = vmul.f32 %v688, %v1497
    %v1562 = vmul.f32 %v694, %v1498
    %v1563 = vmul.f32 %v698, %v1499
    %v1564 = vmul.f32 %v704, %v1500
    %v1565 = vmul.f32 %v708, %v1501
    %v1566 = vmul.f32 %v714, %v1502
    %v1567 = vmul.f32 %v718, %v1503
    %v1568 = vmul.f32 %v724, %v1504
    %v1569 = vmul.f32 %v728, %v1505
    %v1570 = vmul.f32 %v734, %v1506
    %v1571 = vmul.f32 %v738, %v1507
    %v1572 = vmul.f32 %v744, %v1508
    %v1573 = vmul.f32 %v748, %v1509
    %v1574 = vmul.f32 %v754, %v1510
    %v1575 = vmul.f32 %v758, %v1511
    %v1576 = vmul.f32 %v764, %v1512
    %v1577 = vmul.f32 %v768, %v1513
    %v1578 = vmul.f32 %v774, %v1514
    %v1579 = vmul.f32 %v778, %v1515
    %v1580 = vmul.f32 %v784, %v1516
    %v1581 = vmul.f32 %v788, %v1517
    %v1582 = vmul.f32 %v794, %v1518
    %v1583 = vmul.f32 %v798, %v1519
    %v1584 = vmul.f32 %v804, %v1520
    %v1585 = vmul.f32 %v808, %v1521
    %v1586 = vmul.f32 %v814, %v1522
    %v1587 = vmul.f32 %v818, %v1523
    %v1588 = vpack.c.bf16 %v1141, %v1140
    %v1589 = vpack.c.bf16 %v1143, %v1142
    %v1590 = vpack.c.bf16 %v1145, %v1144
    %v1591 = vpack.c.bf16 %v1147, %v1146
    %v1592 = vpack.c.bf16 %v1149, %v1148
    %v1593 = vpack.c.bf16 %v1151, %v1150
    %v1594 = vpack.c.bf16 %v1153, %v1152
    %v1595 = vpack.c.bf16 %v1155, %v1154
    %v1596 = vpack.c.bf16 %v1157, %v1156
    %v1597 = vpack.c.bf16 %v1159, %v1158
    %v1598 = vpack.c.bf16 %v1161, %v1160
    %v1599 = vpack.c.bf16 %v1163, %v1162
    %v1600 = vpack.c.bf16 %v1165, %v1164
    %v1601 = vpack.c.bf16 %v1167, %v1166
    %v1602 = vpack.c.bf16 %v1169, %v1168
    %v1603 = vpack.c.bf16 %v1171, %v1170
    %v1604 = vpack.c.bf16 %v1173, %v1172
    %v1605 = vpack.c.bf16 %v1175, %v1174
    %v1606 = vpack.c.bf16 %v1177, %v1176
    %v1607 = vpack.c.bf16 %v1179, %v1178
    %v1608 = vpack.c.bf16 %v1181, %v1180
    %v1609 = vpack.c.bf16 %v1183, %v1182
    %v1610 = vpack.c.bf16 %v1185, %v1184
    %v1611 = vpack.c.bf16 %v1187, %v1186
    %v1612 = vpack.c.bf16 %v1189, %v1188
    %v1613 = vpack.c.bf16 %v1191, %v1190
    %v1614 = vpack.c.bf16 %v1193, %v1192
    %v1615 = vpack.c.bf16 %v1195, %v1194
    %v1616 = vpack.c.bf16 %v1197, %v1196
    %v1617 = vpack.c.bf16 %v1199, %v1198
    %v1618 = vpack.c.bf16 %v1201, %v1200
    %v1619 = vpack.c.bf16 %v1203, %v1202
    %v1620 = vld [vmem:[%s5] sm:$0xf]
    %v1621 = vld [vmem:[%s5 + $0x4] sm:$0xf]
    %v1622 = vld [vmem:[%s5 + $0x8] sm:$0xf]
    %v1623 = vld [vmem:[%s5 + $0xc] sm:$0xf]
    %v1624 = vld [vmem:[%s5 + $0x10] sm:$0xf]
    %v1625 = vld [vmem:[%s5 + $0x14] sm:$0xf]
    %v1626 = vld [vmem:[%s5 + $0x18] sm:$0xf]
    %v1627 = vld [vmem:[%s5 + $0x1c] sm:$0xf]
    %v1628 = vld [vmem:[%s5 + $0x20] sm:$0xf]
    %v1629 = vld [vmem:[%s5 + $0x24] sm:$0xf]
    %v1630 = vld [vmem:[%s5 + $0x28] sm:$0xf]
    %v1631 = vld [vmem:[%s5 + $0x2c] sm:$0xf]
    %v1632 = vld [vmem:[%s5 + $0x30] sm:$0xf]
    %v1633 = vld [vmem:[%s5 + $0x34] sm:$0xf]
    %v1634 = vld [vmem:[%s5 + $0x38] sm:$0xf]
    %v1635 = vld [vmem:[%s5 + $0x3c] sm:$0xf]
    %v1636 = vld [vmem:[%s6] sm:$0x1]
    %v1638 = vlaneseq
    %v1639 = vshrl.u32 %v1638, 7
    %v1640 = vsub.s32 0, %v1639
    %v1641 = vrot.slane %v1636, %v1640
    %v1659 = vunpack.c.l.b16 %v1620
    %v1660 = vunpack.c.l.b16 %v1621
    %v1661 = vunpack.c.l.b16 %v1622
    %v1662 = vunpack.c.l.b16 %v1623
    %v1663 = vunpack.c.l.b16 %v1624
    %v1664 = vunpack.c.l.b16 %v1625
    %v1665 = vunpack.c.l.b16 %v1626
    %v1666 = vunpack.c.l.b16 %v1627
    %v1667 = vunpack.c.l.b16 %v1628
    %v1668 = vunpack.c.l.b16 %v1629
    %v1669 = vunpack.c.l.b16 %v1630
    %v1670 = vunpack.c.l.b16 %v1631
    %v1671 = vunpack.c.l.b16 %v1632
    %v1672 = vunpack.c.l.b16 %v1633
    %v1673 = vunpack.c.l.b16 %v1634
    %v1674 = vunpack.c.l.b16 %v1635
    %v1675 = vpack.c.b16 %v1660, %v1659
    %v1676 = vpack.c.b16 %v1662, %v1661
    %v1677 = vpack.c.b16 %v1664, %v1663
    %v1678 = vpack.c.b16 %v1666, %v1665
    %v1679 = vpack.c.b16 %v1668, %v1667
    %v1680 = vpack.c.b16 %v1670, %v1669
    %v1681 = vpack.c.b16 %v1672, %v1671
    %v1682 = vpack.c.b16 %v1674, %v1673
    %1691 = vmatprep.subr.bf16.mxu0 0
    %1692 = vmatpush1.bf16.msra.mxu0 %v1675
    %1693 = vmatprep.subr.bf16.mxu0 0
    %1694 = vmatpush1.bf16.msra.mxu0 %v1676
    %1695 = vmatprep.subr.bf16.mxu0 0
    %1696 = vmatpush1.bf16.msra.mxu0 %v1677
    %1697 = vmatprep.subr.bf16.mxu0 0
    %1698 = vmatpush1.bf16.msra.mxu0 %v1678
    %1699 = vmatprep.subr.bf16.mxu0 0
    %1700 = vmatpush1.bf16.msra.mxu0 %v1679
    %1701 = vmatprep.subr.bf16.mxu0 0
    %1702 = vmatpush1.bf16.msra.mxu0 %v1680
    %1703 = vmatprep.subr.bf16.mxu0 0
    %1704 = vmatpush1.bf16.msra.mxu0 %v1681
    %1705 = vmatprep.subr.bf16.mxu0 0
    %1706 = vmatpush1.bf16.msra.mxu0 %v1682
    %1707 = vmatprep.subr.bf16.mxu0 0
    %1708 = vmatpush1.bf16.msra.mxu0 0
    %1709 = vmatprep.subr.bf16.mxu0 0
    %1710 = vmatpush1.bf16.msra.mxu0 0
    %1711 = vmatprep.subr.bf16.mxu0 0
    %1712 = vmatpush1.bf16.msra.mxu0 0
    %1713 = vmatprep.subr.bf16.mxu0 0
    %1714 = vmatpush1.bf16.msra.mxu0 0
    %1715 = vmatprep.subr.bf16.mxu0 0
    %1716 = vmatpush1.bf16.msra.mxu0 0
    %1717 = vmatprep.subr.bf16.mxu0 0
    %1718 = vmatpush1.bf16.msra.mxu0 0
    %1719 = vmatprep.subr.bf16.mxu0 0
    %1720 = vmatpush1.bf16.msra.mxu0 0
    %1721 = vmatprep.subr.bf16.mxu0 0
    %1722 = vmatpush1.bf16.msra.mxu0 0
    %1723 = vmatprep.mubr.bf16.mxu0 0
    %1724 = vmatmul.mubr.bf16.gmra.mrb[0].mxu0 %v1588
    %v1725 = vpop.f32.mrb[0].mxu0
    %v1726 = vadd.f32 %v1641, %v1725
    %v1727 = vpop.f32.mrb[0].mxu0
    %v1728 = vpop.f32.mrb[0].mxu0
    %v1729 = vadd.f32 %v1641, %v1728
    %v1730 = vpop.f32.mrb[0].mxu0
    %1731 = vmatprep.mubr.bf16.mxu0 0
    %1732 = vmatmul.mubr.bf16.gmra.mrb[0].mxu0 %v1589
    %v1733 = vpop.f32.mrb[0].mxu0
    %v1734 = vadd.f32 %v1641, %v1733
    %v1735 = vpop.f32.mrb[0].mxu0
    %v1736 = vpop.f32.mrb[0].mxu0
    %v1737 = vadd.f32 %v1641, %v1736
    %v1738 = vpop.f32.mrb[0].mxu0
    %1739 = vmatprep.mubr.bf16.mxu0 0
    %1740 = vmatmul.mubr.bf16.gmra.mrb[0].mxu0 %v1590
    %v1741 = vpop.f32.mrb[0].mxu0
    %v1742 = vadd.f32 %v1641, %v1741
    %v1743 = vpop.f32.mrb[0].mxu0
    %v1744 = vpop.f32.mrb[0].mxu0
    %v1745 = vadd.f32 %v1641, %v1744
    %v1746 = vpop.f32.mrb[0].mxu0
    %1747 = vmatprep.mubr.bf16.mxu0 0
    %1748 = vmatmul.mubr.bf16.gmra.mrb[0].mxu0 %v1591
    %v1749 = vpop.f32.mrb[0].mxu0
    %v1750 = vadd.f32 %v1641, %v1749
    %v1751 = vpop.f32.mrb[0].mxu0
    %v1752 = vpop.f32.mrb[0].mxu0
    %v1753 = vadd.f32 %v1641, %v1752
    %v1754 = vpop.f32.mrb[0].mxu0
    %1755 = vmatprep.mubr.bf16.mxu0 0
    %1756 = vmatmul.mubr.bf16.gmra.mrb[0].mxu0 %v1592
    %v1757 = vpop.f32.mrb[0].mxu0
    %v1758 = vadd.f32 %v1641, %v1757
    %v1759 = vpop.f32.mrb[0].mxu0
    %v1760 = vpop.f32.mrb[0].mxu0
    %v1761 = vadd.f32 %v1641, %v1760
    %v1762 = vpop.f32.mrb[0].mxu0
    %1763 = vmatprep.mubr.bf16.mxu0 0
    %1764 = vmatmul.mubr.bf16.gmra.mrb[0].mxu0 %v1593
    %v1765 = vpop.f32.mrb[0].mxu0
    %v1766 = vadd.f32 %v1641, %v1765
    %v1767 = vpop.f32.mrb[0].mxu0
    %v1768 = vpop.f32.mrb[0].mxu0
    %v1769 = vadd.f32 %v1641, %v1768
    %v1770 = vpop.f32.mrb[0].mxu0
    %1771 = vmatprep.mubr.bf16.mxu0 0
    %1772 = vmatmul.mubr.bf16.gmra.mrb[0].mxu0 %v1594
    %v1773 = vpop.f32.mrb[0].mxu0
    %v1774 = vadd.f32 %v1641, %v1773
    %v1775 = vpop.f32.mrb[0].mxu0
    %v1776 = vpop.f32.mrb[0].mxu0
    %v1777 = vadd.f32 %v1641, %v1776
    %v1778 = vpop.f32.mrb[0].mxu0
    %1779 = vmatprep.mubr.bf16.mxu0 0
    %1780 = vmatmul.mubr.bf16.gmra.mrb[0].mxu0 %v1595
    %v1781 = vpop.f32.mrb[0].mxu0
    %v1782 = vadd.f32 %v1641, %v1781
    %v1783 = vpop.f32.mrb[0].mxu0
    %v1784 = vpop.f32.mrb[0].mxu0
    %v1785 = vadd.f32 %v1641, %v1784
    %v1786 = vpop.f32.mrb[0].mxu0
    %1787 = vmatprep.mubr.bf16.mxu0 0
    %1788 = vmatmul.mubr.bf16.gmra.mrb[0].mxu0 %v1596
    %v1789 = vpop.f32.mrb[0].mxu0
    %v1790 = vadd.f32 %v1641, %v1789
    %v1791 = vpop.f32.mrb[0].mxu0
    %v1792 = vpop.f32.mrb[0].mxu0
    %v1793 = vadd.f32 %v1641, %v1792
    %v1794 = vpop.f32.mrb[0].mxu0
    %1795 = vmatprep.mubr.bf16.mxu0 0
    %1796 = vmatmul.mubr.bf16.gmra.mrb[0].mxu0 %v1597
    %v1797 = vpop.f32.mrb[0].mxu0
    %v1798 = vadd.f32 %v1641, %v1797
    %v1799 = vpop.f32.mrb[0].mxu0
    %v1800 = vpop.f32.mrb[0].mxu0
    %v1801 = vadd.f32 %v1641, %v1800
    %v1802 = vpop.f32.mrb[0].mxu0
    %1803 = vmatprep.mubr.bf16.mxu0 0
    %1804 = vmatmul.mubr.bf16.gmra.mrb[0].mxu0 %v1598
    %v1805 = vpop.f32.mrb[0].mxu0
    %v1806 = vadd.f32 %v1641, %v1805
    %v1807 = vpop.f32.mrb[0].mxu0
    %v1808 = vpop.f32.mrb[0].mxu0
    %v1809 = vadd.f32 %v1641, %v1808
    %v1810 = vpop.f32.mrb[0].mxu0
    %1811 = vmatprep.mubr.bf16.mxu0 0
    %1812 = vmatmul.mubr.bf16.gmra.mrb[0].mxu0 %v1599
    %v1813 = vpop.f32.mrb[0].mxu0
    %v1814 = vadd.f32 %v1641, %v1813
    %v1815 = vpop.f32.mrb[0].mxu0
    %v1816 = vpop.f32.mrb[0].mxu0
    %v1817 = vadd.f32 %v1641, %v1816
    %v1818 = vpop.f32.mrb[0].mxu0
    %1819 = vmatprep.mubr.bf16.mxu0 0
    %1820 = vmatmul.mubr.bf16.gmra.mrb[0].mxu0 %v1600
    %v1821 = vpop.f32.mrb[0].mxu0
    %v1822 = vadd.f32 %v1641, %v1821
    %v1823 = vpop.f32.mrb[0].mxu0
    %v1824 = vpop.f32.mrb[0].mxu0
    %v1825 = vadd.f32 %v1641, %v1824
    %v1826 = vpop.f32.mrb[0].mxu0
    %1827 = vmatprep.mubr.bf16.mxu0 0
    %1828 = vmatmul.mubr.bf16.gmra.mrb[0].mxu0 %v1601
    %v1829 = vpop.f32.mrb[0].mxu0
    %v1830 = vadd.f32 %v1641, %v1829
    %v1831 = vpop.f32.mrb[0].mxu0
    %v1832 = vpop.f32.mrb[0].mxu0
    %v1833 = vadd.f32 %v1641, %v1832
    %v1834 = vpop.f32.mrb[0].mxu0
    %1835 = vmatprep.mubr.bf16.mxu0 0
    %1836 = vmatmul.mubr.bf16.gmra.mrb[0].mxu0 %v1602
    %v1837 = vpop.f32.mrb[0].mxu0
    %v1838 = vadd.f32 %v1641, %v1837
    %v1839 = vpop.f32.mrb[0].mxu0
    %v1840 = vpop.f32.mrb[0].mxu0
    %v1841 = vadd.f32 %v1641, %v1840
    %v1842 = vpop.f32.mrb[0].mxu0
    %1843 = vmatprep.mubr.bf16.mxu0 0
    %1844 = vmatmul.mubr.bf16.gmra.mrb[0].mxu0 %v1603
    %v1845 = vpop.f32.mrb[0].mxu0
    %v1846 = vadd.f32 %v1641, %v1845
    %v1847 = vpop.f32.mrb[0].mxu0
    %v1848 = vpop.f32.mrb[0].mxu0
    %v1849 = vadd.f32 %v1641, %v1848
    %v1850 = vpop.f32.mrb[0].mxu0
    %1851 = vmatprep.mubr.bf16.mxu0 0
    %1852 = vmatmul.mubr.bf16.gmra.mrb[0].mxu0 %v1604
    %v1853 = vpop.f32.mrb[0].mxu0
    %v1854 = vadd.f32 %v1641, %v1853
    %v1855 = vpop.f32.mrb[0].mxu0
    %v1856 = vpop.f32.mrb[0].mxu0
    %v1857 = vadd.f32 %v1641, %v1856
    %v1858 = vpop.f32.mrb[0].mxu0
    %1859 = vmatprep.mubr.bf16.mxu0 0
    %1860 = vmatmul.mubr.bf16.gmra.mrb[0].mxu0 %v1605
    %v1861 = vpop.f32.mrb[0].mxu0
    %v1862 = vadd.f32 %v1641, %v1861
    %v1863 = vpop.f32.mrb[0].mxu0
    %v1864 = vpop.f32.mrb[0].mxu0
    %v1865 = vadd.f32 %v1641, %v1864
    %v1866 = vpop.f32.mrb[0].mxu0
    %1867 = vmatprep.mubr.bf16.mxu0 0
    %1868 = vmatmul.mubr.bf16.gmra.mrb[0].mxu0 %v1606
    %v1869 = vpop.f32.mrb[0].mxu0
    %v1870 = vadd.f32 %v1641, %v1869
    %v1871 = vpop.f32.mrb[0].mxu0
    %v1872 = vpop.f32.mrb[0].mxu0
    %v1873 = vadd.f32 %v1641, %v1872
    %v1874 = vpop.f32.mrb[0].mxu0
    %1875 = vmatprep.mubr.bf16.mxu0 0
    %1876 = vmatmul.mubr.bf16.gmra.mrb[0].mxu0 %v1607
    %v1877 = vpop.f32.mrb[0].mxu0
    %v1878 = vadd.f32 %v1641, %v1877
    %v1879 = vpop.f32.mrb[0].mxu0
    %v1880 = vpop.f32.mrb[0].mxu0
    %v1881 = vadd.f32 %v1641, %v1880
    %v1882 = vpop.f32.mrb[0].mxu0
    %1883 = vmatprep.mubr.bf16.mxu0 0
    %1884 = vmatmul.mubr.bf16.gmra.mrb[0].mxu0 %v1608
    %v1885 = vpop.f32.mrb[0].mxu0
    %v1886 = vadd.f32 %v1641, %v1885
    %v1887 = vpop.f32.mrb[0].mxu0
    %v1888 = vpop.f32.mrb[0].mxu0
    %v1889 = vadd.f32 %v1641, %v1888
    %v1890 = vpop.f32.mrb[0].mxu0
    %1891 = vmatprep.mubr.bf16.mxu0 0
    %1892 = vmatmul.mubr.bf16.gmra.mrb[0].mxu0 %v1609
    %v1893 = vpop.f32.mrb[0].mxu0
    %v1894 = vadd.f32 %v1641, %v1893
    %v1895 = vpop.f32.mrb[0].mxu0
    %v1896 = vpop.f32.mrb[0].mxu0
    %v1897 = vadd.f32 %v1641, %v1896
    %v1898 = vpop.f32.mrb[0].mxu0
    %1899 = vmatprep.mubr.bf16.mxu0 0
    %1900 = vmatmul.mubr.bf16.gmra.mrb[0].mxu0 %v1610
    %v1901 = vpop.f32.mrb[0].mxu0
    %v1902 = vadd.f32 %v1641, %v1901
    %v1903 = vpop.f32.mrb[0].mxu0
    %v1904 = vpop.f32.mrb[0].mxu0
    %v1905 = vadd.f32 %v1641, %v1904
    %v1906 = vpop.f32.mrb[0].mxu0
    %1907 = vmatprep.mubr.bf16.mxu0 0
    %1908 = vmatmul.mubr.bf16.gmra.mrb[0].mxu0 %v1611
    %v1909 = vpop.f32.mrb[0].mxu0
    %v1910 = vadd.f32 %v1641, %v1909
    %v1911 = vpop.f32.mrb[0].mxu0
    %v1912 = vpop.f32.mrb[0].mxu0
    %v1913 = vadd.f32 %v1641, %v1912
    %v1914 = vpop.f32.mrb[0].mxu0
    %1915 = vmatprep.mubr.bf16.mxu0 0
    %1916 = vmatmul.mubr.bf16.gmra.mrb[0].mxu0 %v1612
    %v1917 = vpop.f32.mrb[0].mxu0
    %v1918 = vadd.f32 %v1641, %v1917
    %v1919 = vpop.f32.mrb[0].mxu0
    %v1920 = vpop.f32.mrb[0].mxu0
    %v1921 = vadd.f32 %v1641, %v1920
    %v1922 = vpop.f32.mrb[0].mxu0
    %1923 = vmatprep.mubr.bf16.mxu0 0
    %1924 = vmatmul.mubr.bf16.gmra.mrb[0].mxu0 %v1613
    %v1925 = vpop.f32.mrb[0].mxu0
    %v1926 = vadd.f32 %v1641, %v1925
    %v1927 = vpop.f32.mrb[0].mxu0
    %v1928 = vpop.f32.mrb[0].mxu0
    %v1929 = vadd.f32 %v1641, %v1928
    %v1930 = vpop.f32.mrb[0].mxu0
    %1931 = vmatprep.mubr.bf16.mxu0 0
    %1932 = vmatmul.mubr.bf16.gmra.mrb[0].mxu0 %v1614
    %v1933 = vpop.f32.mrb[0].mxu0
    %v1934 = vadd.f32 %v1641, %v1933
    %v1935 = vpop.f32.mrb[0].mxu0
    %v1936 = vpop.f32.mrb[0].mxu0
    %v1937 = vadd.f32 %v1641, %v1936
    %v1938 = vpop.f32.mrb[0].mxu0
    %1939 = vmatprep.mubr.bf16.mxu0 0
    %1940 = vmatmul.mubr.bf16.gmra.mrb[0].mxu0 %v1615
    %v1941 = vpop.f32.mrb[0].mxu0
    %v1942 = vadd.f32 %v1641, %v1941
    %v1943 = vpop.f32.mrb[0].mxu0
    %v1944 = vpop.f32.mrb[0].mxu0
    %v1945 = vadd.f32 %v1641, %v1944
    %v1946 = vpop.f32.mrb[0].mxu0
    %1947 = vmatprep.mubr.bf16.mxu0 0
    %1948 = vmatmul.mubr.bf16.gmra.mrb[0].mxu0 %v1616
    %v1949 = vpop.f32.mrb[0].mxu0
    %v1950 = vadd.f32 %v1641, %v1949
    %v1951 = vpop.f32.mrb[0].mxu0
    %v1952 = vpop.f32.mrb[0].mxu0
    %v1953 = vadd.f32 %v1641, %v1952
    %v1954 = vpop.f32.mrb[0].mxu0
    %1955 = vmatprep.mubr.bf16.mxu0 0
    %1956 = vmatmul.mubr.bf16.gmra.mrb[0].mxu0 %v1617
    %v1957 = vpop.f32.mrb[0].mxu0
    %v1958 = vadd.f32 %v1641, %v1957
    %v1959 = vpop.f32.mrb[0].mxu0
    %v1960 = vpop.f32.mrb[0].mxu0
    %v1961 = vadd.f32 %v1641, %v1960
    %v1962 = vpop.f32.mrb[0].mxu0
    %1963 = vmatprep.mubr.bf16.mxu0 0
    %1964 = vmatmul.mubr.bf16.gmra.mrb[0].mxu0 %v1618
    %v1965 = vpop.f32.mrb[0].mxu0
    %v1966 = vadd.f32 %v1641, %v1965
    %v1967 = vpop.f32.mrb[0].mxu0
    %v1968 = vpop.f32.mrb[0].mxu0
    %v1969 = vadd.f32 %v1641, %v1968
    %v1970 = vpop.f32.mrb[0].mxu0
    %1971 = vmatprep.mubr.bf16.mxu0 0
    %1972 = vmatmul.mubr.bf16.gmra.mrb[0].mxu0 %v1619
    %v1973 = vpop.f32.mrb[0].mxu0
    %v1974 = vadd.f32 %v1641, %v1973
    %v1975 = vpop.f32.mrb[0].mxu0
    %v1976 = vpop.f32.mrb[0].mxu0
    %v1977 = vadd.f32 %v1641, %v1976
    %v1978 = vpop.f32.mrb[0].mxu0
    %1979 = vdwg.mxu0
    %v1980 = vsub.f32 0.0, %v1726
    %v1981 = vsub.f32 0.0, %v1729
    %v1982 = vsub.f32 0.0, %v1734
    %v1983 = vsub.f32 0.0, %v1737
    %v1984 = vsub.f32 0.0, %v1742
    %v1985 = vsub.f32 0.0, %v1745
    %v1986 = vsub.f32 0.0, %v1750
    %v1987 = vsub.f32 0.0, %v1753
    %v1988 = vsub.f32 0.0, %v1758
    %v1989 = vsub.f32 0.0, %v1761
    %v1990 = vsub.f32 0.0, %v1766
    %v1991 = vsub.f32 0.0, %v1769
    %v1992 = vsub.f32 0.0, %v1774
    %v1993 = vsub.f32 0.0, %v1777
    %v1994 = vsub.f32 0.0, %v1782
    %v1995 = vsub.f32 0.0, %v1785
    %v1996 = vsub.f32 0.0, %v1790
    %v1997 = vsub.f32 0.0, %v1793
    %v1998 = vsub.f32 0.0, %v1798
    %v1999 = vsub.f32 0.0, %v1801
    %v2000 = vsub.f32 0.0, %v1806
    %v2001 = vsub.f32 0.0, %v1809
    %v2002 = vsub.f32 0.0, %v1814
    %v2003 = vsub.f32 0.0, %v1817
    %v2004 = vsub.f32 0.0, %v1822
    %v2005 = vsub.f32 0.0, %v1825
    %v2006 = vsub.f32 0.0, %v1830
    %v2007 = vsub.f32 0.0, %v1833
    %v2008 = vsub.f32 0.0, %v1838
    %v2009 = vsub.f32 0.0, %v1841
    %v2010 = vsub.f32 0.0, %v1846
    %v2011 = vsub.f32 0.0, %v1849
    %v2012 = vsub.f32 0.0, %v1854
    %v2013 = vsub.f32 0.0, %v1857
    %v2014 = vsub.f32 0.0, %v1862
    %v2015 = vsub.f32 0.0, %v1865
    %v2016 = vsub.f32 0.0, %v1870
    %v2017 = vsub.f32 0.0, %v1873
    %v2018 = vsub.f32 0.0, %v1878
    %v2019 = vsub.f32 0.0, %v1881
    %v2020 = vsub.f32 0.0, %v1886
    %v2021 = vsub.f32 0.0, %v1889
    %v2022 = vsub.f32 0.0, %v1894
    %v2023 = vsub.f32 0.0, %v1897
    %v2024 = vsub.f32 0.0, %v1902
    %v2025 = vsub.f32 0.0, %v1905
    %v2026 = vsub.f32 0.0, %v1910
    %v2027 = vsub.f32 0.0, %v1913
    %v2028 = vsub.f32 0.0, %v1918
    %v2029 = vsub.f32 0.0, %v1921
    %v2030 = vsub.f32 0.0, %v1926
    %v2031 = vsub.f32 0.0, %v1929
    %v2032 = vsub.f32 0.0, %v1934
    %v2033 = vsub.f32 0.0, %v1937
    %v2034 = vsub.f32 0.0, %v1942
    %v2035 = vsub.f32 0.0, %v1945
    %v2036 = vsub.f32 0.0, %v1950
    %v2037 = vsub.f32 0.0, %v1953
    %v2038 = vsub.f32 0.0, %v1958
    %v2039 = vsub.f32 0.0, %v1961
    %v2040 = vsub.f32 0.0, %v1966
    %v2041 = vsub.f32 0.0, %v1969
    %v2042 = vsub.f32 0.0, %v1974
    %v2043 = vsub.f32 0.0, %v1977
    %v2044 = vmul.f32 %v1980, 1.442695
    %v2045 = vpow.pop %v2044
    %v2046 = vmul.f32 %v1981, 1.442695
    %v2047 = vpow.pop %v2046
    %v2048 = vmul.f32 %v1982, 1.442695
    %v2049 = vpow.pop %v2048
    %v2050 = vmul.f32 %v1983, 1.442695
    %v2051 = vpow.pop %v2050
    %v2052 = vmul.f32 %v1984, 1.442695
    %v2053 = vpow.pop %v2052
    %v2054 = vmul.f32 %v1985, 1.442695
    %v2055 = vpow.pop %v2054
    %v2056 = vmul.f32 %v1986, 1.442695
    %v2057 = vpow.pop %v2056
    %v2058 = vmul.f32 %v1987, 1.442695
    %v2059 = vpow.pop %v2058
    %v2060 = vmul.f32 %v1988, 1.442695
    %v2061 = vpow.pop %v2060
    %v2062 = vmul.f32 %v1989, 1.442695
    %v2063 = vpow.pop %v2062
    %v2064 = vmul.f32 %v1990, 1.442695
    %v2065 = vpow.pop %v2064
    %v2066 = vmul.f32 %v1991, 1.442695
    %v2067 = vpow.pop %v2066
    %v2068 = vmul.f32 %v1992, 1.442695
    %v2069 = vpow.pop %v2068
    %v2070 = vmul.f32 %v1993, 1.442695
    %v2071 = vpow.pop %v2070
    %v2072 = vmul.f32 %v1994, 1.442695
    %v2073 = vpow.pop %v2072
    %v2074 = vmul.f32 %v1995, 1.442695
    %v2075 = vpow.pop %v2074
    %v2076 = vmul.f32 %v1996, 1.442695
    %v2077 = vpow.pop %v2076
    %v2078 = vmul.f32 %v1997, 1.442695
    %v2079 = vpow.pop %v2078
    %v2080 = vmul.f32 %v1998, 1.442695
    %v2081 = vpow.pop %v2080
    %v2082 = vmul.f32 %v1999, 1.442695
    %v2083 = vpow.pop %v2082
    %v2084 = vmul.f32 %v2000, 1.442695
    %v2085 = vpow.pop %v2084
    %v2086 = vmul.f32 %v2001, 1.442695
    %v2087 = vpow.pop %v2086
    %v2088 = vmul.f32 %v2002, 1.442695
    %v2089 = vpow.pop %v2088
    %v2090 = vmul.f32 %v2003, 1.442695
    %v2091 = vpow.pop %v2090
    %v2092 = vmul.f32 %v2004, 1.442695
    %v2093 = vpow.pop %v2092
    %v2094 = vmul.f32 %v2005, 1.442695
    %v2095 = vpow.pop %v2094
    %v2096 = vmul.f32 %v2006, 1.442695
    %v2097 = vpow.pop %v2096
    %v2098 = vmul.f32 %v2007, 1.442695
    %v2099 = vpow.pop %v2098
    %v2100 = vmul.f32 %v2008, 1.442695
    %v2101 = vpow.pop %v2100
    %v2102 = vmul.f32 %v2009, 1.442695
    %v2103 = vpow.pop %v2102
    %v2104 = vmul.f32 %v2010, 1.442695
    %v2105 = vpow.pop %v2104
    %v2106 = vmul.f32 %v2011, 1.442695
    %v2107 = vpow.pop %v2106
    %v2108 = vmul.f32 %v2012, 1.442695
    %v2109 = vpow.pop %v2108
    %v2110 = vmul.f32 %v2013, 1.442695
    %v2111 = vpow.pop %v2110
    %v2112 = vmul.f32 %v2014, 1.442695
    %v2113 = vpow.pop %v2112
    %v2114 = vmul.f32 %v2015, 1.442695
    %v2115 = vpow.pop %v2114
    %v2116 = vmul.f32 %v2016, 1.442695
    %v2117 = vpow.pop %v2116
    %v2118 = vmul.f32 %v2017, 1.442695
    %v2119 = vpow.pop %v2118
    %v2120 = vmul.f32 %v2018, 1.442695
    %v2121 = vpow.pop %v2120
    %v2122 = vmul.f32 %v2019, 1.442695
    %v2123 = vpow.pop %v2122
    %v2124 = vmul.f32 %v2020, 1.442695
    %v2125 = vpow.pop %v2124
    %v2126 = vmul.f32 %v2021, 1.442695
    %v2127 = vpow.pop %v2126
    %v2128 = vmul.f32 %v2022, 1.442695
    %v2129 = vpow.pop %v2128
    %v2130 = vmul.f32 %v2023, 1.442695
    %v2131 = vpow.pop %v2130
    %v2132 = vmul.f32 %v2024, 1.442695
    %v2133 = vpow.pop %v2132
    %v2134 = vmul.f32 %v2025, 1.442695
    %v2135 = vpow.pop %v2134
    %v2136 = vmul.f32 %v2026, 1.442695
    %v2137 = vpow.pop %v2136
    %v2138 = vmul.f32 %v2027, 1.442695
    %v2139 = vpow.pop %v2138
    %v2140 = vmul.f32 %v2028, 1.442695
    %v2141 = vpow.pop %v2140
    %v2142 = vmul.f32 %v2029, 1.442695
    %v2143 = vpow.pop %v2142
    %v2144 = vmul.f32 %v2030, 1.442695
    %v2145 = vpow.pop %v2144
    %v2146 = vmul.f32 %v2031, 1.442695
    %v2147 = vpow.pop %v2146
    %v2148 = vmul.f32 %v2032, 1.442695
    %v2149 = vpow.pop %v2148
    %v2150 = vmul.f32 %v2033, 1.442695
    %v2151 = vpow.pop %v2150
    %v2152 = vmul.f32 %v2034, 1.442695
    %v2153 = vpow.pop %v2152
    %v2154 = vmul.f32 %v2035, 1.442695
    %v2155 = vpow.pop %v2154
    %v2156 = vmul.f32 %v2036, 1.442695
    %v2157 = vpow.pop %v2156
    %v2158 = vmul.f32 %v2037, 1.442695
    %v2159 = vpow.pop %v2158
    %v2160 = vmul.f32 %v2038, 1.442695
    %v2161 = vpow.pop %v2160
    %v2162 = vmul.f32 %v2039, 1.442695
    %v2163 = vpow.pop %v2162
    %v2164 = vmul.f32 %v2040, 1.442695
    %v2165 = vpow.pop %v2164
    %v2166 = vmul.f32 %v2041, 1.442695
    %v2167 = vpow.pop %v2166
    %v2168 = vmul.f32 %v2042, 1.442695
    %v2169 = vpow.pop %v2168
    %v2170 = vmul.f32 %v2043, 1.442695
    %v2171 = vpow.pop %v2170
    %v2172 = vadd.f32 %v2045, 1.0
    %v2173 = vadd.f32 %v2047, 1.0
    %v2174 = vadd.f32 %v2049, 1.0
    %v2175 = vadd.f32 %v2051, 1.0
    %v2176 = vadd.f32 %v2053, 1.0
    %v2177 = vadd.f32 %v2055, 1.0
    %v2178 = vadd.f32 %v2057, 1.0
    %v2179 = vadd.f32 %v2059, 1.0
    %v2180 = vadd.f32 %v2061, 1.0
    %v2181 = vadd.f32 %v2063, 1.0
    %v2182 = vadd.f32 %v2065, 1.0
    %v2183 = vadd.f32 %v2067, 1.0
    %v2184 = vadd.f32 %v2069, 1.0
    %v2185 = vadd.f32 %v2071, 1.0
    %v2186 = vadd.f32 %v2073, 1.0
    %v2187 = vadd.f32 %v2075, 1.0
    %v2188 = vadd.f32 %v2077, 1.0
    %v2189 = vadd.f32 %v2079, 1.0
    %v2190 = vadd.f32 %v2081, 1.0
    %v2191 = vadd.f32 %v2083, 1.0
    %v2192 = vadd.f32 %v2085, 1.0
    %v2193 = vadd.f32 %v2087, 1.0
    %v2194 = vadd.f32 %v2089, 1.0
    %v2195 = vadd.f32 %v2091, 1.0
    %v2196 = vadd.f32 %v2093, 1.0
    %v2197 = vadd.f32 %v2095, 1.0
    %v2198 = vadd.f32 %v2097, 1.0
    %v2199 = vadd.f32 %v2099, 1.0
    %v2200 = vadd.f32 %v2101, 1.0
    %v2201 = vadd.f32 %v2103, 1.0
    %v2202 = vadd.f32 %v2105, 1.0
    %v2203 = vadd.f32 %v2107, 1.0
    %v2204 = vadd.f32 %v2109, 1.0
    %v2205 = vadd.f32 %v2111, 1.0
    %v2206 = vadd.f32 %v2113, 1.0
    %v2207 = vadd.f32 %v2115, 1.0
    %v2208 = vadd.f32 %v2117, 1.0
    %v2209 = vadd.f32 %v2119, 1.0
    %v2210 = vadd.f32 %v2121, 1.0
    %v2211 = vadd.f32 %v2123, 1.0
    %v2212 = vadd.f32 %v2125, 1.0
    %v2213 = vadd.f32 %v2127, 1.0
    %v2214 = vadd.f32 %v2129, 1.0
    %v2215 = vadd.f32 %v2131, 1.0
    %v2216 = vadd.f32 %v2133, 1.0
    %v2217 = vadd.f32 %v2135, 1.0
    %v2218 = vadd.f32 %v2137, 1.0
    %v2219 = vadd.f32 %v2139, 1.0
    %v2220 = vadd.f32 %v2141, 1.0
    %v2221 = vadd.f32 %v2143, 1.0
    %v2222 = vadd.f32 %v2145, 1.0
    %v2223 = vadd.f32 %v2147, 1.0
    %v2224 = vadd.f32 %v2149, 1.0
    %v2225 = vadd.f32 %v2151, 1.0
    %v2226 = vadd.f32 %v2153, 1.0
    %v2227 = vadd.f32 %v2155, 1.0
    %v2228 = vadd.f32 %v2157, 1.0
    %v2229 = vadd.f32 %v2159, 1.0
    %v2230 = vadd.f32 %v2161, 1.0
    %v2231 = vadd.f32 %v2163, 1.0
    %v2232 = vadd.f32 %v2165, 1.0
    %v2233 = vadd.f32 %v2167, 1.0
    %v2234 = vadd.f32 %v2169, 1.0
    %v2235 = vadd.f32 %v2171, 1.0
    %v2236 = vrcp.pop %v2172
    %v2237 = vrcp.pop %v2173
    %v2238 = vrcp.pop %v2174
    %v2239 = vrcp.pop %v2175
    %v2240 = vrcp.pop %v2176
    %v2241 = vrcp.pop %v2177
    %v2242 = vrcp.pop %v2178
    %v2243 = vrcp.pop %v2179
    %v2244 = vrcp.pop %v2180
    %v2245 = vrcp.pop %v2181
    %v2246 = vrcp.pop %v2182
    %v2247 = vrcp.pop %v2183
    %v2248 = vrcp.pop %v2184
    %v2249 = vrcp.pop %v2185
    %v2250 = vrcp.pop %v2186
    %v2251 = vrcp.pop %v2187
    %v2252 = vrcp.pop %v2188
    %v2253 = vrcp.pop %v2189
    %v2254 = vrcp.pop %v2190
    %v2255 = vrcp.pop %v2191
    %v2256 = vrcp.pop %v2192
    %v2257 = vrcp.pop %v2193
    %v2258 = vrcp.pop %v2194
    %v2259 = vrcp.pop %v2195
    %v2260 = vrcp.pop %v2196
    %v2261 = vrcp.pop %v2197
    %v2262 = vrcp.pop %v2198
    %v2263 = vrcp.pop %v2199
    %v2264 = vrcp.pop %v2200
    %v2265 = vrcp.pop %v2201
    %v2266 = vrcp.pop %v2202
    %v2267 = vrcp.pop %v2203
    %v2268 = vrcp.pop %v2204
    %v2269 = vrcp.pop %v2205
    %v2270 = vrcp.pop %v2206
    %v2271 = vrcp.pop %v2207
    %v2272 = vrcp.pop %v2208
    %v2273 = vrcp.pop %v2209
    %v2274 = vrcp.pop %v2210
    %v2275 = vrcp.pop %v2211
    %v2276 = vrcp.pop %v2212
    %v2277 = vrcp.pop %v2213
    %v2278 = vrcp.pop %v2214
    %v2279 = vrcp.pop %v2215
    %v2280 = vrcp.pop %v2216
    %v2281 = vrcp.pop %v2217
    %v2282 = vrcp.pop %v2218
    %v2283 = vrcp.pop %v2219
    %v2284 = vrcp.pop %v2220
    %v2285 = vrcp.pop %v2221
    %v2286 = vrcp.pop %v2222
    %v2287 = vrcp.pop %v2223
    %v2288 = vrcp.pop %v2224
    %v2289 = vrcp.pop %v2225
    %v2290 = vrcp.pop %v2226
    %v2291 = vrcp.pop %v2227
    %v2292 = vrcp.pop %v2228
    %v2293 = vrcp.pop %v2229
    %v2294 = vrcp.pop %v2230
    %v2295 = vrcp.pop %v2231
    %v2296 = vrcp.pop %v2232
    %v2297 = vrcp.pop %v2233
    %v2298 = vrcp.pop %v2234
    %v2299 = vrcp.pop %v2235
    %v2300 = vmul.f32 %v1726, %v2236
    %v2301 = vmul.f32 %v1729, %v2237
    %v2302 = vmul.f32 %v1734, %v2238
    %v2303 = vmul.f32 %v1737, %v2239
    %v2304 = vmul.f32 %v1742, %v2240
    %v2305 = vmul.f32 %v1745, %v2241
    %v2306 = vmul.f32 %v1750, %v2242
    %v2307 = vmul.f32 %v1753, %v2243
    %v2308 = vmul.f32 %v1758, %v2244
    %v2309 = vmul.f32 %v1761, %v2245
    %v2310 = vmul.f32 %v1766, %v2246
    %v2311 = vmul.f32 %v1769, %v2247
    %v2312 = vmul.f32 %v1774, %v2248
    %v2313 = vmul.f32 %v1777, %v2249
    %v2314 = vmul.f32 %v1782, %v2250
    %v2315 = vmul.f32 %v1785, %v2251
    %v2316 = vmul.f32 %v1790, %v2252
    %v2317 = vmul.f32 %v1793, %v2253
    %v2318 = vmul.f32 %v1798, %v2254
    %v2319 = vmul.f32 %v1801, %v2255
    %v2320 = vmul.f32 %v1806, %v2256
    %v2321 = vmul.f32 %v1809, %v2257
    %v2322 = vmul.f32 %v1814, %v2258
    %v2323 = vmul.f32 %v1817, %v2259
    %v2324 = vmul.f32 %v1822, %v2260
    %v2325 = vmul.f32 %v1825, %v2261
    %v2326 = vmul.f32 %v1830, %v2262
    %v2327 = vmul.f32 %v1833, %v2263
    %v2328 = vmul.f32 %v1838, %v2264
    %v2329 = vmul.f32 %v1841, %v2265
    %v2330 = vmul.f32 %v1846, %v2266
    %v2331 = vmul.f32 %v1849, %v2267
    %v2332 = vmul.f32 %v1854, %v2268
    %v2333 = vmul.f32 %v1857, %v2269
    %v2334 = vmul.f32 %v1862, %v2270
    %v2335 = vmul.f32 %v1865, %v2271
    %v2336 = vmul.f32 %v1870, %v2272
    %v2337 = vmul.f32 %v1873, %v2273
    %v2338 = vmul.f32 %v1878, %v2274
    %v2339 = vmul.f32 %v1881, %v2275
    %v2340 = vmul.f32 %v1886, %v2276
    %v2341 = vmul.f32 %v1889, %v2277
    %v2342 = vmul.f32 %v1894, %v2278
    %v2343 = vmul.f32 %v1897, %v2279
    %v2344 = vmul.f32 %v1902, %v2280
    %v2345 = vmul.f32 %v1905, %v2281
    %v2346 = vmul.f32 %v1910, %v2282
    %v2347 = vmul.f32 %v1913, %v2283
    %v2348 = vmul.f32 %v1918, %v2284
    %v2349 = vmul.f32 %v1921, %v2285
    %v2350 = vmul.f32 %v1926, %v2286
    %v2351 = vmul.f32 %v1929, %v2287
    %v2352 = vmul.f32 %v1934, %v2288
    %v2353 = vmul.f32 %v1937, %v2289
    %v2354 = vmul.f32 %v1942, %v2290
    %v2355 = vmul.f32 %v1945, %v2291
    %v2356 = vmul.f32 %v1950, %v2292
    %v2357 = vmul.f32 %v1953, %v2293
    %v2358 = vmul.f32 %v1958, %v2294
    %v2359 = vmul.f32 %v1961, %v2295
    %v2360 = vmul.f32 %v1966, %v2296
    %v2361 = vmul.f32 %v1969, %v2297
    %v2362 = vmul.f32 %v1974, %v2298
    %v2363 = vmul.f32 %v1977, %v2299
    %v2364 = vpack.c.bf16 %v1525, %v1524
    %v2365 = vpack.c.bf16 %v1527, %v1526
    %v2366 = vpack.c.bf16 %v1529, %v1528
    %v2367 = vpack.c.bf16 %v1531, %v1530
    %v2368 = vpack.c.bf16 %v1533, %v1532
    %v2369 = vpack.c.bf16 %v1535, %v1534
    %v2370 = vpack.c.bf16 %v1537, %v1536
    %v2371 = vpack.c.bf16 %v1539, %v1538
    %v2372 = vpack.c.bf16 %v1541, %v1540
    %v2373 = vpack.c.bf16 %v1543, %v1542
    %v2374 = vpack.c.bf16 %v1545, %v1544
    %v2375 = vpack.c.bf16 %v1547, %v1546
    %v2376 = vpack.c.bf16 %v1549, %v1548
    %v2377 = vpack.c.bf16 %v1551, %v1550
    %v2378 = vpack.c.bf16 %v1553, %v1552
    %v2379 = vpack.c.bf16 %v1555, %v1554
    %v2380 = vpack.c.bf16 %v1557, %v1556
    %v2381 = vpack.c.bf16 %v1559, %v1558
    %v2382 = vpack.c.bf16 %v1561, %v1560
    %v2383 = vpack.c.bf16 %v1563, %v1562
    %v2384 = vpack.c.bf16 %v1565, %v1564
    %v2385 = vpack.c.bf16 %v1567, %v1566
    %v2386 = vpack.c.bf16 %v1569, %v1568
    %v2387 = vpack.c.bf16 %v1571, %v1570
    %v2388 = vpack.c.bf16 %v1573, %v1572
    %v2389 = vpack.c.bf16 %v1575, %v1574
    %v2390 = vpack.c.bf16 %v1577, %v1576
    %v2391 = vpack.c.bf16 %v1579, %v1578
    %v2392 = vpack.c.bf16 %v1581, %v1580
    %v2393 = vpack.c.bf16 %v1583, %v1582
    %v2394 = vpack.c.bf16 %v1585, %v1584
    %v2395 = vpack.c.bf16 %v1587, %v1586
    %v2396 = vld [vmem:[#allocation8] sm:$0xf]
    %v2397 = vld [vmem:[#allocation8 + $0x4] sm:$0xf]
    %v2398 = vld [vmem:[#allocation8 + $0x8] sm:$0xf]
    %v2399 = vld [vmem:[#allocation8 + $0xc] sm:$0xf]
    %v2400 = vld [vmem:[#allocation8 + $0x10] sm:$0xf]
    %v2401 = vld [vmem:[#allocation8 + $0x14] sm:$0xf]
    %v2402 = vld [vmem:[#allocation8 + $0x18] sm:$0xf]
    %v2403 = vld [vmem:[#allocation8 + $0x1c] sm:$0xf]
    %v2404 = vld [vmem:[#allocation8 + $0x20] sm:$0xf]
    %v2405 = vld [vmem:[#allocation8 + $0x24] sm:$0xf]
    %v2406 = vld [vmem:[#allocation8 + $0x28] sm:$0xf]
    %v2407 = vld [vmem:[#allocation8 + $0x2c] sm:$0xf]
    %v2408 = vld [vmem:[#allocation8 + $0x30] sm:$0xf]
    %v2409 = vld [vmem:[#allocation8 + $0x34] sm:$0xf]
    %v2410 = vld [vmem:[#allocation8 + $0x38] sm:$0xf]
    %v2411 = vld [vmem:[#allocation8 + $0x3c] sm:$0xf]
    %v2412 = vld [vmem:[%s8] sm:$0x1]
    %v2414 = vlaneseq
    %v2415 = vshrl.u32 %v2414, 7
    %v2416 = vsub.s32 0, %v2415
    %v2417 = vrot.slane %v2412, %v2416
    %v2435 = vunpack.c.l.b16 %v2396
    %v2436 = vunpack.c.l.b16 %v2397
    %v2437 = vunpack.c.l.b16 %v2398
    %v2438 = vunpack.c.l.b16 %v2399
    %v2439 = vunpack.c.l.b16 %v2400
    %v2440 = vunpack.c.l.b16 %v2401
    %v2441 = vunpack.c.l.b16 %v2402
    %v2442 = vunpack.c.l.b16 %v2403
    %v2443 = vunpack.c.l.b16 %v2404
    %v2444 = vunpack.c.l.b16 %v2405
    %v2445 = vunpack.c.l.b16 %v2406
    %v2446 = vunpack.c.l.b16 %v2407
    %v2447 = vunpack.c.l.b16 %v2408
    %v2448 = vunpack.c.l.b16 %v2409
    %v2449 = vunpack.c.l.b16 %v2410
    %v2450 = vunpack.c.l.b16 %v2411
    %v2451 = vpack.c.b16 %v2436, %v2435
    %v2452 = vpack.c.b16 %v2438, %v2437
    %v2453 = vpack.c.b16 %v2440, %v2439
    %v2454 = vpack.c.b16 %v2442, %v2441
    %v2455 = vpack.c.b16 %v2444, %v2443
    %v2456 = vpack.c.b16 %v2446, %v2445
    %v2457 = vpack.c.b16 %v2448, %v2447
    %v2458 = vpack.c.b16 %v2450, %v2449
    %2467 = vmatprep.subr.bf16.mxu0 0
    %2468 = vmatpush1.bf16.msra.mxu0 %v2451
    %2469 = vmatprep.subr.bf16.mxu0 0
    %2470 = vmatpush1.bf16.msra.mxu0 %v2452
    %2471 = vmatprep.subr.bf16.mxu0 0
    %2472 = vmatpush1.bf16.msra.mxu0 %v2453
    %2473 = vmatprep.subr.bf16.mxu0 0
    %2474 = vmatpush1.bf16.msra.mxu0 %v2454
    %2475 = vmatprep.subr.bf16.mxu0 0
    %2476 = vmatpush1.bf16.msra.mxu0 %v2455
    %2477 = vmatprep.subr.bf16.mxu0 0
    %2478 = vmatpush1.bf16.msra.mxu0 %v2456
    %2479 = vmatprep.subr.bf16.mxu0 0
    %2480 = vmatpush1.bf16.msra.mxu0 %v2457
    %2481 = vmatprep.subr.bf16.mxu0 0
    %2482 = vmatpush1.bf16.msra.mxu0 %v2458
    %2483 = vmatprep.subr.bf16.mxu0 0
    %2484 = vmatpush1.bf16.msra.mxu0 0
    %2485 = vmatprep.subr.bf16.mxu0 0
    %2486 = vmatpush1.bf16.msra.mxu0 0
    %2487 = vmatprep.subr.bf16.mxu0 0
    %2488 = vmatpush1.bf16.msra.mxu0 0
    %2489 = vmatprep.subr.bf16.mxu0 0
    %2490 = vmatpush1.bf16.msra.mxu0 0
    %2491 = vmatprep.subr.bf16.mxu0 0
    %2492 = vmatpush1.bf16.msra.mxu0 0
    %2493 = vmatprep.subr.bf16.mxu0 0
    %2494 = vmatpush1.bf16.msra.mxu0 0
    %2495 = vmatprep.subr.bf16.mxu0 0
    %2496 = vmatpush1.bf16.msra.mxu0 0
    %2497 = vmatprep.subr.bf16.mxu0 0
    %2498 = vmatpush1.bf16.msra.mxu0 0
    %2499 = vmatprep.mubr.bf16.mxu0 0
    %2500 = vmatmul.mubr.bf16.gmra.mrb[0].mxu0 %v2364
    %v2501 = vpop.f32.mrb[0].mxu0
    %v2502 = vadd.f32 %v2417, %v2501
    %v2503 = vpop.f32.mrb[0].mxu0
    %v2504 = vpop.f32.mrb[0].mxu0
    %v2505 = vadd.f32 %v2417, %v2504
    %v2506 = vpop.f32.mrb[0].mxu0
    %2507 = vmatprep.mubr.bf16.mxu0 0
    %2508 = vmatmul.mubr.bf16.gmra.mrb[0].mxu0 %v2365
    %v2509 = vpop.f32.mrb[0].mxu0
    %v2510 = vadd.f32 %v2417, %v2509
    %v2511 = vpop.f32.mrb[0].mxu0
    %v2512 = vpop.f32.mrb[0].mxu0
    %v2513 = vadd.f32 %v2417, %v2512
    %v2514 = vpop.f32.mrb[0].mxu0
    %2515 = vmatprep.mubr.bf16.mxu0 0
    %2516 = vmatmul.mubr.bf16.gmra.mrb[0].mxu0 %v2366
    %v2517 = vpop.f32.mrb[0].mxu0
    %v2518 = vadd.f32 %v2417, %v2517
    %v2519 = vpop.f32.mrb[0].mxu0
    %v2520 = vpop.f32.mrb[0].mxu0
    %v2521 = vadd.f32 %v2417, %v2520
    %v2522 = vpop.f32.mrb[0].mxu0
    %2523 = vmatprep.mubr.bf16.mxu0 0
    %2524 = vmatmul.mubr.bf16.gmra.mrb[0].mxu0 %v2367
    %v2525 = vpop.f32.mrb[0].mxu0
    %v2526 = vadd.f32 %v2417, %v2525
    %v2527 = vpop.f32.mrb[0].mxu0
    %v2528 = vpop.f32.mrb[0].mxu0
    %v2529 = vadd.f32 %v2417, %v2528
    %v2530 = vpop.f32.mrb[0].mxu0
    %2531 = vmatprep.mubr.bf16.mxu0 0
    %2532 = vmatmul.mubr.bf16.gmra.mrb[0].mxu0 %v2368
    %v2533 = vpop.f32.mrb[0].mxu0
    %v2534 = vadd.f32 %v2417, %v2533
    %v2535 = vpop.f32.mrb[0].mxu0
    %v2536 = vpop.f32.mrb[0].mxu0
    %v2537 = vadd.f32 %v2417, %v2536
    %v2538 = vpop.f32.mrb[0].mxu0
    %2539 = vmatprep.mubr.bf16.mxu0 0
    %2540 = vmatmul.mubr.bf16.gmra.mrb[0].mxu0 %v2369
    %v2541 = vpop.f32.mrb[0].mxu0
    %v2542 = vadd.f32 %v2417, %v2541
    %v2543 = vpop.f32.mrb[0].mxu0
    %v2544 = vpop.f32.mrb[0].mxu0
    %v2545 = vadd.f32 %v2417, %v2544
    %v2546 = vpop.f32.mrb[0].mxu0
    %2547 = vmatprep.mubr.bf16.mxu0 0
    %2548 = vmatmul.mubr.bf16.gmra.mrb[0].mxu0 %v2370
    %v2549 = vpop.f32.mrb[0].mxu0
    %v2550 = vadd.f32 %v2417, %v2549
    %v2551 = vpop.f32.mrb[0].mxu0
    %v2552 = vpop.f32.mrb[0].mxu0
    %v2553 = vadd.f32 %v2417, %v2552
    %v2554 = vpop.f32.mrb[0].mxu0
    %2555 = vmatprep.mubr.bf16.mxu0 0
    %2556 = vmatmul.mubr.bf16.gmra.mrb[0].mxu0 %v2371
    %v2557 = vpop.f32.mrb[0].mxu0
    %v2558 = vadd.f32 %v2417, %v2557
    %v2559 = vpop.f32.mrb[0].mxu0
    %v2560 = vpop.f32.mrb[0].mxu0
    %v2561 = vadd.f32 %v2417, %v2560
    %v2562 = vpop.f32.mrb[0].mxu0
    %2563 = vmatprep.mubr.bf16.mxu0 0
    %2564 = vmatmul.mubr.bf16.gmra.mrb[0].mxu0 %v2372
    %v2565 = vpop.f32.mrb[0].mxu0
    %v2566 = vadd.f32 %v2417, %v2565
    %v2567 = vpop.f32.mrb[0].mxu0
    %v2568 = vpop.f32.mrb[0].mxu0
    %v2569 = vadd.f32 %v2417, %v2568
    %v2570 = vpop.f32.mrb[0].mxu0
    %2571 = vmatprep.mubr.bf16.mxu0 0
    %2572 = vmatmul.mubr.bf16.gmra.mrb[0].mxu0 %v2373
    %v2573 = vpop.f32.mrb[0].mxu0
    %v2574 = vadd.f32 %v2417, %v2573
    %v2575 = vpop.f32.mrb[0].mxu0
    %v2576 = vpop.f32.mrb[0].mxu0
    %v2577 = vadd.f32 %v2417, %v2576
    %v2578 = vpop.f32.mrb[0].mxu0
    %2579 = vmatprep.mubr.bf16.mxu0 0
    %2580 = vmatmul.mubr.bf16.gmra.mrb[0].mxu0 %v2374
    %v2581 = vpop.f32.mrb[0].mxu0
    %v2582 = vadd.f32 %v2417, %v2581
    %v2583 = vpop.f32.mrb[0].mxu0
    %v2584 = vpop.f32.mrb[0].mxu0
    %v2585 = vadd.f32 %v2417, %v2584
    %v2586 = vpop.f32.mrb[0].mxu0
    %2587 = vmatprep.mubr.bf16.mxu0 0
    %2588 = vmatmul.mubr.bf16.gmra.mrb[0].mxu0 %v2375
    %v2589 = vpop.f32.mrb[0].mxu0
    %v2590 = vadd.f32 %v2417, %v2589
    %v2591 = vpop.f32.mrb[0].mxu0
    %v2592 = vpop.f32.mrb[0].mxu0
    %v2593 = vadd.f32 %v2417, %v2592
    %v2594 = vpop.f32.mrb[0].mxu0
    %2595 = vmatprep.mubr.bf16.mxu0 0
    %2596 = vmatmul.mubr.bf16.gmra.mrb[0].mxu0 %v2376
    %v2597 = vpop.f32.mrb[0].mxu0
    %v2598 = vadd.f32 %v2417, %v2597
    %v2599 = vpop.f32.mrb[0].mxu0
    %v2600 = vpop.f32.mrb[0].mxu0
    %v2601 = vadd.f32 %v2417, %v2600
    %v2602 = vpop.f32.mrb[0].mxu0
    %2603 = vmatprep.mubr.bf16.mxu0 0
    %2604 = vmatmul.mubr.bf16.gmra.mrb[0].mxu0 %v2377
    %v2605 = vpop.f32.mrb[0].mxu0
    %v2606 = vadd.f32 %v2417, %v2605
    %v2607 = vpop.f32.mrb[0].mxu0
    %v2608 = vpop.f32.mrb[0].mxu0
    %v2609 = vadd.f32 %v2417, %v2608
    %v2610 = vpop.f32.mrb[0].mxu0
    %2611 = vmatprep.mubr.bf16.mxu0 0
    %2612 = vmatmul.mubr.bf16.gmra.mrb[0].mxu0 %v2378
    %v2613 = vpop.f32.mrb[0].mxu0
    %v2614 = vadd.f32 %v2417, %v2613
    %v2615 = vpop.f32.mrb[0].mxu0
    %v2616 = vpop.f32.mrb[0].mxu0
    %v2617 = vadd.f32 %v2417, %v2616
    %v2618 = vpop.f32.mrb[0].mxu0
    %2619 = vmatprep.mubr.bf16.mxu0 0
    %2620 = vmatmul.mubr.bf16.gmra.mrb[0].mxu0 %v2379
    %v2621 = vpop.f32.mrb[0].mxu0
    %v2622 = vadd.f32 %v2417, %v2621
    %v2623 = vpop.f32.mrb[0].mxu0
    %v2624 = vpop.f32.mrb[0].mxu0
    %v2625 = vadd.f32 %v2417, %v2624
    %v2626 = vpop.f32.mrb[0].mxu0
    %2627 = vmatprep.mubr.bf16.mxu0 0
    %2628 = vmatmul.mubr.bf16.gmra.mrb[0].mxu0 %v2380
    %v2629 = vpop.f32.mrb[0].mxu0
    %v2630 = vadd.f32 %v2417, %v2629
    %v2631 = vpop.f32.mrb[0].mxu0
    %v2632 = vpop.f32.mrb[0].mxu0
    %v2633 = vadd.f32 %v2417, %v2632
    %v2634 = vpop.f32.mrb[0].mxu0
    %2635 = vmatprep.mubr.bf16.mxu0 0
    %2636 = vmatmul.mubr.bf16.gmra.mrb[0].mxu0 %v2381
    %v2637 = vpop.f32.mrb[0].mxu0
    %v2638 = vadd.f32 %v2417, %v2637
    %v2639 = vpop.f32.mrb[0].mxu0
    %v2640 = vpop.f32.mrb[0].mxu0
    %v2641 = vadd.f32 %v2417, %v2640
    %v2642 = vpop.f32.mrb[0].mxu0
    %2643 = vmatprep.mubr.bf16.mxu0 0
    %2644 = vmatmul.mubr.bf16.gmra.mrb[0].mxu0 %v2382
    %v2645 = vpop.f32.mrb[0].mxu0
    %v2646 = vadd.f32 %v2417, %v2645
    %v2647 = vpop.f32.mrb[0].mxu0
    %v2648 = vpop.f32.mrb[0].mxu0
    %v2649 = vadd.f32 %v2417, %v2648
    %v2650 = vpop.f32.mrb[0].mxu0
    %2651 = vmatprep.mubr.bf16.mxu0 0
    %2652 = vmatmul.mubr.bf16.gmra.mrb[0].mxu0 %v2383
    %v2653 = vpop.f32.mrb[0].mxu0
    %v2654 = vadd.f32 %v2417, %v2653
    %v2655 = vpop.f32.mrb[0].mxu0
    %v2656 = vpop.f32.mrb[0].mxu0
    %v2657 = vadd.f32 %v2417, %v2656
    %v2658 = vpop.f32.mrb[0].mxu0
    %2659 = vmatprep.mubr.bf16.mxu0 0
    %2660 = vmatmul.mubr.bf16.gmra.mrb[0].mxu0 %v2384
    %v2661 = vpop.f32.mrb[0].mxu0
    %v2662 = vadd.f32 %v2417, %v2661
    %v2663 = vpop.f32.mrb[0].mxu0
    %v2664 = vpop.f32.mrb[0].mxu0
    %v2665 = vadd.f32 %v2417, %v2664
    %v2666 = vpop.f32.mrb[0].mxu0
    %2667 = vmatprep.mubr.bf16.mxu0 0
    %2668 = vmatmul.mubr.bf16.gmra.mrb[0].mxu0 %v2385
    %v2669 = vpop.f32.mrb[0].mxu0
    %v2670 = vadd.f32 %v2417, %v2669
    %v2671 = vpop.f32.mrb[0].mxu0
    %v2672 = vpop.f32.mrb[0].mxu0
    %v2673 = vadd.f32 %v2417, %v2672
    %v2674 = vpop.f32.mrb[0].mxu0
    %2675 = vmatprep.mubr.bf16.mxu0 0
    %2676 = vmatmul.mubr.bf16.gmra.mrb[0].mxu0 %v2386
    %v2677 = vpop.f32.mrb[0].mxu0
    %v2678 = vadd.f32 %v2417, %v2677
    %v2679 = vpop.f32.mrb[0].mxu0
    %v2680 = vpop.f32.mrb[0].mxu0
    %v2681 = vadd.f32 %v2417, %v2680
    %v2682 = vpop.f32.mrb[0].mxu0
    %2683 = vmatprep.mubr.bf16.mxu0 0
    %2684 = vmatmul.mubr.bf16.gmra.mrb[0].mxu0 %v2387
    %v2685 = vpop.f32.mrb[0].mxu0
    %v2686 = vadd.f32 %v2417, %v2685
    %v2687 = vpop.f32.mrb[0].mxu0
    %v2688 = vpop.f32.mrb[0].mxu0
    %v2689 = vadd.f32 %v2417, %v2688
    %v2690 = vpop.f32.mrb[0].mxu0
    %2691 = vmatprep.mubr.bf16.mxu0 0
    %2692 = vmatmul.mubr.bf16.gmra.mrb[0].mxu0 %v2388
    %v2693 = vpop.f32.mrb[0].mxu0
    %v2694 = vadd.f32 %v2417, %v2693
    %v2695 = vpop.f32.mrb[0].mxu0
    %v2696 = vpop.f32.mrb[0].mxu0
    %v2697 = vadd.f32 %v2417, %v2696
    %v2698 = vpop.f32.mrb[0].mxu0
    %2699 = vmatprep.mubr.bf16.mxu0 0
    %2700 = vmatmul.mubr.bf16.gmra.mrb[0].mxu0 %v2389
    %v2701 = vpop.f32.mrb[0].mxu0
    %v2702 = vadd.f32 %v2417, %v2701
    %v2703 = vpop.f32.mrb[0].mxu0
    %v2704 = vpop.f32.mrb[0].mxu0
    %v2705 = vadd.f32 %v2417, %v2704
    %v2706 = vpop.f32.mrb[0].mxu0
    %2707 = vmatprep.mubr.bf16.mxu0 0
    %2708 = vmatmul.mubr.bf16.gmra.mrb[0].mxu0 %v2390
    %v2709 = vpop.f32.mrb[0].mxu0
    %v2710 = vadd.f32 %v2417, %v2709
    %v2711 = vpop.f32.mrb[0].mxu0
    %v2712 = vpop.f32.mrb[0].mxu0
    %v2713 = vadd.f32 %v2417, %v2712
    %v2714 = vpop.f32.mrb[0].mxu0
    %2715 = vmatprep.mubr.bf16.mxu0 0
    %2716 = vmatmul.mubr.bf16.gmra.mrb[0].mxu0 %v2391
    %v2717 = vpop.f32.mrb[0].mxu0
    %v2718 = vadd.f32 %v2417, %v2717
    %v2719 = vpop.f32.mrb[0].mxu0
    %v2720 = vpop.f32.mrb[0].mxu0
    %v2721 = vadd.f32 %v2417, %v2720
    %v2722 = vpop.f32.mrb[0].mxu0
    %2723 = vmatprep.mubr.bf16.mxu0 0
    %2724 = vmatmul.mubr.bf16.gmra.mrb[0].mxu0 %v2392
    %v2725 = vpop.f32.mrb[0].mxu0
    %v2726 = vadd.f32 %v2417, %v2725
    %v2727 = vpop.f32.mrb[0].mxu0
    %v2728 = vpop.f32.mrb[0].mxu0
    %v2729 = vadd.f32 %v2417, %v2728
    %v2730 = vpop.f32.mrb[0].mxu0
    %2731 = vmatprep.mubr.bf16.mxu0 0
    %2732 = vmatmul.mubr.bf16.gmra.mrb[0].mxu0 %v2393
    %v2733 = vpop.f32.mrb[0].mxu0
    %v2734 = vadd.f32 %v2417, %v2733
    %v2735 = vpop.f32.mrb[0].mxu0
    %v2736 = vpop.f32.mrb[0].mxu0
    %v2737 = vadd.f32 %v2417, %v2736
    %v2738 = vpop.f32.mrb[0].mxu0
    %2739 = vmatprep.mubr.bf16.mxu0 0
    %2740 = vmatmul.mubr.bf16.gmra.mrb[0].mxu0 %v2394
    %v2741 = vpop.f32.mrb[0].mxu0
    %v2742 = vadd.f32 %v2417, %v2741
    %v2743 = vpop.f32.mrb[0].mxu0
    %v2744 = vpop.f32.mrb[0].mxu0
    %v2745 = vadd.f32 %v2417, %v2744
    %v2746 = vpop.f32.mrb[0].mxu0
    %2747 = vmatprep.mubr.bf16.mxu0 0
    %2748 = vmatmul.mubr.bf16.gmra.mrb[0].mxu0 %v2395
    %v2749 = vpop.f32.mrb[0].mxu0
    %v2750 = vadd.f32 %v2417, %v2749
    %v2751 = vpop.f32.mrb[0].mxu0
    %v2752 = vpop.f32.mrb[0].mxu0
    %v2753 = vadd.f32 %v2417, %v2752
    %v2754 = vpop.f32.mrb[0].mxu0
    %2755 = vdwg.mxu0
    %v2756 = vsub.f32 0.0, %v2502
    %v2757 = vsub.f32 0.0, %v2505
    %v2758 = vsub.f32 0.0, %v2510
    %v2759 = vsub.f32 0.0, %v2513
    %v2760 = vsub.f32 0.0, %v2518
    %v2761 = vsub.f32 0.0, %v2521
    %v2762 = vsub.f32 0.0, %v2526
    %v2763 = vsub.f32 0.0, %v2529
    %v2764 = vsub.f32 0.0, %v2534
    %v2765 = vsub.f32 0.0, %v2537
    %v2766 = vsub.f32 0.0, %v2542
    %v2767 = vsub.f32 0.0, %v2545
    %v2768 = vsub.f32 0.0, %v2550
    %v2769 = vsub.f32 0.0, %v2553
    %v2770 = vsub.f32 0.0, %v2558
    %v2771 = vsub.f32 0.0, %v2561
    %v2772 = vsub.f32 0.0, %v2566
    %v2773 = vsub.f32 0.0, %v2569
    %v2774 = vsub.f32 0.0, %v2574
    %v2775 = vsub.f32 0.0, %v2577
    %v2776 = vsub.f32 0.0, %v2582
    %v2777 = vsub.f32 0.0, %v2585
    %v2778 = vsub.f32 0.0, %v2590
    %v2779 = vsub.f32 0.0, %v2593
    %v2780 = vsub.f32 0.0, %v2598
    %v2781 = vsub.f32 0.0, %v2601
    %v2782 = vsub.f32 0.0, %v2606
    %v2783 = vsub.f32 0.0, %v2609
    %v2784 = vsub.f32 0.0, %v2614
    %v2785 = vsub.f32 0.0, %v2617
    %v2786 = vsub.f32 0.0, %v2622
    %v2787 = vsub.f32 0.0, %v2625
    %v2788 = vsub.f32 0.0, %v2630
    %v2789 = vsub.f32 0.0, %v2633
    %v2790 = vsub.f32 0.0, %v2638
    %v2791 = vsub.f32 0.0, %v2641
    %v2792 = vsub.f32 0.0, %v2646
    %v2793 = vsub.f32 0.0, %v2649
    %v2794 = vsub.f32 0.0, %v2654
    %v2795 = vsub.f32 0.0, %v2657
    %v2796 = vsub.f32 0.0, %v2662
    %v2797 = vsub.f32 0.0, %v2665
    %v2798 = vsub.f32 0.0, %v2670
    %v2799 = vsub.f32 0.0, %v2673
    %v2800 = vsub.f32 0.0, %v2678
    %v2801 = vsub.f32 0.0, %v2681
    %v2802 = vsub.f32 0.0, %v2686
    %v2803 = vsub.f32 0.0, %v2689
    %v2804 = vsub.f32 0.0, %v2694
    %v2805 = vsub.f32 0.0, %v2697
    %v2806 = vsub.f32 0.0, %v2702
    %v2807 = vsub.f32 0.0, %v2705
    %v2808 = vsub.f32 0.0, %v2710
    %v2809 = vsub.f32 0.0, %v2713
    %v2810 = vsub.f32 0.0, %v2718
    %v2811 = vsub.f32 0.0, %v2721
    %v2812 = vsub.f32 0.0, %v2726
    %v2813 = vsub.f32 0.0, %v2729
    %v2814 = vsub.f32 0.0, %v2734
    %v2815 = vsub.f32 0.0, %v2737
    %v2816 = vsub.f32 0.0, %v2742
    %v2817 = vsub.f32 0.0, %v2745
    %v2818 = vsub.f32 0.0, %v2750
    %v2819 = vsub.f32 0.0, %v2753
    %v2820 = vmul.f32 %v2756, 1.442695
    %v2821 = vpow.pop %v2820
    %v2822 = vmul.f32 %v2757, 1.442695
    %v2823 = vpow.pop %v2822
    %v2824 = vmul.f32 %v2758, 1.442695
    %v2825 = vpow.pop %v2824
    %v2826 = vmul.f32 %v2759, 1.442695
    %v2827 = vpow.pop %v2826
    %v2828 = vmul.f32 %v2760, 1.442695
    %v2829 = vpow.pop %v2828
    %v2830 = vmul.f32 %v2761, 1.442695
    %v2831 = vpow.pop %v2830
    %v2832 = vmul.f32 %v2762, 1.442695
    %v2833 = vpow.pop %v2832
    %v2834 = vmul.f32 %v2763, 1.442695
    %v2835 = vpow.pop %v2834
    %v2836 = vmul.f32 %v2764, 1.442695
    %v2837 = vpow.pop %v2836
    %v2838 = vmul.f32 %v2765, 1.442695
    %v2839 = vpow.pop %v2838
    %v2840 = vmul.f32 %v2766, 1.442695
    %v2841 = vpow.pop %v2840
    %v2842 = vmul.f32 %v2767, 1.442695
    %v2843 = vpow.pop %v2842
    %v2844 = vmul.f32 %v2768, 1.442695
    %v2845 = vpow.pop %v2844
    %v2846 = vmul.f32 %v2769, 1.442695
    %v2847 = vpow.pop %v2846
    %v2848 = vmul.f32 %v2770, 1.442695
    %v2849 = vpow.pop %v2848
    %v2850 = vmul.f32 %v2771, 1.442695
    %v2851 = vpow.pop %v2850
    %v2852 = vmul.f32 %v2772, 1.442695
    %v2853 = vpow.pop %v2852
    %v2854 = vmul.f32 %v2773, 1.442695
    %v2855 = vpow.pop %v2854
    %v2856 = vmul.f32 %v2774, 1.442695
    %v2857 = vpow.pop %v2856
    %v2858 = vmul.f32 %v2775, 1.442695
    %v2859 = vpow.pop %v2858
    %v2860 = vmul.f32 %v2776, 1.442695
    %v2861 = vpow.pop %v2860
    %v2862 = vmul.f32 %v2777, 1.442695
    %v2863 = vpow.pop %v2862
    %v2864 = vmul.f32 %v2778, 1.442695
    %v2865 = vpow.pop %v2864
    %v2866 = vmul.f32 %v2779, 1.442695
    %v2867 = vpow.pop %v2866
    %v2868 = vmul.f32 %v2780, 1.442695
    %v2869 = vpow.pop %v2868
    %v2870 = vmul.f32 %v2781, 1.442695
    %v2871 = vpow.pop %v2870
    %v2872 = vmul.f32 %v2782, 1.442695
    %v2873 = vpow.pop %v2872
    %v2874 = vmul.f32 %v2783, 1.442695
    %v2875 = vpow.pop %v2874
    %v2876 = vmul.f32 %v2784, 1.442695
    %v2877 = vpow.pop %v2876
    %v2878 = vmul.f32 %v2785, 1.442695
    %v2879 = vpow.pop %v2878
    %v2880 = vmul.f32 %v2786, 1.442695
    %v2881 = vpow.pop %v2880
    %v2882 = vmul.f32 %v2787, 1.442695
    %v2883 = vpow.pop %v2882
    %v2884 = vmul.f32 %v2788, 1.442695
    %v2885 = vpow.pop %v2884
    %v2886 = vmul.f32 %v2789, 1.442695
    %v2887 = vpow.pop %v2886
    %v2888 = vmul.f32 %v2790, 1.442695
    %v2889 = vpow.pop %v2888
    %v2890 = vmul.f32 %v2791, 1.442695
    %v2891 = vpow.pop %v2890
    %v2892 = vmul.f32 %v2792, 1.442695
    %v2893 = vpow.pop %v2892
    %v2894 = vmul.f32 %v2793, 1.442695
    %v2895 = vpow.pop %v2894
    %v2896 = vmul.f32 %v2794, 1.442695
    %v2897 = vpow.pop %v2896
    %v2898 = vmul.f32 %v2795, 1.442695
    %v2899 = vpow.pop %v2898
    %v2900 = vmul.f32 %v2796, 1.442695
    %v2901 = vpow.pop %v2900
    %v2902 = vmul.f32 %v2797, 1.442695
    %v2903 = vpow.pop %v2902
    %v2904 = vmul.f32 %v2798, 1.442695
    %v2905 = vpow.pop %v2904
    %v2906 = vmul.f32 %v2799, 1.442695
    %v2907 = vpow.pop %v2906
    %v2908 = vmul.f32 %v2800, 1.442695
    %v2909 = vpow.pop %v2908
    %v2910 = vmul.f32 %v2801, 1.442695
    %v2911 = vpow.pop %v2910
    %v2912 = vmul.f32 %v2802, 1.442695
    %v2913 = vpow.pop %v2912
    %v2914 = vmul.f32 %v2803, 1.442695
    %v2915 = vpow.pop %v2914
    %v2916 = vmul.f32 %v2804, 1.442695
    %v2917 = vpow.pop %v2916
    %v2918 = vmul.f32 %v2805, 1.442695
    %v2919 = vpow.pop %v2918
    %v2920 = vmul.f32 %v2806, 1.442695
    %v2921 = vpow.pop %v2920
    %v2922 = vmul.f32 %v2807, 1.442695
    %v2923 = vpow.pop %v2922
    %v2924 = vmul.f32 %v2808, 1.442695
    %v2925 = vpow.pop %v2924
    %v2926 = vmul.f32 %v2809, 1.442695
    %v2927 = vpow.pop %v2926
    %v2928 = vmul.f32 %v2810, 1.442695
    %v2929 = vpow.pop %v2928
    %v2930 = vmul.f32 %v2811, 1.442695
    %v2931 = vpow.pop %v2930
    %v2932 = vmul.f32 %v2812, 1.442695
    %v2933 = vpow.pop %v2932
    %v2934 = vmul.f32 %v2813, 1.442695
    %v2935 = vpow.pop %v2934
    %v2936 = vmul.f32 %v2814, 1.442695
    %v2937 = vpow.pop %v2936
    %v2938 = vmul.f32 %v2815, 1.442695
    %v2939 = vpow.pop %v2938
    %v2940 = vmul.f32 %v2816, 1.442695
    %v2941 = vpow.pop %v2940
    %v2942 = vmul.f32 %v2817, 1.442695
    %v2943 = vpow.pop %v2942
    %v2944 = vmul.f32 %v2818, 1.442695
    %v2945 = vpow.pop %v2944
    %v2946 = vmul.f32 %v2819, 1.442695
    %v2947 = vpow.pop %v2946
    %v2948 = vadd.f32 %v2821, 1.0
    %v2949 = vadd.f32 %v2823, 1.0
    %v2950 = vadd.f32 %v2825, 1.0
    %v2951 = vadd.f32 %v2827, 1.0
    %v2952 = vadd.f32 %v2829, 1.0
    %v2953 = vadd.f32 %v2831, 1.0
    %v2954 = vadd.f32 %v2833, 1.0
    %v2955 = vadd.f32 %v2835, 1.0
    %v2956 = vadd.f32 %v2837, 1.0
    %v2957 = vadd.f32 %v2839, 1.0
    %v2958 = vadd.f32 %v2841, 1.0
    %v2959 = vadd.f32 %v2843, 1.0
    %v2960 = vadd.f32 %v2845, 1.0
    %v2961 = vadd.f32 %v2847, 1.0
    %v2962 = vadd.f32 %v2849, 1.0
    %v2963 = vadd.f32 %v2851, 1.0
    %v2964 = vadd.f32 %v2853, 1.0
    %v2965 = vadd.f32 %v2855, 1.0
    %v2966 = vadd.f32 %v2857, 1.0
    %v2967 = vadd.f32 %v2859, 1.0
    %v2968 = vadd.f32 %v2861, 1.0
    %v2969 = vadd.f32 %v2863, 1.0
    %v2970 = vadd.f32 %v2865, 1.0
    %v2971 = vadd.f32 %v2867, 1.0
    %v2972 = vadd.f32 %v2869, 1.0
    %v2973 = vadd.f32 %v2871, 1.0
    %v2974 = vadd.f32 %v2873, 1.0
    %v2975 = vadd.f32 %v2875, 1.0
    %v2976 = vadd.f32 %v2877, 1.0
    %v2977 = vadd.f32 %v2879, 1.0
    %v2978 = vadd.f32 %v2881, 1.0
    %v2979 = vadd.f32 %v2883, 1.0
    %v2980 = vadd.f32 %v2885, 1.0
    %v2981 = vadd.f32 %v2887, 1.0
    %v2982 = vadd.f32 %v2889, 1.0
    %v2983 = vadd.f32 %v2891, 1.0
    %v2984 = vadd.f32 %v2893, 1.0
    %v2985 = vadd.f32 %v2895, 1.0
    %v2986 = vadd.f32 %v2897, 1.0
    %v2987 = vadd.f32 %v2899, 1.0
    %v2988 = vadd.f32 %v2901, 1.0
    %v2989 = vadd.f32 %v2903, 1.0
    %v2990 = vadd.f32 %v2905, 1.0
    %v2991 = vadd.f32 %v2907, 1.0
    %v2992 = vadd.f32 %v2909, 1.0
    %v2993 = vadd.f32 %v2911, 1.0
    %v2994 = vadd.f32 %v2913, 1.0
    %v2995 = vadd.f32 %v2915, 1.0
    %v2996 = vadd.f32 %v2917, 1.0
    %v2997 = vadd.f32 %v2919, 1.0
    %v2998 = vadd.f32 %v2921, 1.0
    %v2999 = vadd.f32 %v2923, 1.0
    %v3000 = vadd.f32 %v2925, 1.0
    %v3001 = vadd.f32 %v2927, 1.0
    %v3002 = vadd.f32 %v2929, 1.0
    %v3003 = vadd.f32 %v2931, 1.0
    %v3004 = vadd.f32 %v2933, 1.0
    %v3005 = vadd.f32 %v2935, 1.0
    %v3006 = vadd.f32 %v2937, 1.0
    %v3007 = vadd.f32 %v2939, 1.0
    %v3008 = vadd.f32 %v2941, 1.0
    %v3009 = vadd.f32 %v2943, 1.0
    %v3010 = vadd.f32 %v2945, 1.0
    %v3011 = vadd.f32 %v2947, 1.0
    %v3012 = vrcp.pop %v2948
    %v3013 = vrcp.pop %v2949
    %v3014 = vrcp.pop %v2950
    %v3015 = vrcp.pop %v2951
    %v3016 = vrcp.pop %v2952
    %v3017 = vrcp.pop %v2953
    %v3018 = vrcp.pop %v2954
    %v3019 = vrcp.pop %v2955
    %v3020 = vrcp.pop %v2956
    %v3021 = vrcp.pop %v2957
    %v3022 = vrcp.pop %v2958
    %v3023 = vrcp.pop %v2959
    %v3024 = vrcp.pop %v2960
    %v3025 = vrcp.pop %v2961
    %v3026 = vrcp.pop %v2962
    %v3027 = vrcp.pop %v2963
    %v3028 = vrcp.pop %v2964
    %v3029 = vrcp.pop %v2965
    %v3030 = vrcp.pop %v2966
    %v3031 = vrcp.pop %v2967
    %v3032 = vrcp.pop %v2968
    %v3033 = vrcp.pop %v2969
    %v3034 = vrcp.pop %v2970
    %v3035 = vrcp.pop %v2971
    %v3036 = vrcp.pop %v2972
    %v3037 = vrcp.pop %v2973
    %v3038 = vrcp.pop %v2974
    %v3039 = vrcp.pop %v2975
    %v3040 = vrcp.pop %v2976
    %v3041 = vrcp.pop %v2977
    %v3042 = vrcp.pop %v2978
    %v3043 = vrcp.pop %v2979
    %v3044 = vrcp.pop %v2980
    %v3045 = vrcp.pop %v2981
    %v3046 = vrcp.pop %v2982
    %v3047 = vrcp.pop %v2983
    %v3048 = vrcp.pop %v2984
    %v3049 = vrcp.pop %v2985
    %v3050 = vrcp.pop %v2986
    %v3051 = vrcp.pop %v2987
    %v3052 = vrcp.pop %v2988
    %v3053 = vrcp.pop %v2989
    %v3054 = vrcp.pop %v2990
    %v3055 = vrcp.pop %v2991
    %v3056 = vrcp.pop %v2992
    %v3057 = vrcp.pop %v2993
    %v3058 = vrcp.pop %v2994
    %v3059 = vrcp.pop %v2995
    %v3060 = vrcp.pop %v2996
    %v3061 = vrcp.pop %v2997
    %v3062 = vrcp.pop %v2998
    %v3063 = vrcp.pop %v2999
    %v3064 = vrcp.pop %v3000
    %v3065 = vrcp.pop %v3001
    %v3066 = vrcp.pop %v3002
    %v3067 = vrcp.pop %v3003
    %v3068 = vrcp.pop %v3004
    %v3069 = vrcp.pop %v3005
    %v3070 = vrcp.pop %v3006
    %v3071 = vrcp.pop %v3007
    %v3072 = vrcp.pop %v3008
    %v3073 = vrcp.pop %v3009
    %v3074 = vrcp.pop %v3010
    %v3075 = vrcp.pop %v3011
    %v3076 = vmul.f32 %v2300, %v3012
    %v3077 = vmul.f32 %v2301, %v3013
    %v3078 = vmul.f32 %v2302, %v3014
    %v3079 = vmul.f32 %v2303, %v3015
    %v3080 = vmul.f32 %v2304, %v3016
    %v3081 = vmul.f32 %v2305, %v3017
    %v3082 = vmul.f32 %v2306, %v3018
    %v3083 = vmul.f32 %v2307, %v3019
    %v3084 = vmul.f32 %v2308, %v3020
    %v3085 = vmul.f32 %v2309, %v3021
    %v3086 = vmul.f32 %v2310, %v3022
    %v3087 = vmul.f32 %v2311, %v3023
    %v3088 = vmul.f32 %v2312, %v3024
    %v3089 = vmul.f32 %v2313, %v3025
    %v3090 = vmul.f32 %v2314, %v3026
    %v3091 = vmul.f32 %v2315, %v3027
    %v3092 = vmul.f32 %v2316, %v3028
    %v3093 = vmul.f32 %v2317, %v3029
    %v3094 = vmul.f32 %v2318, %v3030
    %v3095 = vmul.f32 %v2319, %v3031
    %v3096 = vmul.f32 %v2320, %v3032
    %v3097 = vmul.f32 %v2321, %v3033
    %v3098 = vmul.f32 %v2322, %v3034
    %v3099 = vmul.f32 %v2323, %v3035
    %v3100 = vmul.f32 %v2324, %v3036
    %v3101 = vmul.f32 %v2325, %v3037
    %v3102 = vmul.f32 %v2326, %v3038
    %v3103 = vmul.f32 %v2327, %v3039
    %v3104 = vmul.f32 %v2328, %v3040
    %v3105 = vmul.f32 %v2329, %v3041
    %v3106 = vmul.f32 %v2330, %v3042
    %v3107 = vmul.f32 %v2331, %v3043
    %v3108 = vmul.f32 %v2332, %v3044
    %v3109 = vmul.f32 %v2333, %v3045
    %v3110 = vmul.f32 %v2334, %v3046
    %v3111 = vmul.f32 %v2335, %v3047
    %v3112 = vmul.f32 %v2336, %v3048
    %v3113 = vmul.f32 %v2337, %v3049
    %v3114 = vmul.f32 %v2338, %v3050
    %v3115 = vmul.f32 %v2339, %v3051
    %v3116 = vmul.f32 %v2340, %v3052
    %v3117 = vmul.f32 %v2341, %v3053
    %v3118 = vmul.f32 %v2342, %v3054
    %v3119 = vmul.f32 %v2343, %v3055
    %v3120 = vmul.f32 %v2344, %v3056
    %v3121 = vmul.f32 %v2345, %v3057
    %v3122 = vmul.f32 %v2346, %v3058
    %v3123 = vmul.f32 %v2347, %v3059
    %v3124 = vmul.f32 %v2348, %v3060
    %v3125 = vmul.f32 %v2349, %v3061
    %v3126 = vmul.f32 %v2350, %v3062
    %v3127 = vmul.f32 %v2351, %v3063
    %v3128 = vmul.f32 %v2352, %v3064
    %v3129 = vmul.f32 %v2353, %v3065
    %v3130 = vmul.f32 %v2354, %v3066
    %v3131 = vmul.f32 %v2355, %v3067
    %v3132 = vmul.f32 %v2356, %v3068
    %v3133 = vmul.f32 %v2357, %v3069
    %v3134 = vmul.f32 %v2358, %v3070
    %v3135 = vmul.f32 %v2359, %v3071
    %v3136 = vmul.f32 %v2360, %v3072
    %v3137 = vmul.f32 %v2361, %v3073
    %v3138 = vmul.f32 %v2362, %v3074
    %v3139 = vmul.f32 %v2363, %v3075
    %v3140 = vpack.c.bf16 %v3077, %v3076
    %v3141 = vpack.c.bf16 %v3079, %v3078
    %v3142 = vpack.c.bf16 %v3081, %v3080
    %v3143 = vpack.c.bf16 %v3083, %v3082
    %v3144 = vpack.c.bf16 %v3085, %v3084
    %v3145 = vpack.c.bf16 %v3087, %v3086
    %v3146 = vpack.c.bf16 %v3089, %v3088
    %v3147 = vpack.c.bf16 %v3091, %v3090
    %v3148 = vpack.c.bf16 %v3093, %v3092
    %v3149 = vpack.c.bf16 %v3095, %v3094
    %v3150 = vpack.c.bf16 %v3097, %v3096
    %v3151 = vpack.c.bf16 %v3099, %v3098
    %v3152 = vpack.c.bf16 %v3101, %v3100
    %v3153 = vpack.c.bf16 %v3103, %v3102
    %v3154 = vpack.c.bf16 %v3105, %v3104
    %v3155 = vpack.c.bf16 %v3107, %v3106
    %v3156 = vpack.c.bf16 %v3109, %v3108
    %v3157 = vpack.c.bf16 %v3111, %v3110
    %v3158 = vpack.c.bf16 %v3113, %v3112
    %v3159 = vpack.c.bf16 %v3115, %v3114
    %v3160 = vpack.c.bf16 %v3117, %v3116
    %v3161 = vpack.c.bf16 %v3119, %v3118
    %v3162 = vpack.c.bf16 %v3121, %v3120
    %v3163 = vpack.c.bf16 %v3123, %v3122
    %v3164 = vpack.c.bf16 %v3125, %v3124
    %v3165 = vpack.c.bf16 %v3127, %v3126
    %v3166 = vpack.c.bf16 %v3129, %v3128
    %v3167 = vpack.c.bf16 %v3131, %v3130
    %v3168 = vpack.c.bf16 %v3133, %v3132
    %v3169 = vpack.c.bf16 %v3135, %v3134
    %v3170 = vpack.c.bf16 %v3137, %v3136
    %v3171 = vpack.c.bf16 %v3139, %v3138
    %v3172 = vlaneseq
    %v3173 = vshrl.u32 %v3172, 7
    %v3174 = vadd.s32 %v3173, 8
    %v3175 = vadd.s32 %v3173, 16
    %v3176 = vadd.s32 %v3173, 24
    %v3177 = vadd.s32 %v3173, 32
    %v3178 = vld [vmem:[%s0] sm:$0xf]
    %v3179 = vlaneseq
    %v3180 = vshrl.u32 %v3179, 7
    %v3181 = vsub.s32 0, %v3180
    %v3182 = vrot.slane %v3178, %v3181
    %v3183 = vlaneseq
    %v3184 = vshrl.u32 %v3183, 7
    %v3185 = vsub.s32 1, %v3184
    %v3186 = vrot.slane %v3178, %v3185
    %v3187 = vlaneseq
    %v3188 = vshrl.u32 %v3187, 7
    %v3189 = vsub.s32 2, %v3188
    %v3190 = vrot.slane %v3178, %v3189
    %v3191 = vlaneseq
    %v3192 = vshrl.u32 %v3191, 7
    %v3193 = vsub.s32 3, %v3192
    %v3194 = vrot.slane %v3178, %v3193
    %vm3195 = vcmp.eq.s32.totalorder %v3182, %v3173
    %vm3196 = vcmp.eq.s32.totalorder %v3186, %v3173
    %vm3197 = vcmp.eq.s32.totalorder %v3190, %v3173
    %vm3198 = vcmp.eq.s32.totalorder %v3194, %v3173
    %vm3199 = vcmp.eq.s32.totalorder %v3182, %v3174
    %vm3200 = vcmp.eq.s32.totalorder %v3186, %v3174
    %vm3201 = vcmp.eq.s32.totalorder %v3190, %v3174
    %vm3202 = vcmp.eq.s32.totalorder %v3194, %v3174
    %vm3203 = vcmp.eq.s32.totalorder %v3182, %v3175
    %vm3204 = vcmp.eq.s32.totalorder %v3186, %v3175
    %vm3205 = vcmp.eq.s32.totalorder %v3190, %v3175
    %vm3206 = vcmp.eq.s32.totalorder %v3194, %v3175
    %vm3207 = vcmp.eq.s32.totalorder %v3182, %v3176
    %vm3208 = vcmp.eq.s32.totalorder %v3186, %v3176
    %vm3209 = vcmp.eq.s32.totalorder %v3190, %v3176
    %vm3210 = vcmp.eq.s32.totalorder %v3194, %v3176
    %vm3211 = vcmp.eq.s32.totalorder %v3182, %v3177
    %vm3212 = vcmp.eq.s32.totalorder %v3186, %v3177
    %vm3213 = vcmp.eq.s32.totalorder %v3190, %v3177
    %vm3214 = vcmp.eq.s32.totalorder %v3194, %v3177
    %v3215 = vsel %vm3195, 1, 0
    %v3216 = vsel %vm3196, 1, 0
    %v3217 = vsel %vm3197, 1, 0
    %v3218 = vsel %vm3198, 1, 0
    %v3219 = vsel %vm3199, 1, 0
    %v3220 = vsel %vm3200, 1, 0
    %v3221 = vsel %vm3201, 1, 0
    %v3222 = vsel %vm3202, 1, 0
    %v3223 = vsel %vm3203, 1, 0
    %v3224 = vsel %vm3204, 1, 0
    %v3225 = vsel %vm3205, 1, 0
    %v3226 = vsel %vm3206, 1, 0
    %v3227 = vsel %vm3207, 1, 0
    %v3228 = vsel %vm3208, 1, 0
    %v3229 = vsel %vm3209, 1, 0
    %v3230 = vsel %vm3210, 1, 0
    %v3231 = vsel %vm3211, 1, 0
    %v3232 = vsel %vm3212, 1, 0
    %v3233 = vsel %vm3213, 1, 0
    %v3234 = vsel %vm3214, 1, 0
    %v3235 = vcvt.s32.f32 %v3215
    %v3236 = vcvt.s32.f32 %v3216
    %v3237 = vcvt.s32.f32 %v3217
    %v3238 = vcvt.s32.f32 %v3218
    %v3239 = vcvt.s32.f32 %v3219
    %v3240 = vcvt.s32.f32 %v3220
    %v3241 = vcvt.s32.f32 %v3221
    %v3242 = vcvt.s32.f32 %v3222
    %v3243 = vcvt.s32.f32 %v3223
    %v3244 = vcvt.s32.f32 %v3224
    %v3245 = vcvt.s32.f32 %v3225
    %v3246 = vcvt.s32.f32 %v3226
    %v3247 = vcvt.s32.f32 %v3227
    %v3248 = vcvt.s32.f32 %v3228
    %v3249 = vcvt.s32.f32 %v3229
    %v3250 = vcvt.s32.f32 %v3230
    %v3251 = vcvt.s32.f32 %v3231
    %v3252 = vcvt.s32.f32 %v3232
    %v3253 = vcvt.s32.f32 %v3233
    %v3254 = vcvt.s32.f32 %v3234
    %v3255 = vpack.c.bf16 %v3239, %v3235
    %v3256 = vpack.c.bf16 %v3240, %v3236
    %v3257 = vpack.c.bf16 %v3241, %v3237
    %v3258 = vpack.c.bf16 %v3242, %v3238
    %v3259 = vpack.c.bf16 %v3247, %v3243
    %v3260 = vpack.c.bf16 %v3248, %v3244
    %v3261 = vpack.c.bf16 %v3249, %v3245
    %v3262 = vpack.c.bf16 %v3250, %v3246
    %v3263 = vpack.c.bf16 %v3251, %v3251
    %v3264 = vpack.c.bf16 %v3252, %v3252
    %v3265 = vpack.c.bf16 %v3253, %v3253
    %v3266 = vpack.c.bf16 %v3254, %v3254
    %v3267 = vld [vmem:[#allocation10] sm:$0xff]
    %v3268 = vld [vmem:[#allocation10 + $0x8] sm:$0xff]
    %v3269 = vld [vmem:[#allocation10 + $0x10] sm:$0xff]
    %v3270 = vld [vmem:[#allocation10 + $0x18] sm:$0xff]
    %v3271 = vld [vmem:[#allocation10 + $0x20] sm:$0xff]
    %3272 = vmatprep.subr.bf16.mxu0 0
    %3273 = vmatpush1.bf16.msra.mxu0 %v3140
    %3274 = vmatprep.subr.bf16.mxu0 0
    %3275 = vmatpush1.bf16.msra.mxu0 %v3141
    %3276 = vmatprep.subr.bf16.mxu0 0
    %3277 = vmatpush1.bf16.msra.mxu0 %v3142
    %3278 = vmatprep.subr.bf16.mxu0 0
    %3279 = vmatpush1.bf16.msra.mxu0 %v3143
    %3280 = vmatprep.subr.bf16.mxu0 0
    %3281 = vmatpush1.bf16.msra.mxu0 %v3144
    %3282 = vmatprep.subr.bf16.mxu0 0
    %3283 = vmatpush1.bf16.msra.mxu0 %v3145
    %3284 = vmatprep.subr.bf16.mxu0 0
    %3285 = vmatpush1.bf16.msra.mxu0 %v3146
    %3286 = vmatprep.subr.bf16.mxu0 0
    %3287 = vmatpush1.bf16.msra.mxu0 %v3147
    %3288 = vmatprep.subr.bf16.mxu0 0
    %3289 = vmatpush1.bf16.msra.mxu0 %v3148
    %3290 = vmatprep.subr.bf16.mxu0 0
    %3291 = vmatpush1.bf16.msra.mxu0 %v3149
    %3292 = vmatprep.subr.bf16.mxu0 0
    %3293 = vmatpush1.bf16.msra.mxu0 %v3150
    %3294 = vmatprep.subr.bf16.mxu0 0
    %3295 = vmatpush1.bf16.msra.mxu0 %v3151
    %3296 = vmatprep.subr.bf16.mxu0 0
    %3297 = vmatpush1.bf16.msra.mxu0 %v3152
    %3298 = vmatprep.subr.bf16.mxu0 0
    %3299 = vmatpush1.bf16.msra.mxu0 %v3153
    %3300 = vmatprep.subr.bf16.mxu0 0
    %3301 = vmatpush1.bf16.msra.mxu0 %v3154
    %3302 = vmatprep.subr.bf16.mxu0 0
    %3303 = vmatpush1.bf16.msra.mxu0 %v3155
    %3304 = vmatprep.mubr.bf16.mxu0 %v3256
    %3305 = vmatmul.mubr.bf16.gmra.mrb[0].mxu0 %v3255
    %v3306 = vpop.f32.mrb[0].mxu0
    %v3307 = vadd.f32 0.0, %v3306
    %v3308 = vpop.f32.mrb[0].mxu0
    %v3309 = vpop.f32.mrb[0].mxu0
    %v3310 = vadd.f32 0.0, %v3309
    %v3311 = vpop.f32.mrb[0].mxu0
    %3312 = vmatprep.mubr.bf16.mxu0 %v3260
    %3313 = vmatmul.mubr.bf16.gmra.mrb[0].mxu0 %v3259
    %v3314 = vpop.f32.mrb[0].mxu0
    %v3315 = vadd.f32 0.0, %v3314
    %v3316 = vpop.f32.mrb[0].mxu0
    %v3317 = vpop.f32.mrb[0].mxu0
    %v3318 = vadd.f32 0.0, %v3317
    %v3319 = vpop.f32.mrb[0].mxu0
    %3320 = vmatprep.mubr.bf16.mxu0 %v3264
    %3321 = vmatmul.mubr.bf16.gmra.mrb[0].mxu0 %v3263
    %v3322 = vpop.f32.mrb[0].mxu0
    %v3323 = vadd.f32 0.0, %v3322
    %v3324 = vpop.f32.mrb[0].mxu0
    %v3325 = vpop.f32.mrb[0].mxu0
    %v3326 = vpop.f32.mrb[0].mxu0
    %3327 = vdwg.mxu0
    %3328 = vmatprep.subr.bf16.mxu0 0
    %3329 = vmatpush1.bf16.msra.mxu0 %v3156
    %3330 = vmatprep.subr.bf16.mxu0 0
    %3331 = vmatpush1.bf16.msra.mxu0 %v3157
    %3332 = vmatprep.subr.bf16.mxu0 0
    %3333 = vmatpush1.bf16.msra.mxu0 %v3158
    %3334 = vmatprep.subr.bf16.mxu0 0
    %3335 = vmatpush1.bf16.msra.mxu0 %v3159
    %3336 = vmatprep.subr.bf16.mxu0 0
    %3337 = vmatpush1.bf16.msra.mxu0 %v3160
    %3338 = vmatprep.subr.bf16.mxu0 0
    %3339 = vmatpush1.bf16.msra.mxu0 %v3161
    %3340 = vmatprep.subr.bf16.mxu0 0
    %3341 = vmatpush1.bf16.msra.mxu0 %v3162
    %3342 = vmatprep.subr.bf16.mxu0 0
    %3343 = vmatpush1.bf16.msra.mxu0 %v3163
    %3344 = vmatprep.subr.bf16.mxu0 0
    %3345 = vmatpush1.bf16.msra.mxu0 %v3164
    %3346 = vmatprep.subr.bf16.mxu0 0
    %3347 = vmatpush1.bf16.msra.mxu0 %v3165
    %3348 = vmatprep.subr.bf16.mxu0 0
    %3349 = vmatpush1.bf16.msra.mxu0 %v3166
    %3350 = vmatprep.subr.bf16.mxu0 0
    %3351 = vmatpush1.bf16.msra.mxu0 %v3167
    %3352 = vmatprep.subr.bf16.mxu0 0
    %3353 = vmatpush1.bf16.msra.mxu0 %v3168
    %3354 = vmatprep.subr.bf16.mxu0 0
    %3355 = vmatpush1.bf16.msra.mxu0 %v3169
    %3356 = vmatprep.subr.bf16.mxu0 0
    %3357 = vmatpush1.bf16.msra.mxu0 %v3170
    %3358 = vmatprep.subr.bf16.mxu0 0
    %3359 = vmatpush1.bf16.msra.mxu0 %v3171
    %3360 = vmatprep.mubr.bf16.mxu0 %v3258
    %3361 = vmatmul.mubr.bf16.gmra.mrb[0].mxu0 %v3257
    %v3362 = vpop.f32.mrb[0].mxu0
    %v3363 = vadd.f32 %v3307, %v3362
    %v3364 = vpop.f32.mrb[0].mxu0
    %v3365 = vpop.f32.mrb[0].mxu0
    %v3366 = vadd.f32 %v3310, %v3365
    %v3367 = vpop.f32.mrb[0].mxu0
    %3368 = vmatprep.mubr.bf16.mxu0 %v3262
    %3369 = vmatmul.mubr.bf16.gmra.mrb[0].mxu0 %v3261
    %v3370 = vpop.f32.mrb[0].mxu0
    %v3371 = vadd.f32 %v3315, %v3370
    %v3372 = vpop.f32.mrb[0].mxu0
    %v3373 = vpop.f32.mrb[0].mxu0
    %v3374 = vadd.f32 %v3318, %v3373
    %v3375 = vpop.f32.mrb[0].mxu0
    %3376 = vmatprep.mubr.bf16.mxu0 %v3266
    %3377 = vmatmul.mubr.bf16.gmra.mrb[0].mxu0 %v3265
    %v3378 = vpop.f32.mrb[0].mxu0
    %v3379 = vadd.f32 %v3323, %v3378
    %v3380 = vpop.f32.mrb[0].mxu0
    %v3381 = vpop.f32.mrb[0].mxu0
    %v3382 = vpop.f32.mrb[0].mxu0
    %3383 = vdwg.mxu0
    %v3384 = vadd.f32 %v3267, %v3363
    %v3385 = vadd.f32 %v3268, %v3366
    %v3386 = vadd.f32 %v3269, %v3371
    %v3387 = vadd.f32 %v3270, %v3374
    %v3388 = vadd.f32 %v3271, %v3379
    %3389 = vst [vmem:[#allocation10] sm:$0xff] %v3384
    %3390 = vst [vmem:[#allocation10 + $0x8] sm:$0xff] %v3385
    %3391 = vst [vmem:[#allocation10 + $0x10] sm:$0xff] %v3386
    %3392 = vst [vmem:[#allocation10 + $0x18] sm:$0xff] %v3387
    %3393 = vst [vmem:[#allocation10 + $0x20] sm:$0xff] %v3388
    // Predicated region
    $region58: #{tpu_custom_call.1} parent=1 // pred_check
      _
    $region59: #{tpu_custom_call.1} parent=1 // pred_check_branch
      %3395 = sbr.rel (0) target = $region61
    $region60: #{tpu_custom_call.1} parent=1 // pred_region
      %s3397 = ssub.s32 640, 640
      %3398 = vsyncadd [#allocation4], %s3397
      %s3399 = sshll.u32 [#allocation10], 4
      %s3400 = int_to_ptr.vmem [resolvable:$true] %s3399
      %3405 = dma.vmem_to_hbm [thread:$0]  %s3400, 640, %s9, [#allocation4], 128, 128, 8
    $region61: #{tpu_custom_call.1} parent=1 // pred_fallthru
      _
    // Predicated region
    $region62: #{tpu_custom_call.1} parent=1 // pred_check
      _
    $region63: #{tpu_custom_call.1} parent=1 // pred_check_branch
      %3407 = sbr.rel (0) target = $region65
    $region64: #{tpu_custom_call.1} parent=1 // pred_region
      %3408 = dma.done [#allocation4], 640
    $region65: #{tpu_custom_call.1} parent=1 // pred_fallthru
      _
    %3409 = vsyncpa [#allocation3], 1
    %3410 = vsyncpa [#allocation6], 1
    %3411 = vsyncpa [#allocation9], 1
    %3412 = vsyncpa [#allocation4], 1

</llo_original>
